<compile_context>
chip_gen: v7x
topology: tpu7x:2x2x1
jax: 0.10.0
libtpu: 0.0.40
codegen_flags: <defaults>
</compile_context>

<pallas_src>
import jax
import jax.numpy as jnp
import numpy as np
from jax import lax
from jax.experimental import pallas as pl
from jax.experimental.pallas import tpu as pltpu


def _convgru_kernel(hx_ref, wpack_ref, wqh_ref, b_ref, out_ref, rh_pad_ref):
    # hx_ref    : (N, H+2, W+2, Cin)  zero-padded concat([h, x]), NHWC, bf16
    # wpack_ref : (9*Cin, 3*Ch)       im2col-packed [wz | wr | wq_x(h-rows=0)], bf16
    # wqh_ref   : (9*Ch, Ch)          im2col-packed wq rows acting on r*h, bf16
    # b_ref     : (1, 3*Ch)           [bz | br | bq], f32
    # out_ref   : (N, H, W, Ch)       new hidden state, f32
    # rh_pad_ref: (N, H+2, W+2, Ch)   VMEM scratch holding zero-padded r*h, f32
    N, H, W, Ch = out_ref.shape
    Cin = hx_ref.shape[-1]
    M = N * H * W
    dims2d = (((1,), (0,)), ((), ()))          # (M,K) x (K,N) contraction

    hx = hx_ref[...]                           # (N, H+2, W+2, Cin) bf16
    # f32 hidden state for the r*h product and the final GRU update.
    h = hx[:, 1:H + 1, 1:W + 1, :Ch].astype(jnp.float32).reshape(M, Ch)

    # --- conv_z / conv_r / conv_q(x-part) as ONE matmul (taps folded into K) ---
    # Hoist the 3 sublane (dx) shifts; dy shifts are cheap outer-dim slices.
    hx_dx = [hx[:, :, dx:dx + W, :] for dx in range(3)]
    cols = [hx_dx[dx][:, dy:dy + H].reshape(M, Cin)        # tap order t = dy*3+dx
            for dy in range(3) for dx in range(3)]
    lhs1 = jnp.concatenate(cols, axis=1)                   # (M, 9*Cin) bf16

    acc = lax.dot_general(lhs1, wpack_ref[...], dims2d,
                          preferred_element_type=jnp.float32)  # (M, 3*Ch) f32
    acc = acc + b_ref[...]                                 # single bias add

    zr = jax.nn.sigmoid(acc[:, :2 * Ch])                   # one dispatch for z|r
    z = zr[:, :Ch]
    r = zr[:, Ch:]
    qx = acc[:, 2 * Ch:]                                   # x-contribution to q (incl. bq)

    # --- conv_q(r*h): pad r*h via f32 VMEM scratch, zero only the border ring ---
    rh_pad_ref[:, 0:1, :, :] = jnp.zeros((N, 1, W + 2, Ch), jnp.float32)
    rh_pad_ref[:, H + 1:H + 2, :, :] = jnp.zeros((N, 1, W + 2, Ch), jnp.float32)
    rh_pad_ref[:, :, 0:1, :] = jnp.zeros((N, H + 2, 1, Ch), jnp.float32)
    rh_pad_ref[:, :, W + 1:W + 2, :] = jnp.zeros((N, H + 2, 1, Ch), jnp.float32)
    rh_pad_ref[:, 1:H + 1, 1:W + 1, :] = (r * h).reshape(N, H, W, Ch)

    rhp = rh_pad_ref[...].astype(jnp.bfloat16)             # one cast of the slab
    rhp_dx = [rhp[:, :, dx:dx + W, :] for dx in range(3)]
    cols2 = [rhp_dx[dx][:, dy:dy + H].reshape(M, Ch)
             for dy in range(3) for dx in range(3)]
    lhs2 = jnp.concatenate(cols2, axis=1)                  # (M, 9*Ch) bf16

    qh = lax.dot_general(lhs2, wqh_ref[...], dims2d,
                         preferred_element_type=jnp.float32)   # (M, Ch) f32
    q = jnp.tanh(qx + qh)

    # --- GRU state update ---
    h_new = (1.0 - z) * h + z * q
    out_ref[...] = h_new.reshape(N, H, W, Ch).astype(out_ref.dtype)


def conv_gru_pallas(h_nchw, x_nchw, wz, bz, wr, br, wq, bq):
    """h_nchw: (N, Ch, H, W), x_nchw: (N, Cx, H, W).
    Conv weights are HWIO: wz/wr/wq: (3, 3, Ch+Cx, Ch); biases: (Ch,)."""
    N, Ch, H, W = h_nchw.shape
    Cx = x_nchw.shape[1]
    Cin = Ch + Cx

    h = jnp.transpose(h_nchw, (0, 2, 3, 1)).astype(jnp.float32)   # NHWC
    x = jnp.transpose(x_nchw, (0, 2, 3, 1)).astype(jnp.float32)   # NHWC
    # Zero-padded concat([h, x]), DMA'd once per call as bf16.
    hx_pad = jnp.pad(jnp.concatenate([h, x], axis=-1),
                     ((0, 0), (1, 1), (1, 1), (0, 0))).astype(jnp.bfloat16)

    # Per-tap weight matrices packed for the im2col contraction:
    # row index k = t*Cin + c, tap t = dy*3 + dx (matching the HWIO reshape).
    wz9 = wz.reshape(9, Cin, Ch)
    wr9 = wr.reshape(9, Cin, Ch)
    wq9 = wq.reshape(9, Cin, Ch)
    wqx9 = wq9.at[:, :Ch, :].set(0.0)               # x-only contribution to q
    w_pack = jnp.concatenate([wz9, wr9, wqx9], axis=-1)        # (9, Cin, 3*Ch)
    w_pack = w_pack.reshape(9 * Cin, 3 * Ch).astype(jnp.bfloat16)
    wqh = wq9[:, :Ch, :].reshape(9 * Ch, Ch).astype(jnp.bfloat16)   # acts on r*h
    b_pack = jnp.concatenate([bz, br, bq]).reshape(1, 3 * Ch).astype(jnp.float32)

    out_nhwc = pl.pallas_call(
        _convgru_kernel,
        out_shape=jax.ShapeDtypeStruct((N, H, W, Ch), jnp.float32),
        grid_spec=pltpu.PrefetchScalarGridSpec(
            num_scalar_prefetch=0,
            grid=(1,),                              # whole batch in one step
            in_specs=[
                pl.BlockSpec((N, H + 2, W + 2, Cin), lambda i: (0, 0, 0, 0)),
                pl.BlockSpec((9 * Cin, 3 * Ch), lambda i: (0, 0)),
                pl.BlockSpec((9 * Ch, Ch), lambda i: (0, 0)),
                pl.BlockSpec((1, 3 * Ch), lambda i: (0, 0)),
            ],
            out_specs=pl.BlockSpec((N, H, W, Ch), lambda i: (0, 0, 0, 0)),
            scratch_shapes=[pltpu.VMEM((N, H + 2, W + 2, Ch), jnp.float32)],
        ),
        compiler_params=pltpu.CompilerParams(
            dimension_semantics=("arbitrary",)),
    )(hx_pad, w_pack, wqh, b_pack)

    return jnp.transpose(out_nhwc, (0, 3, 1, 2))  # back to NCHW


# ---------------------------------------------------------------------------
# Pure-JAX reference (mirrors the PyTorch forward, via lax.conv, all f32)
# ---------------------------------------------------------------------------
def _ref_conv(x_nhwc, w_hwio, b):
    y = lax.conv_general_dilated(
        x_nhwc, w_hwio, window_strides=(1, 1), padding="SAME",
        dimension_numbers=("NHWC", "HWIO", "NHWC"))
    return y + b


def conv_gru_ref(h_nchw, x_nchw, wz, bz, wr, br, wq, bq):
    h = jnp.transpose(h_nchw, (0, 2, 3, 1)).astype(jnp.float32)
    x = jnp.transpose(x_nchw, (0, 2, 3, 1)).astype(jnp.float32)
    hx = jnp.concatenate([h, x], axis=-1)
    z = jax.nn.sigmoid(_ref_conv(hx, wz, bz))
    r = jax.nn.sigmoid(_ref_conv(hx, wr, br))
    rhx = jnp.concatenate([r * h, x], axis=-1)
    q = jnp.tanh(_ref_conv(rhx, wq, bq))
    h_new = (1.0 - z) * h + z * q
    return jnp.transpose(h_new, (0, 3, 1, 2))


if __name__ == "__main__":
    # args.GRU_hidden_dim = 32, args.GRU_input_dim = 8
    N, Ch, Cx, H, W = 2, 32, 8, 16, 16
    Cin = Ch + Cx

    key = jax.random.PRNGKey(0)
    keys = jax.random.split(key, 8)

    h0 = jax.random.normal(keys[0], (N, Ch, H, W), jnp.float32)
    x0 = jax.random.normal(keys[1], (N, Cx, H, W), jnp.float32)

    # Deterministic synthetic parameters (HWIO conv weights + biases).
    scale = 1.0 / np.sqrt(Cin * 9)
    wz = jax.random.normal(keys[2], (3, 3, Cin, Ch), jnp.float32) * scale
    wr = jax.random.normal(keys[3], (3, 3, Cin, Ch), jnp.float32) * scale
    wq = jax.random.normal(keys[4], (3, 3, Cin, Ch), jnp.float32) * scale
    bz = jax.random.normal(keys[5], (Ch,), jnp.float32) * 0.1
    br = jax.random.normal(keys[6], (Ch,), jnp.float32) * 0.1
    bq = jax.random.normal(keys[7], (Ch,), jnp.float32) * 0.1

    out = conv_gru_pallas(h0, x0, wz, bz, wr, br, wq, bq)
    out = jax.block_until_ready(out)

    ref = conv_gru_ref(h0, x0, wz, bz, wr, br, wq, bq)
    ref = jax.block_until_ready(ref)

    # Tolerance: matmul operands (and the DMA'd hx, incl. h) are bf16 with f32
    # accumulation; reference is pure f32.
    np.testing.assert_allclose(np.asarray(out), np.asarray(ref),
                               rtol=3e-2, atol=3e-2)
    print("KERNEL_OK")
</pallas_src>

<mosaic_0001>
module attributes {stable_mosaic.version = 11 : i64} {
  func.func @_convgru_kernel(%arg0: i32, %arg1: memref<2x18x18x40xbf16, #tpu.memory_space<vmem>>, %arg2: memref<360x96xbf16, #tpu.memory_space<vmem>>, %arg3: memref<288x32xbf16, #tpu.memory_space<vmem>>, %arg4: memref<1x96xf32, #tpu.memory_space<vmem>>, %arg5: memref<2x16x16x32xf32, #tpu.memory_space<vmem>>, %arg6: memref<2x18x18x32xf32, #tpu.memory_space<vmem>>) attributes {dimension_semantics = [#tpu.dimension_semantics<arbitrary>], iteration_bounds = array<i64: 1>, scalar_prefetch = 0 : i64, scratch_operands = 1 : i64, tpu.core_type = #tpu.core_type<tc>, window_params = [{pipeline_mode = #tpu.pipeline_mode<synchronous>, transform_indices = @transform_0, window_bounds = array<i64: 2, 18, 18, 40>}, {pipeline_mode = #tpu.pipeline_mode<synchronous>, transform_indices = @transform_1, window_bounds = array<i64: 360, 96>}, {pipeline_mode = #tpu.pipeline_mode<synchronous>, transform_indices = @transform_2, window_bounds = array<i64: 288, 32>}, {pipeline_mode = #tpu.pipeline_mode<synchronous>, transform_indices = @transform_3, window_bounds = array<i64: 1, 96>}, {pipeline_mode = #tpu.pipeline_mode<synchronous>, transform_indices = @transform_4, window_bounds = array<i64: 2, 16, 16, 32>}]} {
    %c0 = arith.constant 0 : index
    %c0_0 = arith.constant 0 : index
    %c0_1 = arith.constant 0 : index
    %c0_2 = arith.constant 0 : index
    %0 = vector.load %arg1[%c0, %c0_0, %c0_1, %c0_2] : memref<2x18x18x40xbf16, #tpu.memory_space<vmem>>, vector<2x18x18x40xbf16>
    %1 = vector.extract_strided_slice %0 {offsets = [0, 1, 1, 0], sizes = [2, 16, 16, 32], strides = [1, 1, 1, 1]} : vector<2x18x18x40xbf16> to vector<2x16x16x32xbf16>
    %2 = arith.extf %1 : vector<2x16x16x32xbf16> to vector<2x16x16x32xf32>
    %3 = vector.shape_cast %2 : vector<2x16x16x32xf32> to vector<512x32xf32>
    %4 = vector.extract_strided_slice %0 {offsets = [0, 0, 0, 0], sizes = [2, 18, 16, 40], strides = [1, 1, 1, 1]} : vector<2x18x18x40xbf16> to vector<2x18x16x40xbf16>
    %5 = vector.extract_strided_slice %0 {offsets = [0, 0, 1, 0], sizes = [2, 18, 16, 40], strides = [1, 1, 1, 1]} : vector<2x18x18x40xbf16> to vector<2x18x16x40xbf16>
    %6 = vector.extract_strided_slice %0 {offsets = [0, 0, 2, 0], sizes = [2, 18, 16, 40], strides = [1, 1, 1, 1]} : vector<2x18x18x40xbf16> to vector<2x18x16x40xbf16>
    %7 = vector.extract_strided_slice %4 {offsets = [0, 0, 0, 0], sizes = [2, 16, 16, 40], strides = [1, 1, 1, 1]} : vector<2x18x16x40xbf16> to vector<2x16x16x40xbf16>
    %8 = vector.shape_cast %7 : vector<2x16x16x40xbf16> to vector<512x40xbf16>
    %9 = vector.extract_strided_slice %5 {offsets = [0, 0, 0, 0], sizes = [2, 16, 16, 40], strides = [1, 1, 1, 1]} : vector<2x18x16x40xbf16> to vector<2x16x16x40xbf16>
    %10 = vector.shape_cast %9 : vector<2x16x16x40xbf16> to vector<512x40xbf16>
    %11 = vector.extract_strided_slice %6 {offsets = [0, 0, 0, 0], sizes = [2, 16, 16, 40], strides = [1, 1, 1, 1]} : vector<2x18x16x40xbf16> to vector<2x16x16x40xbf16>
    %12 = vector.shape_cast %11 : vector<2x16x16x40xbf16> to vector<512x40xbf16>
    %13 = vector.extract_strided_slice %4 {offsets = [0, 1, 0, 0], sizes = [2, 16, 16, 40], strides = [1, 1, 1, 1]} : vector<2x18x16x40xbf16> to vector<2x16x16x40xbf16>
    %14 = vector.shape_cast %13 : vector<2x16x16x40xbf16> to vector<512x40xbf16>
    %15 = vector.extract_strided_slice %5 {offsets = [0, 1, 0, 0], sizes = [2, 16, 16, 40], strides = [1, 1, 1, 1]} : vector<2x18x16x40xbf16> to vector<2x16x16x40xbf16>
    %16 = vector.shape_cast %15 : vector<2x16x16x40xbf16> to vector<512x40xbf16>
    %17 = vector.extract_strided_slice %6 {offsets = [0, 1, 0, 0], sizes = [2, 16, 16, 40], strides = [1, 1, 1, 1]} : vector<2x18x16x40xbf16> to vector<2x16x16x40xbf16>
    %18 = vector.shape_cast %17 : vector<2x16x16x40xbf16> to vector<512x40xbf16>
    %19 = vector.extract_strided_slice %4 {offsets = [0, 2, 0, 0], sizes = [2, 16, 16, 40], strides = [1, 1, 1, 1]} : vector<2x18x16x40xbf16> to vector<2x16x16x40xbf16>
    %20 = vector.shape_cast %19 : vector<2x16x16x40xbf16> to vector<512x40xbf16>
    %21 = vector.extract_strided_slice %5 {offsets = [0, 2, 0, 0], sizes = [2, 16, 16, 40], strides = [1, 1, 1, 1]} : vector<2x18x16x40xbf16> to vector<2x16x16x40xbf16>
    %22 = vector.shape_cast %21 : vector<2x16x16x40xbf16> to vector<512x40xbf16>
    %23 = vector.extract_strided_slice %6 {offsets = [0, 2, 0, 0], sizes = [2, 16, 16, 40], strides = [1, 1, 1, 1]} : vector<2x18x16x40xbf16> to vector<2x16x16x40xbf16>
    %24 = vector.shape_cast %23 : vector<2x16x16x40xbf16> to vector<512x40xbf16>
    %25 = tpu.concatenate %8, %10, %12, %14, %16, %18, %20, %22, %24 in 1 : vector<512x40xbf16>, vector<512x40xbf16>, vector<512x40xbf16>, vector<512x40xbf16>, vector<512x40xbf16>, vector<512x40xbf16>, vector<512x40xbf16>, vector<512x40xbf16>, vector<512x40xbf16> -> vector<512x360xbf16>
    %c0_3 = arith.constant 0 : index
    %c0_4 = arith.constant 0 : index
    %26 = vector.load %arg2[%c0_3, %c0_4] : memref<360x96xbf16, #tpu.memory_space<vmem>>, vector<360x96xbf16>
    %cst = arith.constant dense<0.000000e+00> : vector<512x96xf32>
    %27 = tpu.matmul %25, %26, %cst {dimension_numbers = #tpu.dot_dimension_numbers<[1], [0], [0], [1], [0, 0, 1, 1], [], []>} : vector<512x360xbf16>, vector<360x96xbf16>, vector<512x96xf32> -> vector<512x96xf32>
    %c0_5 = arith.constant 0 : index
    %c0_6 = arith.constant 0 : index
    %28 = vector.load %arg4[%c0_5, %c0_6] : memref<1x96xf32, #tpu.memory_space<vmem>>, vector<1x96xf32>
    %29 = vector.broadcast %28 : vector<1x96xf32> to vector<512x96xf32>
    %30 = arith.addf %27, %29 : vector<512x96xf32>
    %31 = vector.extract_strided_slice %30 {offsets = [0, 0], sizes = [512, 64], strides = [1, 1]} : vector<512x96xf32> to vector<512x64xf32>
    %32 = arith.negf %31 : vector<512x64xf32>
    %33 = math.exp %32 : vector<512x64xf32>
    %cst_7 = arith.constant 1.000000e+00 : f32
    %34 = vector.broadcast %cst_7 : f32 to vector<512x64xf32>
    %35 = arith.addf %34, %33 : vector<512x64xf32>
    %36 = arith.divf %34, %35 : vector<512x64xf32>
    %37 = vector.extract_strided_slice %36 {offsets = [0, 0], sizes = [512, 32], strides = [1, 1]} : vector<512x64xf32> to vector<512x32xf32>
    %38 = vector.extract_strided_slice %36 {offsets = [0, 32], sizes = [512, 32], strides = [1, 1]} : vector<512x64xf32> to vector<512x32xf32>
    %39 = vector.extract_strided_slice %30 {offsets = [0, 64], sizes = [512, 32], strides = [1, 1]} : vector<512x96xf32> to vector<512x32xf32>
    %cst_8 = arith.constant 0.000000e+00 : f32
    %40 = vector.broadcast %cst_8 : f32 to vector<2x1x18x32xf32>
    %c0_9 = arith.constant 0 : index
    %c0_10 = arith.constant 0 : index
    %c0_11 = arith.constant 0 : index
    %c0_12 = arith.constant 0 : index
    %41 = vector.load %arg6[%c0_9, %c0_10, %c0_11, %c0_12] : memref<2x18x18x32xf32, #tpu.memory_space<vmem>>, vector<2x1x18x32xf32>
    tpu.vector_store %arg6[%c0_9, %c0_10, %c0_11, %c0_12], %40 {strides = array<i32>} : memref<2x18x18x32xf32, #tpu.memory_space<vmem>>, vector<2x1x18x32xf32>,
    %cst_13 = arith.constant 0.000000e+00 : f32
    %42 = vector.broadcast %cst_13 : f32 to vector<2x1x18x32xf32>
    %c0_14 = arith.constant 0 : index
    %c17 = arith.constant 17 : index
    %c0_15 = arith.constant 0 : index
    %c0_16 = arith.constant 0 : index
    %43 = vector.load %arg6[%c0_14, %c17, %c0_15, %c0_16] : memref<2x18x18x32xf32, #tpu.memory_space<vmem>>, vector<2x1x18x32xf32>
    tpu.vector_store %arg6[%c0_14, %c17, %c0_15, %c0_16], %42 {strides = array<i32>} : memref<2x18x18x32xf32, #tpu.memory_space<vmem>>, vector<2x1x18x32xf32>,
    %cst_17 = arith.constant 0.000000e+00 : f32
    %44 = vector.broadcast %cst_17 : f32 to vector<2x18x1x32xf32>
    %c0_18 = arith.constant 0 : index
    %c0_19 = arith.constant 0 : index
    %c0_20 = arith.constant 0 : index
    %c0_21 = arith.constant 0 : index
    %45 = vector.load %arg6[%c0_18, %c0_19, %c0_20, %c0_21] : memref<2x18x18x32xf32, #tpu.memory_space<vmem>>, vector<2x18x1x32xf32>
    tpu.vector_store %arg6[%c0_18, %c0_19, %c0_20, %c0_21], %44 {strides = array<i32>} : memref<2x18x18x32xf32, #tpu.memory_space<vmem>>, vector<2x18x1x32xf32>,
    %cst_22 = arith.constant 0.000000e+00 : f32
    %46 = vector.broadcast %cst_22 : f32 to vector<2x18x1x32xf32>
    %c0_23 = arith.constant 0 : index
    %c0_24 = arith.constant 0 : index
    %c17_25 = arith.constant 17 : index
    %c0_26 = arith.constant 0 : index
    %47 = vector.load %arg6[%c0_23, %c0_24, %c17_25, %c0_26] : memref<2x18x18x32xf32, #tpu.memory_space<vmem>>, vector<2x18x1x32xf32>
    tpu.vector_store %arg6[%c0_23, %c0_24, %c17_25, %c0_26], %46 {strides = array<i32>} : memref<2x18x18x32xf32, #tpu.memory_space<vmem>>, vector<2x18x1x32xf32>,
    %48 = arith.mulf %38, %3 : vector<512x32xf32>
    %49 = vector.shape_cast %48 : vector<512x32xf32> to vector<2x16x16x32xf32>
    %c0_27 = arith.constant 0 : index
    %c1 = arith.constant 1 : index
    %c1_28 = arith.constant 1 : index
    %c0_29 = arith.constant 0 : index
    %50 = vector.load %arg6[%c0_27, %c1, %c1_28, %c0_29] : memref<2x18x18x32xf32, #tpu.memory_space<vmem>>, vector<2x16x16x32xf32>
    tpu.vector_store %arg6[%c0_27, %c1, %c1_28, %c0_29], %49 {strides = array<i32>} : memref<2x18x18x32xf32, #tpu.memory_space<vmem>>, vector<2x16x16x32xf32>,
    %c0_30 = arith.constant 0 : index
    %c0_31 = arith.constant 0 : index
    %c0_32 = arith.constant 0 : index
    %c0_33 = arith.constant 0 : index
    %51 = vector.load %arg6[%c0_30, %c0_31, %c0_32, %c0_33] : memref<2x18x18x32xf32, #tpu.memory_space<vmem>>, vector<2x18x18x32xf32>
    %52 = arith.truncf %51 : vector<2x18x18x32xf32> to vector<2x18x18x32xbf16>
    %53 = vector.extract_strided_slice %52 {offsets = [0, 0, 0, 0], sizes = [2, 18, 16, 32], strides = [1, 1, 1, 1]} : vector<2x18x18x32xbf16> to vector<2x18x16x32xbf16>
    %54 = vector.extract_strided_slice %52 {offsets = [0, 0, 1, 0], sizes = [2, 18, 16, 32], strides = [1, 1, 1, 1]} : vector<2x18x18x32xbf16> to vector<2x18x16x32xbf16>
    %55 = vector.extract_strided_slice %52 {offsets = [0, 0, 2, 0], sizes = [2, 18, 16, 32], strides = [1, 1, 1, 1]} : vector<2x18x18x32xbf16> to vector<2x18x16x32xbf16>
    %56 = vector.extract_strided_slice %53 {offsets = [0, 0, 0, 0], sizes = [2, 16, 16, 32], strides = [1, 1, 1, 1]} : vector<2x18x16x32xbf16> to vector<2x16x16x32xbf16>
    %57 = vector.shape_cast %56 : vector<2x16x16x32xbf16> to vector<512x32xbf16>
    %58 = vector.extract_strided_slice %54 {offsets = [0, 0, 0, 0], sizes = [2, 16, 16, 32], strides = [1, 1, 1, 1]} : vector<2x18x16x32xbf16> to vector<2x16x16x32xbf16>
    %59 = vector.shape_cast %58 : vector<2x16x16x32xbf16> to vector<512x32xbf16>
    %60 = vector.extract_strided_slice %55 {offsets = [0, 0, 0, 0], sizes = [2, 16, 16, 32], strides = [1, 1, 1, 1]} : vector<2x18x16x32xbf16> to vector<2x16x16x32xbf16>
    %61 = vector.shape_cast %60 : vector<2x16x16x32xbf16> to vector<512x32xbf16>
    %62 = vector.extract_strided_slice %53 {offsets = [0, 1, 0, 0], sizes = [2, 16, 16, 32], strides = [1, 1, 1, 1]} : vector<2x18x16x32xbf16> to vector<2x16x16x32xbf16>
    %63 = vector.shape_cast %62 : vector<2x16x16x32xbf16> to vector<512x32xbf16>
    %64 = vector.extract_strided_slice %54 {offsets = [0, 1, 0, 0], sizes = [2, 16, 16, 32], strides = [1, 1, 1, 1]} : vector<2x18x16x32xbf16> to vector<2x16x16x32xbf16>
    %65 = vector.shape_cast %64 : vector<2x16x16x32xbf16> to vector<512x32xbf16>
    %66 = vector.extract_strided_slice %55 {offsets = [0, 1, 0, 0], sizes = [2, 16, 16, 32], strides = [1, 1, 1, 1]} : vector<2x18x16x32xbf16> to vector<2x16x16x32xbf16>
    %67 = vector.shape_cast %66 : vector<2x16x16x32xbf16> to vector<512x32xbf16>
    %68 = vector.extract_strided_slice %53 {offsets = [0, 2, 0, 0], sizes = [2, 16, 16, 32], strides = [1, 1, 1, 1]} : vector<2x18x16x32xbf16> to vector<2x16x16x32xbf16>
    %69 = vector.shape_cast %68 : vector<2x16x16x32xbf16> to vector<512x32xbf16>
    %70 = vector.extract_strided_slice %54 {offsets = [0, 2, 0, 0], sizes = [2, 16, 16, 32], strides = [1, 1, 1, 1]} : vector<2x18x16x32xbf16> to vector<2x16x16x32xbf16>
    %71 = vector.shape_cast %70 : vector<2x16x16x32xbf16> to vector<512x32xbf16>
    %72 = vector.extract_strided_slice %55 {offsets = [0, 2, 0, 0], sizes = [2, 16, 16, 32], strides = [1, 1, 1, 1]} : vector<2x18x16x32xbf16> to vector<2x16x16x32xbf16>
    %73 = vector.shape_cast %72 : vector<2x16x16x32xbf16> to vector<512x32xbf16>
    %74 = tpu.concatenate %57, %59, %61, %63, %65, %67, %69, %71, %73 in 1 : vector<512x32xbf16>, vector<512x32xbf16>, vector<512x32xbf16>, vector<512x32xbf16>, vector<512x32xbf16>, vector<512x32xbf16>, vector<512x32xbf16>, vector<512x32xbf16>, vector<512x32xbf16> -> vector<512x288xbf16>
    %c0_34 = arith.constant 0 : index
    %c0_35 = arith.constant 0 : index
    %75 = vector.load %arg3[%c0_34, %c0_35] : memref<288x32xbf16, #tpu.memory_space<vmem>>, vector<288x32xbf16>
    %cst_36 = arith.constant dense<0.000000e+00> : vector<512x32xf32>
    %76 = tpu.matmul %74, %75, %cst_36 {dimension_numbers = #tpu.dot_dimension_numbers<[1], [0], [0], [1], [0, 0, 1, 1], [], []>} : vector<512x288xbf16>, vector<288x32xbf16>, vector<512x32xf32> -> vector<512x32xf32>
    %77 = arith.addf %39, %76 : vector<512x32xf32>
    %78 = math.tanh %77 : vector<512x32xf32>
    %cst_37 = arith.constant 1.000000e+00 : f32
    %79 = vector.broadcast %cst_37 : f32 to vector<512x32xf32>
    %80 = arith.subf %79, %37 : vector<512x32xf32>
    %81 = arith.mulf %80, %3 : vector<512x32xf32>
    %82 = arith.mulf %37, %78 : vector<512x32xf32>
    %83 = arith.addf %81, %82 : vector<512x32xf32>
    %84 = vector.shape_cast %83 : vector<512x32xf32> to vector<2x16x16x32xf32>
    %c0_38 = arith.constant 0 : index
    %c0_39 = arith.constant 0 : index
    %c0_40 = arith.constant 0 : index
    %c0_41 = arith.constant 0 : index
    %85 = vector.load %arg5[%c0_38, %c0_39, %c0_40, %c0_41] : memref<2x16x16x32xf32, #tpu.memory_space<vmem>>, vector<2x16x16x32xf32>
    tpu.vector_store %arg5[%c0_38, %c0_39, %c0_40, %c0_41], %84 {strides = array<i32>} : memref<2x16x16x32xf32, #tpu.memory_space<vmem>>, vector<2x16x16x32xf32>,
    return
  }
  func.func @transform_0(%arg0: i32) -> (i32, i32, i32, i32) {
    %c0_i32 = arith.constant 0 : i32
    %c0_i32_0 = arith.constant 0 : i32
    %c0_i32_1 = arith.constant 0 : i32
    %c0_i32_2 = arith.constant 0 : i32
    %c0_i32_3 = arith.constant 0 : i32
    return %c0_i32, %c0_i32_0, %c0_i32_1, %c0_i32_2 : i32, i32, i32, i32
  }
  func.func @transform_1(%arg0: i32) -> (i32, i32) {
    %c0_i32 = arith.constant 0 : i32
    %c0_i32_0 = arith.constant 0 : i32
    %c0_i32_1 = arith.constant 0 : i32
    return %c0_i32, %c0_i32_0 : i32, i32
  }
  func.func @transform_2(%arg0: i32) -> (i32, i32) {
    %c0_i32 = arith.constant 0 : i32
    %c0_i32_0 = arith.constant 0 : i32
    %c0_i32_1 = arith.constant 0 : i32
    return %c0_i32, %c0_i32_0 : i32, i32
  }
  func.func @transform_3(%arg0: i32) -> (i32, i32) {
    %c0_i32 = arith.constant 0 : i32
    %c0_i32_0 = arith.constant 0 : i32
    %c0_i32_1 = arith.constant 0 : i32
    return %c0_i32, %c0_i32_0 : i32, i32
  }
  func.func @transform_4(%arg0: i32) -> (i32, i32, i32, i32) {
    %c0_i32 = arith.constant 0 : i32
    %c0_i32_0 = arith.constant 0 : i32
    %c0_i32_1 = arith.constant 0 : i32
    %c0_i32_2 = arith.constant 0 : i32
    %c0_i32_3 = arith.constant 0 : i32
    return %c0_i32, %c0_i32_0, %c0_i32_1, %c0_i32_2 : i32, i32, i32, i32
  }
}

</mosaic_0001>

<llo_original>
// kernel: tpu_custom_call.1
$region0: #{tpu_custom_call.1}
  #allocation0 [shape = 'u32[]', space=smem, size = 0x4, offset = 0x4, fixed_abs, tag = 'smem constant byte address 0x4 - core index']
  #allocation1 [shape = 'u32[144,128]{1,0:T(1,128)}', space=vmem, size = 0x12000, scoped, tag = 'internal scratch']
  #allocation2 [shape = 'f32[2,18,18,32]{3,2,1,0:T(8,128)}', space=vmem, size = 0x6c000, scoped, tag = 'scratch operand']
  %s0 = inlined_call_operand.vmem [shape: bf16[2,18,18,40], index: 0, kind: input, shape index: {}]
  %s1 = inlined_call_operand.vmem [shape: bf16[360,96], index: 1, kind: input, shape index: {}]
  %s2 = inlined_call_operand.vmem [shape: bf16[288,32], index: 2, kind: input, shape index: {}]
  %s3 = inlined_call_operand.vmem [shape: f32[1,96], index: 3, kind: input, shape index: {}]
  %s4 = inlined_call_operand.hbm [shape: f32[2,16,16,32], index: 4, kind: output, shape index: {}]
  %s5 = sld [smem:[#allocation0]]
  $region26: #{tpu_custom_call.1} parent=0
    _
  %s7 = ssub.s32 1, %s5
  %s8 = scalar_select 0, %s7, %s5
  $region1: #{tpu_custom_call.1} parent=0
    #allocation3 [shape = 'u8[262144]{0}', space=vmem, size = 0x40000, scoped, tag = 'output window, operand 0, single buffered']
    #allocation4 [shape = 's32[1]{0}', space=sflag, size = 0x4, scoped, tag = 'scoped memory for tpu_custom_call.1']
    %9 = vsyncpa [#allocation4], 0
    // Predicated region
    $region2: #{tpu_custom_call.1} parent=1 // pred_check
      _
    $region3: #{tpu_custom_call.1} parent=1 // pred_check_branch
      %11 = sbr.rel (0) target = $region5
    $region4: #{tpu_custom_call.1} parent=1 // pred_region
      _
    $region5: #{tpu_custom_call.1} parent=1 // pred_fallthru
      _
    // Predicated region
    $region6: #{tpu_custom_call.1} parent=1 // pred_check
      _
    $region7: #{tpu_custom_call.1} parent=1 // pred_check_branch
      %13 = sbr.rel (0) target = $region9
    $region8: #{tpu_custom_call.1} parent=1 // pred_region
      _
    $region9: #{tpu_custom_call.1} parent=1 // pred_fallthru
      _
    // Predicated region
    $region10: #{tpu_custom_call.1} parent=1 // pred_check
      _
    $region11: #{tpu_custom_call.1} parent=1 // pred_check_branch
      %15 = sbr.rel (0) target = $region13
    $region12: #{tpu_custom_call.1} parent=1 // pred_region
      _
    $region13: #{tpu_custom_call.1} parent=1 // pred_fallthru
      _
    // Predicated region
    $region14: #{tpu_custom_call.1} parent=1 // pred_check
      _
    $region15: #{tpu_custom_call.1} parent=1 // pred_check_branch
      %17 = sbr.rel (0) target = $region17
    $region16: #{tpu_custom_call.1} parent=1 // pred_region
      _
    $region17: #{tpu_custom_call.1} parent=1 // pred_fallthru
      _
    %v19 = vld [vmem:[%s0] sm:$0xf]
    %v20 = vld [vmem:[%s0 + $0x4] sm:$0xf]
    %v21 = vld [vmem:[%s0 + $0x8] sm:$0x1]
    %v22 = vld [vmem:[%s0 + $0xc] sm:$0xf]
    %v23 = vld [vmem:[%s0 + $0x10] sm:$0xf]
    %v24 = vld [vmem:[%s0 + $0x14] sm:$0x1]
    %v25 = vld [vmem:[%s0 + $0x18] sm:$0xf]
    %v26 = vld [vmem:[%s0 + $0x1c] sm:$0xf]
    %v27 = vld [vmem:[%s0 + $0x20] sm:$0x1]
    %v28 = vld [vmem:[%s0 + $0x24] sm:$0xf]
    %v29 = vld [vmem:[%s0 + $0x28] sm:$0xf]
    %v30 = vld [vmem:[%s0 + $0x2c] sm:$0x1]
    %v31 = vld [vmem:[%s0 + $0x30] sm:$0xf]
    %v32 = vld [vmem:[%s0 + $0x34] sm:$0xf]
    %v33 = vld [vmem:[%s0 + $0x38] sm:$0x1]
    %v34 = vld [vmem:[%s0 + $0x3c] sm:$0xf]
    %v35 = vld [vmem:[%s0 + $0x40] sm:$0xf]
    %v36 = vld [vmem:[%s0 + $0x44] sm:$0x1]
    %v37 = vld [vmem:[%s0 + $0x48] sm:$0xf]
    %v38 = vld [vmem:[%s0 + $0x4c] sm:$0xf]
    %v39 = vld [vmem:[%s0 + $0x50] sm:$0x1]
    %v40 = vld [vmem:[%s0 + $0x54] sm:$0xf]
    %v41 = vld [vmem:[%s0 + $0x58] sm:$0xf]
    %v42 = vld [vmem:[%s0 + $0x5c] sm:$0x1]
    %v43 = vld [vmem:[%s0 + $0x60] sm:$0xf]
    %v44 = vld [vmem:[%s0 + $0x64] sm:$0xf]
    %v45 = vld [vmem:[%s0 + $0x68] sm:$0x1]
    %v46 = vld [vmem:[%s0 + $0x6c] sm:$0xf]
    %v47 = vld [vmem:[%s0 + $0x70] sm:$0xf]
    %v48 = vld [vmem:[%s0 + $0x74] sm:$0x1]
    %v49 = vld [vmem:[%s0 + $0x78] sm:$0xf]
    %v50 = vld [vmem:[%s0 + $0x7c] sm:$0xf]
    %v51 = vld [vmem:[%s0 + $0x80] sm:$0x1]
    %v52 = vld [vmem:[%s0 + $0x84] sm:$0xf]
    %v53 = vld [vmem:[%s0 + $0x88] sm:$0xf]
    %v54 = vld [vmem:[%s0 + $0x8c] sm:$0x1]
    %v55 = vld [vmem:[%s0 + $0x90] sm:$0xf]
    %v56 = vld [vmem:[%s0 + $0x94] sm:$0xf]
    %v57 = vld [vmem:[%s0 + $0x98] sm:$0x1]
    %v58 = vld [vmem:[%s0 + $0x9c] sm:$0xf]
    %v59 = vld [vmem:[%s0 + $0xa0] sm:$0xf]
    %v60 = vld [vmem:[%s0 + $0xa4] sm:$0x1]
    %v61 = vld [vmem:[%s0 + $0xa8] sm:$0xf]
    %v62 = vld [vmem:[%s0 + $0xac] sm:$0xf]
    %v63 = vld [vmem:[%s0 + $0xb0] sm:$0x1]
    %v64 = vld [vmem:[%s0 + $0xb4] sm:$0xf]
    %v65 = vld [vmem:[%s0 + $0xb8] sm:$0xf]
    %v66 = vld [vmem:[%s0 + $0xbc] sm:$0x1]
    %v67 = vld [vmem:[%s0 + $0xc0] sm:$0xf]
    %v68 = vld [vmem:[%s0 + $0xc4] sm:$0xf]
    %v69 = vld [vmem:[%s0 + $0xc8] sm:$0x1]
    %v70 = vld [vmem:[%s0 + $0xcc] sm:$0xf]
    %v71 = vld [vmem:[%s0 + $0xd0] sm:$0xf]
    %v72 = vld [vmem:[%s0 + $0xd4] sm:$0x1]
    %v73 = vld [vmem:[%s0 + $0xd8] sm:$0xf]
    %v74 = vld [vmem:[%s0 + $0xdc] sm:$0xf]
    %v75 = vld [vmem:[%s0 + $0xe0] sm:$0x1]
    %v76 = vld [vmem:[%s0 + $0xe4] sm:$0xf]
    %v77 = vld [vmem:[%s0 + $0xe8] sm:$0xf]
    %v78 = vld [vmem:[%s0 + $0xec] sm:$0x1]
    %v79 = vld [vmem:[%s0 + $0xf0] sm:$0xf]
    %v80 = vld [vmem:[%s0 + $0xf4] sm:$0xf]
    %v81 = vld [vmem:[%s0 + $0xf8] sm:$0x1]
    %v82 = vld [vmem:[%s0 + $0xfc] sm:$0xf]
    %v83 = vld [vmem:[%s0 + $0x100] sm:$0xf]
    %v84 = vld [vmem:[%s0 + $0x104] sm:$0x1]
    %v85 = vld [vmem:[%s0 + $0x108] sm:$0xf]
    %v86 = vld [vmem:[%s0 + $0x10c] sm:$0xf]
    %v87 = vld [vmem:[%s0 + $0x110] sm:$0x1]
    %v88 = vld [vmem:[%s0 + $0x114] sm:$0xf]
    %v89 = vld [vmem:[%s0 + $0x118] sm:$0xf]
    %v90 = vld [vmem:[%s0 + $0x11c] sm:$0x1]
    %v91 = vld [vmem:[%s0 + $0x120] sm:$0xf]
    %v92 = vld [vmem:[%s0 + $0x124] sm:$0xf]
    %v93 = vld [vmem:[%s0 + $0x128] sm:$0x1]
    %v94 = vld [vmem:[%s0 + $0x12c] sm:$0xf]
    %v95 = vld [vmem:[%s0 + $0x130] sm:$0xf]
    %v96 = vld [vmem:[%s0 + $0x134] sm:$0x1]
    %v97 = vld [vmem:[%s0 + $0x138] sm:$0xf]
    %v98 = vld [vmem:[%s0 + $0x13c] sm:$0xf]
    %v99 = vld [vmem:[%s0 + $0x140] sm:$0x1]
    %v100 = vld [vmem:[%s0 + $0x144] sm:$0xf]
    %v101 = vld [vmem:[%s0 + $0x148] sm:$0xf]
    %v102 = vld [vmem:[%s0 + $0x14c] sm:$0x1]
    %v103 = vld [vmem:[%s0 + $0x150] sm:$0xf]
    %v104 = vld [vmem:[%s0 + $0x154] sm:$0xf]
    %v105 = vld [vmem:[%s0 + $0x158] sm:$0x1]
    %v106 = vld [vmem:[%s0 + $0x15c] sm:$0xf]
    %v107 = vld [vmem:[%s0 + $0x160] sm:$0xf]
    %v108 = vld [vmem:[%s0 + $0x164] sm:$0x1]
    %v109 = vld [vmem:[%s0 + $0x168] sm:$0xf]
    %v110 = vld [vmem:[%s0 + $0x16c] sm:$0xf]
    %v111 = vld [vmem:[%s0 + $0x170] sm:$0x1]
    %v112 = vld [vmem:[%s0 + $0x174] sm:$0xf]
    %v113 = vld [vmem:[%s0 + $0x178] sm:$0xf]
    %v114 = vld [vmem:[%s0 + $0x17c] sm:$0x1]
    %v115 = vld [vmem:[%s0 + $0x180] sm:$0xf]
    %v116 = vld [vmem:[%s0 + $0x184] sm:$0xf]
    %v117 = vld [vmem:[%s0 + $0x188] sm:$0x1]
    %v118 = vld [vmem:[%s0 + $0x18c] sm:$0xf]
    %v119 = vld [vmem:[%s0 + $0x190] sm:$0xf]
    %v120 = vld [vmem:[%s0 + $0x194] sm:$0x1]
    %v121 = vld [vmem:[%s0 + $0x198] sm:$0xf]
    %v122 = vld [vmem:[%s0 + $0x19c] sm:$0xf]
    %v123 = vld [vmem:[%s0 + $0x1a0] sm:$0x1]
    %v124 = vld [vmem:[%s0 + $0x1a4] sm:$0xf]
    %v125 = vld [vmem:[%s0 + $0x1a8] sm:$0xf]
    %v126 = vld [vmem:[%s0 + $0x1ac] sm:$0x1]
    %v127 = vunpack.c.l.bf16 %v22
    %v128 = vunpack.c.l.bf16 %v23
    %v129 = vunpack.c.l.bf16 %v24
    %v130 = vunpack.c.l.bf16 %v25
    %v131 = vunpack.c.l.bf16 %v26
    %v132 = vunpack.c.l.bf16 %v27
    %v133 = vunpack.c.l.bf16 %v28
    %v134 = vunpack.c.l.bf16 %v29
    %v135 = vunpack.c.l.bf16 %v30
    %v136 = vunpack.c.l.bf16 %v31
    %v137 = vunpack.c.l.bf16 %v32
    %v138 = vunpack.c.l.bf16 %v33
    %v139 = vunpack.c.l.bf16 %v34
    %v140 = vunpack.c.l.bf16 %v35
    %v141 = vunpack.c.l.bf16 %v36
    %v142 = vunpack.c.l.bf16 %v37
    %v143 = vunpack.c.l.bf16 %v38
    %v144 = vunpack.c.l.bf16 %v39
    %v145 = vunpack.c.l.bf16 %v40
    %v146 = vunpack.c.l.bf16 %v41
    %v147 = vunpack.c.l.bf16 %v42
    %v148 = vunpack.c.l.bf16 %v43
    %v149 = vunpack.c.l.bf16 %v44
    %v150 = vunpack.c.l.bf16 %v45
    %v151 = vunpack.c.l.bf16 %v46
    %v152 = vunpack.c.l.bf16 %v47
    %v153 = vunpack.c.l.bf16 %v48
    %v154 = vunpack.c.l.bf16 %v49
    %v155 = vunpack.c.l.bf16 %v50
    %v156 = vunpack.c.l.bf16 %v51
    %v157 = vunpack.c.l.bf16 %v52
    %v158 = vunpack.c.l.bf16 %v53
    %v159 = vunpack.c.l.bf16 %v54
    %v160 = vunpack.c.l.bf16 %v55
    %v161 = vunpack.c.l.bf16 %v56
    %v162 = vunpack.c.l.bf16 %v57
    %v163 = vunpack.c.l.bf16 %v58
    %v164 = vunpack.c.l.bf16 %v59
    %v165 = vunpack.c.l.bf16 %v60
    %v166 = vunpack.c.l.bf16 %v61
    %v167 = vunpack.c.l.bf16 %v62
    %v168 = vunpack.c.l.bf16 %v63
    %v169 = vunpack.c.l.bf16 %v64
    %v170 = vunpack.c.l.bf16 %v65
    %v171 = vunpack.c.l.bf16 %v66
    %v172 = vunpack.c.l.bf16 %v67
    %v173 = vunpack.c.l.bf16 %v68
    %v174 = vunpack.c.l.bf16 %v69
    %v175 = vunpack.c.l.bf16 %v76
    %v176 = vunpack.c.l.bf16 %v77
    %v177 = vunpack.c.l.bf16 %v78
    %v178 = vunpack.c.l.bf16 %v79
    %v179 = vunpack.c.l.bf16 %v80
    %v180 = vunpack.c.l.bf16 %v81
    %v181 = vunpack.c.l.bf16 %v82
    %v182 = vunpack.c.l.bf16 %v83
    %v183 = vunpack.c.l.bf16 %v84
    %v184 = vunpack.c.l.bf16 %v85
    %v185 = vunpack.c.l.bf16 %v86
    %v186 = vunpack.c.l.bf16 %v87
    %v187 = vunpack.c.l.bf16 %v88
    %v188 = vunpack.c.l.bf16 %v89
    %v189 = vunpack.c.l.bf16 %v90
    %v190 = vunpack.c.l.bf16 %v91
    %v191 = vunpack.c.l.bf16 %v92
    %v192 = vunpack.c.l.bf16 %v93
    %v193 = vunpack.c.l.bf16 %v94
    %v194 = vunpack.c.l.bf16 %v95
    %v195 = vunpack.c.l.bf16 %v96
    %v196 = vunpack.c.l.bf16 %v97
    %v197 = vunpack.c.l.bf16 %v98
    %v198 = vunpack.c.l.bf16 %v99
    %v199 = vunpack.c.l.bf16 %v100
    %v200 = vunpack.c.l.bf16 %v101
    %v201 = vunpack.c.l.bf16 %v102
    %v202 = vunpack.c.l.bf16 %v103
    %v203 = vunpack.c.l.bf16 %v104
    %v204 = vunpack.c.l.bf16 %v105
    %v205 = vunpack.c.l.bf16 %v106
    %v206 = vunpack.c.l.bf16 %v107
    %v207 = vunpack.c.l.bf16 %v108
    %v208 = vunpack.c.l.bf16 %v109
    %v209 = vunpack.c.l.bf16 %v110
    %v210 = vunpack.c.l.bf16 %v111
    %v211 = vunpack.c.l.bf16 %v112
    %v212 = vunpack.c.l.bf16 %v113
    %v213 = vunpack.c.l.bf16 %v114
    %v214 = vunpack.c.l.bf16 %v115
    %v215 = vunpack.c.l.bf16 %v116
    %v216 = vunpack.c.l.bf16 %v117
    %v217 = vunpack.c.l.bf16 %v118
    %v218 = vunpack.c.l.bf16 %v119
    %v219 = vunpack.c.l.bf16 %v120
    %v220 = vunpack.c.l.bf16 %v121
    %v221 = vunpack.c.l.bf16 %v122
    %v222 = vunpack.c.l.bf16 %v123
    %vm319 = vcmask 1046528
    %v320 = vrot.slane %v127, 1
    %v321 = vrot.slane %v128, 1
    %v322 = vsel %vm319, %v320, %v321
    %v323 = vrot.slane %v129, 1
    %v324 = vsel %vm319, %v321, %v323
    %v325 = vrot.slane %v130, 1
    %v326 = vrot.slane %v131, 1
    %v327 = vsel %vm319, %v325, %v326
    %v328 = vrot.slane %v132, 1
    %v329 = vsel %vm319, %v326, %v328
    %v330 = vrot.slane %v133, 1
    %v331 = vrot.slane %v134, 1
    %v332 = vsel %vm319, %v330, %v331
    %v333 = vrot.slane %v135, 1
    %v334 = vsel %vm319, %v331, %v333
    %v335 = vrot.slane %v136, 1
    %v336 = vrot.slane %v137, 1
    %v337 = vsel %vm319, %v335, %v336
    %v338 = vrot.slane %v138, 1
    %v339 = vsel %vm319, %v336, %v338
    %v340 = vrot.slane %v139, 1
    %v341 = vrot.slane %v140, 1
    %v342 = vsel %vm319, %v340, %v341
    %v343 = vrot.slane %v141, 1
    %v344 = vsel %vm319, %v341, %v343
    %v345 = vrot.slane %v142, 1
    %v346 = vrot.slane %v143, 1
    %v347 = vsel %vm319, %v345, %v346
    %v348 = vrot.slane %v144, 1
    %v349 = vsel %vm319, %v346, %v348
    %v350 = vrot.slane %v145, 1
    %v351 = vrot.slane %v146, 1
    %v352 = vsel %vm319, %v350, %v351
    %v353 = vrot.slane %v147, 1
    %v354 = vsel %vm319, %v351, %v353
    %v355 = vrot.slane %v148, 1
    %v356 = vrot.slane %v149, 1
    %v357 = vsel %vm319, %v355, %v356
    %v358 = vrot.slane %v150, 1
    %v359 = vsel %vm319, %v356, %v358
    %v360 = vrot.slane %v151, 1
    %v361 = vrot.slane %v152, 1
    %v362 = vsel %vm319, %v360, %v361
    %v363 = vrot.slane %v153, 1
    %v364 = vsel %vm319, %v361, %v363
    %v365 = vrot.slane %v154, 1
    %v366 = vrot.slane %v155, 1
    %v367 = vsel %vm319, %v365, %v366
    %v368 = vrot.slane %v156, 1
    %v369 = vsel %vm319, %v366, %v368
    %v370 = vrot.slane %v157, 1
    %v371 = vrot.slane %v158, 1
    %v372 = vsel %vm319, %v370, %v371
    %v373 = vrot.slane %v159, 1
    %v374 = vsel %vm319, %v371, %v373
    %v375 = vrot.slane %v160, 1
    %v376 = vrot.slane %v161, 1
    %v377 = vsel %vm319, %v375, %v376
    %v378 = vrot.slane %v162, 1
    %v379 = vsel %vm319, %v376, %v378
    %v380 = vrot.slane %v163, 1
    %v381 = vrot.slane %v164, 1
    %v382 = vsel %vm319, %v380, %v381
    %v383 = vrot.slane %v165, 1
    %v384 = vsel %vm319, %v381, %v383
    %v385 = vrot.slane %v166, 1
    %v386 = vrot.slane %v167, 1
    %v387 = vsel %vm319, %v385, %v386
    %v388 = vrot.slane %v168, 1
    %v389 = vsel %vm319, %v386, %v388
    %v390 = vrot.slane %v169, 1
    %v391 = vrot.slane %v170, 1
    %v392 = vsel %vm319, %v390, %v391
    %v393 = vrot.slane %v171, 1
    %v394 = vsel %vm319, %v391, %v393
    %v395 = vrot.slane %v172, 1
    %v396 = vrot.slane %v173, 1
    %v397 = vsel %vm319, %v395, %v396
    %v398 = vrot.slane %v174, 1
    %v399 = vsel %vm319, %v396, %v398
    %v400 = vrot.slane %v175, 1
    %v401 = vrot.slane %v176, 1
    %v402 = vsel %vm319, %v400, %v401
    %v403 = vrot.slane %v177, 1
    %v404 = vsel %vm319, %v401, %v403
    %v405 = vrot.slane %v178, 1
    %v406 = vrot.slane %v179, 1
    %v407 = vsel %vm319, %v405, %v406
    %v408 = vrot.slane %v180, 1
    %v409 = vsel %vm319, %v406, %v408
    %v410 = vrot.slane %v181, 1
    %v411 = vrot.slane %v182, 1
    %v412 = vsel %vm319, %v410, %v411
    %v413 = vrot.slane %v183, 1
    %v414 = vsel %vm319, %v411, %v413
    %v415 = vrot.slane %v184, 1
    %v416 = vrot.slane %v185, 1
    %v417 = vsel %vm319, %v415, %v416
    %v418 = vrot.slane %v186, 1
    %v419 = vsel %vm319, %v416, %v418
    %v420 = vrot.slane %v187, 1
    %v421 = vrot.slane %v188, 1
    %v422 = vsel %vm319, %v420, %v421
    %v423 = vrot.slane %v189, 1
    %v424 = vsel %vm319, %v421, %v423
    %v425 = vrot.slane %v190, 1
    %v426 = vrot.slane %v191, 1
    %v427 = vsel %vm319, %v425, %v426
    %v428 = vrot.slane %v192, 1
    %v429 = vsel %vm319, %v426, %v428
    %v430 = vrot.slane %v193, 1
    %v431 = vrot.slane %v194, 1
    %v432 = vsel %vm319, %v430, %v431
    %v433 = vrot.slane %v195, 1
    %v434 = vsel %vm319, %v431, %v433
    %v435 = vrot.slane %v196, 1
    %v436 = vrot.slane %v197, 1
    %v437 = vsel %vm319, %v435, %v436
    %v438 = vrot.slane %v198, 1
    %v439 = vsel %vm319, %v436, %v438
    %v440 = vrot.slane %v199, 1
    %v441 = vrot.slane %v200, 1
    %v442 = vsel %vm319, %v440, %v441
    %v443 = vrot.slane %v201, 1
    %v444 = vsel %vm319, %v441, %v443
    %v445 = vrot.slane %v202, 1
    %v446 = vrot.slane %v203, 1
    %v447 = vsel %vm319, %v445, %v446
    %v448 = vrot.slane %v204, 1
    %v449 = vsel %vm319, %v446, %v448
    %v450 = vrot.slane %v205, 1
    %v451 = vrot.slane %v206, 1
    %v452 = vsel %vm319, %v450, %v451
    %v453 = vrot.slane %v207, 1
    %v454 = vsel %vm319, %v451, %v453
    %v455 = vrot.slane %v208, 1
    %v456 = vrot.slane %v209, 1
    %v457 = vsel %vm319, %v455, %v456
    %v458 = vrot.slane %v210, 1
    %v459 = vsel %vm319, %v456, %v458
    %v460 = vrot.slane %v211, 1
    %v461 = vrot.slane %v212, 1
    %v462 = vsel %vm319, %v460, %v461
    %v463 = vrot.slane %v213, 1
    %v464 = vsel %vm319, %v461, %v463
    %v465 = vrot.slane %v214, 1
    %v466 = vrot.slane %v215, 1
    %v467 = vsel %vm319, %v465, %v466
    %v468 = vrot.slane %v216, 1
    %v469 = vsel %vm319, %v466, %v468
    %v470 = vrot.slane %v217, 1
    %v471 = vrot.slane %v218, 1
    %v472 = vsel %vm319, %v470, %v471
    %v473 = vrot.slane %v219, 1
    %v474 = vsel %vm319, %v471, %v473
    %v475 = vrot.slane %v220, 1
    %v476 = vrot.slane %v221, 1
    %v477 = vsel %vm319, %v475, %v476
    %v478 = vrot.slane %v222, 1
    %v479 = vsel %vm319, %v476, %v478
    %vm544 = vsmask.f32 3328
    %vm545 = vsmask.f32 7440
    %vm546 = vmor %vm544, %vm545
    %v548 = vshrl.u32 %v19, 16
    %v550 = vrot.slane %v548, 4
    %v551 = vshll.u32 %v19, 16
    %v553 = vrot.slane %v551, 5
    %v554 = vor.u32 %v550, %v553
    %v555 = vrot.slane %v554, 4
    %v557 = vshll.u32 %v20, 16
    %v559 = vrot.slane %v557, 5
    %v560 = vsel %vm546, %v555, %v559
    %v561 = vshrl.u32 %v20, 16
    %v563 = vrot.slane %v561, 4
    %v564 = vor.u32 %v563, %v559
    %v565 = vrot.slane %v564, 4
    %v567 = vshll.u32 %v21, 16
    %v569 = vrot.slane %v567, 5
    %v570 = vsel %vm546, %v565, %v569
    %v572 = vshrl.u32 %v22, 16
    %v574 = vrot.slane %v572, 4
    %v575 = vshll.u32 %v22, 16
    %v577 = vrot.slane %v575, 5
    %v578 = vor.u32 %v574, %v577
    %v579 = vrot.slane %v578, 4
    %v581 = vshll.u32 %v23, 16
    %v583 = vrot.slane %v581, 5
    %v584 = vsel %vm546, %v579, %v583
    %v585 = vshrl.u32 %v23, 16
    %v587 = vrot.slane %v585, 4
    %v588 = vor.u32 %v587, %v583
    %v589 = vrot.slane %v588, 4
    %v591 = vshll.u32 %v24, 16
    %v593 = vrot.slane %v591, 5
    %v594 = vsel %vm546, %v589, %v593
    %v596 = vshrl.u32 %v25, 16
    %v598 = vrot.slane %v596, 4
    %v599 = vshll.u32 %v25, 16
    %v601 = vrot.slane %v599, 5
    %v602 = vor.u32 %v598, %v601
    %v603 = vrot.slane %v602, 4
    %v605 = vshll.u32 %v26, 16
    %v607 = vrot.slane %v605, 5
    %v608 = vsel %vm546, %v603, %v607
    %v609 = vshrl.u32 %v26, 16
    %v611 = vrot.slane %v609, 4
    %v612 = vor.u32 %v611, %v607
    %v613 = vrot.slane %v612, 4
    %v615 = vshll.u32 %v27, 16
    %v617 = vrot.slane %v615, 5
    %v618 = vsel %vm546, %v613, %v617
    %v620 = vshrl.u32 %v28, 16
    %v622 = vrot.slane %v620, 4
    %v623 = vshll.u32 %v28, 16
    %v625 = vrot.slane %v623, 5
    %v626 = vor.u32 %v622, %v625
    %v627 = vrot.slane %v626, 4
    %v629 = vshll.u32 %v29, 16
    %v631 = vrot.slane %v629, 5
    %v632 = vsel %vm546, %v627, %v631
    %v633 = vshrl.u32 %v29, 16
    %v635 = vrot.slane %v633, 4
    %v636 = vor.u32 %v635, %v631
    %v637 = vrot.slane %v636, 4
    %v639 = vshll.u32 %v30, 16
    %v641 = vrot.slane %v639, 5
    %v642 = vsel %vm546, %v637, %v641
    %v644 = vshrl.u32 %v31, 16
    %v646 = vrot.slane %v644, 4
    %v647 = vshll.u32 %v31, 16
    %v649 = vrot.slane %v647, 5
    %v650 = vor.u32 %v646, %v649
    %v651 = vrot.slane %v650, 4
    %v653 = vshll.u32 %v32, 16
    %v655 = vrot.slane %v653, 5
    %v656 = vsel %vm546, %v651, %v655
    %v657 = vshrl.u32 %v32, 16
    %v659 = vrot.slane %v657, 4
    %v660 = vor.u32 %v659, %v655
    %v661 = vrot.slane %v660, 4
    %v663 = vshll.u32 %v33, 16
    %v665 = vrot.slane %v663, 5
    %v666 = vsel %vm546, %v661, %v665
    %v668 = vshrl.u32 %v34, 16
    %v670 = vrot.slane %v668, 4
    %v671 = vshll.u32 %v34, 16
    %v673 = vrot.slane %v671, 5
    %v674 = vor.u32 %v670, %v673
    %v675 = vrot.slane %v674, 4
    %v677 = vshll.u32 %v35, 16
    %v679 = vrot.slane %v677, 5
    %v680 = vsel %vm546, %v675, %v679
    %v681 = vshrl.u32 %v35, 16
    %v683 = vrot.slane %v681, 4
    %v684 = vor.u32 %v683, %v679
    %v685 = vrot.slane %v684, 4
    %v687 = vshll.u32 %v36, 16
    %v689 = vrot.slane %v687, 5
    %v690 = vsel %vm546, %v685, %v689
    %v692 = vshrl.u32 %v37, 16
    %v694 = vrot.slane %v692, 4
    %v695 = vshll.u32 %v37, 16
    %v697 = vrot.slane %v695, 5
    %v698 = vor.u32 %v694, %v697
    %v699 = vrot.slane %v698, 4
    %v701 = vshll.u32 %v38, 16
    %v703 = vrot.slane %v701, 5
    %v704 = vsel %vm546, %v699, %v703
    %v705 = vshrl.u32 %v38, 16
    %v707 = vrot.slane %v705, 4
    %v708 = vor.u32 %v707, %v703
    %v709 = vrot.slane %v708, 4
    %v711 = vshll.u32 %v39, 16
    %v713 = vrot.slane %v711, 5
    %v714 = vsel %vm546, %v709, %v713
    %v716 = vshrl.u32 %v40, 16
    %v718 = vrot.slane %v716, 4
    %v719 = vshll.u32 %v40, 16
    %v721 = vrot.slane %v719, 5
    %v722 = vor.u32 %v718, %v721
    %v723 = vrot.slane %v722, 4
    %v725 = vshll.u32 %v41, 16
    %v727 = vrot.slane %v725, 5
    %v728 = vsel %vm546, %v723, %v727
    %v729 = vshrl.u32 %v41, 16
    %v731 = vrot.slane %v729, 4
    %v732 = vor.u32 %v731, %v727
    %v733 = vrot.slane %v732, 4
    %v735 = vshll.u32 %v42, 16
    %v737 = vrot.slane %v735, 5
    %v738 = vsel %vm546, %v733, %v737
    %v740 = vshrl.u32 %v43, 16
    %v742 = vrot.slane %v740, 4
    %v743 = vshll.u32 %v43, 16
    %v745 = vrot.slane %v743, 5
    %v746 = vor.u32 %v742, %v745
    %v747 = vrot.slane %v746, 4
    %v749 = vshll.u32 %v44, 16
    %v751 = vrot.slane %v749, 5
    %v752 = vsel %vm546, %v747, %v751
    %v753 = vshrl.u32 %v44, 16
    %v755 = vrot.slane %v753, 4
    %v756 = vor.u32 %v755, %v751
    %v757 = vrot.slane %v756, 4
    %v759 = vshll.u32 %v45, 16
    %v761 = vrot.slane %v759, 5
    %v762 = vsel %vm546, %v757, %v761
    %v764 = vshrl.u32 %v46, 16
    %v766 = vrot.slane %v764, 4
    %v767 = vshll.u32 %v46, 16
    %v769 = vrot.slane %v767, 5
    %v770 = vor.u32 %v766, %v769
    %v771 = vrot.slane %v770, 4
    %v773 = vshll.u32 %v47, 16
    %v775 = vrot.slane %v773, 5
    %v776 = vsel %vm546, %v771, %v775
    %v777 = vshrl.u32 %v47, 16
    %v779 = vrot.slane %v777, 4
    %v780 = vor.u32 %v779, %v775
    %v781 = vrot.slane %v780, 4
    %v783 = vshll.u32 %v48, 16
    %v785 = vrot.slane %v783, 5
    %v786 = vsel %vm546, %v781, %v785
    %v788 = vshrl.u32 %v49, 16
    %v790 = vrot.slane %v788, 4
    %v791 = vshll.u32 %v49, 16
    %v793 = vrot.slane %v791, 5
    %v794 = vor.u32 %v790, %v793
    %v795 = vrot.slane %v794, 4
    %v797 = vshll.u32 %v50, 16
    %v799 = vrot.slane %v797, 5
    %v800 = vsel %vm546, %v795, %v799
    %v801 = vshrl.u32 %v50, 16
    %v803 = vrot.slane %v801, 4
    %v804 = vor.u32 %v803, %v799
    %v805 = vrot.slane %v804, 4
    %v807 = vshll.u32 %v51, 16
    %v809 = vrot.slane %v807, 5
    %v810 = vsel %vm546, %v805, %v809
    %v812 = vshrl.u32 %v52, 16
    %v814 = vrot.slane %v812, 4
    %v815 = vshll.u32 %v52, 16
    %v817 = vrot.slane %v815, 5
    %v818 = vor.u32 %v814, %v817
    %v819 = vrot.slane %v818, 4
    %v821 = vshll.u32 %v53, 16
    %v823 = vrot.slane %v821, 5
    %v824 = vsel %vm546, %v819, %v823
    %v825 = vshrl.u32 %v53, 16
    %v827 = vrot.slane %v825, 4
    %v828 = vor.u32 %v827, %v823
    %v829 = vrot.slane %v828, 4
    %v831 = vshll.u32 %v54, 16
    %v833 = vrot.slane %v831, 5
    %v834 = vsel %vm546, %v829, %v833
    %v836 = vshrl.u32 %v55, 16
    %v838 = vrot.slane %v836, 4
    %v839 = vshll.u32 %v55, 16
    %v841 = vrot.slane %v839, 5
    %v842 = vor.u32 %v838, %v841
    %v843 = vrot.slane %v842, 4
    %v845 = vshll.u32 %v56, 16
    %v847 = vrot.slane %v845, 5
    %v848 = vsel %vm546, %v843, %v847
    %v849 = vshrl.u32 %v56, 16
    %v851 = vrot.slane %v849, 4
    %v852 = vor.u32 %v851, %v847
    %v853 = vrot.slane %v852, 4
    %v855 = vshll.u32 %v57, 16
    %v857 = vrot.slane %v855, 5
    %v858 = vsel %vm546, %v853, %v857
    %v860 = vshrl.u32 %v58, 16
    %v862 = vrot.slane %v860, 4
    %v863 = vshll.u32 %v58, 16
    %v865 = vrot.slane %v863, 5
    %v866 = vor.u32 %v862, %v865
    %v867 = vrot.slane %v866, 4
    %v869 = vshll.u32 %v59, 16
    %v871 = vrot.slane %v869, 5
    %v872 = vsel %vm546, %v867, %v871
    %v873 = vshrl.u32 %v59, 16
    %v875 = vrot.slane %v873, 4
    %v876 = vor.u32 %v875, %v871
    %v877 = vrot.slane %v876, 4
    %v879 = vshll.u32 %v60, 16
    %v881 = vrot.slane %v879, 5
    %v882 = vsel %vm546, %v877, %v881
    %v884 = vshrl.u32 %v61, 16
    %v886 = vrot.slane %v884, 4
    %v887 = vshll.u32 %v61, 16
    %v889 = vrot.slane %v887, 5
    %v890 = vor.u32 %v886, %v889
    %v891 = vrot.slane %v890, 4
    %v893 = vshll.u32 %v62, 16
    %v895 = vrot.slane %v893, 5
    %v896 = vsel %vm546, %v891, %v895
    %v897 = vshrl.u32 %v62, 16
    %v899 = vrot.slane %v897, 4
    %v900 = vor.u32 %v899, %v895
    %v901 = vrot.slane %v900, 4
    %v903 = vshll.u32 %v63, 16
    %v905 = vrot.slane %v903, 5
    %v906 = vsel %vm546, %v901, %v905
    %v908 = vshrl.u32 %v64, 16
    %v910 = vrot.slane %v908, 4
    %v911 = vshll.u32 %v64, 16
    %v913 = vrot.slane %v911, 5
    %v914 = vor.u32 %v910, %v913
    %v915 = vrot.slane %v914, 4
    %v917 = vshll.u32 %v65, 16
    %v919 = vrot.slane %v917, 5
    %v920 = vsel %vm546, %v915, %v919
    %v921 = vshrl.u32 %v65, 16
    %v923 = vrot.slane %v921, 4
    %v924 = vor.u32 %v923, %v919
    %v925 = vrot.slane %v924, 4
    %v927 = vshll.u32 %v66, 16
    %v929 = vrot.slane %v927, 5
    %v930 = vsel %vm546, %v925, %v929
    %v932 = vshrl.u32 %v73, 16
    %v934 = vrot.slane %v932, 4
    %v935 = vshll.u32 %v73, 16
    %v937 = vrot.slane %v935, 5
    %v938 = vor.u32 %v934, %v937
    %v939 = vrot.slane %v938, 4
    %v941 = vshll.u32 %v74, 16
    %v943 = vrot.slane %v941, 5
    %v944 = vsel %vm546, %v939, %v943
    %v945 = vshrl.u32 %v74, 16
    %v947 = vrot.slane %v945, 4
    %v948 = vor.u32 %v947, %v943
    %v949 = vrot.slane %v948, 4
    %v951 = vshll.u32 %v75, 16
    %v953 = vrot.slane %v951, 5
    %v954 = vsel %vm546, %v949, %v953
    %v956 = vshrl.u32 %v76, 16
    %v958 = vrot.slane %v956, 4
    %v959 = vshll.u32 %v76, 16
    %v961 = vrot.slane %v959, 5
    %v962 = vor.u32 %v958, %v961
    %v963 = vrot.slane %v962, 4
    %v965 = vshll.u32 %v77, 16
    %v967 = vrot.slane %v965, 5
    %v968 = vsel %vm546, %v963, %v967
    %v969 = vshrl.u32 %v77, 16
    %v971 = vrot.slane %v969, 4
    %v972 = vor.u32 %v971, %v967
    %v973 = vrot.slane %v972, 4
    %v975 = vshll.u32 %v78, 16
    %v977 = vrot.slane %v975, 5
    %v978 = vsel %vm546, %v973, %v977
    %v980 = vshrl.u32 %v79, 16
    %v982 = vrot.slane %v980, 4
    %v983 = vshll.u32 %v79, 16
    %v985 = vrot.slane %v983, 5
    %v986 = vor.u32 %v982, %v985
    %v987 = vrot.slane %v986, 4
    %v989 = vshll.u32 %v80, 16
    %v991 = vrot.slane %v989, 5
    %v992 = vsel %vm546, %v987, %v991
    %v993 = vshrl.u32 %v80, 16
    %v995 = vrot.slane %v993, 4
    %v996 = vor.u32 %v995, %v991
    %v997 = vrot.slane %v996, 4
    %v999 = vshll.u32 %v81, 16
    %v1001 = vrot.slane %v999, 5
    %v1002 = vsel %vm546, %v997, %v1001
    %v1004 = vshrl.u32 %v82, 16
    %v1006 = vrot.slane %v1004, 4
    %v1007 = vshll.u32 %v82, 16
    %v1009 = vrot.slane %v1007, 5
    %v1010 = vor.u32 %v1006, %v1009
    %v1011 = vrot.slane %v1010, 4
    %v1013 = vshll.u32 %v83, 16
    %v1015 = vrot.slane %v1013, 5
    %v1016 = vsel %vm546, %v1011, %v1015
    %v1017 = vshrl.u32 %v83, 16
    %v1019 = vrot.slane %v1017, 4
    %v1020 = vor.u32 %v1019, %v1015
    %v1021 = vrot.slane %v1020, 4
    %v1023 = vshll.u32 %v84, 16
    %v1025 = vrot.slane %v1023, 5
    %v1026 = vsel %vm546, %v1021, %v1025
    %v1028 = vshrl.u32 %v85, 16
    %v1030 = vrot.slane %v1028, 4
    %v1031 = vshll.u32 %v85, 16
    %v1033 = vrot.slane %v1031, 5
    %v1034 = vor.u32 %v1030, %v1033
    %v1035 = vrot.slane %v1034, 4
    %v1037 = vshll.u32 %v86, 16
    %v1039 = vrot.slane %v1037, 5
    %v1040 = vsel %vm546, %v1035, %v1039
    %v1041 = vshrl.u32 %v86, 16
    %v1043 = vrot.slane %v1041, 4
    %v1044 = vor.u32 %v1043, %v1039
    %v1045 = vrot.slane %v1044, 4
    %v1047 = vshll.u32 %v87, 16
    %v1049 = vrot.slane %v1047, 5
    %v1050 = vsel %vm546, %v1045, %v1049
    %v1052 = vshrl.u32 %v88, 16
    %v1054 = vrot.slane %v1052, 4
    %v1055 = vshll.u32 %v88, 16
    %v1057 = vrot.slane %v1055, 5
    %v1058 = vor.u32 %v1054, %v1057
    %v1059 = vrot.slane %v1058, 4
    %v1061 = vshll.u32 %v89, 16
    %v1063 = vrot.slane %v1061, 5
    %v1064 = vsel %vm546, %v1059, %v1063
    %v1065 = vshrl.u32 %v89, 16
    %v1067 = vrot.slane %v1065, 4
    %v1068 = vor.u32 %v1067, %v1063
    %v1069 = vrot.slane %v1068, 4
    %v1071 = vshll.u32 %v90, 16
    %v1073 = vrot.slane %v1071, 5
    %v1074 = vsel %vm546, %v1069, %v1073
    %v1076 = vshrl.u32 %v91, 16
    %v1078 = vrot.slane %v1076, 4
    %v1079 = vshll.u32 %v91, 16
    %v1081 = vrot.slane %v1079, 5
    %v1082 = vor.u32 %v1078, %v1081
    %v1083 = vrot.slane %v1082, 4
    %v1085 = vshll.u32 %v92, 16
    %v1087 = vrot.slane %v1085, 5
    %v1088 = vsel %vm546, %v1083, %v1087
    %v1089 = vshrl.u32 %v92, 16
    %v1091 = vrot.slane %v1089, 4
    %v1092 = vor.u32 %v1091, %v1087
    %v1093 = vrot.slane %v1092, 4
    %v1095 = vshll.u32 %v93, 16
    %v1097 = vrot.slane %v1095, 5
    %v1098 = vsel %vm546, %v1093, %v1097
    %v1100 = vshrl.u32 %v94, 16
    %v1102 = vrot.slane %v1100, 4
    %v1103 = vshll.u32 %v94, 16
    %v1105 = vrot.slane %v1103, 5
    %v1106 = vor.u32 %v1102, %v1105
    %v1107 = vrot.slane %v1106, 4
    %v1109 = vshll.u32 %v95, 16
    %v1111 = vrot.slane %v1109, 5
    %v1112 = vsel %vm546, %v1107, %v1111
    %v1113 = vshrl.u32 %v95, 16
    %v1115 = vrot.slane %v1113, 4
    %v1116 = vor.u32 %v1115, %v1111
    %v1117 = vrot.slane %v1116, 4
    %v1119 = vshll.u32 %v96, 16
    %v1121 = vrot.slane %v1119, 5
    %v1122 = vsel %vm546, %v1117, %v1121
    %v1124 = vshrl.u32 %v97, 16
    %v1126 = vrot.slane %v1124, 4
    %v1127 = vshll.u32 %v97, 16
    %v1129 = vrot.slane %v1127, 5
    %v1130 = vor.u32 %v1126, %v1129
    %v1131 = vrot.slane %v1130, 4
    %v1133 = vshll.u32 %v98, 16
    %v1135 = vrot.slane %v1133, 5
    %v1136 = vsel %vm546, %v1131, %v1135
    %v1137 = vshrl.u32 %v98, 16
    %v1139 = vrot.slane %v1137, 4
    %v1140 = vor.u32 %v1139, %v1135
    %v1141 = vrot.slane %v1140, 4
    %v1143 = vshll.u32 %v99, 16
    %v1145 = vrot.slane %v1143, 5
    %v1146 = vsel %vm546, %v1141, %v1145
    %v1148 = vshrl.u32 %v100, 16
    %v1150 = vrot.slane %v1148, 4
    %v1151 = vshll.u32 %v100, 16
    %v1153 = vrot.slane %v1151, 5
    %v1154 = vor.u32 %v1150, %v1153
    %v1155 = vrot.slane %v1154, 4
    %v1157 = vshll.u32 %v101, 16
    %v1159 = vrot.slane %v1157, 5
    %v1160 = vsel %vm546, %v1155, %v1159
    %v1161 = vshrl.u32 %v101, 16
    %v1163 = vrot.slane %v1161, 4
    %v1164 = vor.u32 %v1163, %v1159
    %v1165 = vrot.slane %v1164, 4
    %v1167 = vshll.u32 %v102, 16
    %v1169 = vrot.slane %v1167, 5
    %v1170 = vsel %vm546, %v1165, %v1169
    %v1172 = vshrl.u32 %v103, 16
    %v1174 = vrot.slane %v1172, 4
    %v1175 = vshll.u32 %v103, 16
    %v1177 = vrot.slane %v1175, 5
    %v1178 = vor.u32 %v1174, %v1177
    %v1179 = vrot.slane %v1178, 4
    %v1181 = vshll.u32 %v104, 16
    %v1183 = vrot.slane %v1181, 5
    %v1184 = vsel %vm546, %v1179, %v1183
    %v1185 = vshrl.u32 %v104, 16
    %v1187 = vrot.slane %v1185, 4
    %v1188 = vor.u32 %v1187, %v1183
    %v1189 = vrot.slane %v1188, 4
    %v1191 = vshll.u32 %v105, 16
    %v1193 = vrot.slane %v1191, 5
    %v1194 = vsel %vm546, %v1189, %v1193
    %v1196 = vshrl.u32 %v106, 16
    %v1198 = vrot.slane %v1196, 4
    %v1199 = vshll.u32 %v106, 16
    %v1201 = vrot.slane %v1199, 5
    %v1202 = vor.u32 %v1198, %v1201
    %v1203 = vrot.slane %v1202, 4
    %v1205 = vshll.u32 %v107, 16
    %v1207 = vrot.slane %v1205, 5
    %v1208 = vsel %vm546, %v1203, %v1207
    %v1209 = vshrl.u32 %v107, 16
    %v1211 = vrot.slane %v1209, 4
    %v1212 = vor.u32 %v1211, %v1207
    %v1213 = vrot.slane %v1212, 4
    %v1215 = vshll.u32 %v108, 16
    %v1217 = vrot.slane %v1215, 5
    %v1218 = vsel %vm546, %v1213, %v1217
    %v1220 = vshrl.u32 %v109, 16
    %v1222 = vrot.slane %v1220, 4
    %v1223 = vshll.u32 %v109, 16
    %v1225 = vrot.slane %v1223, 5
    %v1226 = vor.u32 %v1222, %v1225
    %v1227 = vrot.slane %v1226, 4
    %v1229 = vshll.u32 %v110, 16
    %v1231 = vrot.slane %v1229, 5
    %v1232 = vsel %vm546, %v1227, %v1231
    %v1233 = vshrl.u32 %v110, 16
    %v1235 = vrot.slane %v1233, 4
    %v1236 = vor.u32 %v1235, %v1231
    %v1237 = vrot.slane %v1236, 4
    %v1239 = vshll.u32 %v111, 16
    %v1241 = vrot.slane %v1239, 5
    %v1242 = vsel %vm546, %v1237, %v1241
    %v1244 = vshrl.u32 %v112, 16
    %v1246 = vrot.slane %v1244, 4
    %v1247 = vshll.u32 %v112, 16
    %v1249 = vrot.slane %v1247, 5
    %v1250 = vor.u32 %v1246, %v1249
    %v1251 = vrot.slane %v1250, 4
    %v1253 = vshll.u32 %v113, 16
    %v1255 = vrot.slane %v1253, 5
    %v1256 = vsel %vm546, %v1251, %v1255
    %v1257 = vshrl.u32 %v113, 16
    %v1259 = vrot.slane %v1257, 4
    %v1260 = vor.u32 %v1259, %v1255
    %v1261 = vrot.slane %v1260, 4
    %v1263 = vshll.u32 %v114, 16
    %v1265 = vrot.slane %v1263, 5
    %v1266 = vsel %vm546, %v1261, %v1265
    %v1268 = vshrl.u32 %v115, 16
    %v1270 = vrot.slane %v1268, 4
    %v1271 = vshll.u32 %v115, 16
    %v1273 = vrot.slane %v1271, 5
    %v1274 = vor.u32 %v1270, %v1273
    %v1275 = vrot.slane %v1274, 4
    %v1277 = vshll.u32 %v116, 16
    %v1279 = vrot.slane %v1277, 5
    %v1280 = vsel %vm546, %v1275, %v1279
    %v1281 = vshrl.u32 %v116, 16
    %v1283 = vrot.slane %v1281, 4
    %v1284 = vor.u32 %v1283, %v1279
    %v1285 = vrot.slane %v1284, 4
    %v1287 = vshll.u32 %v117, 16
    %v1289 = vrot.slane %v1287, 5
    %v1290 = vsel %vm546, %v1285, %v1289
    %v1292 = vshrl.u32 %v118, 16
    %v1294 = vrot.slane %v1292, 4
    %v1295 = vshll.u32 %v118, 16
    %v1297 = vrot.slane %v1295, 5
    %v1298 = vor.u32 %v1294, %v1297
    %v1299 = vrot.slane %v1298, 4
    %v1301 = vshll.u32 %v119, 16
    %v1303 = vrot.slane %v1301, 5
    %v1304 = vsel %vm546, %v1299, %v1303
    %v1305 = vshrl.u32 %v119, 16
    %v1307 = vrot.slane %v1305, 4
    %v1308 = vor.u32 %v1307, %v1303
    %v1309 = vrot.slane %v1308, 4
    %v1311 = vshll.u32 %v120, 16
    %v1313 = vrot.slane %v1311, 5
    %v1314 = vsel %vm546, %v1309, %v1313
    %vm1411 = vcmask 1042432
    %vm1412 = vcmask 1046532
    %vm1413 = vmor %vm1411, %vm1412
    %v1414 = vrot.slane %v19, 5
    %v1415 = vrot.slane %v1414, 4
    %v1416 = vrot.slane %v20, 5
    %v1417 = vsel %vm1413, %v1415, %v1416
    %v1418 = vrot.slane %v1416, 4
    %v1419 = vrot.slane %v21, 5
    %v1420 = vsel %vm1413, %v1418, %v1419
    %v1421 = vrot.slane %v22, 5
    %v1422 = vrot.slane %v1421, 4
    %v1423 = vrot.slane %v23, 5
    %v1424 = vsel %vm1413, %v1422, %v1423
    %v1425 = vrot.slane %v1423, 4
    %v1426 = vrot.slane %v24, 5
    %v1427 = vsel %vm1413, %v1425, %v1426
    %v1428 = vrot.slane %v25, 5
    %v1429 = vrot.slane %v1428, 4
    %v1430 = vrot.slane %v26, 5
    %v1431 = vsel %vm1413, %v1429, %v1430
    %v1432 = vrot.slane %v1430, 4
    %v1433 = vrot.slane %v27, 5
    %v1434 = vsel %vm1413, %v1432, %v1433
    %v1435 = vrot.slane %v28, 5
    %v1436 = vrot.slane %v1435, 4
    %v1437 = vrot.slane %v29, 5
    %v1438 = vsel %vm1413, %v1436, %v1437
    %v1439 = vrot.slane %v1437, 4
    %v1440 = vrot.slane %v30, 5
    %v1441 = vsel %vm1413, %v1439, %v1440
    %v1442 = vrot.slane %v31, 5
    %v1443 = vrot.slane %v1442, 4
    %v1444 = vrot.slane %v32, 5
    %v1445 = vsel %vm1413, %v1443, %v1444
    %v1446 = vrot.slane %v1444, 4
    %v1447 = vrot.slane %v33, 5
    %v1448 = vsel %vm1413, %v1446, %v1447
    %v1449 = vrot.slane %v34, 5
    %v1450 = vrot.slane %v1449, 4
    %v1451 = vrot.slane %v35, 5
    %v1452 = vsel %vm1413, %v1450, %v1451
    %v1453 = vrot.slane %v1451, 4
    %v1454 = vrot.slane %v36, 5
    %v1455 = vsel %vm1413, %v1453, %v1454
    %v1456 = vrot.slane %v37, 5
    %v1457 = vrot.slane %v1456, 4
    %v1458 = vrot.slane %v38, 5
    %v1459 = vsel %vm1413, %v1457, %v1458
    %v1460 = vrot.slane %v1458, 4
    %v1461 = vrot.slane %v39, 5
    %v1462 = vsel %vm1413, %v1460, %v1461
    %v1463 = vrot.slane %v40, 5
    %v1464 = vrot.slane %v1463, 4
    %v1465 = vrot.slane %v41, 5
    %v1466 = vsel %vm1413, %v1464, %v1465
    %v1467 = vrot.slane %v1465, 4
    %v1468 = vrot.slane %v42, 5
    %v1469 = vsel %vm1413, %v1467, %v1468
    %v1470 = vrot.slane %v43, 5
    %v1471 = vrot.slane %v1470, 4
    %v1472 = vrot.slane %v44, 5
    %v1473 = vsel %vm1413, %v1471, %v1472
    %v1474 = vrot.slane %v1472, 4
    %v1475 = vrot.slane %v45, 5
    %v1476 = vsel %vm1413, %v1474, %v1475
    %v1477 = vrot.slane %v46, 5
    %v1478 = vrot.slane %v1477, 4
    %v1479 = vrot.slane %v47, 5
    %v1480 = vsel %vm1413, %v1478, %v1479
    %v1481 = vrot.slane %v1479, 4
    %v1482 = vrot.slane %v48, 5
    %v1483 = vsel %vm1413, %v1481, %v1482
    %v1484 = vrot.slane %v49, 5
    %v1485 = vrot.slane %v1484, 4
    %v1486 = vrot.slane %v50, 5
    %v1487 = vsel %vm1413, %v1485, %v1486
    %v1488 = vrot.slane %v1486, 4
    %v1489 = vrot.slane %v51, 5
    %v1490 = vsel %vm1413, %v1488, %v1489
    %v1491 = vrot.slane %v52, 5
    %v1492 = vrot.slane %v1491, 4
    %v1493 = vrot.slane %v53, 5
    %v1494 = vsel %vm1413, %v1492, %v1493
    %v1495 = vrot.slane %v1493, 4
    %v1496 = vrot.slane %v54, 5
    %v1497 = vsel %vm1413, %v1495, %v1496
    %v1498 = vrot.slane %v55, 5
    %v1499 = vrot.slane %v1498, 4
    %v1500 = vrot.slane %v56, 5
    %v1501 = vsel %vm1413, %v1499, %v1500
    %v1502 = vrot.slane %v1500, 4
    %v1503 = vrot.slane %v57, 5
    %v1504 = vsel %vm1413, %v1502, %v1503
    %v1505 = vrot.slane %v58, 5
    %v1506 = vrot.slane %v1505, 4
    %v1507 = vrot.slane %v59, 5
    %v1508 = vsel %vm1413, %v1506, %v1507
    %v1509 = vrot.slane %v1507, 4
    %v1510 = vrot.slane %v60, 5
    %v1511 = vsel %vm1413, %v1509, %v1510
    %v1512 = vrot.slane %v61, 5
    %v1513 = vrot.slane %v1512, 4
    %v1514 = vrot.slane %v62, 5
    %v1515 = vsel %vm1413, %v1513, %v1514
    %v1516 = vrot.slane %v1514, 4
    %v1517 = vrot.slane %v63, 5
    %v1518 = vsel %vm1413, %v1516, %v1517
    %v1519 = vrot.slane %v64, 5
    %v1520 = vrot.slane %v1519, 4
    %v1521 = vrot.slane %v65, 5
    %v1522 = vsel %vm1413, %v1520, %v1521
    %v1523 = vrot.slane %v1521, 4
    %v1524 = vrot.slane %v66, 5
    %v1525 = vsel %vm1413, %v1523, %v1524
    %v1526 = vrot.slane %v73, 5
    %v1527 = vrot.slane %v1526, 4
    %v1528 = vrot.slane %v74, 5
    %v1529 = vsel %vm1413, %v1527, %v1528
    %v1530 = vrot.slane %v1528, 4
    %v1531 = vrot.slane %v75, 5
    %v1532 = vsel %vm1413, %v1530, %v1531
    %v1533 = vrot.slane %v76, 5
    %v1534 = vrot.slane %v1533, 4
    %v1535 = vrot.slane %v77, 5
    %v1536 = vsel %vm1413, %v1534, %v1535
    %v1537 = vrot.slane %v1535, 4
    %v1538 = vrot.slane %v78, 5
    %v1539 = vsel %vm1413, %v1537, %v1538
    %v1540 = vrot.slane %v79, 5
    %v1541 = vrot.slane %v1540, 4
    %v1542 = vrot.slane %v80, 5
    %v1543 = vsel %vm1413, %v1541, %v1542
    %v1544 = vrot.slane %v1542, 4
    %v1545 = vrot.slane %v81, 5
    %v1546 = vsel %vm1413, %v1544, %v1545
    %v1547 = vrot.slane %v82, 5
    %v1548 = vrot.slane %v1547, 4
    %v1549 = vrot.slane %v83, 5
    %v1550 = vsel %vm1413, %v1548, %v1549
    %v1551 = vrot.slane %v1549, 4
    %v1552 = vrot.slane %v84, 5
    %v1553 = vsel %vm1413, %v1551, %v1552
    %v1554 = vrot.slane %v85, 5
    %v1555 = vrot.slane %v1554, 4
    %v1556 = vrot.slane %v86, 5
    %v1557 = vsel %vm1413, %v1555, %v1556
    %v1558 = vrot.slane %v1556, 4
    %v1559 = vrot.slane %v87, 5
    %v1560 = vsel %vm1413, %v1558, %v1559
    %v1561 = vrot.slane %v88, 5
    %v1562 = vrot.slane %v1561, 4
    %v1563 = vrot.slane %v89, 5
    %v1564 = vsel %vm1413, %v1562, %v1563
    %v1565 = vrot.slane %v1563, 4
    %v1566 = vrot.slane %v90, 5
    %v1567 = vsel %vm1413, %v1565, %v1566
    %v1568 = vrot.slane %v91, 5
    %v1569 = vrot.slane %v1568, 4
    %v1570 = vrot.slane %v92, 5
    %v1571 = vsel %vm1413, %v1569, %v1570
    %v1572 = vrot.slane %v1570, 4
    %v1573 = vrot.slane %v93, 5
    %v1574 = vsel %vm1413, %v1572, %v1573
    %v1575 = vrot.slane %v94, 5
    %v1576 = vrot.slane %v1575, 4
    %v1577 = vrot.slane %v95, 5
    %v1578 = vsel %vm1413, %v1576, %v1577
    %v1579 = vrot.slane %v1577, 4
    %v1580 = vrot.slane %v96, 5
    %v1581 = vsel %vm1413, %v1579, %v1580
    %v1582 = vrot.slane %v97, 5
    %v1583 = vrot.slane %v1582, 4
    %v1584 = vrot.slane %v98, 5
    %v1585 = vsel %vm1413, %v1583, %v1584
    %v1586 = vrot.slane %v1584, 4
    %v1587 = vrot.slane %v99, 5
    %v1588 = vsel %vm1413, %v1586, %v1587
    %v1589 = vrot.slane %v100, 5
    %v1590 = vrot.slane %v1589, 4
    %v1591 = vrot.slane %v101, 5
    %v1592 = vsel %vm1413, %v1590, %v1591
    %v1593 = vrot.slane %v1591, 4
    %v1594 = vrot.slane %v102, 5
    %v1595 = vsel %vm1413, %v1593, %v1594
    %v1596 = vrot.slane %v103, 5
    %v1597 = vrot.slane %v1596, 4
    %v1598 = vrot.slane %v104, 5
    %v1599 = vsel %vm1413, %v1597, %v1598
    %v1600 = vrot.slane %v1598, 4
    %v1601 = vrot.slane %v105, 5
    %v1602 = vsel %vm1413, %v1600, %v1601
    %v1603 = vrot.slane %v106, 5
    %v1604 = vrot.slane %v1603, 4
    %v1605 = vrot.slane %v107, 5
    %v1606 = vsel %vm1413, %v1604, %v1605
    %v1607 = vrot.slane %v1605, 4
    %v1608 = vrot.slane %v108, 5
    %v1609 = vsel %vm1413, %v1607, %v1608
    %v1610 = vrot.slane %v109, 5
    %v1611 = vrot.slane %v1610, 4
    %v1612 = vrot.slane %v110, 5
    %v1613 = vsel %vm1413, %v1611, %v1612
    %v1614 = vrot.slane %v1612, 4
    %v1615 = vrot.slane %v111, 5
    %v1616 = vsel %vm1413, %v1614, %v1615
    %v1617 = vrot.slane %v112, 5
    %v1618 = vrot.slane %v1617, 4
    %v1619 = vrot.slane %v113, 5
    %v1620 = vsel %vm1413, %v1618, %v1619
    %v1621 = vrot.slane %v1619, 4
    %v1622 = vrot.slane %v114, 5
    %v1623 = vsel %vm1413, %v1621, %v1622
    %v1624 = vrot.slane %v115, 5
    %v1625 = vrot.slane %v1624, 4
    %v1626 = vrot.slane %v116, 5
    %v1627 = vsel %vm1413, %v1625, %v1626
    %v1628 = vrot.slane %v1626, 4
    %v1629 = vrot.slane %v117, 5
    %v1630 = vsel %vm1413, %v1628, %v1629
    %v1631 = vrot.slane %v118, 5
    %v1632 = vrot.slane %v1631, 4
    %v1633 = vrot.slane %v119, 5
    %v1634 = vsel %vm1413, %v1632, %v1633
    %v1635 = vrot.slane %v1633, 4
    %v1636 = vrot.slane %v120, 5
    %v1637 = vsel %vm1413, %v1635, %v1636
    %v1639 = vshrl.u32 %v67, 16
    %v1641 = vrot.slane %v1639, 4
    %v1642 = vshll.u32 %v67, 16
    %v1644 = vrot.slane %v1642, 5
    %v1645 = vor.u32 %v1641, %v1644
    %v1646 = vrot.slane %v1645, 4
    %v1648 = vshll.u32 %v68, 16
    %v1650 = vrot.slane %v1648, 5
    %v1651 = vsel %vm546, %v1646, %v1650
    %v1652 = vshrl.u32 %v68, 16
    %v1654 = vrot.slane %v1652, 4
    %v1655 = vor.u32 %v1654, %v1650
    %v1656 = vrot.slane %v1655, 4
    %v1658 = vshll.u32 %v69, 16
    %v1660 = vrot.slane %v1658, 5
    %v1661 = vsel %vm546, %v1656, %v1660
    %v1663 = vshrl.u32 %v121, 16
    %v1665 = vrot.slane %v1663, 4
    %v1666 = vshll.u32 %v121, 16
    %v1668 = vrot.slane %v1666, 5
    %v1669 = vor.u32 %v1665, %v1668
    %v1670 = vrot.slane %v1669, 4
    %v1672 = vshll.u32 %v122, 16
    %v1674 = vrot.slane %v1672, 5
    %v1675 = vsel %vm546, %v1670, %v1674
    %v1676 = vshrl.u32 %v122, 16
    %v1678 = vrot.slane %v1676, 4
    %v1679 = vor.u32 %v1678, %v1674
    %v1680 = vrot.slane %v1679, 4
    %v1682 = vshll.u32 %v123, 16
    %v1684 = vrot.slane %v1682, 5
    %v1685 = vsel %vm546, %v1680, %v1684
    %v1692 = vrot.slane %v67, 5
    %v1693 = vrot.slane %v1692, 4
    %v1694 = vrot.slane %v68, 5
    %v1695 = vsel %vm1413, %v1693, %v1694
    %v1696 = vrot.slane %v1694, 4
    %v1697 = vrot.slane %v69, 5
    %v1698 = vsel %vm1413, %v1696, %v1697
    %v1699 = vrot.slane %v121, 5
    %v1700 = vrot.slane %v1699, 4
    %v1701 = vrot.slane %v122, 5
    %v1702 = vsel %vm1413, %v1700, %v1701
    %v1703 = vrot.slane %v1701, 4
    %v1704 = vrot.slane %v123, 5
    %v1705 = vsel %vm1413, %v1703, %v1704
    %v1707 = vshrl.u32 %v70, 16
    %v1709 = vrot.slane %v1707, 4
    %v1710 = vshll.u32 %v70, 16
    %v1712 = vrot.slane %v1710, 5
    %v1713 = vor.u32 %v1709, %v1712
    %v1714 = vrot.slane %v1713, 4
    %v1716 = vshll.u32 %v71, 16
    %v1718 = vrot.slane %v1716, 5
    %v1719 = vsel %vm546, %v1714, %v1718
    %v1720 = vshrl.u32 %v71, 16
    %v1722 = vrot.slane %v1720, 4
    %v1723 = vor.u32 %v1722, %v1718
    %v1724 = vrot.slane %v1723, 4
    %v1726 = vshll.u32 %v72, 16
    %v1728 = vrot.slane %v1726, 5
    %v1729 = vsel %vm546, %v1724, %v1728
    %v1731 = vshrl.u32 %v124, 16
    %v1733 = vrot.slane %v1731, 4
    %v1734 = vshll.u32 %v124, 16
    %v1736 = vrot.slane %v1734, 5
    %v1737 = vor.u32 %v1733, %v1736
    %v1738 = vrot.slane %v1737, 4
    %v1740 = vshll.u32 %v125, 16
    %v1742 = vrot.slane %v1740, 5
    %v1743 = vsel %vm546, %v1738, %v1742
    %v1744 = vshrl.u32 %v125, 16
    %v1746 = vrot.slane %v1744, 4
    %v1747 = vor.u32 %v1746, %v1742
    %v1748 = vrot.slane %v1747, 4
    %v1750 = vshll.u32 %v126, 16
    %v1752 = vrot.slane %v1750, 5
    %v1753 = vsel %vm546, %v1748, %v1752
    %v1760 = vrot.slane %v70, 5
    %v1761 = vrot.slane %v1760, 4
    %v1762 = vrot.slane %v71, 5
    %v1763 = vsel %vm1413, %v1761, %v1762
    %v1764 = vrot.slane %v1762, 4
    %v1765 = vrot.slane %v72, 5
    %v1766 = vsel %vm1413, %v1764, %v1765
    %v1767 = vrot.slane %v124, 5
    %v1768 = vrot.slane %v1767, 4
    %v1769 = vrot.slane %v125, 5
    %v1770 = vsel %vm1413, %v1768, %v1769
    %v1771 = vrot.slane %v1769, 4
    %v1772 = vrot.slane %v126, 5
    %v1773 = vsel %vm1413, %v1771, %v1772
    %v1774 = vunpack.c.l.b16 %v19
    %v1775 = vunpack.c.l.b16 %v20
    %v1776 = vunpack.c.l.b16 %v22
    %v1777 = vunpack.c.l.b16 %v23
    %v1778 = vunpack.c.l.b16 %v25
    %v1779 = vunpack.c.l.b16 %v26
    %v1780 = vunpack.c.l.b16 %v28
    %v1781 = vunpack.c.l.b16 %v29
    %v1782 = vunpack.c.l.b16 %v31
    %v1783 = vunpack.c.l.b16 %v32
    %v1784 = vunpack.c.l.b16 %v34
    %v1785 = vunpack.c.l.b16 %v35
    %v1786 = vunpack.c.l.b16 %v37
    %v1787 = vunpack.c.l.b16 %v38
    %v1788 = vunpack.c.l.b16 %v40
    %v1789 = vunpack.c.l.b16 %v41
    %v1790 = vunpack.c.l.b16 %v43
    %v1791 = vunpack.c.l.b16 %v44
    %v1792 = vunpack.c.l.b16 %v46
    %v1793 = vunpack.c.l.b16 %v47
    %v1794 = vunpack.c.l.b16 %v49
    %v1795 = vunpack.c.l.b16 %v50
    %v1796 = vunpack.c.l.b16 %v52
    %v1797 = vunpack.c.l.b16 %v53
    %v1798 = vunpack.c.l.b16 %v55
    %v1799 = vunpack.c.l.b16 %v56
    %v1800 = vunpack.c.l.b16 %v58
    %v1801 = vunpack.c.l.b16 %v59
    %v1802 = vunpack.c.l.b16 %v61
    %v1803 = vunpack.c.l.b16 %v62
    %v1804 = vunpack.c.l.b16 %v64
    %v1805 = vunpack.c.l.b16 %v65
    %v1806 = vunpack.c.l.b16 %v73
    %v1807 = vunpack.c.l.b16 %v74
    %v1808 = vunpack.c.l.b16 %v76
    %v1809 = vunpack.c.l.b16 %v77
    %v1810 = vunpack.c.l.b16 %v79
    %v1811 = vunpack.c.l.b16 %v80
    %v1812 = vunpack.c.l.b16 %v82
    %v1813 = vunpack.c.l.b16 %v83
    %v1814 = vunpack.c.l.b16 %v85
    %v1815 = vunpack.c.l.b16 %v86
    %v1816 = vunpack.c.l.b16 %v88
    %v1817 = vunpack.c.l.b16 %v89
    %v1818 = vunpack.c.l.b16 %v91
    %v1819 = vunpack.c.l.b16 %v92
    %v1820 = vunpack.c.l.b16 %v94
    %v1821 = vunpack.c.l.b16 %v95
    %v1822 = vunpack.c.l.b16 %v97
    %v1823 = vunpack.c.l.b16 %v98
    %v1824 = vunpack.c.l.b16 %v100
    %v1825 = vunpack.c.l.b16 %v101
    %v1826 = vunpack.c.l.b16 %v103
    %v1827 = vunpack.c.l.b16 %v104
    %v1828 = vunpack.c.l.b16 %v106
    %v1829 = vunpack.c.l.b16 %v107
    %v1830 = vunpack.c.l.b16 %v109
    %v1831 = vunpack.c.l.b16 %v110
    %v1832 = vunpack.c.l.b16 %v112
    %v1833 = vunpack.c.l.b16 %v113
    %v1834 = vunpack.c.l.b16 %v115
    %v1835 = vunpack.c.l.b16 %v116
    %v1836 = vunpack.c.l.b16 %v118
    %v1837 = vunpack.c.l.b16 %v119
    %v1838 = vpack.c.b16 %v1775, %v1774
    %v1839 = vpack.c.b16 %v1777, %v1776
    %v1840 = vpack.c.b16 %v1779, %v1778
    %v1841 = vpack.c.b16 %v1781, %v1780
    %v1842 = vpack.c.b16 %v1783, %v1782
    %v1843 = vpack.c.b16 %v1785, %v1784
    %v1844 = vpack.c.b16 %v1787, %v1786
    %v1845 = vpack.c.b16 %v1789, %v1788
    %v1846 = vpack.c.b16 %v1791, %v1790
    %v1847 = vpack.c.b16 %v1793, %v1792
    %v1848 = vpack.c.b16 %v1795, %v1794
    %v1849 = vpack.c.b16 %v1797, %v1796
    %v1850 = vpack.c.b16 %v1799, %v1798
    %v1851 = vpack.c.b16 %v1801, %v1800
    %v1852 = vpack.c.b16 %v1803, %v1802
    %v1853 = vpack.c.b16 %v1805, %v1804
    %v1854 = vpack.c.b16 %v1807, %v1806
    %v1855 = vpack.c.b16 %v1809, %v1808
    %v1856 = vpack.c.b16 %v1811, %v1810
    %v1857 = vpack.c.b16 %v1813, %v1812
    %v1858 = vpack.c.b16 %v1815, %v1814
    %v1859 = vpack.c.b16 %v1817, %v1816
    %v1860 = vpack.c.b16 %v1819, %v1818
    %v1861 = vpack.c.b16 %v1821, %v1820
    %v1862 = vpack.c.b16 %v1823, %v1822
    %v1863 = vpack.c.b16 %v1825, %v1824
    %v1864 = vpack.c.b16 %v1827, %v1826
    %v1865 = vpack.c.b16 %v1829, %v1828
    %v1866 = vpack.c.b16 %v1831, %v1830
    %v1867 = vpack.c.b16 %v1833, %v1832
    %v1868 = vpack.c.b16 %v1835, %v1834
    %v1869 = vpack.c.b16 %v1837, %v1836
    %v1870 = vunpack.c.l.b16 %v560
    %v1871 = vunpack.c.l.b16 %v570
    %v1872 = vunpack.c.l.b16 %v584
    %v1873 = vunpack.c.l.b16 %v594
    %v1874 = vunpack.c.l.b16 %v608
    %v1875 = vunpack.c.l.b16 %v618
    %v1876 = vunpack.c.l.b16 %v632
    %v1877 = vunpack.c.l.b16 %v642
    %v1878 = vunpack.c.l.b16 %v656
    %v1879 = vunpack.c.l.b16 %v666
    %v1880 = vunpack.c.l.b16 %v680
    %v1881 = vunpack.c.l.b16 %v690
    %v1882 = vunpack.c.l.b16 %v704
    %v1883 = vunpack.c.l.b16 %v714
    %v1884 = vunpack.c.l.b16 %v728
    %v1885 = vunpack.c.l.b16 %v738
    %v1886 = vunpack.c.l.b16 %v752
    %v1887 = vunpack.c.l.b16 %v762
    %v1888 = vunpack.c.l.b16 %v776
    %v1889 = vunpack.c.l.b16 %v786
    %v1890 = vunpack.c.l.b16 %v800
    %v1891 = vunpack.c.l.b16 %v810
    %v1892 = vunpack.c.l.b16 %v824
    %v1893 = vunpack.c.l.b16 %v834
    %v1894 = vunpack.c.l.b16 %v848
    %v1895 = vunpack.c.l.b16 %v858
    %v1896 = vunpack.c.l.b16 %v872
    %v1897 = vunpack.c.l.b16 %v882
    %v1898 = vunpack.c.l.b16 %v896
    %v1899 = vunpack.c.l.b16 %v906
    %v1900 = vunpack.c.l.b16 %v920
    %v1901 = vunpack.c.l.b16 %v930
    %v1902 = vunpack.c.l.b16 %v944
    %v1903 = vunpack.c.l.b16 %v954
    %v1904 = vunpack.c.l.b16 %v968
    %v1905 = vunpack.c.l.b16 %v978
    %v1906 = vunpack.c.l.b16 %v992
    %v1907 = vunpack.c.l.b16 %v1002
    %v1908 = vunpack.c.l.b16 %v1016
    %v1909 = vunpack.c.l.b16 %v1026
    %v1910 = vunpack.c.l.b16 %v1040
    %v1911 = vunpack.c.l.b16 %v1050
    %v1912 = vunpack.c.l.b16 %v1064
    %v1913 = vunpack.c.l.b16 %v1074
    %v1914 = vunpack.c.l.b16 %v1088
    %v1915 = vunpack.c.l.b16 %v1098
    %v1916 = vunpack.c.l.b16 %v1112
    %v1917 = vunpack.c.l.b16 %v1122
    %v1918 = vunpack.c.l.b16 %v1136
    %v1919 = vunpack.c.l.b16 %v1146
    %v1920 = vunpack.c.l.b16 %v1160
    %v1921 = vunpack.c.l.b16 %v1170
    %v1922 = vunpack.c.l.b16 %v1184
    %v1923 = vunpack.c.l.b16 %v1194
    %v1924 = vunpack.c.l.b16 %v1208
    %v1925 = vunpack.c.l.b16 %v1218
    %v1926 = vunpack.c.l.b16 %v1232
    %v1927 = vunpack.c.l.b16 %v1242
    %v1928 = vunpack.c.l.b16 %v1256
    %v1929 = vunpack.c.l.b16 %v1266
    %v1930 = vunpack.c.l.b16 %v1280
    %v1931 = vunpack.c.l.b16 %v1290
    %v1932 = vunpack.c.l.b16 %v1304
    %v1933 = vunpack.c.l.b16 %v1314
    %v1934 = vpack.c.b16 %v1871, %v1870
    %v1935 = vpack.c.b16 %v1873, %v1872
    %v1936 = vpack.c.b16 %v1875, %v1874
    %v1937 = vpack.c.b16 %v1877, %v1876
    %v1938 = vpack.c.b16 %v1879, %v1878
    %v1939 = vpack.c.b16 %v1881, %v1880
    %v1940 = vpack.c.b16 %v1883, %v1882
    %v1941 = vpack.c.b16 %v1885, %v1884
    %v1942 = vpack.c.b16 %v1887, %v1886
    %v1943 = vpack.c.b16 %v1889, %v1888
    %v1944 = vpack.c.b16 %v1891, %v1890
    %v1945 = vpack.c.b16 %v1893, %v1892
    %v1946 = vpack.c.b16 %v1895, %v1894
    %v1947 = vpack.c.b16 %v1897, %v1896
    %v1948 = vpack.c.b16 %v1899, %v1898
    %v1949 = vpack.c.b16 %v1901, %v1900
    %v1950 = vpack.c.b16 %v1903, %v1902
    %v1951 = vpack.c.b16 %v1905, %v1904
    %v1952 = vpack.c.b16 %v1907, %v1906
    %v1953 = vpack.c.b16 %v1909, %v1908
    %v1954 = vpack.c.b16 %v1911, %v1910
    %v1955 = vpack.c.b16 %v1913, %v1912
    %v1956 = vpack.c.b16 %v1915, %v1914
    %v1957 = vpack.c.b16 %v1917, %v1916
    %v1958 = vpack.c.b16 %v1919, %v1918
    %v1959 = vpack.c.b16 %v1921, %v1920
    %v1960 = vpack.c.b16 %v1923, %v1922
    %v1961 = vpack.c.b16 %v1925, %v1924
    %v1962 = vpack.c.b16 %v1927, %v1926
    %v1963 = vpack.c.b16 %v1929, %v1928
    %v1964 = vpack.c.b16 %v1931, %v1930
    %v1965 = vpack.c.b16 %v1933, %v1932
    %1966 = vrot.lane.b32.xlu0 %v1934, 40
    %v1967 = vpop.permute.xlu0 %1966
    %1968 = vrot.lane.b32.xlu0 %v1935, 40
    %v1969 = vpop.permute.xlu0 %1968
    %1970 = vrot.lane.b32.xlu0 %v1936, 40
    %v1971 = vpop.permute.xlu0 %1970
    %1972 = vrot.lane.b32.xlu0 %v1937, 40
    %v1973 = vpop.permute.xlu0 %1972
    %1974 = vrot.lane.b32.xlu0 %v1938, 40
    %v1975 = vpop.permute.xlu0 %1974
    %1976 = vrot.lane.b32.xlu0 %v1939, 40
    %v1977 = vpop.permute.xlu0 %1976
    %1978 = vrot.lane.b32.xlu0 %v1940, 40
    %v1979 = vpop.permute.xlu0 %1978
    %1980 = vrot.lane.b32.xlu0 %v1941, 40
    %v1981 = vpop.permute.xlu0 %1980
    %1982 = vrot.lane.b32.xlu0 %v1942, 40
    %v1983 = vpop.permute.xlu0 %1982
    %1984 = vrot.lane.b32.xlu0 %v1943, 40
    %v1985 = vpop.permute.xlu0 %1984
    %1986 = vrot.lane.b32.xlu0 %v1944, 40
    %v1987 = vpop.permute.xlu0 %1986
    %1988 = vrot.lane.b32.xlu0 %v1945, 40
    %v1989 = vpop.permute.xlu0 %1988
    %1990 = vrot.lane.b32.xlu0 %v1946, 40
    %v1991 = vpop.permute.xlu0 %1990
    %1992 = vrot.lane.b32.xlu0 %v1947, 40
    %v1993 = vpop.permute.xlu0 %1992
    %1994 = vrot.lane.b32.xlu0 %v1948, 40
    %v1995 = vpop.permute.xlu0 %1994
    %1996 = vrot.lane.b32.xlu0 %v1949, 40
    %v1997 = vpop.permute.xlu0 %1996
    %1998 = vrot.lane.b32.xlu0 %v1950, 40
    %v1999 = vpop.permute.xlu0 %1998
    %2000 = vrot.lane.b32.xlu0 %v1951, 40
    %v2001 = vpop.permute.xlu0 %2000
    %2002 = vrot.lane.b32.xlu0 %v1952, 40
    %v2003 = vpop.permute.xlu0 %2002
    %2004 = vrot.lane.b32.xlu0 %v1953, 40
    %v2005 = vpop.permute.xlu0 %2004
    %2006 = vrot.lane.b32.xlu0 %v1954, 40
    %v2007 = vpop.permute.xlu0 %2006
    %2008 = vrot.lane.b32.xlu0 %v1955, 40
    %v2009 = vpop.permute.xlu0 %2008
    %2010 = vrot.lane.b32.xlu0 %v1956, 40
    %v2011 = vpop.permute.xlu0 %2010
    %2012 = vrot.lane.b32.xlu0 %v1957, 40
    %v2013 = vpop.permute.xlu0 %2012
    %2014 = vrot.lane.b32.xlu0 %v1958, 40
    %v2015 = vpop.permute.xlu0 %2014
    %2016 = vrot.lane.b32.xlu0 %v1959, 40
    %v2017 = vpop.permute.xlu0 %2016
    %2018 = vrot.lane.b32.xlu0 %v1960, 40
    %v2019 = vpop.permute.xlu0 %2018
    %2020 = vrot.lane.b32.xlu0 %v1961, 40
    %v2021 = vpop.permute.xlu0 %2020
    %2022 = vrot.lane.b32.xlu0 %v1962, 40
    %v2023 = vpop.permute.xlu0 %2022
    %2024 = vrot.lane.b32.xlu0 %v1963, 40
    %v2025 = vpop.permute.xlu0 %2024
    %2026 = vrot.lane.b32.xlu0 %v1964, 40
    %v2027 = vpop.permute.xlu0 %2026
    %2028 = vrot.lane.b32.xlu0 %v1965, 40
    %v2029 = vpop.permute.xlu0 %2028
    %v2030 = vunpack.c.l.b16 %v1417
    %v2031 = vunpack.c.l.b16 %v1420
    %v2032 = vunpack.c.l.b16 %v1424
    %v2033 = vunpack.c.l.b16 %v1427
    %v2034 = vunpack.c.l.b16 %v1431
    %v2035 = vunpack.c.l.b16 %v1434
    %v2036 = vunpack.c.l.b16 %v1438
    %v2037 = vunpack.c.l.b16 %v1441
    %v2038 = vunpack.c.l.b16 %v1445
    %v2039 = vunpack.c.l.b16 %v1448
    %v2040 = vunpack.c.l.b16 %v1452
    %v2041 = vunpack.c.l.b16 %v1455
    %v2042 = vunpack.c.l.b16 %v1459
    %v2043 = vunpack.c.l.b16 %v1462
    %v2044 = vunpack.c.l.b16 %v1466
    %v2045 = vunpack.c.l.b16 %v1469
    %v2046 = vunpack.c.l.b16 %v1473
    %v2047 = vunpack.c.l.b16 %v1476
    %v2048 = vunpack.c.l.b16 %v1480
    %v2049 = vunpack.c.l.b16 %v1483
    %v2050 = vunpack.c.l.b16 %v1487
    %v2051 = vunpack.c.l.b16 %v1490
    %v2052 = vunpack.c.l.b16 %v1494
    %v2053 = vunpack.c.l.b16 %v1497
    %v2054 = vunpack.c.l.b16 %v1501
    %v2055 = vunpack.c.l.b16 %v1504
    %v2056 = vunpack.c.l.b16 %v1508
    %v2057 = vunpack.c.l.b16 %v1511
    %v2058 = vunpack.c.l.b16 %v1515
    %v2059 = vunpack.c.l.b16 %v1518
    %v2060 = vunpack.c.l.b16 %v1522
    %v2061 = vunpack.c.l.b16 %v1525
    %v2062 = vunpack.c.l.b16 %v1529
    %v2063 = vunpack.c.l.b16 %v1532
    %v2064 = vunpack.c.l.b16 %v1536
    %v2065 = vunpack.c.l.b16 %v1539
    %v2066 = vunpack.c.l.b16 %v1543
    %v2067 = vunpack.c.l.b16 %v1546
    %v2068 = vunpack.c.l.b16 %v1550
    %v2069 = vunpack.c.l.b16 %v1553
    %v2070 = vunpack.c.l.b16 %v1557
    %v2071 = vunpack.c.l.b16 %v1560
    %v2072 = vunpack.c.l.b16 %v1564
    %v2073 = vunpack.c.l.b16 %v1567
    %v2074 = vunpack.c.l.b16 %v1571
    %v2075 = vunpack.c.l.b16 %v1574
    %v2076 = vunpack.c.l.b16 %v1578
    %v2077 = vunpack.c.l.b16 %v1581
    %v2078 = vunpack.c.l.b16 %v1585
    %v2079 = vunpack.c.l.b16 %v1588
    %v2080 = vunpack.c.l.b16 %v1592
    %v2081 = vunpack.c.l.b16 %v1595
    %v2082 = vunpack.c.l.b16 %v1599
    %v2083 = vunpack.c.l.b16 %v1602
    %v2084 = vunpack.c.l.b16 %v1606
    %v2085 = vunpack.c.l.b16 %v1609
    %v2086 = vunpack.c.l.b16 %v1613
    %v2087 = vunpack.c.l.b16 %v1616
    %v2088 = vunpack.c.l.b16 %v1620
    %v2089 = vunpack.c.l.b16 %v1623
    %v2090 = vunpack.c.l.b16 %v1627
    %v2091 = vunpack.c.l.b16 %v1630
    %v2092 = vunpack.c.l.b16 %v1634
    %v2093 = vunpack.c.l.b16 %v1637
    %v2094 = vpack.c.b16 %v2031, %v2030
    %v2095 = vpack.c.b16 %v2033, %v2032
    %v2096 = vpack.c.b16 %v2035, %v2034
    %v2097 = vpack.c.b16 %v2037, %v2036
    %v2098 = vpack.c.b16 %v2039, %v2038
    %v2099 = vpack.c.b16 %v2041, %v2040
    %v2100 = vpack.c.b16 %v2043, %v2042
    %v2101 = vpack.c.b16 %v2045, %v2044
    %v2102 = vpack.c.b16 %v2047, %v2046
    %v2103 = vpack.c.b16 %v2049, %v2048
    %v2104 = vpack.c.b16 %v2051, %v2050
    %v2105 = vpack.c.b16 %v2053, %v2052
    %v2106 = vpack.c.b16 %v2055, %v2054
    %v2107 = vpack.c.b16 %v2057, %v2056
    %v2108 = vpack.c.b16 %v2059, %v2058
    %v2109 = vpack.c.b16 %v2061, %v2060
    %v2110 = vpack.c.b16 %v2063, %v2062
    %v2111 = vpack.c.b16 %v2065, %v2064
    %v2112 = vpack.c.b16 %v2067, %v2066
    %v2113 = vpack.c.b16 %v2069, %v2068
    %v2114 = vpack.c.b16 %v2071, %v2070
    %v2115 = vpack.c.b16 %v2073, %v2072
    %v2116 = vpack.c.b16 %v2075, %v2074
    %v2117 = vpack.c.b16 %v2077, %v2076
    %v2118 = vpack.c.b16 %v2079, %v2078
    %v2119 = vpack.c.b16 %v2081, %v2080
    %v2120 = vpack.c.b16 %v2083, %v2082
    %v2121 = vpack.c.b16 %v2085, %v2084
    %v2122 = vpack.c.b16 %v2087, %v2086
    %v2123 = vpack.c.b16 %v2089, %v2088
    %v2124 = vpack.c.b16 %v2091, %v2090
    %v2125 = vpack.c.b16 %v2093, %v2092
    %2126 = vrot.lane.b32.xlu0 %v2094, 80
    %v2127 = vpop.permute.xlu0 %2126
    %2128 = vrot.lane.b32.xlu0 %v2095, 80
    %v2129 = vpop.permute.xlu0 %2128
    %2130 = vrot.lane.b32.xlu0 %v2096, 80
    %v2131 = vpop.permute.xlu0 %2130
    %2132 = vrot.lane.b32.xlu0 %v2097, 80
    %v2133 = vpop.permute.xlu0 %2132
    %2134 = vrot.lane.b32.xlu0 %v2098, 80
    %v2135 = vpop.permute.xlu0 %2134
    %2136 = vrot.lane.b32.xlu0 %v2099, 80
    %v2137 = vpop.permute.xlu0 %2136
    %2138 = vrot.lane.b32.xlu0 %v2100, 80
    %v2139 = vpop.permute.xlu0 %2138
    %2140 = vrot.lane.b32.xlu0 %v2101, 80
    %v2141 = vpop.permute.xlu0 %2140
    %2142 = vrot.lane.b32.xlu0 %v2102, 80
    %v2143 = vpop.permute.xlu0 %2142
    %2144 = vrot.lane.b32.xlu0 %v2103, 80
    %v2145 = vpop.permute.xlu0 %2144
    %2146 = vrot.lane.b32.xlu0 %v2104, 80
    %v2147 = vpop.permute.xlu0 %2146
    %2148 = vrot.lane.b32.xlu0 %v2105, 80
    %v2149 = vpop.permute.xlu0 %2148
    %2150 = vrot.lane.b32.xlu0 %v2106, 80
    %v2151 = vpop.permute.xlu0 %2150
    %2152 = vrot.lane.b32.xlu0 %v2107, 80
    %v2153 = vpop.permute.xlu0 %2152
    %2154 = vrot.lane.b32.xlu0 %v2108, 80
    %v2155 = vpop.permute.xlu0 %2154
    %2156 = vrot.lane.b32.xlu0 %v2109, 80
    %v2157 = vpop.permute.xlu0 %2156
    %2158 = vrot.lane.b32.xlu0 %v2110, 80
    %v2159 = vpop.permute.xlu0 %2158
    %2160 = vrot.lane.b32.xlu0 %v2111, 80
    %v2161 = vpop.permute.xlu0 %2160
    %2162 = vrot.lane.b32.xlu0 %v2112, 80
    %v2163 = vpop.permute.xlu0 %2162
    %2164 = vrot.lane.b32.xlu0 %v2113, 80
    %v2165 = vpop.permute.xlu0 %2164
    %2166 = vrot.lane.b32.xlu0 %v2114, 80
    %v2167 = vpop.permute.xlu0 %2166
    %2168 = vrot.lane.b32.xlu0 %v2115, 80
    %v2169 = vpop.permute.xlu0 %2168
    %2170 = vrot.lane.b32.xlu0 %v2116, 80
    %v2171 = vpop.permute.xlu0 %2170
    %2172 = vrot.lane.b32.xlu0 %v2117, 80
    %v2173 = vpop.permute.xlu0 %2172
    %2174 = vrot.lane.b32.xlu0 %v2118, 80
    %v2175 = vpop.permute.xlu0 %2174
    %2176 = vrot.lane.b32.xlu0 %v2119, 80
    %v2177 = vpop.permute.xlu0 %2176
    %2178 = vrot.lane.b32.xlu0 %v2120, 80
    %v2179 = vpop.permute.xlu0 %2178
    %2180 = vrot.lane.b32.xlu0 %v2121, 80
    %v2181 = vpop.permute.xlu0 %2180
    %2182 = vrot.lane.b32.xlu0 %v2122, 80
    %v2183 = vpop.permute.xlu0 %2182
    %2184 = vrot.lane.b32.xlu0 %v2123, 80
    %v2185 = vpop.permute.xlu0 %2184
    %2186 = vrot.lane.b32.xlu0 %v2124, 80
    %v2187 = vpop.permute.xlu0 %2186
    %2188 = vrot.lane.b32.xlu0 %v2125, 80
    %v2189 = vpop.permute.xlu0 %2188
    %v2190 = vunpack.c.l.b16 %v67
    %v2191 = vunpack.c.l.b16 %v68
    %v2192 = vunpack.c.l.b16 %v121
    %v2193 = vunpack.c.l.b16 %v122
    %v2194 = vpack.c.b16 %v2191, %v2190
    %v2195 = vpack.c.b16 %v2193, %v2192
    %2196 = vrot.lane.b32.xlu0 %v1839, 120
    %v2197 = vpop.permute.xlu0 %2196
    %2198 = vrot.lane.b32.xlu0 %v1840, 120
    %v2199 = vpop.permute.xlu0 %2198
    %2200 = vrot.lane.b32.xlu0 %v1841, 120
    %v2201 = vpop.permute.xlu0 %2200
    %2202 = vrot.lane.b32.xlu0 %v1842, 120
    %v2203 = vpop.permute.xlu0 %2202
    %2204 = vrot.lane.b32.xlu0 %v1843, 120
    %v2205 = vpop.permute.xlu0 %2204
    %2206 = vrot.lane.b32.xlu0 %v1844, 120
    %v2207 = vpop.permute.xlu0 %2206
    %2208 = vrot.lane.b32.xlu0 %v1845, 120
    %v2209 = vpop.permute.xlu0 %2208
    %2210 = vrot.lane.b32.xlu0 %v1846, 120
    %v2211 = vpop.permute.xlu0 %2210
    %2212 = vrot.lane.b32.xlu0 %v1847, 120
    %v2213 = vpop.permute.xlu0 %2212
    %2214 = vrot.lane.b32.xlu0 %v1848, 120
    %v2215 = vpop.permute.xlu0 %2214
    %2216 = vrot.lane.b32.xlu0 %v1849, 120
    %v2217 = vpop.permute.xlu0 %2216
    %2218 = vrot.lane.b32.xlu0 %v1850, 120
    %v2219 = vpop.permute.xlu0 %2218
    %2220 = vrot.lane.b32.xlu0 %v1851, 120
    %v2221 = vpop.permute.xlu0 %2220
    %2222 = vrot.lane.b32.xlu0 %v1852, 120
    %v2223 = vpop.permute.xlu0 %2222
    %2224 = vrot.lane.b32.xlu0 %v1853, 120
    %v2225 = vpop.permute.xlu0 %2224
    %2226 = vrot.lane.b32.xlu0 %v2194, 120
    %v2227 = vpop.permute.xlu0 %2226
    %2228 = vrot.lane.b32.xlu0 %v1855, 120
    %v2229 = vpop.permute.xlu0 %2228
    %2230 = vrot.lane.b32.xlu0 %v1856, 120
    %v2231 = vpop.permute.xlu0 %2230
    %2232 = vrot.lane.b32.xlu0 %v1857, 120
    %v2233 = vpop.permute.xlu0 %2232
    %2234 = vrot.lane.b32.xlu0 %v1858, 120
    %v2235 = vpop.permute.xlu0 %2234
    %2236 = vrot.lane.b32.xlu0 %v1859, 120
    %v2237 = vpop.permute.xlu0 %2236
    %2238 = vrot.lane.b32.xlu0 %v1860, 120
    %v2239 = vpop.permute.xlu0 %2238
    %2240 = vrot.lane.b32.xlu0 %v1861, 120
    %v2241 = vpop.permute.xlu0 %2240
    %2242 = vrot.lane.b32.xlu0 %v1862, 120
    %v2243 = vpop.permute.xlu0 %2242
    %2244 = vrot.lane.b32.xlu0 %v1863, 120
    %v2245 = vpop.permute.xlu0 %2244
    %2246 = vrot.lane.b32.xlu0 %v1864, 120
    %v2247 = vpop.permute.xlu0 %2246
    %2248 = vrot.lane.b32.xlu0 %v1865, 120
    %v2249 = vpop.permute.xlu0 %2248
    %2250 = vrot.lane.b32.xlu0 %v1866, 120
    %v2251 = vpop.permute.xlu0 %2250
    %2252 = vrot.lane.b32.xlu0 %v1867, 120
    %v2253 = vpop.permute.xlu0 %2252
    %2254 = vrot.lane.b32.xlu0 %v1868, 120
    %v2255 = vpop.permute.xlu0 %2254
    %2256 = vrot.lane.b32.xlu0 %v1869, 120
    %v2257 = vpop.permute.xlu0 %2256
    %2258 = vrot.lane.b32.xlu0 %v2195, 120
    %v2259 = vpop.permute.xlu0 %2258
    %v2260 = vunpack.c.l.b16 %v1651
    %v2261 = vunpack.c.l.b16 %v1661
    %v2262 = vunpack.c.l.b16 %v1675
    %v2263 = vunpack.c.l.b16 %v1685
    %v2264 = vpack.c.b16 %v2261, %v2260
    %v2265 = vpack.c.b16 %v2263, %v2262
    %2266 = vrot.lane.b32.xlu0 %v1935, 32
    %v2267 = vpop.permute.xlu0 %2266
    %2268 = vrot.lane.b32.xlu0 %v1936, 32
    %v2269 = vpop.permute.xlu0 %2268
    %2270 = vrot.lane.b32.xlu0 %v1937, 32
    %v2271 = vpop.permute.xlu0 %2270
    %2272 = vrot.lane.b32.xlu0 %v1938, 32
    %v2273 = vpop.permute.xlu0 %2272
    %2274 = vrot.lane.b32.xlu0 %v1939, 32
    %v2275 = vpop.permute.xlu0 %2274
    %2276 = vrot.lane.b32.xlu0 %v1940, 32
    %v2277 = vpop.permute.xlu0 %2276
    %2278 = vrot.lane.b32.xlu0 %v1941, 32
    %v2279 = vpop.permute.xlu0 %2278
    %2280 = vrot.lane.b32.xlu0 %v1942, 32
    %v2281 = vpop.permute.xlu0 %2280
    %2282 = vrot.lane.b32.xlu0 %v1943, 32
    %v2283 = vpop.permute.xlu0 %2282
    %2284 = vrot.lane.b32.xlu0 %v1944, 32
    %v2285 = vpop.permute.xlu0 %2284
    %2286 = vrot.lane.b32.xlu0 %v1945, 32
    %v2287 = vpop.permute.xlu0 %2286
    %2288 = vrot.lane.b32.xlu0 %v1946, 32
    %v2289 = vpop.permute.xlu0 %2288
    %2290 = vrot.lane.b32.xlu0 %v1947, 32
    %v2291 = vpop.permute.xlu0 %2290
    %2292 = vrot.lane.b32.xlu0 %v1948, 32
    %v2293 = vpop.permute.xlu0 %2292
    %2294 = vrot.lane.b32.xlu0 %v1949, 32
    %v2295 = vpop.permute.xlu0 %2294
    %2296 = vrot.lane.b32.xlu0 %v2264, 32
    %v2297 = vpop.permute.xlu0 %2296
    %2298 = vrot.lane.b32.xlu0 %v1951, 32
    %v2299 = vpop.permute.xlu0 %2298
    %2300 = vrot.lane.b32.xlu0 %v1952, 32
    %v2301 = vpop.permute.xlu0 %2300
    %2302 = vrot.lane.b32.xlu0 %v1953, 32
    %v2303 = vpop.permute.xlu0 %2302
    %2304 = vrot.lane.b32.xlu0 %v1954, 32
    %v2305 = vpop.permute.xlu0 %2304
    %2306 = vrot.lane.b32.xlu0 %v1955, 32
    %v2307 = vpop.permute.xlu0 %2306
    %2308 = vrot.lane.b32.xlu0 %v1956, 32
    %v2309 = vpop.permute.xlu0 %2308
    %2310 = vrot.lane.b32.xlu0 %v1957, 32
    %v2311 = vpop.permute.xlu0 %2310
    %2312 = vrot.lane.b32.xlu0 %v1958, 32
    %v2313 = vpop.permute.xlu0 %2312
    %2314 = vrot.lane.b32.xlu0 %v1959, 32
    %v2315 = vpop.permute.xlu0 %2314
    %2316 = vrot.lane.b32.xlu0 %v1960, 32
    %v2317 = vpop.permute.xlu0 %2316
    %2318 = vrot.lane.b32.xlu0 %v1961, 32
    %v2319 = vpop.permute.xlu0 %2318
    %2320 = vrot.lane.b32.xlu0 %v1962, 32
    %v2321 = vpop.permute.xlu0 %2320
    %2322 = vrot.lane.b32.xlu0 %v1963, 32
    %v2323 = vpop.permute.xlu0 %2322
    %2324 = vrot.lane.b32.xlu0 %v1964, 32
    %v2325 = vpop.permute.xlu0 %2324
    %2326 = vrot.lane.b32.xlu0 %v1965, 32
    %v2327 = vpop.permute.xlu0 %2326
    %2328 = vrot.lane.b32.xlu0 %v2265, 32
    %v2329 = vpop.permute.xlu0 %2328
    %v2330 = vunpack.c.l.b16 %v1695
    %v2331 = vunpack.c.l.b16 %v1698
    %v2332 = vunpack.c.l.b16 %v1702
    %v2333 = vunpack.c.l.b16 %v1705
    %v2334 = vpack.c.b16 %v2331, %v2330
    %v2335 = vpack.c.b16 %v2333, %v2332
    %2336 = vrot.lane.b32.xlu0 %v2095, 72
    %v2337 = vpop.permute.xlu0 %2336
    %2338 = vrot.lane.b32.xlu0 %v2096, 72
    %v2339 = vpop.permute.xlu0 %2338
    %2340 = vrot.lane.b32.xlu0 %v2097, 72
    %v2341 = vpop.permute.xlu0 %2340
    %2342 = vrot.lane.b32.xlu0 %v2098, 72
    %v2343 = vpop.permute.xlu0 %2342
    %2344 = vrot.lane.b32.xlu0 %v2099, 72
    %v2345 = vpop.permute.xlu0 %2344
    %2346 = vrot.lane.b32.xlu0 %v2100, 72
    %v2347 = vpop.permute.xlu0 %2346
    %2348 = vrot.lane.b32.xlu0 %v2101, 72
    %v2349 = vpop.permute.xlu0 %2348
    %2350 = vrot.lane.b32.xlu0 %v2102, 72
    %v2351 = vpop.permute.xlu0 %2350
    %2352 = vrot.lane.b32.xlu0 %v2103, 72
    %v2353 = vpop.permute.xlu0 %2352
    %2354 = vrot.lane.b32.xlu0 %v2104, 72
    %v2355 = vpop.permute.xlu0 %2354
    %2356 = vrot.lane.b32.xlu0 %v2105, 72
    %v2357 = vpop.permute.xlu0 %2356
    %2358 = vrot.lane.b32.xlu0 %v2106, 72
    %v2359 = vpop.permute.xlu0 %2358
    %2360 = vrot.lane.b32.xlu0 %v2107, 72
    %v2361 = vpop.permute.xlu0 %2360
    %2362 = vrot.lane.b32.xlu0 %v2108, 72
    %v2363 = vpop.permute.xlu0 %2362
    %2364 = vrot.lane.b32.xlu0 %v2109, 72
    %v2365 = vpop.permute.xlu0 %2364
    %2366 = vrot.lane.b32.xlu0 %v2334, 72
    %v2367 = vpop.permute.xlu0 %2366
    %2368 = vrot.lane.b32.xlu0 %v2111, 72
    %v2369 = vpop.permute.xlu0 %2368
    %2370 = vrot.lane.b32.xlu0 %v2112, 72
    %v2371 = vpop.permute.xlu0 %2370
    %2372 = vrot.lane.b32.xlu0 %v2113, 72
    %v2373 = vpop.permute.xlu0 %2372
    %2374 = vrot.lane.b32.xlu0 %v2114, 72
    %v2375 = vpop.permute.xlu0 %2374
    %2376 = vrot.lane.b32.xlu0 %v2115, 72
    %v2377 = vpop.permute.xlu0 %2376
    %2378 = vrot.lane.b32.xlu0 %v2116, 72
    %v2379 = vpop.permute.xlu0 %2378
    %2380 = vrot.lane.b32.xlu0 %v2117, 72
    %v2381 = vpop.permute.xlu0 %2380
    %2382 = vrot.lane.b32.xlu0 %v2118, 72
    %v2383 = vpop.permute.xlu0 %2382
    %2384 = vrot.lane.b32.xlu0 %v2119, 72
    %v2385 = vpop.permute.xlu0 %2384
    %2386 = vrot.lane.b32.xlu0 %v2120, 72
    %v2387 = vpop.permute.xlu0 %2386
    %2388 = vrot.lane.b32.xlu0 %v2121, 72
    %v2389 = vpop.permute.xlu0 %2388
    %2390 = vrot.lane.b32.xlu0 %v2122, 72
    %v2391 = vpop.permute.xlu0 %2390
    %2392 = vrot.lane.b32.xlu0 %v2123, 72
    %v2393 = vpop.permute.xlu0 %2392
    %2394 = vrot.lane.b32.xlu0 %v2124, 72
    %v2395 = vpop.permute.xlu0 %2394
    %2396 = vrot.lane.b32.xlu0 %v2125, 72
    %v2397 = vpop.permute.xlu0 %2396
    %2398 = vrot.lane.b32.xlu0 %v2335, 72
    %v2399 = vpop.permute.xlu0 %2398
    %v2400 = vunpack.c.l.b16 %v70
    %v2401 = vunpack.c.l.b16 %v71
    %v2402 = vunpack.c.l.b16 %v124
    %v2403 = vunpack.c.l.b16 %v125
    %v2404 = vpack.c.b16 %v2401, %v2400
    %v2405 = vpack.c.b16 %v2403, %v2402
    %2406 = vrot.lane.b32.xlu0 %v1840, 112
    %v2407 = vpop.permute.xlu0 %2406
    %2408 = vrot.lane.b32.xlu0 %v1841, 112
    %v2409 = vpop.permute.xlu0 %2408
    %2410 = vrot.lane.b32.xlu0 %v1842, 112
    %v2411 = vpop.permute.xlu0 %2410
    %2412 = vrot.lane.b32.xlu0 %v1843, 112
    %v2413 = vpop.permute.xlu0 %2412
    %2414 = vrot.lane.b32.xlu0 %v1844, 112
    %v2415 = vpop.permute.xlu0 %2414
    %2416 = vrot.lane.b32.xlu0 %v1845, 112
    %v2417 = vpop.permute.xlu0 %2416
    %2418 = vrot.lane.b32.xlu0 %v1846, 112
    %v2419 = vpop.permute.xlu0 %2418
    %2420 = vrot.lane.b32.xlu0 %v1847, 112
    %v2421 = vpop.permute.xlu0 %2420
    %2422 = vrot.lane.b32.xlu0 %v1848, 112
    %v2423 = vpop.permute.xlu0 %2422
    %2424 = vrot.lane.b32.xlu0 %v1849, 112
    %v2425 = vpop.permute.xlu0 %2424
    %2426 = vrot.lane.b32.xlu0 %v1850, 112
    %v2427 = vpop.permute.xlu0 %2426
    %2428 = vrot.lane.b32.xlu0 %v1851, 112
    %v2429 = vpop.permute.xlu0 %2428
    %2430 = vrot.lane.b32.xlu0 %v1852, 112
    %v2431 = vpop.permute.xlu0 %2430
    %2432 = vrot.lane.b32.xlu0 %v1853, 112
    %v2433 = vpop.permute.xlu0 %2432
    %2434 = vrot.lane.b32.xlu0 %v2194, 112
    %v2435 = vpop.permute.xlu0 %2434
    %2436 = vrot.lane.b32.xlu0 %v2404, 112
    %v2437 = vpop.permute.xlu0 %2436
    %2438 = vrot.lane.b32.xlu0 %v1856, 112
    %v2439 = vpop.permute.xlu0 %2438
    %2440 = vrot.lane.b32.xlu0 %v1857, 112
    %v2441 = vpop.permute.xlu0 %2440
    %2442 = vrot.lane.b32.xlu0 %v1858, 112
    %v2443 = vpop.permute.xlu0 %2442
    %2444 = vrot.lane.b32.xlu0 %v1859, 112
    %v2445 = vpop.permute.xlu0 %2444
    %2446 = vrot.lane.b32.xlu0 %v1860, 112
    %v2447 = vpop.permute.xlu0 %2446
    %2448 = vrot.lane.b32.xlu0 %v1861, 112
    %v2449 = vpop.permute.xlu0 %2448
    %2450 = vrot.lane.b32.xlu0 %v1862, 112
    %v2451 = vpop.permute.xlu0 %2450
    %2452 = vrot.lane.b32.xlu0 %v1863, 112
    %v2453 = vpop.permute.xlu0 %2452
    %2454 = vrot.lane.b32.xlu0 %v1864, 112
    %v2455 = vpop.permute.xlu0 %2454
    %2456 = vrot.lane.b32.xlu0 %v1865, 112
    %v2457 = vpop.permute.xlu0 %2456
    %2458 = vrot.lane.b32.xlu0 %v1866, 112
    %v2459 = vpop.permute.xlu0 %2458
    %2460 = vrot.lane.b32.xlu0 %v1867, 112
    %v2461 = vpop.permute.xlu0 %2460
    %2462 = vrot.lane.b32.xlu0 %v1868, 112
    %v2463 = vpop.permute.xlu0 %2462
    %2464 = vrot.lane.b32.xlu0 %v1869, 112
    %v2465 = vpop.permute.xlu0 %2464
    %2466 = vrot.lane.b32.xlu0 %v2195, 112
    %v2467 = vpop.permute.xlu0 %2466
    %2468 = vrot.lane.b32.xlu0 %v2405, 112
    %v2469 = vpop.permute.xlu0 %2468
    %v2470 = vunpack.c.l.b16 %v1719
    %v2471 = vunpack.c.l.b16 %v1729
    %v2472 = vunpack.c.l.b16 %v1743
    %v2473 = vunpack.c.l.b16 %v1753
    %v2474 = vpack.c.b16 %v2471, %v2470
    %v2475 = vpack.c.b16 %v2473, %v2472
    %2476 = vrot.lane.b32.xlu0 %v1936, 24
    %v2477 = vpop.permute.xlu0 %2476
    %2478 = vrot.lane.b32.xlu0 %v1937, 24
    %v2479 = vpop.permute.xlu0 %2478
    %2480 = vrot.lane.b32.xlu0 %v1938, 24
    %v2481 = vpop.permute.xlu0 %2480
    %2482 = vrot.lane.b32.xlu0 %v1939, 24
    %v2483 = vpop.permute.xlu0 %2482
    %2484 = vrot.lane.b32.xlu0 %v1940, 24
    %v2485 = vpop.permute.xlu0 %2484
    %2486 = vrot.lane.b32.xlu0 %v1941, 24
    %v2487 = vpop.permute.xlu0 %2486
    %2488 = vrot.lane.b32.xlu0 %v1942, 24
    %v2489 = vpop.permute.xlu0 %2488
    %2490 = vrot.lane.b32.xlu0 %v1943, 24
    %v2491 = vpop.permute.xlu0 %2490
    %2492 = vrot.lane.b32.xlu0 %v1944, 24
    %v2493 = vpop.permute.xlu0 %2492
    %2494 = vrot.lane.b32.xlu0 %v1945, 24
    %v2495 = vpop.permute.xlu0 %2494
    %2496 = vrot.lane.b32.xlu0 %v1946, 24
    %v2497 = vpop.permute.xlu0 %2496
    %2498 = vrot.lane.b32.xlu0 %v1947, 24
    %v2499 = vpop.permute.xlu0 %2498
    %2500 = vrot.lane.b32.xlu0 %v1948, 24
    %v2501 = vpop.permute.xlu0 %2500
    %2502 = vrot.lane.b32.xlu0 %v1949, 24
    %v2503 = vpop.permute.xlu0 %2502
    %2504 = vrot.lane.b32.xlu0 %v2264, 24
    %v2505 = vpop.permute.xlu0 %2504
    %2506 = vrot.lane.b32.xlu0 %v2474, 24
    %v2507 = vpop.permute.xlu0 %2506
    %2508 = vrot.lane.b32.xlu0 %v1952, 24
    %v2509 = vpop.permute.xlu0 %2508
    %2510 = vrot.lane.b32.xlu0 %v1953, 24
    %v2511 = vpop.permute.xlu0 %2510
    %2512 = vrot.lane.b32.xlu0 %v1954, 24
    %v2513 = vpop.permute.xlu0 %2512
    %2514 = vrot.lane.b32.xlu0 %v1955, 24
    %v2515 = vpop.permute.xlu0 %2514
    %2516 = vrot.lane.b32.xlu0 %v1956, 24
    %v2517 = vpop.permute.xlu0 %2516
    %2518 = vrot.lane.b32.xlu0 %v1957, 24
    %v2519 = vpop.permute.xlu0 %2518
    %2520 = vrot.lane.b32.xlu0 %v1958, 24
    %v2521 = vpop.permute.xlu0 %2520
    %2522 = vrot.lane.b32.xlu0 %v1959, 24
    %v2523 = vpop.permute.xlu0 %2522
    %2524 = vrot.lane.b32.xlu0 %v1960, 24
    %v2525 = vpop.permute.xlu0 %2524
    %2526 = vrot.lane.b32.xlu0 %v1961, 24
    %v2527 = vpop.permute.xlu0 %2526
    %2528 = vrot.lane.b32.xlu0 %v1962, 24
    %v2529 = vpop.permute.xlu0 %2528
    %2530 = vrot.lane.b32.xlu0 %v1963, 24
    %v2531 = vpop.permute.xlu0 %2530
    %2532 = vrot.lane.b32.xlu0 %v1964, 24
    %v2533 = vpop.permute.xlu0 %2532
    %2534 = vrot.lane.b32.xlu0 %v1965, 24
    %v2535 = vpop.permute.xlu0 %2534
    %2536 = vrot.lane.b32.xlu0 %v2265, 24
    %v2537 = vpop.permute.xlu0 %2536
    %2538 = vrot.lane.b32.xlu0 %v2475, 24
    %v2539 = vpop.permute.xlu0 %2538
    %v2540 = vunpack.c.l.b16 %v1763
    %v2541 = vunpack.c.l.b16 %v1766
    %v2542 = vunpack.c.l.b16 %v1770
    %v2543 = vunpack.c.l.b16 %v1773
    %v2544 = vpack.c.b16 %v2541, %v2540
    %v2545 = vpack.c.b16 %v2543, %v2542
    %2546 = vrot.lane.b32.xlu0 %v2096, 64
    %v2547 = vpop.permute.xlu0 %2546
    %2548 = vrot.lane.b32.xlu0 %v2097, 64
    %v2549 = vpop.permute.xlu0 %2548
    %2550 = vrot.lane.b32.xlu0 %v2098, 64
    %v2551 = vpop.permute.xlu0 %2550
    %2552 = vrot.lane.b32.xlu0 %v2099, 64
    %v2553 = vpop.permute.xlu0 %2552
    %2554 = vrot.lane.b32.xlu0 %v2100, 64
    %v2555 = vpop.permute.xlu0 %2554
    %2556 = vrot.lane.b32.xlu0 %v2101, 64
    %v2557 = vpop.permute.xlu0 %2556
    %2558 = vrot.lane.b32.xlu0 %v2102, 64
    %v2559 = vpop.permute.xlu0 %2558
    %2560 = vrot.lane.b32.xlu0 %v2103, 64
    %v2561 = vpop.permute.xlu0 %2560
    %2562 = vrot.lane.b32.xlu0 %v2104, 64
    %v2563 = vpop.permute.xlu0 %2562
    %2564 = vrot.lane.b32.xlu0 %v2105, 64
    %v2565 = vpop.permute.xlu0 %2564
    %2566 = vrot.lane.b32.xlu0 %v2106, 64
    %v2567 = vpop.permute.xlu0 %2566
    %2568 = vrot.lane.b32.xlu0 %v2107, 64
    %v2569 = vpop.permute.xlu0 %2568
    %2570 = vrot.lane.b32.xlu0 %v2108, 64
    %v2571 = vpop.permute.xlu0 %2570
    %2572 = vrot.lane.b32.xlu0 %v2109, 64
    %v2573 = vpop.permute.xlu0 %2572
    %2574 = vrot.lane.b32.xlu0 %v2334, 64
    %v2575 = vpop.permute.xlu0 %2574
    %2576 = vrot.lane.b32.xlu0 %v2544, 64
    %v2577 = vpop.permute.xlu0 %2576
    %2578 = vrot.lane.b32.xlu0 %v2112, 64
    %v2579 = vpop.permute.xlu0 %2578
    %2580 = vrot.lane.b32.xlu0 %v2113, 64
    %v2581 = vpop.permute.xlu0 %2580
    %2582 = vrot.lane.b32.xlu0 %v2114, 64
    %v2583 = vpop.permute.xlu0 %2582
    %2584 = vrot.lane.b32.xlu0 %v2115, 64
    %v2585 = vpop.permute.xlu0 %2584
    %2586 = vrot.lane.b32.xlu0 %v2116, 64
    %v2587 = vpop.permute.xlu0 %2586
    %2588 = vrot.lane.b32.xlu0 %v2117, 64
    %v2589 = vpop.permute.xlu0 %2588
    %2590 = vrot.lane.b32.xlu0 %v2118, 64
    %v2591 = vpop.permute.xlu0 %2590
    %2592 = vrot.lane.b32.xlu0 %v2119, 64
    %v2593 = vpop.permute.xlu0 %2592
    %2594 = vrot.lane.b32.xlu0 %v2120, 64
    %v2595 = vpop.permute.xlu0 %2594
    %2596 = vrot.lane.b32.xlu0 %v2121, 64
    %v2597 = vpop.permute.xlu0 %2596
    %2598 = vrot.lane.b32.xlu0 %v2122, 64
    %v2599 = vpop.permute.xlu0 %2598
    %2600 = vrot.lane.b32.xlu0 %v2123, 64
    %v2601 = vpop.permute.xlu0 %2600
    %2602 = vrot.lane.b32.xlu0 %v2124, 64
    %v2603 = vpop.permute.xlu0 %2602
    %2604 = vrot.lane.b32.xlu0 %v2125, 64
    %v2605 = vpop.permute.xlu0 %2604
    %2606 = vrot.lane.b32.xlu0 %v2335, 64
    %v2607 = vpop.permute.xlu0 %2606
    %2608 = vrot.lane.b32.xlu0 %v2545, 64
    %v2609 = vpop.permute.xlu0 %2608
    %vm2610 = vcmask 326656
    %v2613 = vsel %vm2610, %v1838, %v1967
    %v2616 = vsel %vm2610, %v1839, %v1969
    %v2619 = vsel %vm2610, %v1840, %v1971
    %v2622 = vsel %vm2610, %v1841, %v1973
    %v2625 = vsel %vm2610, %v1842, %v1975
    %v2628 = vsel %vm2610, %v1843, %v1977
    %v2631 = vsel %vm2610, %v1844, %v1979
    %v2634 = vsel %vm2610, %v1845, %v1981
    %v2637 = vsel %vm2610, %v1846, %v1983
    %v2640 = vsel %vm2610, %v1847, %v1985
    %v2643 = vsel %vm2610, %v1848, %v1987
    %v2646 = vsel %vm2610, %v1849, %v1989
    %v2649 = vsel %vm2610, %v1850, %v1991
    %v2652 = vsel %vm2610, %v1851, %v1993
    %v2655 = vsel %vm2610, %v1852, %v1995
    %v2658 = vsel %vm2610, %v1853, %v1997
    %v2661 = vsel %vm2610, %v1854, %v1999
    %v2664 = vsel %vm2610, %v1855, %v2001
    %v2667 = vsel %vm2610, %v1856, %v2003
    %v2670 = vsel %vm2610, %v1857, %v2005
    %v2673 = vsel %vm2610, %v1858, %v2007
    %v2676 = vsel %vm2610, %v1859, %v2009
    %v2679 = vsel %vm2610, %v1860, %v2011
    %v2682 = vsel %vm2610, %v1861, %v2013
    %v2685 = vsel %vm2610, %v1862, %v2015
    %v2688 = vsel %vm2610, %v1863, %v2017
    %v2691 = vsel %vm2610, %v1864, %v2019
    %v2694 = vsel %vm2610, %v1865, %v2021
    %v2697 = vsel %vm2610, %v1866, %v2023
    %v2700 = vsel %vm2610, %v1867, %v2025
    %v2703 = vsel %vm2610, %v1868, %v2027
    %v2706 = vsel %vm2610, %v1869, %v2029
    %vm2707 = vcmask 654336
    %v2709 = vsel %vm2707, %v2613, %v2127
    %v2711 = vsel %vm2707, %v2616, %v2129
    %v2713 = vsel %vm2707, %v2619, %v2131
    %v2715 = vsel %vm2707, %v2622, %v2133
    %v2717 = vsel %vm2707, %v2625, %v2135
    %v2719 = vsel %vm2707, %v2628, %v2137
    %v2721 = vsel %vm2707, %v2631, %v2139
    %v2723 = vsel %vm2707, %v2634, %v2141
    %v2725 = vsel %vm2707, %v2637, %v2143
    %v2727 = vsel %vm2707, %v2640, %v2145
    %v2729 = vsel %vm2707, %v2643, %v2147
    %v2731 = vsel %vm2707, %v2646, %v2149
    %v2733 = vsel %vm2707, %v2649, %v2151
    %v2735 = vsel %vm2707, %v2652, %v2153
    %v2737 = vsel %vm2707, %v2655, %v2155
    %v2739 = vsel %vm2707, %v2658, %v2157
    %v2741 = vsel %vm2707, %v2661, %v2159
    %v2743 = vsel %vm2707, %v2664, %v2161
    %v2745 = vsel %vm2707, %v2667, %v2163
    %v2747 = vsel %vm2707, %v2670, %v2165
    %v2749 = vsel %vm2707, %v2673, %v2167
    %v2751 = vsel %vm2707, %v2676, %v2169
    %v2753 = vsel %vm2707, %v2679, %v2171
    %v2755 = vsel %vm2707, %v2682, %v2173
    %v2757 = vsel %vm2707, %v2685, %v2175
    %v2759 = vsel %vm2707, %v2688, %v2177
    %v2761 = vsel %vm2707, %v2691, %v2179
    %v2763 = vsel %vm2707, %v2694, %v2181
    %v2765 = vsel %vm2707, %v2697, %v2183
    %v2767 = vsel %vm2707, %v2700, %v2185
    %v2769 = vsel %vm2707, %v2703, %v2187
    %v2771 = vsel %vm2707, %v2706, %v2189
    %vm2772 = vcmask 982016
    %v2774 = vsel %vm2772, %v2709, %v2197
    %v2777 = vsel %vm2772, %v2711, %v2199
    %v2780 = vsel %vm2772, %v2713, %v2201
    %v2783 = vsel %vm2772, %v2715, %v2203
    %v2786 = vsel %vm2772, %v2717, %v2205
    %v2789 = vsel %vm2772, %v2719, %v2207
    %v2792 = vsel %vm2772, %v2721, %v2209
    %v2795 = vsel %vm2772, %v2723, %v2211
    %v2798 = vsel %vm2772, %v2725, %v2213
    %v2801 = vsel %vm2772, %v2727, %v2215
    %v2804 = vsel %vm2772, %v2729, %v2217
    %v2807 = vsel %vm2772, %v2731, %v2219
    %v2810 = vsel %vm2772, %v2733, %v2221
    %v2813 = vsel %vm2772, %v2735, %v2223
    %v2816 = vsel %vm2772, %v2737, %v2225
    %v2819 = vsel %vm2772, %v2739, %v2227
    %v2822 = vsel %vm2772, %v2741, %v2229
    %v2825 = vsel %vm2772, %v2743, %v2231
    %v2828 = vsel %vm2772, %v2745, %v2233
    %v2831 = vsel %vm2772, %v2747, %v2235
    %v2834 = vsel %vm2772, %v2749, %v2237
    %v2837 = vsel %vm2772, %v2751, %v2239
    %v2840 = vsel %vm2772, %v2753, %v2241
    %v2843 = vsel %vm2772, %v2755, %v2243
    %v2846 = vsel %vm2772, %v2757, %v2245
    %v2849 = vsel %vm2772, %v2759, %v2247
    %v2852 = vsel %vm2772, %v2761, %v2249
    %v2855 = vsel %vm2772, %v2763, %v2251
    %v2858 = vsel %vm2772, %v2765, %v2253
    %v2861 = vsel %vm2772, %v2767, %v2255
    %v2864 = vsel %vm2772, %v2769, %v2257
    %v2867 = vsel %vm2772, %v2771, %v2259
    %vm2869 = vcmask 261120
    %v2871 = vsel %vm2869, %v2197, %v2267
    %v2873 = vsel %vm2869, %v2199, %v2269
    %v2875 = vsel %vm2869, %v2201, %v2271
    %v2877 = vsel %vm2869, %v2203, %v2273
    %v2879 = vsel %vm2869, %v2205, %v2275
    %v2881 = vsel %vm2869, %v2207, %v2277
    %v2883 = vsel %vm2869, %v2209, %v2279
    %v2885 = vsel %vm2869, %v2211, %v2281
    %v2887 = vsel %vm2869, %v2213, %v2283
    %v2889 = vsel %vm2869, %v2215, %v2285
    %v2891 = vsel %vm2869, %v2217, %v2287
    %v2893 = vsel %vm2869, %v2219, %v2289
    %v2895 = vsel %vm2869, %v2221, %v2291
    %v2897 = vsel %vm2869, %v2223, %v2293
    %v2899 = vsel %vm2869, %v2225, %v2295
    %v2901 = vsel %vm2869, %v2227, %v2297
    %v2903 = vsel %vm2869, %v2229, %v2299
    %v2905 = vsel %vm2869, %v2231, %v2301
    %v2907 = vsel %vm2869, %v2233, %v2303
    %v2909 = vsel %vm2869, %v2235, %v2305
    %v2911 = vsel %vm2869, %v2237, %v2307
    %v2913 = vsel %vm2869, %v2239, %v2309
    %v2915 = vsel %vm2869, %v2241, %v2311
    %v2917 = vsel %vm2869, %v2243, %v2313
    %v2919 = vsel %vm2869, %v2245, %v2315
    %v2921 = vsel %vm2869, %v2247, %v2317
    %v2923 = vsel %vm2869, %v2249, %v2319
    %v2925 = vsel %vm2869, %v2251, %v2321
    %v2927 = vsel %vm2869, %v2253, %v2323
    %v2929 = vsel %vm2869, %v2255, %v2325
    %v2931 = vsel %vm2869, %v2257, %v2327
    %v2933 = vsel %vm2869, %v2259, %v2329
    %vm2934 = vcmask 588800
    %v2936 = vsel %vm2934, %v2871, %v2337
    %v2938 = vsel %vm2934, %v2873, %v2339
    %v2940 = vsel %vm2934, %v2875, %v2341
    %v2942 = vsel %vm2934, %v2877, %v2343
    %v2944 = vsel %vm2934, %v2879, %v2345
    %v2946 = vsel %vm2934, %v2881, %v2347
    %v2948 = vsel %vm2934, %v2883, %v2349
    %v2950 = vsel %vm2934, %v2885, %v2351
    %v2952 = vsel %vm2934, %v2887, %v2353
    %v2954 = vsel %vm2934, %v2889, %v2355
    %v2956 = vsel %vm2934, %v2891, %v2357
    %v2958 = vsel %vm2934, %v2893, %v2359
    %v2960 = vsel %vm2934, %v2895, %v2361
    %v2962 = vsel %vm2934, %v2897, %v2363
    %v2964 = vsel %vm2934, %v2899, %v2365
    %v2966 = vsel %vm2934, %v2901, %v2367
    %v2968 = vsel %vm2934, %v2903, %v2369
    %v2970 = vsel %vm2934, %v2905, %v2371
    %v2972 = vsel %vm2934, %v2907, %v2373
    %v2974 = vsel %vm2934, %v2909, %v2375
    %v2976 = vsel %vm2934, %v2911, %v2377
    %v2978 = vsel %vm2934, %v2913, %v2379
    %v2980 = vsel %vm2934, %v2915, %v2381
    %v2982 = vsel %vm2934, %v2917, %v2383
    %v2984 = vsel %vm2934, %v2919, %v2385
    %v2986 = vsel %vm2934, %v2921, %v2387
    %v2988 = vsel %vm2934, %v2923, %v2389
    %v2990 = vsel %vm2934, %v2925, %v2391
    %v2992 = vsel %vm2934, %v2927, %v2393
    %v2994 = vsel %vm2934, %v2929, %v2395
    %v2996 = vsel %vm2934, %v2931, %v2397
    %v2998 = vsel %vm2934, %v2933, %v2399
    %vm2999 = vcmask 916480
    %v3001 = vsel %vm2999, %v2936, %v2407
    %v3004 = vsel %vm2999, %v2938, %v2409
    %v3007 = vsel %vm2999, %v2940, %v2411
    %v3010 = vsel %vm2999, %v2942, %v2413
    %v3013 = vsel %vm2999, %v2944, %v2415
    %v3016 = vsel %vm2999, %v2946, %v2417
    %v3019 = vsel %vm2999, %v2948, %v2419
    %v3022 = vsel %vm2999, %v2950, %v2421
    %v3025 = vsel %vm2999, %v2952, %v2423
    %v3028 = vsel %vm2999, %v2954, %v2425
    %v3031 = vsel %vm2999, %v2956, %v2427
    %v3034 = vsel %vm2999, %v2958, %v2429
    %v3037 = vsel %vm2999, %v2960, %v2431
    %v3040 = vsel %vm2999, %v2962, %v2433
    %v3043 = vsel %vm2999, %v2964, %v2435
    %v3046 = vsel %vm2999, %v2966, %v2437
    %v3049 = vsel %vm2999, %v2968, %v2439
    %v3052 = vsel %vm2999, %v2970, %v2441
    %v3055 = vsel %vm2999, %v2972, %v2443
    %v3058 = vsel %vm2999, %v2974, %v2445
    %v3061 = vsel %vm2999, %v2976, %v2447
    %v3064 = vsel %vm2999, %v2978, %v2449
    %v3067 = vsel %vm2999, %v2980, %v2451
    %v3070 = vsel %vm2999, %v2982, %v2453
    %v3073 = vsel %vm2999, %v2984, %v2455
    %v3076 = vsel %vm2999, %v2986, %v2457
    %v3079 = vsel %vm2999, %v2988, %v2459
    %v3082 = vsel %vm2999, %v2990, %v2461
    %v3085 = vsel %vm2999, %v2992, %v2463
    %v3088 = vsel %vm2999, %v2994, %v2465
    %v3091 = vsel %vm2999, %v2996, %v2467
    %v3094 = vsel %vm2999, %v2998, %v2469
    %vm3096 = vcmask 195584
    %v3098 = vsel %vm3096, %v2407, %v2477
    %v3100 = vsel %vm3096, %v2409, %v2479
    %v3102 = vsel %vm3096, %v2411, %v2481
    %v3104 = vsel %vm3096, %v2413, %v2483
    %v3106 = vsel %vm3096, %v2415, %v2485
    %v3108 = vsel %vm3096, %v2417, %v2487
    %v3110 = vsel %vm3096, %v2419, %v2489
    %v3112 = vsel %vm3096, %v2421, %v2491
    %v3114 = vsel %vm3096, %v2423, %v2493
    %v3116 = vsel %vm3096, %v2425, %v2495
    %v3118 = vsel %vm3096, %v2427, %v2497
    %v3120 = vsel %vm3096, %v2429, %v2499
    %v3122 = vsel %vm3096, %v2431, %v2501
    %v3124 = vsel %vm3096, %v2433, %v2503
    %v3126 = vsel %vm3096, %v2435, %v2505
    %v3128 = vsel %vm3096, %v2437, %v2507
    %v3130 = vsel %vm3096, %v2439, %v2509
    %v3132 = vsel %vm3096, %v2441, %v2511
    %v3134 = vsel %vm3096, %v2443, %v2513
    %v3136 = vsel %vm3096, %v2445, %v2515
    %v3138 = vsel %vm3096, %v2447, %v2517
    %v3140 = vsel %vm3096, %v2449, %v2519
    %v3142 = vsel %vm3096, %v2451, %v2521
    %v3144 = vsel %vm3096, %v2453, %v2523
    %v3146 = vsel %vm3096, %v2455, %v2525
    %v3148 = vsel %vm3096, %v2457, %v2527
    %v3150 = vsel %vm3096, %v2459, %v2529
    %v3152 = vsel %vm3096, %v2461, %v2531
    %v3154 = vsel %vm3096, %v2463, %v2533
    %v3156 = vsel %vm3096, %v2465, %v2535
    %v3158 = vsel %vm3096, %v2467, %v2537
    %v3160 = vsel %vm3096, %v2469, %v2539
    %vm3161 = vcmask 523264
    %v3163 = vsel %vm3161, %v3098, %v2547
    %v3165 = vsel %vm3161, %v3100, %v2549
    %v3167 = vsel %vm3161, %v3102, %v2551
    %v3169 = vsel %vm3161, %v3104, %v2553
    %v3171 = vsel %vm3161, %v3106, %v2555
    %v3173 = vsel %vm3161, %v3108, %v2557
    %v3175 = vsel %vm3161, %v3110, %v2559
    %v3177 = vsel %vm3161, %v3112, %v2561
    %v3179 = vsel %vm3161, %v3114, %v2563
    %v3181 = vsel %vm3161, %v3116, %v2565
    %v3183 = vsel %vm3161, %v3118, %v2567
    %v3185 = vsel %vm3161, %v3120, %v2569
    %v3187 = vsel %vm3161, %v3122, %v2571
    %v3189 = vsel %vm3161, %v3124, %v2573
    %v3191 = vsel %vm3161, %v3126, %v2575
    %v3193 = vsel %vm3161, %v3128, %v2577
    %v3195 = vsel %vm3161, %v3130, %v2579
    %v3197 = vsel %vm3161, %v3132, %v2581
    %v3199 = vsel %vm3161, %v3134, %v2583
    %v3201 = vsel %vm3161, %v3136, %v2585
    %v3203 = vsel %vm3161, %v3138, %v2587
    %v3205 = vsel %vm3161, %v3140, %v2589
    %v3207 = vsel %vm3161, %v3142, %v2591
    %v3209 = vsel %vm3161, %v3144, %v2593
    %v3211 = vsel %vm3161, %v3146, %v2595
    %v3213 = vsel %vm3161, %v3148, %v2597
    %v3215 = vsel %vm3161, %v3150, %v2599
    %v3217 = vsel %vm3161, %v3152, %v2601
    %v3219 = vsel %vm3161, %v3154, %v2603
    %v3221 = vsel %vm3161, %v3156, %v2605
    %v3223 = vsel %vm3161, %v3158, %v2607
    %v3225 = vsel %vm3161, %v3160, %v2609
    %v3226 = vld [vmem:[%s1] sm:$0xf]
    %v3227 = vld [vmem:[%s1 + $0x4] sm:$0xf]
    %v3228 = vld [vmem:[%s1 + $0x8] sm:$0xf]
    %v3229 = vld [vmem:[%s1 + $0xc] sm:$0xf]
    %v3230 = vld [vmem:[%s1 + $0x10] sm:$0xf]
    %v3231 = vld [vmem:[%s1 + $0x14] sm:$0xf]
    %v3232 = vld [vmem:[%s1 + $0x18] sm:$0xf]
    %v3233 = vld [vmem:[%s1 + $0x1c] sm:$0xf]
    %v3234 = vld [vmem:[%s1 + $0x20] sm:$0xf]
    %v3235 = vld [vmem:[%s1 + $0x24] sm:$0xf]
    %v3236 = vld [vmem:[%s1 + $0x28] sm:$0xf]
    %v3237 = vld [vmem:[%s1 + $0x2c] sm:$0xf]
    %v3238 = vld [vmem:[%s1 + $0x30] sm:$0xf]
    %v3239 = vld [vmem:[%s1 + $0x34] sm:$0xf]
    %v3240 = vld [vmem:[%s1 + $0x38] sm:$0xf]
    %v3241 = vld [vmem:[%s1 + $0x3c] sm:$0xf]
    %v3242 = vld [vmem:[%s1 + $0x40] sm:$0xf]
    %v3243 = vld [vmem:[%s1 + $0x44] sm:$0xf]
    %v3244 = vld [vmem:[%s1 + $0x48] sm:$0xf]
    %v3245 = vld [vmem:[%s1 + $0x4c] sm:$0xf]
    %v3246 = vld [vmem:[%s1 + $0x50] sm:$0xf]
    %v3247 = vld [vmem:[%s1 + $0x54] sm:$0xf]
    %v3248 = vld [vmem:[%s1 + $0x58] sm:$0xf]
    %v3249 = vld [vmem:[%s1 + $0x5c] sm:$0xf]
    %v3250 = vld [vmem:[%s1 + $0x60] sm:$0xf]
    %v3251 = vld [vmem:[%s1 + $0x64] sm:$0xf]
    %v3252 = vld [vmem:[%s1 + $0x68] sm:$0xf]
    %v3253 = vld [vmem:[%s1 + $0x6c] sm:$0xf]
    %v3254 = vld [vmem:[%s1 + $0x70] sm:$0xf]
    %v3255 = vld [vmem:[%s1 + $0x74] sm:$0xf]
    %v3256 = vld [vmem:[%s1 + $0x78] sm:$0xf]
    %v3257 = vld [vmem:[%s1 + $0x7c] sm:$0xf]
    %v3258 = vld [vmem:[%s1 + $0x80] sm:$0xf]
    %v3259 = vld [vmem:[%s1 + $0x84] sm:$0xf]
    %v3260 = vld [vmem:[%s1 + $0x88] sm:$0xf]
    %v3261 = vld [vmem:[%s1 + $0x8c] sm:$0xf]
    %v3262 = vld [vmem:[%s1 + $0x90] sm:$0xf]
    %v3263 = vld [vmem:[%s1 + $0x94] sm:$0xf]
    %v3264 = vld [vmem:[%s1 + $0x98] sm:$0xf]
    %v3265 = vld [vmem:[%s1 + $0x9c] sm:$0xf]
    %v3266 = vld [vmem:[%s1 + $0xa0] sm:$0xf]
    %v3267 = vld [vmem:[%s1 + $0xa4] sm:$0xf]
    %v3268 = vld [vmem:[%s1 + $0xa8] sm:$0xf]
    %v3269 = vld [vmem:[%s1 + $0xac] sm:$0xf]
    %v3270 = vld [vmem:[%s1 + $0xb0] sm:$0xf]
    %v3271 = vld [vmem:[%s3] sm:$0x1]
    %v3273 = vlaneseq
    %v3274 = vshrl.u32 %v3273, 7
    %v3275 = vsub.s32 0, %v3274
    %v3276 = vrot.slane %v3271, %v3275
    %v3323 = vunpack.c.l.b16 %v3226
    %v3324 = vunpack.c.l.b16 %v3227
    %v3325 = vunpack.c.l.b16 %v3228
    %v3326 = vunpack.c.l.b16 %v3229
    %v3327 = vunpack.c.l.b16 %v3230
    %v3328 = vunpack.c.l.b16 %v3231
    %v3329 = vunpack.c.l.b16 %v3232
    %v3330 = vunpack.c.l.b16 %v3233
    %v3331 = vunpack.c.l.b16 %v3234
    %v3332 = vunpack.c.l.b16 %v3235
    %v3333 = vunpack.c.l.b16 %v3236
    %v3334 = vunpack.c.l.b16 %v3237
    %v3335 = vunpack.c.l.b16 %v3238
    %v3336 = vunpack.c.l.b16 %v3239
    %v3337 = vunpack.c.l.b16 %v3240
    %v3338 = vunpack.c.l.b16 %v3241
    %v3339 = vunpack.c.l.b16 %v3242
    %v3340 = vunpack.c.l.b16 %v3243
    %v3341 = vunpack.c.l.b16 %v3244
    %v3342 = vunpack.c.l.b16 %v3245
    %v3343 = vunpack.c.l.b16 %v3246
    %v3344 = vunpack.c.l.b16 %v3247
    %v3345 = vunpack.c.l.b16 %v3248
    %v3346 = vunpack.c.l.b16 %v3249
    %v3347 = vunpack.c.l.b16 %v3250
    %v3348 = vunpack.c.l.b16 %v3251
    %v3349 = vunpack.c.l.b16 %v3252
    %v3350 = vunpack.c.l.b16 %v3253
    %v3351 = vunpack.c.l.b16 %v3254
    %v3352 = vunpack.c.l.b16 %v3255
    %v3353 = vunpack.c.l.b16 %v3256
    %v3354 = vunpack.c.l.b16 %v3257
    %v3355 = vunpack.c.l.b16 %v3258
    %v3356 = vunpack.c.l.b16 %v3259
    %v3357 = vunpack.c.l.b16 %v3260
    %v3358 = vunpack.c.l.b16 %v3261
    %v3359 = vunpack.c.l.b16 %v3262
    %v3360 = vunpack.c.l.b16 %v3263
    %v3361 = vunpack.c.l.b16 %v3264
    %v3362 = vunpack.c.l.b16 %v3265
    %v3363 = vunpack.c.l.b16 %v3266
    %v3364 = vunpack.c.l.b16 %v3267
    %v3365 = vunpack.c.l.b16 %v3268
    %v3366 = vunpack.c.l.b16 %v3269
    %v3367 = vunpack.c.l.b16 %v3270
    %v3368 = vpack.c.b16 %v3324, %v3323
    %v3369 = vpack.c.b16 %v3326, %v3325
    %v3370 = vpack.c.b16 %v3328, %v3327
    %v3371 = vpack.c.b16 %v3330, %v3329
    %v3372 = vpack.c.b16 %v3332, %v3331
    %v3373 = vpack.c.b16 %v3334, %v3333
    %v3374 = vpack.c.b16 %v3336, %v3335
    %v3375 = vpack.c.b16 %v3338, %v3337
    %v3376 = vpack.c.b16 %v3340, %v3339
    %v3377 = vpack.c.b16 %v3342, %v3341
    %v3378 = vpack.c.b16 %v3344, %v3343
    %v3379 = vpack.c.b16 %v3346, %v3345
    %v3380 = vpack.c.b16 %v3348, %v3347
    %v3381 = vpack.c.b16 %v3350, %v3349
    %v3382 = vpack.c.b16 %v3352, %v3351
    %v3383 = vpack.c.b16 %v3354, %v3353
    %v3384 = vpack.c.b16 %v3356, %v3355
    %v3385 = vpack.c.b16 %v3358, %v3357
    %v3386 = vpack.c.b16 %v3360, %v3359
    %v3387 = vpack.c.b16 %v3362, %v3361
    %v3388 = vpack.c.b16 %v3364, %v3363
    %v3389 = vpack.c.b16 %v3366, %v3365
    %v3390 = vpack.c.b16 %v3367, %v3367
    %vm3413 = vcmask 850944
    %v3414 = vsel %vm3413, %v3163, 0
    %v3416 = vsel %vm3413, %v3165, 0
    %v3418 = vsel %vm3413, %v3167, 0
    %v3420 = vsel %vm3413, %v3169, 0
    %v3422 = vsel %vm3413, %v3171, 0
    %v3424 = vsel %vm3413, %v3173, 0
    %v3426 = vsel %vm3413, %v3175, 0
    %v3428 = vsel %vm3413, %v3177, 0
    %v3430 = vsel %vm3413, %v3179, 0
    %v3432 = vsel %vm3413, %v3181, 0
    %v3434 = vsel %vm3413, %v3183, 0
    %v3436 = vsel %vm3413, %v3185, 0
    %v3438 = vsel %vm3413, %v3187, 0
    %v3440 = vsel %vm3413, %v3189, 0
    %v3442 = vsel %vm3413, %v3191, 0
    %v3444 = vsel %vm3413, %v3193, 0
    %v3446 = vsel %vm3413, %v3195, 0
    %v3448 = vsel %vm3413, %v3197, 0
    %v3450 = vsel %vm3413, %v3199, 0
    %v3452 = vsel %vm3413, %v3201, 0
    %v3454 = vsel %vm3413, %v3203, 0
    %v3456 = vsel %vm3413, %v3205, 0
    %v3458 = vsel %vm3413, %v3207, 0
    %v3460 = vsel %vm3413, %v3209, 0
    %v3462 = vsel %vm3413, %v3211, 0
    %v3464 = vsel %vm3413, %v3213, 0
    %v3466 = vsel %vm3413, %v3215, 0
    %v3468 = vsel %vm3413, %v3217, 0
    %v3470 = vsel %vm3413, %v3219, 0
    %v3472 = vsel %vm3413, %v3221, 0
    %v3474 = vsel %vm3413, %v3223, 0
    %v3476 = vsel %vm3413, %v3225, 0
    %vm3478 = vcmask 1043456
    %v3480 = vsel %vm3478, %v3390, 0
    %3482 = vmatprep.subr.bf16.mxu0 0
    %3483 = vmatpush1.bf16.msra.mxu0 %v3368
    %3484 = vmatprep.subr.bf16.mxu0 0
    %3485 = vmatpush1.bf16.msra.mxu0 %v3369
    %3486 = vmatprep.subr.bf16.mxu0 0
    %3487 = vmatpush1.bf16.msra.mxu0 %v3370
    %3488 = vmatprep.subr.bf16.mxu0 0
    %3489 = vmatpush1.bf16.msra.mxu0 %v3371
    %3490 = vmatprep.subr.bf16.mxu0 0
    %3491 = vmatpush1.bf16.msra.mxu0 %v3372
    %3492 = vmatprep.subr.bf16.mxu0 0
    %3493 = vmatpush1.bf16.msra.mxu0 %v3373
    %3494 = vmatprep.subr.bf16.mxu0 0
    %3495 = vmatpush1.bf16.msra.mxu0 %v3374
    %3496 = vmatprep.subr.bf16.mxu0 0
    %3497 = vmatpush1.bf16.msra.mxu0 %v3375
    %3498 = vmatprep.subr.bf16.mxu0 0
    %3499 = vmatpush1.bf16.msra.mxu0 %v3376
    %3500 = vmatprep.subr.bf16.mxu0 0
    %3501 = vmatpush1.bf16.msra.mxu0 %v3377
    %3502 = vmatprep.subr.bf16.mxu0 0
    %3503 = vmatpush1.bf16.msra.mxu0 %v3378
    %3504 = vmatprep.subr.bf16.mxu0 0
    %3505 = vmatpush1.bf16.msra.mxu0 %v3379
    %3506 = vmatprep.subr.bf16.mxu0 0
    %3507 = vmatpush1.bf16.msra.mxu0 %v3380
    %3508 = vmatprep.subr.bf16.mxu0 0
    %3509 = vmatpush1.bf16.msra.mxu0 %v3381
    %3510 = vmatprep.subr.bf16.mxu0 0
    %3511 = vmatpush1.bf16.msra.mxu0 %v3382
    %3512 = vmatprep.subr.bf16.mxu0 0
    %3513 = vmatpush1.bf16.msra.mxu0 %v3383
    %3514 = vmatprep.mubr.bf16.mxu0 %v3001
    %3515 = vmatmul.mubr.bf16.gmra.mrb[0].mxu0 %v2774
    %v3516 = vpop.f32.mrb[0].mxu0
    %v3517 = vadd.f32 %v3276, %v3516
    %v3518 = vpop.f32.mrb[0].mxu0
    %v3519 = vpop.f32.mrb[0].mxu0
    %v3520 = vadd.f32 %v3276, %v3519
    %v3521 = vpop.f32.mrb[0].mxu0
    %3522 = vmatprep.mubr.bf16.mxu0 %v3004
    %3523 = vmatmul.mubr.bf16.gmra.mrb[0].mxu0 %v2777
    %v3524 = vpop.f32.mrb[0].mxu0
    %v3525 = vadd.f32 %v3276, %v3524
    %v3526 = vpop.f32.mrb[0].mxu0
    %v3527 = vpop.f32.mrb[0].mxu0
    %v3528 = vadd.f32 %v3276, %v3527
    %v3529 = vpop.f32.mrb[0].mxu0
    %3530 = vmatprep.mubr.bf16.mxu0 %v3007
    %3531 = vmatmul.mubr.bf16.gmra.mrb[0].mxu0 %v2780
    %v3532 = vpop.f32.mrb[0].mxu0
    %v3533 = vadd.f32 %v3276, %v3532
    %v3534 = vpop.f32.mrb[0].mxu0
    %v3535 = vpop.f32.mrb[0].mxu0
    %v3536 = vadd.f32 %v3276, %v3535
    %v3537 = vpop.f32.mrb[0].mxu0
    %3538 = vmatprep.mubr.bf16.mxu0 %v3010
    %3539 = vmatmul.mubr.bf16.gmra.mrb[0].mxu0 %v2783
    %v3540 = vpop.f32.mrb[0].mxu0
    %v3541 = vadd.f32 %v3276, %v3540
    %v3542 = vpop.f32.mrb[0].mxu0
    %v3543 = vpop.f32.mrb[0].mxu0
    %v3544 = vadd.f32 %v3276, %v3543
    %v3545 = vpop.f32.mrb[0].mxu0
    %3546 = vmatprep.mubr.bf16.mxu0 %v3013
    %3547 = vmatmul.mubr.bf16.gmra.mrb[0].mxu0 %v2786
    %v3548 = vpop.f32.mrb[0].mxu0
    %v3549 = vadd.f32 %v3276, %v3548
    %v3550 = vpop.f32.mrb[0].mxu0
    %v3551 = vpop.f32.mrb[0].mxu0
    %v3552 = vadd.f32 %v3276, %v3551
    %v3553 = vpop.f32.mrb[0].mxu0
    %3554 = vmatprep.mubr.bf16.mxu0 %v3016
    %3555 = vmatmul.mubr.bf16.gmra.mrb[0].mxu0 %v2789
    %v3556 = vpop.f32.mrb[0].mxu0
    %v3557 = vadd.f32 %v3276, %v3556
    %v3558 = vpop.f32.mrb[0].mxu0
    %v3559 = vpop.f32.mrb[0].mxu0
    %v3560 = vadd.f32 %v3276, %v3559
    %v3561 = vpop.f32.mrb[0].mxu0
    %3562 = vmatprep.mubr.bf16.mxu0 %v3019
    %3563 = vmatmul.mubr.bf16.gmra.mrb[0].mxu0 %v2792
    %v3564 = vpop.f32.mrb[0].mxu0
    %v3565 = vadd.f32 %v3276, %v3564
    %v3566 = vpop.f32.mrb[0].mxu0
    %v3567 = vpop.f32.mrb[0].mxu0
    %v3568 = vadd.f32 %v3276, %v3567
    %v3569 = vpop.f32.mrb[0].mxu0
    %3570 = vmatprep.mubr.bf16.mxu0 %v3022
    %3571 = vmatmul.mubr.bf16.gmra.mrb[0].mxu0 %v2795
    %v3572 = vpop.f32.mrb[0].mxu0
    %v3573 = vadd.f32 %v3276, %v3572
    %v3574 = vpop.f32.mrb[0].mxu0
    %v3575 = vpop.f32.mrb[0].mxu0
    %v3576 = vadd.f32 %v3276, %v3575
    %v3577 = vpop.f32.mrb[0].mxu0
    %3578 = vmatprep.mubr.bf16.mxu0 %v3025
    %3579 = vmatmul.mubr.bf16.gmra.mrb[0].mxu0 %v2798
    %v3580 = vpop.f32.mrb[0].mxu0
    %v3581 = vadd.f32 %v3276, %v3580
    %v3582 = vpop.f32.mrb[0].mxu0
    %v3583 = vpop.f32.mrb[0].mxu0
    %v3584 = vadd.f32 %v3276, %v3583
    %v3585 = vpop.f32.mrb[0].mxu0
    %3586 = vmatprep.mubr.bf16.mxu0 %v3028
    %3587 = vmatmul.mubr.bf16.gmra.mrb[0].mxu0 %v2801
    %v3588 = vpop.f32.mrb[0].mxu0
    %v3589 = vadd.f32 %v3276, %v3588
    %v3590 = vpop.f32.mrb[0].mxu0
    %v3591 = vpop.f32.mrb[0].mxu0
    %v3592 = vadd.f32 %v3276, %v3591
    %v3593 = vpop.f32.mrb[0].mxu0
    %3594 = vmatprep.mubr.bf16.mxu0 %v3031
    %3595 = vmatmul.mubr.bf16.gmra.mrb[0].mxu0 %v2804
    %v3596 = vpop.f32.mrb[0].mxu0
    %v3597 = vadd.f32 %v3276, %v3596
    %v3598 = vpop.f32.mrb[0].mxu0
    %v3599 = vpop.f32.mrb[0].mxu0
    %v3600 = vadd.f32 %v3276, %v3599
    %v3601 = vpop.f32.mrb[0].mxu0
    %3602 = vmatprep.mubr.bf16.mxu0 %v3034
    %3603 = vmatmul.mubr.bf16.gmra.mrb[0].mxu0 %v2807
    %v3604 = vpop.f32.mrb[0].mxu0
    %v3605 = vadd.f32 %v3276, %v3604
    %v3606 = vpop.f32.mrb[0].mxu0
    %v3607 = vpop.f32.mrb[0].mxu0
    %v3608 = vadd.f32 %v3276, %v3607
    %v3609 = vpop.f32.mrb[0].mxu0
    %3610 = vmatprep.mubr.bf16.mxu0 %v3037
    %3611 = vmatmul.mubr.bf16.gmra.mrb[0].mxu0 %v2810
    %v3612 = vpop.f32.mrb[0].mxu0
    %v3613 = vadd.f32 %v3276, %v3612
    %v3614 = vpop.f32.mrb[0].mxu0
    %v3615 = vpop.f32.mrb[0].mxu0
    %v3616 = vadd.f32 %v3276, %v3615
    %v3617 = vpop.f32.mrb[0].mxu0
    %3618 = vmatprep.mubr.bf16.mxu0 %v3040
    %3619 = vmatmul.mubr.bf16.gmra.mrb[0].mxu0 %v2813
    %v3620 = vpop.f32.mrb[0].mxu0
    %v3621 = vadd.f32 %v3276, %v3620
    %v3622 = vpop.f32.mrb[0].mxu0
    %v3623 = vpop.f32.mrb[0].mxu0
    %v3624 = vadd.f32 %v3276, %v3623
    %v3625 = vpop.f32.mrb[0].mxu0
    %3626 = vmatprep.mubr.bf16.mxu0 %v3043
    %3627 = vmatmul.mubr.bf16.gmra.mrb[0].mxu0 %v2816
    %v3628 = vpop.f32.mrb[0].mxu0
    %v3629 = vadd.f32 %v3276, %v3628
    %v3630 = vpop.f32.mrb[0].mxu0
    %v3631 = vpop.f32.mrb[0].mxu0
    %v3632 = vadd.f32 %v3276, %v3631
    %v3633 = vpop.f32.mrb[0].mxu0
    %3634 = vmatprep.mubr.bf16.mxu0 %v3046
    %3635 = vmatmul.mubr.bf16.gmra.mrb[0].mxu0 %v2819
    %v3636 = vpop.f32.mrb[0].mxu0
    %v3637 = vadd.f32 %v3276, %v3636
    %v3638 = vpop.f32.mrb[0].mxu0
    %v3639 = vpop.f32.mrb[0].mxu0
    %v3640 = vadd.f32 %v3276, %v3639
    %v3641 = vpop.f32.mrb[0].mxu0
    %3642 = vmatprep.mubr.bf16.mxu0 %v3049
    %3643 = vmatmul.mubr.bf16.gmra.mrb[0].mxu0 %v2822
    %v3644 = vpop.f32.mrb[0].mxu0
    %v3645 = vadd.f32 %v3276, %v3644
    %v3646 = vpop.f32.mrb[0].mxu0
    %v3647 = vpop.f32.mrb[0].mxu0
    %v3648 = vadd.f32 %v3276, %v3647
    %v3649 = vpop.f32.mrb[0].mxu0
    %3650 = vmatprep.mubr.bf16.mxu0 %v3052
    %3651 = vmatmul.mubr.bf16.gmra.mrb[0].mxu0 %v2825
    %v3652 = vpop.f32.mrb[0].mxu0
    %v3653 = vadd.f32 %v3276, %v3652
    %v3654 = vpop.f32.mrb[0].mxu0
    %v3655 = vpop.f32.mrb[0].mxu0
    %v3656 = vadd.f32 %v3276, %v3655
    %v3657 = vpop.f32.mrb[0].mxu0
    %3658 = vmatprep.mubr.bf16.mxu0 %v3055
    %3659 = vmatmul.mubr.bf16.gmra.mrb[0].mxu0 %v2828
    %v3660 = vpop.f32.mrb[0].mxu0
    %v3661 = vadd.f32 %v3276, %v3660
    %v3662 = vpop.f32.mrb[0].mxu0
    %v3663 = vpop.f32.mrb[0].mxu0
    %v3664 = vadd.f32 %v3276, %v3663
    %v3665 = vpop.f32.mrb[0].mxu0
    %3666 = vmatprep.mubr.bf16.mxu0 %v3058
    %3667 = vmatmul.mubr.bf16.gmra.mrb[0].mxu0 %v2831
    %v3668 = vpop.f32.mrb[0].mxu0
    %v3669 = vadd.f32 %v3276, %v3668
    %v3670 = vpop.f32.mrb[0].mxu0
    %v3671 = vpop.f32.mrb[0].mxu0
    %v3672 = vadd.f32 %v3276, %v3671
    %v3673 = vpop.f32.mrb[0].mxu0
    %3674 = vmatprep.mubr.bf16.mxu0 %v3061
    %3675 = vmatmul.mubr.bf16.gmra.mrb[0].mxu0 %v2834
    %v3676 = vpop.f32.mrb[0].mxu0
    %v3677 = vadd.f32 %v3276, %v3676
    %v3678 = vpop.f32.mrb[0].mxu0
    %v3679 = vpop.f32.mrb[0].mxu0
    %v3680 = vadd.f32 %v3276, %v3679
    %v3681 = vpop.f32.mrb[0].mxu0
    %3682 = vmatprep.mubr.bf16.mxu0 %v3064
    %3683 = vmatmul.mubr.bf16.gmra.mrb[0].mxu0 %v2837
    %v3684 = vpop.f32.mrb[0].mxu0
    %v3685 = vadd.f32 %v3276, %v3684
    %v3686 = vpop.f32.mrb[0].mxu0
    %v3687 = vpop.f32.mrb[0].mxu0
    %v3688 = vadd.f32 %v3276, %v3687
    %v3689 = vpop.f32.mrb[0].mxu0
    %3690 = vmatprep.mubr.bf16.mxu0 %v3067
    %3691 = vmatmul.mubr.bf16.gmra.mrb[0].mxu0 %v2840
    %v3692 = vpop.f32.mrb[0].mxu0
    %v3693 = vadd.f32 %v3276, %v3692
    %v3694 = vpop.f32.mrb[0].mxu0
    %v3695 = vpop.f32.mrb[0].mxu0
    %v3696 = vadd.f32 %v3276, %v3695
    %v3697 = vpop.f32.mrb[0].mxu0
    %3698 = vmatprep.mubr.bf16.mxu0 %v3070
    %3699 = vmatmul.mubr.bf16.gmra.mrb[0].mxu0 %v2843
    %v3700 = vpop.f32.mrb[0].mxu0
    %v3701 = vadd.f32 %v3276, %v3700
    %v3702 = vpop.f32.mrb[0].mxu0
    %v3703 = vpop.f32.mrb[0].mxu0
    %v3704 = vadd.f32 %v3276, %v3703
    %v3705 = vpop.f32.mrb[0].mxu0
    %3706 = vmatprep.mubr.bf16.mxu0 %v3073
    %3707 = vmatmul.mubr.bf16.gmra.mrb[0].mxu0 %v2846
    %v3708 = vpop.f32.mrb[0].mxu0
    %v3709 = vadd.f32 %v3276, %v3708
    %v3710 = vpop.f32.mrb[0].mxu0
    %v3711 = vpop.f32.mrb[0].mxu0
    %v3712 = vadd.f32 %v3276, %v3711
    %v3713 = vpop.f32.mrb[0].mxu0
    %3714 = vmatprep.mubr.bf16.mxu0 %v3076
    %3715 = vmatmul.mubr.bf16.gmra.mrb[0].mxu0 %v2849
    %v3716 = vpop.f32.mrb[0].mxu0
    %v3717 = vadd.f32 %v3276, %v3716
    %v3718 = vpop.f32.mrb[0].mxu0
    %v3719 = vpop.f32.mrb[0].mxu0
    %v3720 = vadd.f32 %v3276, %v3719
    %v3721 = vpop.f32.mrb[0].mxu0
    %3722 = vmatprep.mubr.bf16.mxu0 %v3079
    %3723 = vmatmul.mubr.bf16.gmra.mrb[0].mxu0 %v2852
    %v3724 = vpop.f32.mrb[0].mxu0
    %v3725 = vadd.f32 %v3276, %v3724
    %v3726 = vpop.f32.mrb[0].mxu0
    %v3727 = vpop.f32.mrb[0].mxu0
    %v3728 = vadd.f32 %v3276, %v3727
    %v3729 = vpop.f32.mrb[0].mxu0
    %3730 = vmatprep.mubr.bf16.mxu0 %v3082
    %3731 = vmatmul.mubr.bf16.gmra.mrb[0].mxu0 %v2855
    %v3732 = vpop.f32.mrb[0].mxu0
    %v3733 = vadd.f32 %v3276, %v3732
    %v3734 = vpop.f32.mrb[0].mxu0
    %v3735 = vpop.f32.mrb[0].mxu0
    %v3736 = vadd.f32 %v3276, %v3735
    %v3737 = vpop.f32.mrb[0].mxu0
    %3738 = vmatprep.mubr.bf16.mxu0 %v3085
    %3739 = vmatmul.mubr.bf16.gmra.mrb[0].mxu0 %v2858
    %v3740 = vpop.f32.mrb[0].mxu0
    %v3741 = vadd.f32 %v3276, %v3740
    %v3742 = vpop.f32.mrb[0].mxu0
    %v3743 = vpop.f32.mrb[0].mxu0
    %v3744 = vadd.f32 %v3276, %v3743
    %v3745 = vpop.f32.mrb[0].mxu0
    %3746 = vmatprep.mubr.bf16.mxu0 %v3088
    %3747 = vmatmul.mubr.bf16.gmra.mrb[0].mxu0 %v2861
    %v3748 = vpop.f32.mrb[0].mxu0
    %v3749 = vadd.f32 %v3276, %v3748
    %v3750 = vpop.f32.mrb[0].mxu0
    %v3751 = vpop.f32.mrb[0].mxu0
    %v3752 = vadd.f32 %v3276, %v3751
    %v3753 = vpop.f32.mrb[0].mxu0
    %3754 = vmatprep.mubr.bf16.mxu0 %v3091
    %3755 = vmatmul.mubr.bf16.gmra.mrb[0].mxu0 %v2864
    %v3756 = vpop.f32.mrb[0].mxu0
    %v3757 = vadd.f32 %v3276, %v3756
    %v3758 = vpop.f32.mrb[0].mxu0
    %v3759 = vpop.f32.mrb[0].mxu0
    %v3760 = vadd.f32 %v3276, %v3759
    %v3761 = vpop.f32.mrb[0].mxu0
    %3762 = vmatprep.mubr.bf16.mxu0 %v3094
    %3763 = vmatmul.mubr.bf16.gmra.mrb[0].mxu0 %v2867
    %v3764 = vpop.f32.mrb[0].mxu0
    %v3765 = vadd.f32 %v3276, %v3764
    %v3766 = vpop.f32.mrb[0].mxu0
    %v3767 = vpop.f32.mrb[0].mxu0
    %v3768 = vadd.f32 %v3276, %v3767
    %v3769 = vpop.f32.mrb[0].mxu0
    %3770 = vdwg.mxu0
    %3771 = vmatprep.subr.bf16.mxu0 0
    %3772 = vmatpush1.bf16.msra.mxu0 %v3384
    %3773 = vmatprep.subr.bf16.mxu0 0
    %3774 = vmatpush1.bf16.msra.mxu0 %v3385
    %3775 = vmatprep.subr.bf16.mxu0 0
    %3776 = vmatpush1.bf16.msra.mxu0 %v3386
    %3777 = vmatprep.subr.bf16.mxu0 0
    %3778 = vmatpush1.bf16.msra.mxu0 %v3387
    %3779 = vmatprep.subr.bf16.mxu0 0
    %3780 = vmatpush1.bf16.msra.mxu0 %v3388
    %3781 = vmatprep.subr.bf16.mxu0 0
    %3782 = vmatpush1.bf16.msra.mxu0 %v3389
    %3783 = vmatprep.subr.bf16.mxu0 0
    %3784 = vmatpush1.bf16.msra.mxu0 %v3480
    %3785 = vmatprep.subr.bf16.mxu0 0
    %3786 = vmatpush1.bf16.msra.mxu0 0
    %3787 = vmatprep.subr.bf16.mxu0 0
    %3788 = vmatpush1.bf16.msra.mxu0 0
    %3789 = vmatprep.subr.bf16.mxu0 0
    %3790 = vmatpush1.bf16.msra.mxu0 0
    %3791 = vmatprep.subr.bf16.mxu0 0
    %3792 = vmatpush1.bf16.msra.mxu0 0
    %3793 = vmatprep.subr.bf16.mxu0 0
    %3794 = vmatpush1.bf16.msra.mxu0 0
    %3795 = vmatprep.subr.bf16.mxu0 0
    %3796 = vmatpush1.bf16.msra.mxu0 0
    %3797 = vmatprep.subr.bf16.mxu0 0
    %3798 = vmatpush1.bf16.msra.mxu0 0
    %3799 = vmatprep.subr.bf16.mxu0 0
    %3800 = vmatpush1.bf16.msra.mxu0 0
    %3801 = vmatprep.subr.bf16.mxu0 0
    %3802 = vmatpush1.bf16.msra.mxu0 0
    %3803 = vmatprep.mubr.bf16.mxu0 0
    %3804 = vmatmul.mubr.bf16.gmra.mrb[0].mxu0 %v3414
    %v3805 = vpop.f32.mrb[0].mxu0
    %v3806 = vadd.f32 %v3517, %v3805
    %v3807 = vpop.f32.mrb[0].mxu0
    %v3808 = vpop.f32.mrb[0].mxu0
    %v3809 = vadd.f32 %v3520, %v3808
    %v3810 = vpop.f32.mrb[0].mxu0
    %3811 = vmatprep.mubr.bf16.mxu0 0
    %3812 = vmatmul.mubr.bf16.gmra.mrb[0].mxu0 %v3416
    %v3813 = vpop.f32.mrb[0].mxu0
    %v3814 = vadd.f32 %v3525, %v3813
    %v3815 = vpop.f32.mrb[0].mxu0
    %v3816 = vpop.f32.mrb[0].mxu0
    %v3817 = vadd.f32 %v3528, %v3816
    %v3818 = vpop.f32.mrb[0].mxu0
    %3819 = vmatprep.mubr.bf16.mxu0 0
    %3820 = vmatmul.mubr.bf16.gmra.mrb[0].mxu0 %v3418
    %v3821 = vpop.f32.mrb[0].mxu0
    %v3822 = vadd.f32 %v3533, %v3821
    %v3823 = vpop.f32.mrb[0].mxu0
    %v3824 = vpop.f32.mrb[0].mxu0
    %v3825 = vadd.f32 %v3536, %v3824
    %v3826 = vpop.f32.mrb[0].mxu0
    %3827 = vmatprep.mubr.bf16.mxu0 0
    %3828 = vmatmul.mubr.bf16.gmra.mrb[0].mxu0 %v3420
    %v3829 = vpop.f32.mrb[0].mxu0
    %v3830 = vadd.f32 %v3541, %v3829
    %v3831 = vpop.f32.mrb[0].mxu0
    %v3832 = vpop.f32.mrb[0].mxu0
    %v3833 = vadd.f32 %v3544, %v3832
    %v3834 = vpop.f32.mrb[0].mxu0
    %3835 = vmatprep.mubr.bf16.mxu0 0
    %3836 = vmatmul.mubr.bf16.gmra.mrb[0].mxu0 %v3422
    %v3837 = vpop.f32.mrb[0].mxu0
    %v3838 = vadd.f32 %v3549, %v3837
    %v3839 = vpop.f32.mrb[0].mxu0
    %v3840 = vpop.f32.mrb[0].mxu0
    %v3841 = vadd.f32 %v3552, %v3840
    %v3842 = vpop.f32.mrb[0].mxu0
    %3843 = vmatprep.mubr.bf16.mxu0 0
    %3844 = vmatmul.mubr.bf16.gmra.mrb[0].mxu0 %v3424
    %v3845 = vpop.f32.mrb[0].mxu0
    %v3846 = vadd.f32 %v3557, %v3845
    %v3847 = vpop.f32.mrb[0].mxu0
    %v3848 = vpop.f32.mrb[0].mxu0
    %v3849 = vadd.f32 %v3560, %v3848
    %v3850 = vpop.f32.mrb[0].mxu0
    %3851 = vmatprep.mubr.bf16.mxu0 0
    %3852 = vmatmul.mubr.bf16.gmra.mrb[0].mxu0 %v3426
    %v3853 = vpop.f32.mrb[0].mxu0
    %v3854 = vadd.f32 %v3565, %v3853
    %v3855 = vpop.f32.mrb[0].mxu0
    %v3856 = vpop.f32.mrb[0].mxu0
    %v3857 = vadd.f32 %v3568, %v3856
    %v3858 = vpop.f32.mrb[0].mxu0
    %3859 = vmatprep.mubr.bf16.mxu0 0
    %3860 = vmatmul.mubr.bf16.gmra.mrb[0].mxu0 %v3428
    %v3861 = vpop.f32.mrb[0].mxu0
    %v3862 = vadd.f32 %v3573, %v3861
    %v3863 = vpop.f32.mrb[0].mxu0
    %v3864 = vpop.f32.mrb[0].mxu0
    %v3865 = vadd.f32 %v3576, %v3864
    %v3866 = vpop.f32.mrb[0].mxu0
    %3867 = vmatprep.mubr.bf16.mxu0 0
    %3868 = vmatmul.mubr.bf16.gmra.mrb[0].mxu0 %v3430
    %v3869 = vpop.f32.mrb[0].mxu0
    %v3870 = vadd.f32 %v3581, %v3869
    %v3871 = vpop.f32.mrb[0].mxu0
    %v3872 = vpop.f32.mrb[0].mxu0
    %v3873 = vadd.f32 %v3584, %v3872
    %v3874 = vpop.f32.mrb[0].mxu0
    %3875 = vmatprep.mubr.bf16.mxu0 0
    %3876 = vmatmul.mubr.bf16.gmra.mrb[0].mxu0 %v3432
    %v3877 = vpop.f32.mrb[0].mxu0
    %v3878 = vadd.f32 %v3589, %v3877
    %v3879 = vpop.f32.mrb[0].mxu0
    %v3880 = vpop.f32.mrb[0].mxu0
    %v3881 = vadd.f32 %v3592, %v3880
    %v3882 = vpop.f32.mrb[0].mxu0
    %3883 = vmatprep.mubr.bf16.mxu0 0
    %3884 = vmatmul.mubr.bf16.gmra.mrb[0].mxu0 %v3434
    %v3885 = vpop.f32.mrb[0].mxu0
    %v3886 = vadd.f32 %v3597, %v3885
    %v3887 = vpop.f32.mrb[0].mxu0
    %v3888 = vpop.f32.mrb[0].mxu0
    %v3889 = vadd.f32 %v3600, %v3888
    %v3890 = vpop.f32.mrb[0].mxu0
    %3891 = vmatprep.mubr.bf16.mxu0 0
    %3892 = vmatmul.mubr.bf16.gmra.mrb[0].mxu0 %v3436
    %v3893 = vpop.f32.mrb[0].mxu0
    %v3894 = vadd.f32 %v3605, %v3893
    %v3895 = vpop.f32.mrb[0].mxu0
    %v3896 = vpop.f32.mrb[0].mxu0
    %v3897 = vadd.f32 %v3608, %v3896
    %v3898 = vpop.f32.mrb[0].mxu0
    %3899 = vmatprep.mubr.bf16.mxu0 0
    %3900 = vmatmul.mubr.bf16.gmra.mrb[0].mxu0 %v3438
    %v3901 = vpop.f32.mrb[0].mxu0
    %v3902 = vadd.f32 %v3613, %v3901
    %v3903 = vpop.f32.mrb[0].mxu0
    %v3904 = vpop.f32.mrb[0].mxu0
    %v3905 = vadd.f32 %v3616, %v3904
    %v3906 = vpop.f32.mrb[0].mxu0
    %3907 = vmatprep.mubr.bf16.mxu0 0
    %3908 = vmatmul.mubr.bf16.gmra.mrb[0].mxu0 %v3440
    %v3909 = vpop.f32.mrb[0].mxu0
    %v3910 = vadd.f32 %v3621, %v3909
    %v3911 = vpop.f32.mrb[0].mxu0
    %v3912 = vpop.f32.mrb[0].mxu0
    %v3913 = vadd.f32 %v3624, %v3912
    %v3914 = vpop.f32.mrb[0].mxu0
    %3915 = vmatprep.mubr.bf16.mxu0 0
    %3916 = vmatmul.mubr.bf16.gmra.mrb[0].mxu0 %v3442
    %v3917 = vpop.f32.mrb[0].mxu0
    %v3918 = vadd.f32 %v3629, %v3917
    %v3919 = vpop.f32.mrb[0].mxu0
    %v3920 = vpop.f32.mrb[0].mxu0
    %v3921 = vadd.f32 %v3632, %v3920
    %v3922 = vpop.f32.mrb[0].mxu0
    %3923 = vmatprep.mubr.bf16.mxu0 0
    %3924 = vmatmul.mubr.bf16.gmra.mrb[0].mxu0 %v3444
    %v3925 = vpop.f32.mrb[0].mxu0
    %v3926 = vadd.f32 %v3637, %v3925
    %v3927 = vpop.f32.mrb[0].mxu0
    %v3928 = vpop.f32.mrb[0].mxu0
    %v3929 = vadd.f32 %v3640, %v3928
    %v3930 = vpop.f32.mrb[0].mxu0
    %3931 = vmatprep.mubr.bf16.mxu0 0
    %3932 = vmatmul.mubr.bf16.gmra.mrb[0].mxu0 %v3446
    %v3933 = vpop.f32.mrb[0].mxu0
    %v3934 = vadd.f32 %v3645, %v3933
    %v3935 = vpop.f32.mrb[0].mxu0
    %v3936 = vpop.f32.mrb[0].mxu0
    %v3937 = vadd.f32 %v3648, %v3936
    %v3938 = vpop.f32.mrb[0].mxu0
    %3939 = vmatprep.mubr.bf16.mxu0 0
    %3940 = vmatmul.mubr.bf16.gmra.mrb[0].mxu0 %v3448
    %v3941 = vpop.f32.mrb[0].mxu0
    %v3942 = vadd.f32 %v3653, %v3941
    %v3943 = vpop.f32.mrb[0].mxu0
    %v3944 = vpop.f32.mrb[0].mxu0
    %v3945 = vadd.f32 %v3656, %v3944
    %v3946 = vpop.f32.mrb[0].mxu0
    %3947 = vmatprep.mubr.bf16.mxu0 0
    %3948 = vmatmul.mubr.bf16.gmra.mrb[0].mxu0 %v3450
    %v3949 = vpop.f32.mrb[0].mxu0
    %v3950 = vadd.f32 %v3661, %v3949
    %v3951 = vpop.f32.mrb[0].mxu0
    %v3952 = vpop.f32.mrb[0].mxu0
    %v3953 = vadd.f32 %v3664, %v3952
    %v3954 = vpop.f32.mrb[0].mxu0
    %3955 = vmatprep.mubr.bf16.mxu0 0
    %3956 = vmatmul.mubr.bf16.gmra.mrb[0].mxu0 %v3452
    %v3957 = vpop.f32.mrb[0].mxu0
    %v3958 = vadd.f32 %v3669, %v3957
    %v3959 = vpop.f32.mrb[0].mxu0
    %v3960 = vpop.f32.mrb[0].mxu0
    %v3961 = vadd.f32 %v3672, %v3960
    %v3962 = vpop.f32.mrb[0].mxu0
    %3963 = vmatprep.mubr.bf16.mxu0 0
    %3964 = vmatmul.mubr.bf16.gmra.mrb[0].mxu0 %v3454
    %v3965 = vpop.f32.mrb[0].mxu0
    %v3966 = vadd.f32 %v3677, %v3965
    %v3967 = vpop.f32.mrb[0].mxu0
    %v3968 = vpop.f32.mrb[0].mxu0
    %v3969 = vadd.f32 %v3680, %v3968
    %v3970 = vpop.f32.mrb[0].mxu0
    %3971 = vmatprep.mubr.bf16.mxu0 0
    %3972 = vmatmul.mubr.bf16.gmra.mrb[0].mxu0 %v3456
    %v3973 = vpop.f32.mrb[0].mxu0
    %v3974 = vadd.f32 %v3685, %v3973
    %v3975 = vpop.f32.mrb[0].mxu0
    %v3976 = vpop.f32.mrb[0].mxu0
    %v3977 = vadd.f32 %v3688, %v3976
    %v3978 = vpop.f32.mrb[0].mxu0
    %3979 = vmatprep.mubr.bf16.mxu0 0
    %3980 = vmatmul.mubr.bf16.gmra.mrb[0].mxu0 %v3458
    %v3981 = vpop.f32.mrb[0].mxu0
    %v3982 = vadd.f32 %v3693, %v3981
    %v3983 = vpop.f32.mrb[0].mxu0
    %v3984 = vpop.f32.mrb[0].mxu0
    %v3985 = vadd.f32 %v3696, %v3984
    %v3986 = vpop.f32.mrb[0].mxu0
    %3987 = vmatprep.mubr.bf16.mxu0 0
    %3988 = vmatmul.mubr.bf16.gmra.mrb[0].mxu0 %v3460
    %v3989 = vpop.f32.mrb[0].mxu0
    %v3990 = vadd.f32 %v3701, %v3989
    %v3991 = vpop.f32.mrb[0].mxu0
    %v3992 = vpop.f32.mrb[0].mxu0
    %v3993 = vadd.f32 %v3704, %v3992
    %v3994 = vpop.f32.mrb[0].mxu0
    %3995 = vmatprep.mubr.bf16.mxu0 0
    %3996 = vmatmul.mubr.bf16.gmra.mrb[0].mxu0 %v3462
    %v3997 = vpop.f32.mrb[0].mxu0
    %v3998 = vadd.f32 %v3709, %v3997
    %v3999 = vpop.f32.mrb[0].mxu0
    %v4000 = vpop.f32.mrb[0].mxu0
    %v4001 = vadd.f32 %v3712, %v4000
    %v4002 = vpop.f32.mrb[0].mxu0
    %4003 = vmatprep.mubr.bf16.mxu0 0
    %4004 = vmatmul.mubr.bf16.gmra.mrb[0].mxu0 %v3464
    %v4005 = vpop.f32.mrb[0].mxu0
    %v4006 = vadd.f32 %v3717, %v4005
    %v4007 = vpop.f32.mrb[0].mxu0
    %v4008 = vpop.f32.mrb[0].mxu0
    %v4009 = vadd.f32 %v3720, %v4008
    %v4010 = vpop.f32.mrb[0].mxu0
    %4011 = vmatprep.mubr.bf16.mxu0 0
    %4012 = vmatmul.mubr.bf16.gmra.mrb[0].mxu0 %v3466
    %v4013 = vpop.f32.mrb[0].mxu0
    %v4014 = vadd.f32 %v3725, %v4013
    %v4015 = vpop.f32.mrb[0].mxu0
    %v4016 = vpop.f32.mrb[0].mxu0
    %v4017 = vadd.f32 %v3728, %v4016
    %v4018 = vpop.f32.mrb[0].mxu0
    %4019 = vmatprep.mubr.bf16.mxu0 0
    %4020 = vmatmul.mubr.bf16.gmra.mrb[0].mxu0 %v3468
    %v4021 = vpop.f32.mrb[0].mxu0
    %v4022 = vadd.f32 %v3733, %v4021
    %v4023 = vpop.f32.mrb[0].mxu0
    %v4024 = vpop.f32.mrb[0].mxu0
    %v4025 = vadd.f32 %v3736, %v4024
    %v4026 = vpop.f32.mrb[0].mxu0
    %4027 = vmatprep.mubr.bf16.mxu0 0
    %4028 = vmatmul.mubr.bf16.gmra.mrb[0].mxu0 %v3470
    %v4029 = vpop.f32.mrb[0].mxu0
    %v4030 = vadd.f32 %v3741, %v4029
    %v4031 = vpop.f32.mrb[0].mxu0
    %v4032 = vpop.f32.mrb[0].mxu0
    %v4033 = vadd.f32 %v3744, %v4032
    %v4034 = vpop.f32.mrb[0].mxu0
    %4035 = vmatprep.mubr.bf16.mxu0 0
    %4036 = vmatmul.mubr.bf16.gmra.mrb[0].mxu0 %v3472
    %v4037 = vpop.f32.mrb[0].mxu0
    %v4038 = vadd.f32 %v3749, %v4037
    %v4039 = vpop.f32.mrb[0].mxu0
    %v4040 = vpop.f32.mrb[0].mxu0
    %v4041 = vadd.f32 %v3752, %v4040
    %v4042 = vpop.f32.mrb[0].mxu0
    %4043 = vmatprep.mubr.bf16.mxu0 0
    %4044 = vmatmul.mubr.bf16.gmra.mrb[0].mxu0 %v3474
    %v4045 = vpop.f32.mrb[0].mxu0
    %v4046 = vadd.f32 %v3757, %v4045
    %v4047 = vpop.f32.mrb[0].mxu0
    %v4048 = vpop.f32.mrb[0].mxu0
    %v4049 = vadd.f32 %v3760, %v4048
    %v4050 = vpop.f32.mrb[0].mxu0
    %4051 = vmatprep.mubr.bf16.mxu0 0
    %4052 = vmatmul.mubr.bf16.gmra.mrb[0].mxu0 %v3476
    %v4053 = vpop.f32.mrb[0].mxu0
    %v4054 = vadd.f32 %v3765, %v4053
    %v4055 = vpop.f32.mrb[0].mxu0
    %v4056 = vpop.f32.mrb[0].mxu0
    %v4057 = vadd.f32 %v3768, %v4056
    %v4058 = vpop.f32.mrb[0].mxu0
    %4059 = vdwg.mxu0
    %v4060 = vxor.u32 %v3806, 2147483648
    %v4061 = vxor.u32 %v3809, 2147483648
    %v4062 = vxor.u32 %v3814, 2147483648
    %v4063 = vxor.u32 %v3817, 2147483648
    %v4064 = vxor.u32 %v3822, 2147483648
    %v4065 = vxor.u32 %v3825, 2147483648
    %v4066 = vxor.u32 %v3830, 2147483648
    %v4067 = vxor.u32 %v3833, 2147483648
    %v4068 = vxor.u32 %v3838, 2147483648
    %v4069 = vxor.u32 %v3841, 2147483648
    %v4070 = vxor.u32 %v3846, 2147483648
    %v4071 = vxor.u32 %v3849, 2147483648
    %v4072 = vxor.u32 %v3854, 2147483648
    %v4073 = vxor.u32 %v3857, 2147483648
    %v4074 = vxor.u32 %v3862, 2147483648
    %v4075 = vxor.u32 %v3865, 2147483648
    %v4076 = vxor.u32 %v3870, 2147483648
    %v4077 = vxor.u32 %v3873, 2147483648
    %v4078 = vxor.u32 %v3878, 2147483648
    %v4079 = vxor.u32 %v3881, 2147483648
    %v4080 = vxor.u32 %v3886, 2147483648
    %v4081 = vxor.u32 %v3889, 2147483648
    %v4082 = vxor.u32 %v3894, 2147483648
    %v4083 = vxor.u32 %v3897, 2147483648
    %v4084 = vxor.u32 %v3902, 2147483648
    %v4085 = vxor.u32 %v3905, 2147483648
    %v4086 = vxor.u32 %v3910, 2147483648
    %v4087 = vxor.u32 %v3913, 2147483648
    %v4088 = vxor.u32 %v3918, 2147483648
    %v4089 = vxor.u32 %v3921, 2147483648
    %v4090 = vxor.u32 %v3926, 2147483648
    %v4091 = vxor.u32 %v3929, 2147483648
    %v4092 = vxor.u32 %v3934, 2147483648
    %v4093 = vxor.u32 %v3937, 2147483648
    %v4094 = vxor.u32 %v3942, 2147483648
    %v4095 = vxor.u32 %v3945, 2147483648
    %v4096 = vxor.u32 %v3950, 2147483648
    %v4097 = vxor.u32 %v3953, 2147483648
    %v4098 = vxor.u32 %v3958, 2147483648
    %v4099 = vxor.u32 %v3961, 2147483648
    %v4100 = vxor.u32 %v3966, 2147483648
    %v4101 = vxor.u32 %v3969, 2147483648
    %v4102 = vxor.u32 %v3974, 2147483648
    %v4103 = vxor.u32 %v3977, 2147483648
    %v4104 = vxor.u32 %v3982, 2147483648
    %v4105 = vxor.u32 %v3985, 2147483648
    %v4106 = vxor.u32 %v3990, 2147483648
    %v4107 = vxor.u32 %v3993, 2147483648
    %v4108 = vxor.u32 %v3998, 2147483648
    %v4109 = vxor.u32 %v4001, 2147483648
    %v4110 = vxor.u32 %v4006, 2147483648
    %v4111 = vxor.u32 %v4009, 2147483648
    %v4112 = vxor.u32 %v4014, 2147483648
    %v4113 = vxor.u32 %v4017, 2147483648
    %v4114 = vxor.u32 %v4022, 2147483648
    %v4115 = vxor.u32 %v4025, 2147483648
    %v4116 = vxor.u32 %v4030, 2147483648
    %v4117 = vxor.u32 %v4033, 2147483648
    %v4118 = vxor.u32 %v4038, 2147483648
    %v4119 = vxor.u32 %v4041, 2147483648
    %v4120 = vxor.u32 %v4046, 2147483648
    %v4121 = vxor.u32 %v4049, 2147483648
    %v4122 = vxor.u32 %v4054, 2147483648
    %v4123 = vxor.u32 %v4057, 2147483648
    %v4124 = vmul.f32 %v4060, 1.442695
    %v4125 = vpow.pop %v4124
    %v4126 = vmul.f32 %v4061, 1.442695
    %v4127 = vpow.pop %v4126
    %v4128 = vmul.f32 %v4062, 1.442695
    %v4129 = vpow.pop %v4128
    %v4130 = vmul.f32 %v4063, 1.442695
    %v4131 = vpow.pop %v4130
    %v4132 = vmul.f32 %v4064, 1.442695
    %v4133 = vpow.pop %v4132
    %v4134 = vmul.f32 %v4065, 1.442695
    %v4135 = vpow.pop %v4134
    %v4136 = vmul.f32 %v4066, 1.442695
    %v4137 = vpow.pop %v4136
    %v4138 = vmul.f32 %v4067, 1.442695
    %v4139 = vpow.pop %v4138
    %v4140 = vmul.f32 %v4068, 1.442695
    %v4141 = vpow.pop %v4140
    %v4142 = vmul.f32 %v4069, 1.442695
    %v4143 = vpow.pop %v4142
    %v4144 = vmul.f32 %v4070, 1.442695
    %v4145 = vpow.pop %v4144
    %v4146 = vmul.f32 %v4071, 1.442695
    %v4147 = vpow.pop %v4146
    %v4148 = vmul.f32 %v4072, 1.442695
    %v4149 = vpow.pop %v4148
    %v4150 = vmul.f32 %v4073, 1.442695
    %v4151 = vpow.pop %v4150
    %v4152 = vmul.f32 %v4074, 1.442695
    %v4153 = vpow.pop %v4152
    %v4154 = vmul.f32 %v4075, 1.442695
    %v4155 = vpow.pop %v4154
    %v4156 = vmul.f32 %v4076, 1.442695
    %v4157 = vpow.pop %v4156
    %v4158 = vmul.f32 %v4077, 1.442695
    %v4159 = vpow.pop %v4158
    %v4160 = vmul.f32 %v4078, 1.442695
    %v4161 = vpow.pop %v4160
    %v4162 = vmul.f32 %v4079, 1.442695
    %v4163 = vpow.pop %v4162
    %v4164 = vmul.f32 %v4080, 1.442695
    %v4165 = vpow.pop %v4164
    %v4166 = vmul.f32 %v4081, 1.442695
    %v4167 = vpow.pop %v4166
    %v4168 = vmul.f32 %v4082, 1.442695
    %v4169 = vpow.pop %v4168
    %v4170 = vmul.f32 %v4083, 1.442695
    %v4171 = vpow.pop %v4170
    %v4172 = vmul.f32 %v4084, 1.442695
    %v4173 = vpow.pop %v4172
    %v4174 = vmul.f32 %v4085, 1.442695
    %v4175 = vpow.pop %v4174
    %v4176 = vmul.f32 %v4086, 1.442695
    %v4177 = vpow.pop %v4176
    %v4178 = vmul.f32 %v4087, 1.442695
    %v4179 = vpow.pop %v4178
    %v4180 = vmul.f32 %v4088, 1.442695
    %v4181 = vpow.pop %v4180
    %v4182 = vmul.f32 %v4089, 1.442695
    %v4183 = vpow.pop %v4182
    %v4184 = vmul.f32 %v4090, 1.442695
    %v4185 = vpow.pop %v4184
    %v4186 = vmul.f32 %v4091, 1.442695
    %v4187 = vpow.pop %v4186
    %v4188 = vmul.f32 %v4092, 1.442695
    %v4189 = vpow.pop %v4188
    %v4190 = vmul.f32 %v4093, 1.442695
    %v4191 = vpow.pop %v4190
    %v4192 = vmul.f32 %v4094, 1.442695
    %v4193 = vpow.pop %v4192
    %v4194 = vmul.f32 %v4095, 1.442695
    %v4195 = vpow.pop %v4194
    %v4196 = vmul.f32 %v4096, 1.442695
    %v4197 = vpow.pop %v4196
    %v4198 = vmul.f32 %v4097, 1.442695
    %v4199 = vpow.pop %v4198
    %v4200 = vmul.f32 %v4098, 1.442695
    %v4201 = vpow.pop %v4200
    %v4202 = vmul.f32 %v4099, 1.442695
    %v4203 = vpow.pop %v4202
    %v4204 = vmul.f32 %v4100, 1.442695
    %v4205 = vpow.pop %v4204
    %v4206 = vmul.f32 %v4101, 1.442695
    %v4207 = vpow.pop %v4206
    %v4208 = vmul.f32 %v4102, 1.442695
    %v4209 = vpow.pop %v4208
    %v4210 = vmul.f32 %v4103, 1.442695
    %v4211 = vpow.pop %v4210
    %v4212 = vmul.f32 %v4104, 1.442695
    %v4213 = vpow.pop %v4212
    %v4214 = vmul.f32 %v4105, 1.442695
    %v4215 = vpow.pop %v4214
    %v4216 = vmul.f32 %v4106, 1.442695
    %v4217 = vpow.pop %v4216
    %v4218 = vmul.f32 %v4107, 1.442695
    %v4219 = vpow.pop %v4218
    %v4220 = vmul.f32 %v4108, 1.442695
    %v4221 = vpow.pop %v4220
    %v4222 = vmul.f32 %v4109, 1.442695
    %v4223 = vpow.pop %v4222
    %v4224 = vmul.f32 %v4110, 1.442695
    %v4225 = vpow.pop %v4224
    %v4226 = vmul.f32 %v4111, 1.442695
    %v4227 = vpow.pop %v4226
    %v4228 = vmul.f32 %v4112, 1.442695
    %v4229 = vpow.pop %v4228
    %v4230 = vmul.f32 %v4113, 1.442695
    %v4231 = vpow.pop %v4230
    %v4232 = vmul.f32 %v4114, 1.442695
    %v4233 = vpow.pop %v4232
    %v4234 = vmul.f32 %v4115, 1.442695
    %v4235 = vpow.pop %v4234
    %v4236 = vmul.f32 %v4116, 1.442695
    %v4237 = vpow.pop %v4236
    %v4238 = vmul.f32 %v4117, 1.442695
    %v4239 = vpow.pop %v4238
    %v4240 = vmul.f32 %v4118, 1.442695
    %v4241 = vpow.pop %v4240
    %v4242 = vmul.f32 %v4119, 1.442695
    %v4243 = vpow.pop %v4242
    %v4244 = vmul.f32 %v4120, 1.442695
    %v4245 = vpow.pop %v4244
    %v4246 = vmul.f32 %v4121, 1.442695
    %v4247 = vpow.pop %v4246
    %v4248 = vmul.f32 %v4122, 1.442695
    %v4249 = vpow.pop %v4248
    %v4250 = vmul.f32 %v4123, 1.442695
    %v4251 = vpow.pop %v4250
    %v4252 = vadd.f32 %v4125, 1.0
    %v4253 = vadd.f32 %v4127, 1.0
    %v4254 = vadd.f32 %v4129, 1.0
    %v4255 = vadd.f32 %v4131, 1.0
    %v4256 = vadd.f32 %v4133, 1.0
    %v4257 = vadd.f32 %v4135, 1.0
    %v4258 = vadd.f32 %v4137, 1.0
    %v4259 = vadd.f32 %v4139, 1.0
    %v4260 = vadd.f32 %v4141, 1.0
    %v4261 = vadd.f32 %v4143, 1.0
    %v4262 = vadd.f32 %v4145, 1.0
    %v4263 = vadd.f32 %v4147, 1.0
    %v4264 = vadd.f32 %v4149, 1.0
    %v4265 = vadd.f32 %v4151, 1.0
    %v4266 = vadd.f32 %v4153, 1.0
    %v4267 = vadd.f32 %v4155, 1.0
    %v4268 = vadd.f32 %v4157, 1.0
    %v4269 = vadd.f32 %v4159, 1.0
    %v4270 = vadd.f32 %v4161, 1.0
    %v4271 = vadd.f32 %v4163, 1.0
    %v4272 = vadd.f32 %v4165, 1.0
    %v4273 = vadd.f32 %v4167, 1.0
    %v4274 = vadd.f32 %v4169, 1.0
    %v4275 = vadd.f32 %v4171, 1.0
    %v4276 = vadd.f32 %v4173, 1.0
    %v4277 = vadd.f32 %v4175, 1.0
    %v4278 = vadd.f32 %v4177, 1.0
    %v4279 = vadd.f32 %v4179, 1.0
    %v4280 = vadd.f32 %v4181, 1.0
    %v4281 = vadd.f32 %v4183, 1.0
    %v4282 = vadd.f32 %v4185, 1.0
    %v4283 = vadd.f32 %v4187, 1.0
    %v4284 = vadd.f32 %v4189, 1.0
    %v4285 = vadd.f32 %v4191, 1.0
    %v4286 = vadd.f32 %v4193, 1.0
    %v4287 = vadd.f32 %v4195, 1.0
    %v4288 = vadd.f32 %v4197, 1.0
    %v4289 = vadd.f32 %v4199, 1.0
    %v4290 = vadd.f32 %v4201, 1.0
    %v4291 = vadd.f32 %v4203, 1.0
    %v4292 = vadd.f32 %v4205, 1.0
    %v4293 = vadd.f32 %v4207, 1.0
    %v4294 = vadd.f32 %v4209, 1.0
    %v4295 = vadd.f32 %v4211, 1.0
    %v4296 = vadd.f32 %v4213, 1.0
    %v4297 = vadd.f32 %v4215, 1.0
    %v4298 = vadd.f32 %v4217, 1.0
    %v4299 = vadd.f32 %v4219, 1.0
    %v4300 = vadd.f32 %v4221, 1.0
    %v4301 = vadd.f32 %v4223, 1.0
    %v4302 = vadd.f32 %v4225, 1.0
    %v4303 = vadd.f32 %v4227, 1.0
    %v4304 = vadd.f32 %v4229, 1.0
    %v4305 = vadd.f32 %v4231, 1.0
    %v4306 = vadd.f32 %v4233, 1.0
    %v4307 = vadd.f32 %v4235, 1.0
    %v4308 = vadd.f32 %v4237, 1.0
    %v4309 = vadd.f32 %v4239, 1.0
    %v4310 = vadd.f32 %v4241, 1.0
    %v4311 = vadd.f32 %v4243, 1.0
    %v4312 = vadd.f32 %v4245, 1.0
    %v4313 = vadd.f32 %v4247, 1.0
    %v4314 = vadd.f32 %v4249, 1.0
    %v4315 = vadd.f32 %v4251, 1.0
    %v4316 = vrcp.pop %v4252
    %v4317 = vmul.f32 1.0, %v4316
    %v4318 = vrcp.pop %v4253
    %v4319 = vmul.f32 1.0, %v4318
    %v4320 = vrcp.pop %v4254
    %v4321 = vmul.f32 1.0, %v4320
    %v4322 = vrcp.pop %v4255
    %v4323 = vmul.f32 1.0, %v4322
    %v4324 = vrcp.pop %v4256
    %v4325 = vmul.f32 1.0, %v4324
    %v4326 = vrcp.pop %v4257
    %v4327 = vmul.f32 1.0, %v4326
    %v4328 = vrcp.pop %v4258
    %v4329 = vmul.f32 1.0, %v4328
    %v4330 = vrcp.pop %v4259
    %v4331 = vmul.f32 1.0, %v4330
    %v4332 = vrcp.pop %v4260
    %v4333 = vmul.f32 1.0, %v4332
    %v4334 = vrcp.pop %v4261
    %v4335 = vmul.f32 1.0, %v4334
    %v4336 = vrcp.pop %v4262
    %v4337 = vmul.f32 1.0, %v4336
    %v4338 = vrcp.pop %v4263
    %v4339 = vmul.f32 1.0, %v4338
    %v4340 = vrcp.pop %v4264
    %v4341 = vmul.f32 1.0, %v4340
    %v4342 = vrcp.pop %v4265
    %v4343 = vmul.f32 1.0, %v4342
    %v4344 = vrcp.pop %v4266
    %v4345 = vmul.f32 1.0, %v4344
    %v4346 = vrcp.pop %v4267
    %v4347 = vmul.f32 1.0, %v4346
    %v4348 = vrcp.pop %v4268
    %v4349 = vmul.f32 1.0, %v4348
    %v4350 = vrcp.pop %v4269
    %v4351 = vmul.f32 1.0, %v4350
    %v4352 = vrcp.pop %v4270
    %v4353 = vmul.f32 1.0, %v4352
    %v4354 = vrcp.pop %v4271
    %v4355 = vmul.f32 1.0, %v4354
    %v4356 = vrcp.pop %v4272
    %v4357 = vmul.f32 1.0, %v4356
    %v4358 = vrcp.pop %v4273
    %v4359 = vmul.f32 1.0, %v4358
    %v4360 = vrcp.pop %v4274
    %v4361 = vmul.f32 1.0, %v4360
    %v4362 = vrcp.pop %v4275
    %v4363 = vmul.f32 1.0, %v4362
    %v4364 = vrcp.pop %v4276
    %v4365 = vmul.f32 1.0, %v4364
    %v4366 = vrcp.pop %v4277
    %v4367 = vmul.f32 1.0, %v4366
    %v4368 = vrcp.pop %v4278
    %v4369 = vmul.f32 1.0, %v4368
    %v4370 = vrcp.pop %v4279
    %v4371 = vmul.f32 1.0, %v4370
    %v4372 = vrcp.pop %v4280
    %v4373 = vmul.f32 1.0, %v4372
    %v4374 = vrcp.pop %v4281
    %v4375 = vmul.f32 1.0, %v4374
    %v4376 = vrcp.pop %v4282
    %v4377 = vmul.f32 1.0, %v4376
    %v4378 = vrcp.pop %v4283
    %v4379 = vmul.f32 1.0, %v4378
    %v4380 = vrcp.pop %v4284
    %v4381 = vmul.f32 1.0, %v4380
    %v4382 = vrcp.pop %v4285
    %v4383 = vmul.f32 1.0, %v4382
    %v4384 = vrcp.pop %v4286
    %v4385 = vmul.f32 1.0, %v4384
    %v4386 = vrcp.pop %v4287
    %v4387 = vmul.f32 1.0, %v4386
    %v4388 = vrcp.pop %v4288
    %v4389 = vmul.f32 1.0, %v4388
    %v4390 = vrcp.pop %v4289
    %v4391 = vmul.f32 1.0, %v4390
    %v4392 = vrcp.pop %v4290
    %v4393 = vmul.f32 1.0, %v4392
    %v4394 = vrcp.pop %v4291
    %v4395 = vmul.f32 1.0, %v4394
    %v4396 = vrcp.pop %v4292
    %v4397 = vmul.f32 1.0, %v4396
    %v4398 = vrcp.pop %v4293
    %v4399 = vmul.f32 1.0, %v4398
    %v4400 = vrcp.pop %v4294
    %v4401 = vmul.f32 1.0, %v4400
    %v4402 = vrcp.pop %v4295
    %v4403 = vmul.f32 1.0, %v4402
    %v4404 = vrcp.pop %v4296
    %v4405 = vmul.f32 1.0, %v4404
    %v4406 = vrcp.pop %v4297
    %v4407 = vmul.f32 1.0, %v4406
    %v4408 = vrcp.pop %v4298
    %v4409 = vmul.f32 1.0, %v4408
    %v4410 = vrcp.pop %v4299
    %v4411 = vmul.f32 1.0, %v4410
    %v4412 = vrcp.pop %v4300
    %v4413 = vmul.f32 1.0, %v4412
    %v4414 = vrcp.pop %v4301
    %v4415 = vmul.f32 1.0, %v4414
    %v4416 = vrcp.pop %v4302
    %v4417 = vmul.f32 1.0, %v4416
    %v4418 = vrcp.pop %v4303
    %v4419 = vmul.f32 1.0, %v4418
    %v4420 = vrcp.pop %v4304
    %v4421 = vmul.f32 1.0, %v4420
    %v4422 = vrcp.pop %v4305
    %v4423 = vmul.f32 1.0, %v4422
    %v4424 = vrcp.pop %v4306
    %v4425 = vmul.f32 1.0, %v4424
    %v4426 = vrcp.pop %v4307
    %v4427 = vmul.f32 1.0, %v4426
    %v4428 = vrcp.pop %v4308
    %v4429 = vmul.f32 1.0, %v4428
    %v4430 = vrcp.pop %v4309
    %v4431 = vmul.f32 1.0, %v4430
    %v4432 = vrcp.pop %v4310
    %v4433 = vmul.f32 1.0, %v4432
    %v4434 = vrcp.pop %v4311
    %v4435 = vmul.f32 1.0, %v4434
    %v4436 = vrcp.pop %v4312
    %v4437 = vmul.f32 1.0, %v4436
    %v4438 = vrcp.pop %v4313
    %v4439 = vmul.f32 1.0, %v4438
    %v4440 = vrcp.pop %v4314
    %v4441 = vmul.f32 1.0, %v4440
    %v4442 = vrcp.pop %v4315
    %v4443 = vmul.f32 1.0, %v4442
    %4444 = vst.msk [vmem:[#allocation2] sm:$0xff] %vm2869, 0.0
    %4445 = vst.msk [vmem:[#allocation2 + $0x8] sm:$0xff] %vm2869, 0.0
    %vm4446 = vcmask 254976
    %4447 = vst.msk [vmem:[#allocation2 + $0x10] sm:$0x3] %vm4446, 0.0
    %4448 = vst.msk [vmem:[#allocation2 + $0x1b0] sm:$0xff] %vm2869, 0.0
    %4449 = vst.msk [vmem:[#allocation2 + $0x1b8] sm:$0xff] %vm2869, 0.0
    %4450 = vst.msk [vmem:[#allocation2 + $0x1c0] sm:$0x3] %vm4446, 0.0
    %s4451 = scalar_lea.vmem [#allocation2], 408
    %4452 = vst.msk [vmem:[%s4451] sm:$0xff] %vm2869, 0.0
    %4453 = vst.msk [vmem:[%s4451 + $0x8] sm:$0xff] %vm2869, 0.0
    %4454 = vst.msk [vmem:[%s4451 + $0x10] sm:$0x3] %vm4446, 0.0
    %4455 = vst.msk [vmem:[%s4451 + $0x1b0] sm:$0xff] %vm2869, 0.0
    %4456 = vst.msk [vmem:[%s4451 + $0x1b8] sm:$0xff] %vm2869, 0.0
    %4457 = vst.msk [vmem:[%s4451 + $0x1c0] sm:$0x3] %vm4446, 0.0
    %vm4458 = vcmask 253952
    %4459 = vst.msk [vmem:[#allocation2] sm:$0x1] %vm4458, 0.0
    %4460 = vst.msk [vmem:[#allocation2 + $0x18] sm:$0x1] %vm4458, 0.0
    %4461 = vst.msk [vmem:[#allocation2 + $0x30] sm:$0x1] %vm4458, 0.0
    %4462 = vst.msk [vmem:[#allocation2 + $0x48] sm:$0x1] %vm4458, 0.0
    %4463 = vst.msk [vmem:[#allocation2 + $0x60] sm:$0x1] %vm4458, 0.0
    %4464 = vst.msk [vmem:[#allocation2 + $0x78] sm:$0x1] %vm4458, 0.0
    %4465 = vst.msk [vmem:[#allocation2 + $0x90] sm:$0x1] %vm4458, 0.0
    %4466 = vst.msk [vmem:[#allocation2 + $0xa8] sm:$0x1] %vm4458, 0.0
    %4467 = vst.msk [vmem:[#allocation2 + $0xc0] sm:$0x1] %vm4458, 0.0
    %4468 = vst.msk [vmem:[#allocation2 + $0xd8] sm:$0x1] %vm4458, 0.0
    %4469 = vst.msk [vmem:[#allocation2 + $0xf0] sm:$0x1] %vm4458, 0.0
    %4470 = vst.msk [vmem:[#allocation2 + $0x108] sm:$0x1] %vm4458, 0.0
    %4471 = vst.msk [vmem:[#allocation2 + $0x120] sm:$0x1] %vm4458, 0.0
    %4472 = vst.msk [vmem:[#allocation2 + $0x138] sm:$0x1] %vm4458, 0.0
    %4473 = vst.msk [vmem:[#allocation2 + $0x150] sm:$0x1] %vm4458, 0.0
    %4474 = vst.msk [vmem:[#allocation2 + $0x168] sm:$0x1] %vm4458, 0.0
    %4475 = vst.msk [vmem:[#allocation2 + $0x180] sm:$0x1] %vm4458, 0.0
    %4476 = vst.msk [vmem:[#allocation2 + $0x198] sm:$0x1] %vm4458, 0.0
    %4477 = vst.msk [vmem:[#allocation2 + $0x1b0] sm:$0x1] %vm4458, 0.0
    %4478 = vst.msk [vmem:[#allocation2 + $0x1c8] sm:$0x1] %vm4458, 0.0
    %4479 = vst.msk [vmem:[#allocation2 + $0x1e0] sm:$0x1] %vm4458, 0.0
    %4480 = vst.msk [vmem:[#allocation2 + $0x1f8] sm:$0x1] %vm4458, 0.0
    %4481 = vst.msk [vmem:[#allocation2 + $0x210] sm:$0x1] %vm4458, 0.0
    %4482 = vst.msk [vmem:[#allocation2 + $0x228] sm:$0x1] %vm4458, 0.0
    %4483 = vst.msk [vmem:[#allocation2 + $0x240] sm:$0x1] %vm4458, 0.0
    %4484 = vst.msk [vmem:[#allocation2 + $0x258] sm:$0x1] %vm4458, 0.0
    %4485 = vst.msk [vmem:[#allocation2 + $0x270] sm:$0x1] %vm4458, 0.0
    %4486 = vst.msk [vmem:[#allocation2 + $0x288] sm:$0x1] %vm4458, 0.0
    %4487 = vst.msk [vmem:[#allocation2 + $0x2a0] sm:$0x1] %vm4458, 0.0
    %4488 = vst.msk [vmem:[#allocation2 + $0x2b8] sm:$0x1] %vm4458, 0.0
    %4489 = vst.msk [vmem:[#allocation2 + $0x2d0] sm:$0x1] %vm4458, 0.0
    %4490 = vst.msk [vmem:[#allocation2 + $0x2e8] sm:$0x1] %vm4458, 0.0
    %4491 = vst.msk [vmem:[#allocation2 + $0x300] sm:$0x1] %vm4458, 0.0
    %4492 = vst.msk [vmem:[#allocation2 + $0x318] sm:$0x1] %vm4458, 0.0
    %4493 = vst.msk [vmem:[#allocation2 + $0x330] sm:$0x1] %vm4458, 0.0
    %4494 = vst.msk [vmem:[#allocation2 + $0x348] sm:$0x1] %vm4458, 0.0
    %4495 = vst.msk [vmem:[#allocation2 + $0x11] sm:$0x1] %vm4458, 0.0
    %4496 = vst.msk [vmem:[#allocation2 + $0x29] sm:$0x1] %vm4458, 0.0
    %4497 = vst.msk [vmem:[#allocation2 + $0x41] sm:$0x1] %vm4458, 0.0
    %4498 = vst.msk [vmem:[#allocation2 + $0x59] sm:$0x1] %vm4458, 0.0
    %4499 = vst.msk [vmem:[#allocation2 + $0x71] sm:$0x1] %vm4458, 0.0
    %4500 = vst.msk [vmem:[#allocation2 + $0x89] sm:$0x1] %vm4458, 0.0
    %4501 = vst.msk [vmem:[#allocation2 + $0xa1] sm:$0x1] %vm4458, 0.0
    %4502 = vst.msk [vmem:[#allocation2 + $0xb9] sm:$0x1] %vm4458, 0.0
    %4503 = vst.msk [vmem:[#allocation2 + $0xd1] sm:$0x1] %vm4458, 0.0
    %4504 = vst.msk [vmem:[#allocation2 + $0xe9] sm:$0x1] %vm4458, 0.0
    %4505 = vst.msk [vmem:[#allocation2 + $0x101] sm:$0x1] %vm4458, 0.0
    %4506 = vst.msk [vmem:[#allocation2 + $0x119] sm:$0x1] %vm4458, 0.0
    %4507 = vst.msk [vmem:[#allocation2 + $0x131] sm:$0x1] %vm4458, 0.0
    %4508 = vst.msk [vmem:[#allocation2 + $0x149] sm:$0x1] %vm4458, 0.0
    %4509 = vst.msk [vmem:[#allocation2 + $0x161] sm:$0x1] %vm4458, 0.0
    %4510 = vst.msk [vmem:[#allocation2 + $0x179] sm:$0x1] %vm4458, 0.0
    %4511 = vst.msk [vmem:[#allocation2 + $0x191] sm:$0x1] %vm4458, 0.0
    %4512 = vst.msk [vmem:[#allocation2 + $0x1a9] sm:$0x1] %vm4458, 0.0
    %4513 = vst.msk [vmem:[#allocation2 + $0x1c1] sm:$0x1] %vm4458, 0.0
    %4514 = vst.msk [vmem:[#allocation2 + $0x1d9] sm:$0x1] %vm4458, 0.0
    %4515 = vst.msk [vmem:[#allocation2 + $0x1f1] sm:$0x1] %vm4458, 0.0
    %4516 = vst.msk [vmem:[#allocation2 + $0x209] sm:$0x1] %vm4458, 0.0
    %4517 = vst.msk [vmem:[#allocation2 + $0x221] sm:$0x1] %vm4458, 0.0
    %4518 = vst.msk [vmem:[#allocation2 + $0x239] sm:$0x1] %vm4458, 0.0
    %4519 = vst.msk [vmem:[#allocation2 + $0x251] sm:$0x1] %vm4458, 0.0
    %4520 = vst.msk [vmem:[#allocation2 + $0x269] sm:$0x1] %vm4458, 0.0
    %4521 = vst.msk [vmem:[#allocation2 + $0x281] sm:$0x1] %vm4458, 0.0
    %4522 = vst.msk [vmem:[#allocation2 + $0x299] sm:$0x1] %vm4458, 0.0
    %4523 = vst.msk [vmem:[#allocation2 + $0x2b1] sm:$0x1] %vm4458, 0.0
    %4524 = vst.msk [vmem:[#allocation2 + $0x2c9] sm:$0x1] %vm4458, 0.0
    %4525 = vst.msk [vmem:[#allocation2 + $0x2e1] sm:$0x1] %vm4458, 0.0
    %4526 = vst.msk [vmem:[#allocation2 + $0x2f9] sm:$0x1] %vm4458, 0.0
    %4527 = vst.msk [vmem:[#allocation2 + $0x311] sm:$0x1] %vm4458, 0.0
    %4528 = vst.msk [vmem:[#allocation2 + $0x329] sm:$0x1] %vm4458, 0.0
    %4529 = vst.msk [vmem:[#allocation2 + $0x341] sm:$0x1] %vm4458, 0.0
    %4530 = vst.msk [vmem:[#allocation2 + $0x359] sm:$0x1] %vm4458, 0.0
    %4531 = vrot.lane.b32.xlu0 %v322, 32
    %v4532 = vpop.permute.xlu0 %4531
    %4533 = vrot.lane.b32.xlu0 %v324, 32
    %v4534 = vpop.permute.xlu0 %4533
    %4535 = vrot.lane.b32.xlu0 %v327, 32
    %v4536 = vpop.permute.xlu0 %4535
    %4537 = vrot.lane.b32.xlu0 %v329, 32
    %v4538 = vpop.permute.xlu0 %4537
    %4539 = vrot.lane.b32.xlu0 %v332, 32
    %v4540 = vpop.permute.xlu0 %4539
    %4541 = vrot.lane.b32.xlu0 %v334, 32
    %v4542 = vpop.permute.xlu0 %4541
    %4543 = vrot.lane.b32.xlu0 %v337, 32
    %v4544 = vpop.permute.xlu0 %4543
    %4545 = vrot.lane.b32.xlu0 %v339, 32
    %v4546 = vpop.permute.xlu0 %4545
    %4547 = vrot.lane.b32.xlu0 %v342, 32
    %v4548 = vpop.permute.xlu0 %4547
    %4549 = vrot.lane.b32.xlu0 %v344, 32
    %v4550 = vpop.permute.xlu0 %4549
    %4551 = vrot.lane.b32.xlu0 %v347, 32
    %v4552 = vpop.permute.xlu0 %4551
    %4553 = vrot.lane.b32.xlu0 %v349, 32
    %v4554 = vpop.permute.xlu0 %4553
    %4555 = vrot.lane.b32.xlu0 %v352, 32
    %v4556 = vpop.permute.xlu0 %4555
    %4557 = vrot.lane.b32.xlu0 %v354, 32
    %v4558 = vpop.permute.xlu0 %4557
    %4559 = vrot.lane.b32.xlu0 %v357, 32
    %v4560 = vpop.permute.xlu0 %4559
    %4561 = vrot.lane.b32.xlu0 %v359, 32
    %v4562 = vpop.permute.xlu0 %4561
    %4563 = vrot.lane.b32.xlu0 %v362, 32
    %v4564 = vpop.permute.xlu0 %4563
    %4565 = vrot.lane.b32.xlu0 %v364, 32
    %v4566 = vpop.permute.xlu0 %4565
    %4567 = vrot.lane.b32.xlu0 %v367, 32
    %v4568 = vpop.permute.xlu0 %4567
    %4569 = vrot.lane.b32.xlu0 %v369, 32
    %v4570 = vpop.permute.xlu0 %4569
    %4571 = vrot.lane.b32.xlu0 %v372, 32
    %v4572 = vpop.permute.xlu0 %4571
    %4573 = vrot.lane.b32.xlu0 %v374, 32
    %v4574 = vpop.permute.xlu0 %4573
    %4575 = vrot.lane.b32.xlu0 %v377, 32
    %v4576 = vpop.permute.xlu0 %4575
    %4577 = vrot.lane.b32.xlu0 %v379, 32
    %v4578 = vpop.permute.xlu0 %4577
    %4579 = vrot.lane.b32.xlu0 %v382, 32
    %v4580 = vpop.permute.xlu0 %4579
    %4581 = vrot.lane.b32.xlu0 %v384, 32
    %v4582 = vpop.permute.xlu0 %4581
    %4583 = vrot.lane.b32.xlu0 %v387, 32
    %v4584 = vpop.permute.xlu0 %4583
    %4585 = vrot.lane.b32.xlu0 %v389, 32
    %v4586 = vpop.permute.xlu0 %4585
    %4587 = vrot.lane.b32.xlu0 %v392, 32
    %v4588 = vpop.permute.xlu0 %4587
    %4589 = vrot.lane.b32.xlu0 %v394, 32
    %v4590 = vpop.permute.xlu0 %4589
    %4591 = vrot.lane.b32.xlu0 %v397, 32
    %v4592 = vpop.permute.xlu0 %4591
    %4593 = vrot.lane.b32.xlu0 %v399, 32
    %v4594 = vpop.permute.xlu0 %4593
    %4595 = vrot.lane.b32.xlu0 %v402, 32
    %v4596 = vpop.permute.xlu0 %4595
    %4597 = vrot.lane.b32.xlu0 %v404, 32
    %v4598 = vpop.permute.xlu0 %4597
    %4599 = vrot.lane.b32.xlu0 %v407, 32
    %v4600 = vpop.permute.xlu0 %4599
    %4601 = vrot.lane.b32.xlu0 %v409, 32
    %v4602 = vpop.permute.xlu0 %4601
    %4603 = vrot.lane.b32.xlu0 %v412, 32
    %v4604 = vpop.permute.xlu0 %4603
    %4605 = vrot.lane.b32.xlu0 %v414, 32
    %v4606 = vpop.permute.xlu0 %4605
    %4607 = vrot.lane.b32.xlu0 %v417, 32
    %v4608 = vpop.permute.xlu0 %4607
    %4609 = vrot.lane.b32.xlu0 %v419, 32
    %v4610 = vpop.permute.xlu0 %4609
    %4611 = vrot.lane.b32.xlu0 %v422, 32
    %v4612 = vpop.permute.xlu0 %4611
    %4613 = vrot.lane.b32.xlu0 %v424, 32
    %v4614 = vpop.permute.xlu0 %4613
    %4615 = vrot.lane.b32.xlu0 %v427, 32
    %v4616 = vpop.permute.xlu0 %4615
    %4617 = vrot.lane.b32.xlu0 %v429, 32
    %v4618 = vpop.permute.xlu0 %4617
    %4619 = vrot.lane.b32.xlu0 %v432, 32
    %v4620 = vpop.permute.xlu0 %4619
    %4621 = vrot.lane.b32.xlu0 %v434, 32
    %v4622 = vpop.permute.xlu0 %4621
    %4623 = vrot.lane.b32.xlu0 %v437, 32
    %v4624 = vpop.permute.xlu0 %4623
    %4625 = vrot.lane.b32.xlu0 %v439, 32
    %v4626 = vpop.permute.xlu0 %4625
    %4627 = vrot.lane.b32.xlu0 %v442, 32
    %v4628 = vpop.permute.xlu0 %4627
    %4629 = vrot.lane.b32.xlu0 %v444, 32
    %v4630 = vpop.permute.xlu0 %4629
    %4631 = vrot.lane.b32.xlu0 %v447, 32
    %v4632 = vpop.permute.xlu0 %4631
    %4633 = vrot.lane.b32.xlu0 %v449, 32
    %v4634 = vpop.permute.xlu0 %4633
    %4635 = vrot.lane.b32.xlu0 %v452, 32
    %v4636 = vpop.permute.xlu0 %4635
    %4637 = vrot.lane.b32.xlu0 %v454, 32
    %v4638 = vpop.permute.xlu0 %4637
    %4639 = vrot.lane.b32.xlu0 %v457, 32
    %v4640 = vpop.permute.xlu0 %4639
    %4641 = vrot.lane.b32.xlu0 %v459, 32
    %v4642 = vpop.permute.xlu0 %4641
    %4643 = vrot.lane.b32.xlu0 %v462, 32
    %v4644 = vpop.permute.xlu0 %4643
    %4645 = vrot.lane.b32.xlu0 %v464, 32
    %v4646 = vpop.permute.xlu0 %4645
    %4647 = vrot.lane.b32.xlu0 %v467, 32
    %v4648 = vpop.permute.xlu0 %4647
    %4649 = vrot.lane.b32.xlu0 %v469, 32
    %v4650 = vpop.permute.xlu0 %4649
    %4651 = vrot.lane.b32.xlu0 %v472, 32
    %v4652 = vpop.permute.xlu0 %4651
    %4653 = vrot.lane.b32.xlu0 %v474, 32
    %v4654 = vpop.permute.xlu0 %4653
    %4655 = vrot.lane.b32.xlu0 %v477, 32
    %v4656 = vpop.permute.xlu0 %4655
    %4657 = vrot.lane.b32.xlu0 %v479, 32
    %v4658 = vpop.permute.xlu0 %4657
    %v4723 = vmul.f32 %v4317, %v4532
    %v4724 = vmul.f32 %v4319, %v4534
    %v4725 = vmul.f32 %v4321, %v4536
    %v4726 = vmul.f32 %v4323, %v4538
    %v4727 = vmul.f32 %v4325, %v4540
    %v4728 = vmul.f32 %v4327, %v4542
    %v4729 = vmul.f32 %v4329, %v4544
    %v4730 = vmul.f32 %v4331, %v4546
    %v4731 = vmul.f32 %v4333, %v4548
    %v4732 = vmul.f32 %v4335, %v4550
    %v4733 = vmul.f32 %v4337, %v4552
    %v4734 = vmul.f32 %v4339, %v4554
    %v4735 = vmul.f32 %v4341, %v4556
    %v4736 = vmul.f32 %v4343, %v4558
    %v4737 = vmul.f32 %v4345, %v4560
    %v4738 = vmul.f32 %v4347, %v4562
    %v4739 = vmul.f32 %v4349, %v4564
    %v4740 = vmul.f32 %v4351, %v4566
    %v4741 = vmul.f32 %v4353, %v4568
    %v4742 = vmul.f32 %v4355, %v4570
    %v4743 = vmul.f32 %v4357, %v4572
    %v4744 = vmul.f32 %v4359, %v4574
    %v4745 = vmul.f32 %v4361, %v4576
    %v4746 = vmul.f32 %v4363, %v4578
    %v4747 = vmul.f32 %v4365, %v4580
    %v4748 = vmul.f32 %v4367, %v4582
    %v4749 = vmul.f32 %v4369, %v4584
    %v4750 = vmul.f32 %v4371, %v4586
    %v4751 = vmul.f32 %v4373, %v4588
    %v4752 = vmul.f32 %v4375, %v4590
    %v4753 = vmul.f32 %v4377, %v4592
    %v4754 = vmul.f32 %v4379, %v4594
    %v4755 = vmul.f32 %v4381, %v4596
    %v4756 = vmul.f32 %v4383, %v4598
    %v4757 = vmul.f32 %v4385, %v4600
    %v4758 = vmul.f32 %v4387, %v4602
    %v4759 = vmul.f32 %v4389, %v4604
    %v4760 = vmul.f32 %v4391, %v4606
    %v4761 = vmul.f32 %v4393, %v4608
    %v4762 = vmul.f32 %v4395, %v4610
    %v4763 = vmul.f32 %v4397, %v4612
    %v4764 = vmul.f32 %v4399, %v4614
    %v4765 = vmul.f32 %v4401, %v4616
    %v4766 = vmul.f32 %v4403, %v4618
    %v4767 = vmul.f32 %v4405, %v4620
    %v4768 = vmul.f32 %v4407, %v4622
    %v4769 = vmul.f32 %v4409, %v4624
    %v4770 = vmul.f32 %v4411, %v4626
    %v4771 = vmul.f32 %v4413, %v4628
    %v4772 = vmul.f32 %v4415, %v4630
    %v4773 = vmul.f32 %v4417, %v4632
    %v4774 = vmul.f32 %v4419, %v4634
    %v4775 = vmul.f32 %v4421, %v4636
    %v4776 = vmul.f32 %v4423, %v4638
    %v4777 = vmul.f32 %v4425, %v4640
    %v4778 = vmul.f32 %v4427, %v4642
    %v4779 = vmul.f32 %v4429, %v4644
    %v4780 = vmul.f32 %v4431, %v4646
    %v4781 = vmul.f32 %v4433, %v4648
    %v4782 = vmul.f32 %v4435, %v4650
    %v4783 = vmul.f32 %v4437, %v4652
    %v4784 = vmul.f32 %v4439, %v4654
    %v4785 = vmul.f32 %v4441, %v4656
    %v4786 = vmul.f32 %v4443, %v4658
    %4851 = vrot.lane.b32.xlu0 %v4723, 96
    %v4852 = vpop.permute.xlu0 %4851
    %4853 = vrot.lane.b32.xlu0 %v4724, 96
    %v4854 = vpop.permute.xlu0 %4853
    %4855 = vrot.lane.b32.xlu0 %v4725, 96
    %v4856 = vpop.permute.xlu0 %4855
    %4857 = vrot.lane.b32.xlu0 %v4726, 96
    %v4858 = vpop.permute.xlu0 %4857
    %4859 = vrot.lane.b32.xlu0 %v4727, 96
    %v4860 = vpop.permute.xlu0 %4859
    %4861 = vrot.lane.b32.xlu0 %v4728, 96
    %v4862 = vpop.permute.xlu0 %4861
    %4863 = vrot.lane.b32.xlu0 %v4729, 96
    %v4864 = vpop.permute.xlu0 %4863
    %4865 = vrot.lane.b32.xlu0 %v4730, 96
    %v4866 = vpop.permute.xlu0 %4865
    %4867 = vrot.lane.b32.xlu0 %v4731, 96
    %v4868 = vpop.permute.xlu0 %4867
    %4869 = vrot.lane.b32.xlu0 %v4732, 96
    %v4870 = vpop.permute.xlu0 %4869
    %4871 = vrot.lane.b32.xlu0 %v4733, 96
    %v4872 = vpop.permute.xlu0 %4871
    %4873 = vrot.lane.b32.xlu0 %v4734, 96
    %v4874 = vpop.permute.xlu0 %4873
    %4875 = vrot.lane.b32.xlu0 %v4735, 96
    %v4876 = vpop.permute.xlu0 %4875
    %4877 = vrot.lane.b32.xlu0 %v4736, 96
    %v4878 = vpop.permute.xlu0 %4877
    %4879 = vrot.lane.b32.xlu0 %v4737, 96
    %v4880 = vpop.permute.xlu0 %4879
    %4881 = vrot.lane.b32.xlu0 %v4738, 96
    %v4882 = vpop.permute.xlu0 %4881
    %4883 = vrot.lane.b32.xlu0 %v4739, 96
    %v4884 = vpop.permute.xlu0 %4883
    %4885 = vrot.lane.b32.xlu0 %v4740, 96
    %v4886 = vpop.permute.xlu0 %4885
    %4887 = vrot.lane.b32.xlu0 %v4741, 96
    %v4888 = vpop.permute.xlu0 %4887
    %4889 = vrot.lane.b32.xlu0 %v4742, 96
    %v4890 = vpop.permute.xlu0 %4889
    %4891 = vrot.lane.b32.xlu0 %v4743, 96
    %v4892 = vpop.permute.xlu0 %4891
    %4893 = vrot.lane.b32.xlu0 %v4744, 96
    %v4894 = vpop.permute.xlu0 %4893
    %4895 = vrot.lane.b32.xlu0 %v4745, 96
    %v4896 = vpop.permute.xlu0 %4895
    %4897 = vrot.lane.b32.xlu0 %v4746, 96
    %v4898 = vpop.permute.xlu0 %4897
    %4899 = vrot.lane.b32.xlu0 %v4747, 96
    %v4900 = vpop.permute.xlu0 %4899
    %4901 = vrot.lane.b32.xlu0 %v4748, 96
    %v4902 = vpop.permute.xlu0 %4901
    %4903 = vrot.lane.b32.xlu0 %v4749, 96
    %v4904 = vpop.permute.xlu0 %4903
    %4905 = vrot.lane.b32.xlu0 %v4750, 96
    %v4906 = vpop.permute.xlu0 %4905
    %4907 = vrot.lane.b32.xlu0 %v4751, 96
    %v4908 = vpop.permute.xlu0 %4907
    %4909 = vrot.lane.b32.xlu0 %v4752, 96
    %v4910 = vpop.permute.xlu0 %4909
    %4911 = vrot.lane.b32.xlu0 %v4753, 96
    %v4912 = vpop.permute.xlu0 %4911
    %4913 = vrot.lane.b32.xlu0 %v4754, 96
    %v4914 = vpop.permute.xlu0 %4913
    %4915 = vrot.lane.b32.xlu0 %v4755, 96
    %v4916 = vpop.permute.xlu0 %4915
    %4917 = vrot.lane.b32.xlu0 %v4756, 96
    %v4918 = vpop.permute.xlu0 %4917
    %4919 = vrot.lane.b32.xlu0 %v4757, 96
    %v4920 = vpop.permute.xlu0 %4919
    %4921 = vrot.lane.b32.xlu0 %v4758, 96
    %v4922 = vpop.permute.xlu0 %4921
    %4923 = vrot.lane.b32.xlu0 %v4759, 96
    %v4924 = vpop.permute.xlu0 %4923
    %4925 = vrot.lane.b32.xlu0 %v4760, 96
    %v4926 = vpop.permute.xlu0 %4925
    %4927 = vrot.lane.b32.xlu0 %v4761, 96
    %v4928 = vpop.permute.xlu0 %4927
    %4929 = vrot.lane.b32.xlu0 %v4762, 96
    %v4930 = vpop.permute.xlu0 %4929
    %4931 = vrot.lane.b32.xlu0 %v4763, 96
    %v4932 = vpop.permute.xlu0 %4931
    %4933 = vrot.lane.b32.xlu0 %v4764, 96
    %v4934 = vpop.permute.xlu0 %4933
    %4935 = vrot.lane.b32.xlu0 %v4765, 96
    %v4936 = vpop.permute.xlu0 %4935
    %4937 = vrot.lane.b32.xlu0 %v4766, 96
    %v4938 = vpop.permute.xlu0 %4937
    %4939 = vrot.lane.b32.xlu0 %v4767, 96
    %v4940 = vpop.permute.xlu0 %4939
    %4941 = vrot.lane.b32.xlu0 %v4768, 96
    %v4942 = vpop.permute.xlu0 %4941
    %4943 = vrot.lane.b32.xlu0 %v4769, 96
    %v4944 = vpop.permute.xlu0 %4943
    %4945 = vrot.lane.b32.xlu0 %v4770, 96
    %v4946 = vpop.permute.xlu0 %4945
    %4947 = vrot.lane.b32.xlu0 %v4771, 96
    %v4948 = vpop.permute.xlu0 %4947
    %4949 = vrot.lane.b32.xlu0 %v4772, 96
    %v4950 = vpop.permute.xlu0 %4949
    %4951 = vrot.lane.b32.xlu0 %v4773, 96
    %v4952 = vpop.permute.xlu0 %4951
    %4953 = vrot.lane.b32.xlu0 %v4774, 96
    %v4954 = vpop.permute.xlu0 %4953
    %4955 = vrot.lane.b32.xlu0 %v4775, 96
    %v4956 = vpop.permute.xlu0 %4955
    %4957 = vrot.lane.b32.xlu0 %v4776, 96
    %v4958 = vpop.permute.xlu0 %4957
    %4959 = vrot.lane.b32.xlu0 %v4777, 96
    %v4960 = vpop.permute.xlu0 %4959
    %4961 = vrot.lane.b32.xlu0 %v4778, 96
    %v4962 = vpop.permute.xlu0 %4961
    %4963 = vrot.lane.b32.xlu0 %v4779, 96
    %v4964 = vpop.permute.xlu0 %4963
    %4965 = vrot.lane.b32.xlu0 %v4780, 96
    %v4966 = vpop.permute.xlu0 %4965
    %4967 = vrot.lane.b32.xlu0 %v4781, 96
    %v4968 = vpop.permute.xlu0 %4967
    %4969 = vrot.lane.b32.xlu0 %v4782, 96
    %v4970 = vpop.permute.xlu0 %4969
    %4971 = vrot.lane.b32.xlu0 %v4783, 96
    %v4972 = vpop.permute.xlu0 %4971
    %4973 = vrot.lane.b32.xlu0 %v4784, 96
    %v4974 = vpop.permute.xlu0 %4973
    %4975 = vrot.lane.b32.xlu0 %v4785, 96
    %v4976 = vpop.permute.xlu0 %4975
    %4977 = vrot.lane.b32.xlu0 %v4786, 96
    %v4978 = vpop.permute.xlu0 %4977
    %s5043 = scalar_lea.vmem [#allocation2], 24
    %5044 = vst.msk [vmem:[%s5043 + $0x1] sm:$0xff] %vm2869, %v4852
    %5045 = vst.msk [vmem:[%s5043 + $0x9] sm:$0xff] %vm2869, %v4854
    %5046 = vst.msk [vmem:[%s5043 + $0x19] sm:$0xff] %vm2869, %v4856
    %5047 = vst.msk [vmem:[%s5043 + $0x21] sm:$0xff] %vm2869, %v4858
    %5048 = vst.msk [vmem:[%s5043 + $0x31] sm:$0xff] %vm2869, %v4860
    %5049 = vst.msk [vmem:[%s5043 + $0x39] sm:$0xff] %vm2869, %v4862
    %5050 = vst.msk [vmem:[%s5043 + $0x49] sm:$0xff] %vm2869, %v4864
    %5051 = vst.msk [vmem:[%s5043 + $0x51] sm:$0xff] %vm2869, %v4866
    %5052 = vst.msk [vmem:[%s5043 + $0x61] sm:$0xff] %vm2869, %v4868
    %5053 = vst.msk [vmem:[%s5043 + $0x69] sm:$0xff] %vm2869, %v4870
    %5054 = vst.msk [vmem:[%s5043 + $0x79] sm:$0xff] %vm2869, %v4872
    %5055 = vst.msk [vmem:[%s5043 + $0x81] sm:$0xff] %vm2869, %v4874
    %5056 = vst.msk [vmem:[%s5043 + $0x91] sm:$0xff] %vm2869, %v4876
    %5057 = vst.msk [vmem:[%s5043 + $0x99] sm:$0xff] %vm2869, %v4878
    %5058 = vst.msk [vmem:[%s5043 + $0xa9] sm:$0xff] %vm2869, %v4880
    %5059 = vst.msk [vmem:[%s5043 + $0xb1] sm:$0xff] %vm2869, %v4882
    %5060 = vst.msk [vmem:[%s5043 + $0xc1] sm:$0xff] %vm2869, %v4884
    %5061 = vst.msk [vmem:[%s5043 + $0xc9] sm:$0xff] %vm2869, %v4886
    %5062 = vst.msk [vmem:[%s5043 + $0xd9] sm:$0xff] %vm2869, %v4888
    %5063 = vst.msk [vmem:[%s5043 + $0xe1] sm:$0xff] %vm2869, %v4890
    %5064 = vst.msk [vmem:[%s5043 + $0xf1] sm:$0xff] %vm2869, %v4892
    %5065 = vst.msk [vmem:[%s5043 + $0xf9] sm:$0xff] %vm2869, %v4894
    %5066 = vst.msk [vmem:[%s5043 + $0x109] sm:$0xff] %vm2869, %v4896
    %5067 = vst.msk [vmem:[%s5043 + $0x111] sm:$0xff] %vm2869, %v4898
    %5068 = vst.msk [vmem:[%s5043 + $0x121] sm:$0xff] %vm2869, %v4900
    %5069 = vst.msk [vmem:[%s5043 + $0x129] sm:$0xff] %vm2869, %v4902
    %5070 = vst.msk [vmem:[%s5043 + $0x139] sm:$0xff] %vm2869, %v4904
    %5071 = vst.msk [vmem:[%s5043 + $0x141] sm:$0xff] %vm2869, %v4906
    %5072 = vst.msk [vmem:[%s5043 + $0x151] sm:$0xff] %vm2869, %v4908
    %5073 = vst.msk [vmem:[%s5043 + $0x159] sm:$0xff] %vm2869, %v4910
    %5074 = vst.msk [vmem:[%s5043 + $0x169] sm:$0xff] %vm2869, %v4912
    %5075 = vst.msk [vmem:[%s5043 + $0x171] sm:$0xff] %vm2869, %v4914
    %5076 = vst.msk [vmem:[%s5043 + $0x1b1] sm:$0xff] %vm2869, %v4916
    %5077 = vst.msk [vmem:[%s5043 + $0x1b9] sm:$0xff] %vm2869, %v4918
    %5078 = vst.msk [vmem:[%s5043 + $0x1c9] sm:$0xff] %vm2869, %v4920
    %5079 = vst.msk [vmem:[%s5043 + $0x1d1] sm:$0xff] %vm2869, %v4922
    %5080 = vst.msk [vmem:[%s5043 + $0x1e1] sm:$0xff] %vm2869, %v4924
    %5081 = vst.msk [vmem:[%s5043 + $0x1e9] sm:$0xff] %vm2869, %v4926
    %5082 = vst.msk [vmem:[%s5043 + $0x1f9] sm:$0xff] %vm2869, %v4928
    %5083 = vst.msk [vmem:[%s5043 + $0x201] sm:$0xff] %vm2869, %v4930
    %5084 = vst.msk [vmem:[%s5043 + $0x211] sm:$0xff] %vm2869, %v4932
    %5085 = vst.msk [vmem:[%s5043 + $0x219] sm:$0xff] %vm2869, %v4934
    %5086 = vst.msk [vmem:[%s5043 + $0x229] sm:$0xff] %vm2869, %v4936
    %5087 = vst.msk [vmem:[%s5043 + $0x231] sm:$0xff] %vm2869, %v4938
    %5088 = vst.msk [vmem:[%s5043 + $0x241] sm:$0xff] %vm2869, %v4940
    %5089 = vst.msk [vmem:[%s5043 + $0x249] sm:$0xff] %vm2869, %v4942
    %5090 = vst.msk [vmem:[%s5043 + $0x259] sm:$0xff] %vm2869, %v4944
    %5091 = vst.msk [vmem:[%s5043 + $0x261] sm:$0xff] %vm2869, %v4946
    %5092 = vst.msk [vmem:[%s5043 + $0x271] sm:$0xff] %vm2869, %v4948
    %5093 = vst.msk [vmem:[%s5043 + $0x279] sm:$0xff] %vm2869, %v4950
    %5094 = vst.msk [vmem:[%s5043 + $0x289] sm:$0xff] %vm2869, %v4952
    %5095 = vst.msk [vmem:[%s5043 + $0x291] sm:$0xff] %vm2869, %v4954
    %5096 = vst.msk [vmem:[%s5043 + $0x2a1] sm:$0xff] %vm2869, %v4956
    %5097 = vst.msk [vmem:[%s5043 + $0x2a9] sm:$0xff] %vm2869, %v4958
    %5098 = vst.msk [vmem:[%s5043 + $0x2b9] sm:$0xff] %vm2869, %v4960
    %5099 = vst.msk [vmem:[%s5043 + $0x2c1] sm:$0xff] %vm2869, %v4962
    %5100 = vst.msk [vmem:[%s5043 + $0x2d1] sm:$0xff] %vm2869, %v4964
    %5101 = vst.msk [vmem:[%s5043 + $0x2d9] sm:$0xff] %vm2869, %v4966
    %5102 = vst.msk [vmem:[%s5043 + $0x2e9] sm:$0xff] %vm2869, %v4968
    %5103 = vst.msk [vmem:[%s5043 + $0x2f1] sm:$0xff] %vm2869, %v4970
    %5104 = vst.msk [vmem:[%s5043 + $0x301] sm:$0xff] %vm2869, %v4972
    %5105 = vst.msk [vmem:[%s5043 + $0x309] sm:$0xff] %vm2869, %v4974
    %5106 = vst.msk [vmem:[%s5043 + $0x319] sm:$0xff] %vm2869, %v4976
    %5107 = vst.msk [vmem:[%s5043 + $0x321] sm:$0xff] %vm2869, %v4978
    %v5108 = vld [vmem:[#allocation2] sm:$0xff]
    %v5109 = vld [vmem:[#allocation2 + $0x8] sm:$0xff]
    %v5110 = vld [vmem:[#allocation2 + $0x10] sm:$0x3]
    %v5111 = vld [vmem:[#allocation2 + $0x18] sm:$0xff]
    %v5112 = vld [vmem:[#allocation2 + $0x20] sm:$0xff]
    %v5113 = vld [vmem:[#allocation2 + $0x28] sm:$0x3]
    %v5114 = vld [vmem:[#allocation2 + $0x30] sm:$0xff]
    %v5115 = vld [vmem:[#allocation2 + $0x38] sm:$0xff]
    %v5116 = vld [vmem:[#allocation2 + $0x40] sm:$0x3]
    %v5117 = vld [vmem:[#allocation2 + $0x48] sm:$0xff]
    %v5118 = vld [vmem:[#allocation2 + $0x50] sm:$0xff]
    %v5119 = vld [vmem:[#allocation2 + $0x58] sm:$0x3]
    %v5120 = vld [vmem:[#allocation2 + $0x60] sm:$0xff]
    %v5121 = vld [vmem:[#allocation2 + $0x68] sm:$0xff]
    %v5122 = vld [vmem:[#allocation2 + $0x70] sm:$0x3]
    %v5123 = vld [vmem:[#allocation2 + $0x78] sm:$0xff]
    %v5124 = vld [vmem:[#allocation2 + $0x80] sm:$0xff]
    %v5125 = vld [vmem:[#allocation2 + $0x88] sm:$0x3]
    %v5126 = vld [vmem:[#allocation2 + $0x90] sm:$0xff]
    %v5127 = vld [vmem:[#allocation2 + $0x98] sm:$0xff]
    %v5128 = vld [vmem:[#allocation2 + $0xa0] sm:$0x3]
    %v5129 = vld [vmem:[#allocation2 + $0xa8] sm:$0xff]
    %v5130 = vld [vmem:[#allocation2 + $0xb0] sm:$0xff]
    %v5131 = vld [vmem:[#allocation2 + $0xb8] sm:$0x3]
    %v5132 = vld [vmem:[#allocation2 + $0xc0] sm:$0xff]
    %v5133 = vld [vmem:[#allocation2 + $0xc8] sm:$0xff]
    %v5134 = vld [vmem:[#allocation2 + $0xd0] sm:$0x3]
    %v5135 = vld [vmem:[#allocation2 + $0xd8] sm:$0xff]
    %v5136 = vld [vmem:[#allocation2 + $0xe0] sm:$0xff]
    %v5137 = vld [vmem:[#allocation2 + $0xe8] sm:$0x3]
    %v5138 = vld [vmem:[#allocation2 + $0xf0] sm:$0xff]
    %v5139 = vld [vmem:[#allocation2 + $0xf8] sm:$0xff]
    %v5140 = vld [vmem:[#allocation2 + $0x100] sm:$0x3]
    %v5141 = vld [vmem:[#allocation2 + $0x108] sm:$0xff]
    %v5142 = vld [vmem:[#allocation2 + $0x110] sm:$0xff]
    %v5143 = vld [vmem:[#allocation2 + $0x118] sm:$0x3]
    %v5144 = vld [vmem:[#allocation2 + $0x120] sm:$0xff]
    %v5145 = vld [vmem:[#allocation2 + $0x128] sm:$0xff]
    %v5146 = vld [vmem:[#allocation2 + $0x130] sm:$0x3]
    %v5147 = vld [vmem:[#allocation2 + $0x138] sm:$0xff]
    %v5148 = vld [vmem:[#allocation2 + $0x140] sm:$0xff]
    %v5149 = vld [vmem:[#allocation2 + $0x148] sm:$0x3]
    %v5150 = vld [vmem:[#allocation2 + $0x150] sm:$0xff]
    %v5151 = vld [vmem:[#allocation2 + $0x158] sm:$0xff]
    %v5152 = vld [vmem:[#allocation2 + $0x160] sm:$0x3]
    %v5153 = vld [vmem:[#allocation2 + $0x168] sm:$0xff]
    %v5154 = vld [vmem:[#allocation2 + $0x170] sm:$0xff]
    %v5155 = vld [vmem:[#allocation2 + $0x178] sm:$0x3]
    %v5156 = vld [vmem:[#allocation2 + $0x180] sm:$0xff]
    %v5157 = vld [vmem:[#allocation2 + $0x188] sm:$0xff]
    %v5158 = vld [vmem:[#allocation2 + $0x190] sm:$0x3]
    %v5159 = vld [vmem:[#allocation2 + $0x198] sm:$0xff]
    %v5160 = vld [vmem:[#allocation2 + $0x1a0] sm:$0xff]
    %v5161 = vld [vmem:[#allocation2 + $0x1a8] sm:$0x3]
    %v5162 = vld [vmem:[#allocation2 + $0x1b0] sm:$0xff]
    %v5163 = vld [vmem:[#allocation2 + $0x1b8] sm:$0xff]
    %v5164 = vld [vmem:[#allocation2 + $0x1c0] sm:$0x3]
    %v5165 = vld [vmem:[#allocation2 + $0x1c8] sm:$0xff]
    %v5166 = vld [vmem:[#allocation2 + $0x1d0] sm:$0xff]
    %v5167 = vld [vmem:[#allocation2 + $0x1d8] sm:$0x3]
    %v5168 = vld [vmem:[#allocation2 + $0x1e0] sm:$0xff]
    %v5169 = vld [vmem:[#allocation2 + $0x1e8] sm:$0xff]
    %v5170 = vld [vmem:[#allocation2 + $0x1f0] sm:$0x3]
    %v5171 = vld [vmem:[#allocation2 + $0x1f8] sm:$0xff]
    %v5172 = vld [vmem:[#allocation2 + $0x200] sm:$0xff]
    %v5173 = vld [vmem:[#allocation2 + $0x208] sm:$0x3]
    %v5174 = vld [vmem:[#allocation2 + $0x210] sm:$0xff]
    %v5175 = vld [vmem:[#allocation2 + $0x218] sm:$0xff]
    %v5176 = vld [vmem:[#allocation2 + $0x220] sm:$0x3]
    %v5177 = vld [vmem:[#allocation2 + $0x228] sm:$0xff]
    %v5178 = vld [vmem:[#allocation2 + $0x230] sm:$0xff]
    %v5179 = vld [vmem:[#allocation2 + $0x238] sm:$0x3]
    %v5180 = vld [vmem:[#allocation2 + $0x240] sm:$0xff]
    %v5181 = vld [vmem:[#allocation2 + $0x248] sm:$0xff]
    %v5182 = vld [vmem:[#allocation2 + $0x250] sm:$0x3]
    %v5183 = vld [vmem:[#allocation2 + $0x258] sm:$0xff]
    %v5184 = vld [vmem:[#allocation2 + $0x260] sm:$0xff]
    %v5185 = vld [vmem:[#allocation2 + $0x268] sm:$0x3]
    %v5186 = vld [vmem:[#allocation2 + $0x270] sm:$0xff]
    %v5187 = vld [vmem:[#allocation2 + $0x278] sm:$0xff]
    %v5188 = vld [vmem:[#allocation2 + $0x280] sm:$0x3]
    %v5189 = vld [vmem:[#allocation2 + $0x288] sm:$0xff]
    %v5190 = vld [vmem:[#allocation2 + $0x290] sm:$0xff]
    %v5191 = vld [vmem:[#allocation2 + $0x298] sm:$0x3]
    %v5192 = vld [vmem:[#allocation2 + $0x2a0] sm:$0xff]
    %v5193 = vld [vmem:[#allocation2 + $0x2a8] sm:$0xff]
    %v5194 = vld [vmem:[#allocation2 + $0x2b0] sm:$0x3]
    %v5195 = vld [vmem:[#allocation2 + $0x2b8] sm:$0xff]
    %v5196 = vld [vmem:[#allocation2 + $0x2c0] sm:$0xff]
    %v5197 = vld [vmem:[#allocation2 + $0x2c8] sm:$0x3]
    %v5198 = vld [vmem:[#allocation2 + $0x2d0] sm:$0xff]
    %v5199 = vld [vmem:[#allocation2 + $0x2d8] sm:$0xff]
    %v5200 = vld [vmem:[#allocation2 + $0x2e0] sm:$0x3]
    %v5201 = vld [vmem:[#allocation2 + $0x2e8] sm:$0xff]
    %v5202 = vld [vmem:[#allocation2 + $0x2f0] sm:$0xff]
    %v5203 = vld [vmem:[#allocation2 + $0x2f8] sm:$0x3]
    %v5204 = vld [vmem:[#allocation2 + $0x300] sm:$0xff]
    %v5205 = vld [vmem:[#allocation2 + $0x308] sm:$0xff]
    %v5206 = vld [vmem:[#allocation2 + $0x310] sm:$0x3]
    %v5207 = vld [vmem:[#allocation2 + $0x318] sm:$0xff]
    %v5208 = vld [vmem:[#allocation2 + $0x320] sm:$0xff]
    %v5209 = vld [vmem:[#allocation2 + $0x328] sm:$0x3]
    %v5210 = vld [vmem:[#allocation2 + $0x330] sm:$0xff]
    %v5211 = vld [vmem:[#allocation2 + $0x338] sm:$0xff]
    %v5212 = vld [vmem:[#allocation2 + $0x340] sm:$0x3]
    %v5213 = vld [vmem:[#allocation2 + $0x348] sm:$0xff]
    %v5214 = vld [vmem:[#allocation2 + $0x350] sm:$0xff]
    %v5215 = vld [vmem:[#allocation2 + $0x358] sm:$0x3]
    %v5216 = vpack.c.bf16 %v5109, %v5108
    %v5217 = vpack.c.bf16 %v5110, %v5110
    %v5218 = vpack.c.bf16 %v5112, %v5111
    %v5219 = vpack.c.bf16 %v5113, %v5113
    %v5220 = vpack.c.bf16 %v5115, %v5114
    %v5221 = vpack.c.bf16 %v5116, %v5116
    %v5222 = vpack.c.bf16 %v5118, %v5117
    %v5223 = vpack.c.bf16 %v5119, %v5119
    %v5224 = vpack.c.bf16 %v5121, %v5120
    %v5225 = vpack.c.bf16 %v5122, %v5122
    %v5226 = vpack.c.bf16 %v5124, %v5123
    %v5227 = vpack.c.bf16 %v5125, %v5125
    %v5228 = vpack.c.bf16 %v5127, %v5126
    %v5229 = vpack.c.bf16 %v5128, %v5128
    %v5230 = vpack.c.bf16 %v5130, %v5129
    %v5231 = vpack.c.bf16 %v5131, %v5131
    %v5232 = vpack.c.bf16 %v5133, %v5132
    %v5233 = vpack.c.bf16 %v5134, %v5134
    %v5234 = vpack.c.bf16 %v5136, %v5135
    %v5235 = vpack.c.bf16 %v5137, %v5137
    %v5236 = vpack.c.bf16 %v5139, %v5138
    %v5237 = vpack.c.bf16 %v5140, %v5140
    %v5238 = vpack.c.bf16 %v5142, %v5141
    %v5239 = vpack.c.bf16 %v5143, %v5143
    %v5240 = vpack.c.bf16 %v5145, %v5144
    %v5241 = vpack.c.bf16 %v5146, %v5146
    %v5242 = vpack.c.bf16 %v5148, %v5147
    %v5243 = vpack.c.bf16 %v5149, %v5149
    %v5244 = vpack.c.bf16 %v5151, %v5150
    %v5245 = vpack.c.bf16 %v5152, %v5152
    %v5246 = vpack.c.bf16 %v5154, %v5153
    %v5247 = vpack.c.bf16 %v5155, %v5155
    %v5248 = vpack.c.bf16 %v5157, %v5156
    %v5249 = vpack.c.bf16 %v5158, %v5158
    %v5250 = vpack.c.bf16 %v5160, %v5159
    %v5251 = vpack.c.bf16 %v5161, %v5161
    %v5252 = vpack.c.bf16 %v5163, %v5162
    %v5253 = vpack.c.bf16 %v5164, %v5164
    %v5254 = vpack.c.bf16 %v5166, %v5165
    %v5255 = vpack.c.bf16 %v5167, %v5167
    %v5256 = vpack.c.bf16 %v5169, %v5168
    %v5257 = vpack.c.bf16 %v5170, %v5170
    %v5258 = vpack.c.bf16 %v5172, %v5171
    %v5259 = vpack.c.bf16 %v5173, %v5173
    %v5260 = vpack.c.bf16 %v5175, %v5174
    %v5261 = vpack.c.bf16 %v5176, %v5176
    %v5262 = vpack.c.bf16 %v5178, %v5177
    %v5263 = vpack.c.bf16 %v5179, %v5179
    %v5264 = vpack.c.bf16 %v5181, %v5180
    %v5265 = vpack.c.bf16 %v5182, %v5182
    %v5266 = vpack.c.bf16 %v5184, %v5183
    %v5267 = vpack.c.bf16 %v5185, %v5185
    %v5268 = vpack.c.bf16 %v5187, %v5186
    %v5269 = vpack.c.bf16 %v5188, %v5188
    %v5270 = vpack.c.bf16 %v5190, %v5189
    %v5271 = vpack.c.bf16 %v5191, %v5191
    %v5272 = vpack.c.bf16 %v5193, %v5192
    %v5273 = vpack.c.bf16 %v5194, %v5194
    %v5274 = vpack.c.bf16 %v5196, %v5195
    %v5275 = vpack.c.bf16 %v5197, %v5197
    %v5276 = vpack.c.bf16 %v5199, %v5198
    %v5277 = vpack.c.bf16 %v5200, %v5200
    %v5278 = vpack.c.bf16 %v5202, %v5201
    %v5279 = vpack.c.bf16 %v5203, %v5203
    %v5280 = vpack.c.bf16 %v5205, %v5204
    %v5281 = vpack.c.bf16 %v5206, %v5206
    %v5282 = vpack.c.bf16 %v5208, %v5207
    %v5283 = vpack.c.bf16 %v5209, %v5209
    %v5284 = vpack.c.bf16 %v5211, %v5210
    %v5285 = vpack.c.bf16 %v5212, %v5212
    %v5286 = vpack.c.bf16 %v5214, %v5213
    %v5287 = vpack.c.bf16 %v5215, %v5215
    %vm5288 = vsmask.f32 7424
    %v5290 = vshrl.u32 %v5216, 16
    %v5292 = vshll.u32 %v5216, 16
    %v5294 = vrot.slane %v5292, 1
    %v5295 = vor.u32 %v5290, %v5294
    %v5297 = vshll.u32 %v5217, 16
    %v5299 = vrot.slane %v5297, 1
    %v5300 = vsel %vm5288, %v5295, %v5299
    %v5302 = vshrl.u32 %v5218, 16
    %v5304 = vshll.u32 %v5218, 16
    %v5306 = vrot.slane %v5304, 1
    %v5307 = vor.u32 %v5302, %v5306
    %v5309 = vshll.u32 %v5219, 16
    %v5311 = vrot.slane %v5309, 1
    %v5312 = vsel %vm5288, %v5307, %v5311
    %v5314 = vshrl.u32 %v5220, 16
    %v5316 = vshll.u32 %v5220, 16
    %v5318 = vrot.slane %v5316, 1
    %v5319 = vor.u32 %v5314, %v5318
    %v5321 = vshll.u32 %v5221, 16
    %v5323 = vrot.slane %v5321, 1
    %v5324 = vsel %vm5288, %v5319, %v5323
    %v5326 = vshrl.u32 %v5222, 16
    %v5328 = vshll.u32 %v5222, 16
    %v5330 = vrot.slane %v5328, 1
    %v5331 = vor.u32 %v5326, %v5330
    %v5333 = vshll.u32 %v5223, 16
    %v5335 = vrot.slane %v5333, 1
    %v5336 = vsel %vm5288, %v5331, %v5335
    %v5338 = vshrl.u32 %v5224, 16
    %v5340 = vshll.u32 %v5224, 16
    %v5342 = vrot.slane %v5340, 1
    %v5343 = vor.u32 %v5338, %v5342
    %v5345 = vshll.u32 %v5225, 16
    %v5347 = vrot.slane %v5345, 1
    %v5348 = vsel %vm5288, %v5343, %v5347
    %v5350 = vshrl.u32 %v5226, 16
    %v5352 = vshll.u32 %v5226, 16
    %v5354 = vrot.slane %v5352, 1
    %v5355 = vor.u32 %v5350, %v5354
    %v5357 = vshll.u32 %v5227, 16
    %v5359 = vrot.slane %v5357, 1
    %v5360 = vsel %vm5288, %v5355, %v5359
    %v5362 = vshrl.u32 %v5228, 16
    %v5364 = vshll.u32 %v5228, 16
    %v5366 = vrot.slane %v5364, 1
    %v5367 = vor.u32 %v5362, %v5366
    %v5369 = vshll.u32 %v5229, 16
    %v5371 = vrot.slane %v5369, 1
    %v5372 = vsel %vm5288, %v5367, %v5371
    %v5374 = vshrl.u32 %v5230, 16
    %v5376 = vshll.u32 %v5230, 16
    %v5378 = vrot.slane %v5376, 1
    %v5379 = vor.u32 %v5374, %v5378
    %v5381 = vshll.u32 %v5231, 16
    %v5383 = vrot.slane %v5381, 1
    %v5384 = vsel %vm5288, %v5379, %v5383
    %v5386 = vshrl.u32 %v5232, 16
    %v5388 = vshll.u32 %v5232, 16
    %v5390 = vrot.slane %v5388, 1
    %v5391 = vor.u32 %v5386, %v5390
    %v5393 = vshll.u32 %v5233, 16
    %v5395 = vrot.slane %v5393, 1
    %v5396 = vsel %vm5288, %v5391, %v5395
    %v5398 = vshrl.u32 %v5234, 16
    %v5400 = vshll.u32 %v5234, 16
    %v5402 = vrot.slane %v5400, 1
    %v5403 = vor.u32 %v5398, %v5402
    %v5405 = vshll.u32 %v5235, 16
    %v5407 = vrot.slane %v5405, 1
    %v5408 = vsel %vm5288, %v5403, %v5407
    %v5410 = vshrl.u32 %v5236, 16
    %v5412 = vshll.u32 %v5236, 16
    %v5414 = vrot.slane %v5412, 1
    %v5415 = vor.u32 %v5410, %v5414
    %v5417 = vshll.u32 %v5237, 16
    %v5419 = vrot.slane %v5417, 1
    %v5420 = vsel %vm5288, %v5415, %v5419
    %v5422 = vshrl.u32 %v5238, 16
    %v5424 = vshll.u32 %v5238, 16
    %v5426 = vrot.slane %v5424, 1
    %v5427 = vor.u32 %v5422, %v5426
    %v5429 = vshll.u32 %v5239, 16
    %v5431 = vrot.slane %v5429, 1
    %v5432 = vsel %vm5288, %v5427, %v5431
    %v5434 = vshrl.u32 %v5240, 16
    %v5436 = vshll.u32 %v5240, 16
    %v5438 = vrot.slane %v5436, 1
    %v5439 = vor.u32 %v5434, %v5438
    %v5441 = vshll.u32 %v5241, 16
    %v5443 = vrot.slane %v5441, 1
    %v5444 = vsel %vm5288, %v5439, %v5443
    %v5446 = vshrl.u32 %v5242, 16
    %v5448 = vshll.u32 %v5242, 16
    %v5450 = vrot.slane %v5448, 1
    %v5451 = vor.u32 %v5446, %v5450
    %v5453 = vshll.u32 %v5243, 16
    %v5455 = vrot.slane %v5453, 1
    %v5456 = vsel %vm5288, %v5451, %v5455
    %v5458 = vshrl.u32 %v5244, 16
    %v5460 = vshll.u32 %v5244, 16
    %v5462 = vrot.slane %v5460, 1
    %v5463 = vor.u32 %v5458, %v5462
    %v5465 = vshll.u32 %v5245, 16
    %v5467 = vrot.slane %v5465, 1
    %v5468 = vsel %vm5288, %v5463, %v5467
    %v5470 = vshrl.u32 %v5246, 16
    %v5472 = vshll.u32 %v5246, 16
    %v5474 = vrot.slane %v5472, 1
    %v5475 = vor.u32 %v5470, %v5474
    %v5477 = vshll.u32 %v5247, 16
    %v5479 = vrot.slane %v5477, 1
    %v5480 = vsel %vm5288, %v5475, %v5479
    %v5482 = vshrl.u32 %v5252, 16
    %v5484 = vshll.u32 %v5252, 16
    %v5486 = vrot.slane %v5484, 1
    %v5487 = vor.u32 %v5482, %v5486
    %v5489 = vshll.u32 %v5253, 16
    %v5491 = vrot.slane %v5489, 1
    %v5492 = vsel %vm5288, %v5487, %v5491
    %v5494 = vshrl.u32 %v5254, 16
    %v5496 = vshll.u32 %v5254, 16
    %v5498 = vrot.slane %v5496, 1
    %v5499 = vor.u32 %v5494, %v5498
    %v5501 = vshll.u32 %v5255, 16
    %v5503 = vrot.slane %v5501, 1
    %v5504 = vsel %vm5288, %v5499, %v5503
    %v5506 = vshrl.u32 %v5256, 16
    %v5508 = vshll.u32 %v5256, 16
    %v5510 = vrot.slane %v5508, 1
    %v5511 = vor.u32 %v5506, %v5510
    %v5513 = vshll.u32 %v5257, 16
    %v5515 = vrot.slane %v5513, 1
    %v5516 = vsel %vm5288, %v5511, %v5515
    %v5518 = vshrl.u32 %v5258, 16
    %v5520 = vshll.u32 %v5258, 16
    %v5522 = vrot.slane %v5520, 1
    %v5523 = vor.u32 %v5518, %v5522
    %v5525 = vshll.u32 %v5259, 16
    %v5527 = vrot.slane %v5525, 1
    %v5528 = vsel %vm5288, %v5523, %v5527
    %v5530 = vshrl.u32 %v5260, 16
    %v5532 = vshll.u32 %v5260, 16
    %v5534 = vrot.slane %v5532, 1
    %v5535 = vor.u32 %v5530, %v5534
    %v5537 = vshll.u32 %v5261, 16
    %v5539 = vrot.slane %v5537, 1
    %v5540 = vsel %vm5288, %v5535, %v5539
    %v5542 = vshrl.u32 %v5262, 16
    %v5544 = vshll.u32 %v5262, 16
    %v5546 = vrot.slane %v5544, 1
    %v5547 = vor.u32 %v5542, %v5546
    %v5549 = vshll.u32 %v5263, 16
    %v5551 = vrot.slane %v5549, 1
    %v5552 = vsel %vm5288, %v5547, %v5551
    %v5554 = vshrl.u32 %v5264, 16
    %v5556 = vshll.u32 %v5264, 16
    %v5558 = vrot.slane %v5556, 1
    %v5559 = vor.u32 %v5554, %v5558
    %v5561 = vshll.u32 %v5265, 16
    %v5563 = vrot.slane %v5561, 1
    %v5564 = vsel %vm5288, %v5559, %v5563
    %v5566 = vshrl.u32 %v5266, 16
    %v5568 = vshll.u32 %v5266, 16
    %v5570 = vrot.slane %v5568, 1
    %v5571 = vor.u32 %v5566, %v5570
    %v5573 = vshll.u32 %v5267, 16
    %v5575 = vrot.slane %v5573, 1
    %v5576 = vsel %vm5288, %v5571, %v5575
    %v5578 = vshrl.u32 %v5268, 16
    %v5580 = vshll.u32 %v5268, 16
    %v5582 = vrot.slane %v5580, 1
    %v5583 = vor.u32 %v5578, %v5582
    %v5585 = vshll.u32 %v5269, 16
    %v5587 = vrot.slane %v5585, 1
    %v5588 = vsel %vm5288, %v5583, %v5587
    %v5590 = vshrl.u32 %v5270, 16
    %v5592 = vshll.u32 %v5270, 16
    %v5594 = vrot.slane %v5592, 1
    %v5595 = vor.u32 %v5590, %v5594
    %v5597 = vshll.u32 %v5271, 16
    %v5599 = vrot.slane %v5597, 1
    %v5600 = vsel %vm5288, %v5595, %v5599
    %v5602 = vshrl.u32 %v5272, 16
    %v5604 = vshll.u32 %v5272, 16
    %v5606 = vrot.slane %v5604, 1
    %v5607 = vor.u32 %v5602, %v5606
    %v5609 = vshll.u32 %v5273, 16
    %v5611 = vrot.slane %v5609, 1
    %v5612 = vsel %vm5288, %v5607, %v5611
    %v5614 = vshrl.u32 %v5274, 16
    %v5616 = vshll.u32 %v5274, 16
    %v5618 = vrot.slane %v5616, 1
    %v5619 = vor.u32 %v5614, %v5618
    %v5621 = vshll.u32 %v5275, 16
    %v5623 = vrot.slane %v5621, 1
    %v5624 = vsel %vm5288, %v5619, %v5623
    %v5626 = vshrl.u32 %v5276, 16
    %v5628 = vshll.u32 %v5276, 16
    %v5630 = vrot.slane %v5628, 1
    %v5631 = vor.u32 %v5626, %v5630
    %v5633 = vshll.u32 %v5277, 16
    %v5635 = vrot.slane %v5633, 1
    %v5636 = vsel %vm5288, %v5631, %v5635
    %v5638 = vshrl.u32 %v5278, 16
    %v5640 = vshll.u32 %v5278, 16
    %v5642 = vrot.slane %v5640, 1
    %v5643 = vor.u32 %v5638, %v5642
    %v5645 = vshll.u32 %v5279, 16
    %v5647 = vrot.slane %v5645, 1
    %v5648 = vsel %vm5288, %v5643, %v5647
    %v5650 = vshrl.u32 %v5280, 16
    %v5652 = vshll.u32 %v5280, 16
    %v5654 = vrot.slane %v5652, 1
    %v5655 = vor.u32 %v5650, %v5654
    %v5657 = vshll.u32 %v5281, 16
    %v5659 = vrot.slane %v5657, 1
    %v5660 = vsel %vm5288, %v5655, %v5659
    %v5662 = vshrl.u32 %v5282, 16
    %v5664 = vshll.u32 %v5282, 16
    %v5666 = vrot.slane %v5664, 1
    %v5667 = vor.u32 %v5662, %v5666
    %v5669 = vshll.u32 %v5283, 16
    %v5671 = vrot.slane %v5669, 1
    %v5672 = vsel %vm5288, %v5667, %v5671
    %vm5737 = vcmask 1046528
    %v5738 = vrot.slane %v5216, 1
    %v5739 = vrot.slane %v5217, 1
    %v5740 = vsel %vm5737, %v5738, %v5739
    %v5741 = vrot.slane %v5218, 1
    %v5742 = vrot.slane %v5219, 1
    %v5743 = vsel %vm5737, %v5741, %v5742
    %v5744 = vrot.slane %v5220, 1
    %v5745 = vrot.slane %v5221, 1
    %v5746 = vsel %vm5737, %v5744, %v5745
    %v5747 = vrot.slane %v5222, 1
    %v5748 = vrot.slane %v5223, 1
    %v5749 = vsel %vm5737, %v5747, %v5748
    %v5750 = vrot.slane %v5224, 1
    %v5751 = vrot.slane %v5225, 1
    %v5752 = vsel %vm5737, %v5750, %v5751
    %v5753 = vrot.slane %v5226, 1
    %v5754 = vrot.slane %v5227, 1
    %v5755 = vsel %vm5737, %v5753, %v5754
    %v5756 = vrot.slane %v5228, 1
    %v5757 = vrot.slane %v5229, 1
    %v5758 = vsel %vm5737, %v5756, %v5757
    %v5759 = vrot.slane %v5230, 1
    %v5760 = vrot.slane %v5231, 1
    %v5761 = vsel %vm5737, %v5759, %v5760
    %v5762 = vrot.slane %v5232, 1
    %v5763 = vrot.slane %v5233, 1
    %v5764 = vsel %vm5737, %v5762, %v5763
    %v5765 = vrot.slane %v5234, 1
    %v5766 = vrot.slane %v5235, 1
    %v5767 = vsel %vm5737, %v5765, %v5766
    %v5768 = vrot.slane %v5236, 1
    %v5769 = vrot.slane %v5237, 1
    %v5770 = vsel %vm5737, %v5768, %v5769
    %v5771 = vrot.slane %v5238, 1
    %v5772 = vrot.slane %v5239, 1
    %v5773 = vsel %vm5737, %v5771, %v5772
    %v5774 = vrot.slane %v5240, 1
    %v5775 = vrot.slane %v5241, 1
    %v5776 = vsel %vm5737, %v5774, %v5775
    %v5777 = vrot.slane %v5242, 1
    %v5778 = vrot.slane %v5243, 1
    %v5779 = vsel %vm5737, %v5777, %v5778
    %v5780 = vrot.slane %v5244, 1
    %v5781 = vrot.slane %v5245, 1
    %v5782 = vsel %vm5737, %v5780, %v5781
    %v5783 = vrot.slane %v5246, 1
    %v5784 = vrot.slane %v5247, 1
    %v5785 = vsel %vm5737, %v5783, %v5784
    %v5786 = vrot.slane %v5252, 1
    %v5787 = vrot.slane %v5253, 1
    %v5788 = vsel %vm5737, %v5786, %v5787
    %v5789 = vrot.slane %v5254, 1
    %v5790 = vrot.slane %v5255, 1
    %v5791 = vsel %vm5737, %v5789, %v5790
    %v5792 = vrot.slane %v5256, 1
    %v5793 = vrot.slane %v5257, 1
    %v5794 = vsel %vm5737, %v5792, %v5793
    %v5795 = vrot.slane %v5258, 1
    %v5796 = vrot.slane %v5259, 1
    %v5797 = vsel %vm5737, %v5795, %v5796
    %v5798 = vrot.slane %v5260, 1
    %v5799 = vrot.slane %v5261, 1
    %v5800 = vsel %vm5737, %v5798, %v5799
    %v5801 = vrot.slane %v5262, 1
    %v5802 = vrot.slane %v5263, 1
    %v5803 = vsel %vm5737, %v5801, %v5802
    %v5804 = vrot.slane %v5264, 1
    %v5805 = vrot.slane %v5265, 1
    %v5806 = vsel %vm5737, %v5804, %v5805
    %v5807 = vrot.slane %v5266, 1
    %v5808 = vrot.slane %v5267, 1
    %v5809 = vsel %vm5737, %v5807, %v5808
    %v5810 = vrot.slane %v5268, 1
    %v5811 = vrot.slane %v5269, 1
    %v5812 = vsel %vm5737, %v5810, %v5811
    %v5813 = vrot.slane %v5270, 1
    %v5814 = vrot.slane %v5271, 1
    %v5815 = vsel %vm5737, %v5813, %v5814
    %v5816 = vrot.slane %v5272, 1
    %v5817 = vrot.slane %v5273, 1
    %v5818 = vsel %vm5737, %v5816, %v5817
    %v5819 = vrot.slane %v5274, 1
    %v5820 = vrot.slane %v5275, 1
    %v5821 = vsel %vm5737, %v5819, %v5820
    %v5822 = vrot.slane %v5276, 1
    %v5823 = vrot.slane %v5277, 1
    %v5824 = vsel %vm5737, %v5822, %v5823
    %v5825 = vrot.slane %v5278, 1
    %v5826 = vrot.slane %v5279, 1
    %v5827 = vsel %vm5737, %v5825, %v5826
    %v5828 = vrot.slane %v5280, 1
    %v5829 = vrot.slane %v5281, 1
    %v5830 = vsel %vm5737, %v5828, %v5829
    %v5831 = vrot.slane %v5282, 1
    %v5832 = vrot.slane %v5283, 1
    %v5833 = vsel %vm5737, %v5831, %v5832
    %v5835 = vshrl.u32 %v5248, 16
    %v5837 = vshll.u32 %v5248, 16
    %v5839 = vrot.slane %v5837, 1
    %v5840 = vor.u32 %v5835, %v5839
    %v5842 = vshll.u32 %v5249, 16
    %v5844 = vrot.slane %v5842, 1
    %v5845 = vsel %vm5288, %v5840, %v5844
    %v5847 = vshrl.u32 %v5284, 16
    %v5849 = vshll.u32 %v5284, 16
    %v5851 = vrot.slane %v5849, 1
    %v5852 = vor.u32 %v5847, %v5851
    %v5854 = vshll.u32 %v5285, 16
    %v5856 = vrot.slane %v5854, 1
    %v5857 = vsel %vm5288, %v5852, %v5856
    %v5862 = vrot.slane %v5248, 1
    %v5863 = vrot.slane %v5249, 1
    %v5864 = vsel %vm5737, %v5862, %v5863
    %v5865 = vrot.slane %v5284, 1
    %v5866 = vrot.slane %v5285, 1
    %v5867 = vsel %vm5737, %v5865, %v5866
    %v5869 = vshrl.u32 %v5250, 16
    %v5871 = vshll.u32 %v5250, 16
    %v5873 = vrot.slane %v5871, 1
    %v5874 = vor.u32 %v5869, %v5873
    %v5876 = vshll.u32 %v5251, 16
    %v5878 = vrot.slane %v5876, 1
    %v5879 = vsel %vm5288, %v5874, %v5878
    %v5881 = vshrl.u32 %v5286, 16
    %v5883 = vshll.u32 %v5286, 16
    %v5885 = vrot.slane %v5883, 1
    %v5886 = vor.u32 %v5881, %v5885
    %v5888 = vshll.u32 %v5287, 16
    %v5890 = vrot.slane %v5888, 1
    %v5891 = vsel %vm5288, %v5886, %v5890
    %v5896 = vrot.slane %v5250, 1
    %v5897 = vrot.slane %v5251, 1
    %v5898 = vsel %vm5737, %v5896, %v5897
    %v5899 = vrot.slane %v5286, 1
    %v5900 = vrot.slane %v5287, 1
    %v5901 = vsel %vm5737, %v5899, %v5900
    %5902 = vrot.lane.b32.xlu0 %v5300, 32
    %v5903 = vpop.permute.xlu0 %5902
    %5904 = vrot.lane.b32.xlu0 %v5312, 32
    %v5905 = vpop.permute.xlu0 %5904
    %5906 = vrot.lane.b32.xlu0 %v5324, 32
    %v5907 = vpop.permute.xlu0 %5906
    %5908 = vrot.lane.b32.xlu0 %v5336, 32
    %v5909 = vpop.permute.xlu0 %5908
    %5910 = vrot.lane.b32.xlu0 %v5348, 32
    %v5911 = vpop.permute.xlu0 %5910
    %5912 = vrot.lane.b32.xlu0 %v5360, 32
    %v5913 = vpop.permute.xlu0 %5912
    %5914 = vrot.lane.b32.xlu0 %v5372, 32
    %v5915 = vpop.permute.xlu0 %5914
    %5916 = vrot.lane.b32.xlu0 %v5384, 32
    %v5917 = vpop.permute.xlu0 %5916
    %5918 = vrot.lane.b32.xlu0 %v5396, 32
    %v5919 = vpop.permute.xlu0 %5918
    %5920 = vrot.lane.b32.xlu0 %v5408, 32
    %v5921 = vpop.permute.xlu0 %5920
    %5922 = vrot.lane.b32.xlu0 %v5420, 32
    %v5923 = vpop.permute.xlu0 %5922
    %5924 = vrot.lane.b32.xlu0 %v5432, 32
    %v5925 = vpop.permute.xlu0 %5924
    %5926 = vrot.lane.b32.xlu0 %v5444, 32
    %v5927 = vpop.permute.xlu0 %5926
    %5928 = vrot.lane.b32.xlu0 %v5456, 32
    %v5929 = vpop.permute.xlu0 %5928
    %5930 = vrot.lane.b32.xlu0 %v5468, 32
    %v5931 = vpop.permute.xlu0 %5930
    %5932 = vrot.lane.b32.xlu0 %v5480, 32
    %v5933 = vpop.permute.xlu0 %5932
    %5934 = vrot.lane.b32.xlu0 %v5492, 32
    %v5935 = vpop.permute.xlu0 %5934
    %5936 = vrot.lane.b32.xlu0 %v5504, 32
    %v5937 = vpop.permute.xlu0 %5936
    %5938 = vrot.lane.b32.xlu0 %v5516, 32
    %v5939 = vpop.permute.xlu0 %5938
    %5940 = vrot.lane.b32.xlu0 %v5528, 32
    %v5941 = vpop.permute.xlu0 %5940
    %5942 = vrot.lane.b32.xlu0 %v5540, 32
    %v5943 = vpop.permute.xlu0 %5942
    %5944 = vrot.lane.b32.xlu0 %v5552, 32
    %v5945 = vpop.permute.xlu0 %5944
    %5946 = vrot.lane.b32.xlu0 %v5564, 32
    %v5947 = vpop.permute.xlu0 %5946
    %5948 = vrot.lane.b32.xlu0 %v5576, 32
    %v5949 = vpop.permute.xlu0 %5948
    %5950 = vrot.lane.b32.xlu0 %v5588, 32
    %v5951 = vpop.permute.xlu0 %5950
    %5952 = vrot.lane.b32.xlu0 %v5600, 32
    %v5953 = vpop.permute.xlu0 %5952
    %5954 = vrot.lane.b32.xlu0 %v5612, 32
    %v5955 = vpop.permute.xlu0 %5954
    %5956 = vrot.lane.b32.xlu0 %v5624, 32
    %v5957 = vpop.permute.xlu0 %5956
    %5958 = vrot.lane.b32.xlu0 %v5636, 32
    %v5959 = vpop.permute.xlu0 %5958
    %5960 = vrot.lane.b32.xlu0 %v5648, 32
    %v5961 = vpop.permute.xlu0 %5960
    %5962 = vrot.lane.b32.xlu0 %v5660, 32
    %v5963 = vpop.permute.xlu0 %5962
    %5964 = vrot.lane.b32.xlu0 %v5672, 32
    %v5965 = vpop.permute.xlu0 %5964
    %5966 = vrot.lane.b32.xlu0 %v5740, 64
    %v5967 = vpop.permute.xlu0 %5966
    %5968 = vrot.lane.b32.xlu0 %v5743, 64
    %v5969 = vpop.permute.xlu0 %5968
    %5970 = vrot.lane.b32.xlu0 %v5746, 64
    %v5971 = vpop.permute.xlu0 %5970
    %5972 = vrot.lane.b32.xlu0 %v5749, 64
    %v5973 = vpop.permute.xlu0 %5972
    %5974 = vrot.lane.b32.xlu0 %v5752, 64
    %v5975 = vpop.permute.xlu0 %5974
    %5976 = vrot.lane.b32.xlu0 %v5755, 64
    %v5977 = vpop.permute.xlu0 %5976
    %5978 = vrot.lane.b32.xlu0 %v5758, 64
    %v5979 = vpop.permute.xlu0 %5978
    %5980 = vrot.lane.b32.xlu0 %v5761, 64
    %v5981 = vpop.permute.xlu0 %5980
    %5982 = vrot.lane.b32.xlu0 %v5764, 64
    %v5983 = vpop.permute.xlu0 %5982
    %5984 = vrot.lane.b32.xlu0 %v5767, 64
    %v5985 = vpop.permute.xlu0 %5984
    %5986 = vrot.lane.b32.xlu0 %v5770, 64
    %v5987 = vpop.permute.xlu0 %5986
    %5988 = vrot.lane.b32.xlu0 %v5773, 64
    %v5989 = vpop.permute.xlu0 %5988
    %5990 = vrot.lane.b32.xlu0 %v5776, 64
    %v5991 = vpop.permute.xlu0 %5990
    %5992 = vrot.lane.b32.xlu0 %v5779, 64
    %v5993 = vpop.permute.xlu0 %5992
    %5994 = vrot.lane.b32.xlu0 %v5782, 64
    %v5995 = vpop.permute.xlu0 %5994
    %5996 = vrot.lane.b32.xlu0 %v5785, 64
    %v5997 = vpop.permute.xlu0 %5996
    %5998 = vrot.lane.b32.xlu0 %v5788, 64
    %v5999 = vpop.permute.xlu0 %5998
    %6000 = vrot.lane.b32.xlu0 %v5791, 64
    %v6001 = vpop.permute.xlu0 %6000
    %6002 = vrot.lane.b32.xlu0 %v5794, 64
    %v6003 = vpop.permute.xlu0 %6002
    %6004 = vrot.lane.b32.xlu0 %v5797, 64
    %v6005 = vpop.permute.xlu0 %6004
    %6006 = vrot.lane.b32.xlu0 %v5800, 64
    %v6007 = vpop.permute.xlu0 %6006
    %6008 = vrot.lane.b32.xlu0 %v5803, 64
    %v6009 = vpop.permute.xlu0 %6008
    %6010 = vrot.lane.b32.xlu0 %v5806, 64
    %v6011 = vpop.permute.xlu0 %6010
    %6012 = vrot.lane.b32.xlu0 %v5809, 64
    %v6013 = vpop.permute.xlu0 %6012
    %6014 = vrot.lane.b32.xlu0 %v5812, 64
    %v6015 = vpop.permute.xlu0 %6014
    %6016 = vrot.lane.b32.xlu0 %v5815, 64
    %v6017 = vpop.permute.xlu0 %6016
    %6018 = vrot.lane.b32.xlu0 %v5818, 64
    %v6019 = vpop.permute.xlu0 %6018
    %6020 = vrot.lane.b32.xlu0 %v5821, 64
    %v6021 = vpop.permute.xlu0 %6020
    %6022 = vrot.lane.b32.xlu0 %v5824, 64
    %v6023 = vpop.permute.xlu0 %6022
    %6024 = vrot.lane.b32.xlu0 %v5827, 64
    %v6025 = vpop.permute.xlu0 %6024
    %6026 = vrot.lane.b32.xlu0 %v5830, 64
    %v6027 = vpop.permute.xlu0 %6026
    %6028 = vrot.lane.b32.xlu0 %v5833, 64
    %v6029 = vpop.permute.xlu0 %6028
    %6030 = vrot.lane.b32.xlu0 %v5218, 96
    %v6031 = vpop.permute.xlu0 %6030
    %6032 = vrot.lane.b32.xlu0 %v5220, 96
    %v6033 = vpop.permute.xlu0 %6032
    %6034 = vrot.lane.b32.xlu0 %v5222, 96
    %v6035 = vpop.permute.xlu0 %6034
    %6036 = vrot.lane.b32.xlu0 %v5224, 96
    %v6037 = vpop.permute.xlu0 %6036
    %6038 = vrot.lane.b32.xlu0 %v5226, 96
    %v6039 = vpop.permute.xlu0 %6038
    %6040 = vrot.lane.b32.xlu0 %v5228, 96
    %v6041 = vpop.permute.xlu0 %6040
    %6042 = vrot.lane.b32.xlu0 %v5230, 96
    %v6043 = vpop.permute.xlu0 %6042
    %6044 = vrot.lane.b32.xlu0 %v5232, 96
    %v6045 = vpop.permute.xlu0 %6044
    %6046 = vrot.lane.b32.xlu0 %v5234, 96
    %v6047 = vpop.permute.xlu0 %6046
    %6048 = vrot.lane.b32.xlu0 %v5236, 96
    %v6049 = vpop.permute.xlu0 %6048
    %6050 = vrot.lane.b32.xlu0 %v5238, 96
    %v6051 = vpop.permute.xlu0 %6050
    %6052 = vrot.lane.b32.xlu0 %v5240, 96
    %v6053 = vpop.permute.xlu0 %6052
    %6054 = vrot.lane.b32.xlu0 %v5242, 96
    %v6055 = vpop.permute.xlu0 %6054
    %6056 = vrot.lane.b32.xlu0 %v5244, 96
    %v6057 = vpop.permute.xlu0 %6056
    %6058 = vrot.lane.b32.xlu0 %v5246, 96
    %v6059 = vpop.permute.xlu0 %6058
    %6060 = vrot.lane.b32.xlu0 %v5248, 96
    %v6061 = vpop.permute.xlu0 %6060
    %6062 = vrot.lane.b32.xlu0 %v5254, 96
    %v6063 = vpop.permute.xlu0 %6062
    %6064 = vrot.lane.b32.xlu0 %v5256, 96
    %v6065 = vpop.permute.xlu0 %6064
    %6066 = vrot.lane.b32.xlu0 %v5258, 96
    %v6067 = vpop.permute.xlu0 %6066
    %6068 = vrot.lane.b32.xlu0 %v5260, 96
    %v6069 = vpop.permute.xlu0 %6068
    %6070 = vrot.lane.b32.xlu0 %v5262, 96
    %v6071 = vpop.permute.xlu0 %6070
    %6072 = vrot.lane.b32.xlu0 %v5264, 96
    %v6073 = vpop.permute.xlu0 %6072
    %6074 = vrot.lane.b32.xlu0 %v5266, 96
    %v6075 = vpop.permute.xlu0 %6074
    %6076 = vrot.lane.b32.xlu0 %v5268, 96
    %v6077 = vpop.permute.xlu0 %6076
    %6078 = vrot.lane.b32.xlu0 %v5270, 96
    %v6079 = vpop.permute.xlu0 %6078
    %6080 = vrot.lane.b32.xlu0 %v5272, 96
    %v6081 = vpop.permute.xlu0 %6080
    %6082 = vrot.lane.b32.xlu0 %v5274, 96
    %v6083 = vpop.permute.xlu0 %6082
    %6084 = vrot.lane.b32.xlu0 %v5276, 96
    %v6085 = vpop.permute.xlu0 %6084
    %6086 = vrot.lane.b32.xlu0 %v5278, 96
    %v6087 = vpop.permute.xlu0 %6086
    %6088 = vrot.lane.b32.xlu0 %v5280, 96
    %v6089 = vpop.permute.xlu0 %6088
    %6090 = vrot.lane.b32.xlu0 %v5282, 96
    %v6091 = vpop.permute.xlu0 %6090
    %6092 = vrot.lane.b32.xlu0 %v5284, 96
    %v6093 = vpop.permute.xlu0 %6092
    %6094 = vrot.lane.b32.xlu0 %v5743, 32
    %v6095 = vpop.permute.xlu0 %6094
    %6096 = vrot.lane.b32.xlu0 %v5746, 32
    %v6097 = vpop.permute.xlu0 %6096
    %6098 = vrot.lane.b32.xlu0 %v5749, 32
    %v6099 = vpop.permute.xlu0 %6098
    %6100 = vrot.lane.b32.xlu0 %v5752, 32
    %v6101 = vpop.permute.xlu0 %6100
    %6102 = vrot.lane.b32.xlu0 %v5755, 32
    %v6103 = vpop.permute.xlu0 %6102
    %6104 = vrot.lane.b32.xlu0 %v5758, 32
    %v6105 = vpop.permute.xlu0 %6104
    %6106 = vrot.lane.b32.xlu0 %v5761, 32
    %v6107 = vpop.permute.xlu0 %6106
    %6108 = vrot.lane.b32.xlu0 %v5764, 32
    %v6109 = vpop.permute.xlu0 %6108
    %6110 = vrot.lane.b32.xlu0 %v5767, 32
    %v6111 = vpop.permute.xlu0 %6110
    %6112 = vrot.lane.b32.xlu0 %v5770, 32
    %v6113 = vpop.permute.xlu0 %6112
    %6114 = vrot.lane.b32.xlu0 %v5773, 32
    %v6115 = vpop.permute.xlu0 %6114
    %6116 = vrot.lane.b32.xlu0 %v5776, 32
    %v6117 = vpop.permute.xlu0 %6116
    %6118 = vrot.lane.b32.xlu0 %v5779, 32
    %v6119 = vpop.permute.xlu0 %6118
    %6120 = vrot.lane.b32.xlu0 %v5782, 32
    %v6121 = vpop.permute.xlu0 %6120
    %6122 = vrot.lane.b32.xlu0 %v5785, 32
    %v6123 = vpop.permute.xlu0 %6122
    %6124 = vrot.lane.b32.xlu0 %v5864, 32
    %v6125 = vpop.permute.xlu0 %6124
    %6126 = vrot.lane.b32.xlu0 %v5791, 32
    %v6127 = vpop.permute.xlu0 %6126
    %6128 = vrot.lane.b32.xlu0 %v5794, 32
    %v6129 = vpop.permute.xlu0 %6128
    %6130 = vrot.lane.b32.xlu0 %v5797, 32
    %v6131 = vpop.permute.xlu0 %6130
    %6132 = vrot.lane.b32.xlu0 %v5800, 32
    %v6133 = vpop.permute.xlu0 %6132
    %6134 = vrot.lane.b32.xlu0 %v5803, 32
    %v6135 = vpop.permute.xlu0 %6134
    %6136 = vrot.lane.b32.xlu0 %v5806, 32
    %v6137 = vpop.permute.xlu0 %6136
    %6138 = vrot.lane.b32.xlu0 %v5809, 32
    %v6139 = vpop.permute.xlu0 %6138
    %6140 = vrot.lane.b32.xlu0 %v5812, 32
    %v6141 = vpop.permute.xlu0 %6140
    %6142 = vrot.lane.b32.xlu0 %v5815, 32
    %v6143 = vpop.permute.xlu0 %6142
    %6144 = vrot.lane.b32.xlu0 %v5818, 32
    %v6145 = vpop.permute.xlu0 %6144
    %6146 = vrot.lane.b32.xlu0 %v5821, 32
    %v6147 = vpop.permute.xlu0 %6146
    %6148 = vrot.lane.b32.xlu0 %v5824, 32
    %v6149 = vpop.permute.xlu0 %6148
    %6150 = vrot.lane.b32.xlu0 %v5827, 32
    %v6151 = vpop.permute.xlu0 %6150
    %6152 = vrot.lane.b32.xlu0 %v5830, 32
    %v6153 = vpop.permute.xlu0 %6152
    %6154 = vrot.lane.b32.xlu0 %v5833, 32
    %v6155 = vpop.permute.xlu0 %6154
    %6156 = vrot.lane.b32.xlu0 %v5867, 32
    %v6157 = vpop.permute.xlu0 %6156
    %6158 = vrot.lane.b32.xlu0 %v5220, 64
    %v6159 = vpop.permute.xlu0 %6158
    %6160 = vrot.lane.b32.xlu0 %v5222, 64
    %v6161 = vpop.permute.xlu0 %6160
    %6162 = vrot.lane.b32.xlu0 %v5224, 64
    %v6163 = vpop.permute.xlu0 %6162
    %6164 = vrot.lane.b32.xlu0 %v5226, 64
    %v6165 = vpop.permute.xlu0 %6164
    %6166 = vrot.lane.b32.xlu0 %v5228, 64
    %v6167 = vpop.permute.xlu0 %6166
    %6168 = vrot.lane.b32.xlu0 %v5230, 64
    %v6169 = vpop.permute.xlu0 %6168
    %6170 = vrot.lane.b32.xlu0 %v5232, 64
    %v6171 = vpop.permute.xlu0 %6170
    %6172 = vrot.lane.b32.xlu0 %v5234, 64
    %v6173 = vpop.permute.xlu0 %6172
    %6174 = vrot.lane.b32.xlu0 %v5236, 64
    %v6175 = vpop.permute.xlu0 %6174
    %6176 = vrot.lane.b32.xlu0 %v5238, 64
    %v6177 = vpop.permute.xlu0 %6176
    %6178 = vrot.lane.b32.xlu0 %v5240, 64
    %v6179 = vpop.permute.xlu0 %6178
    %6180 = vrot.lane.b32.xlu0 %v5242, 64
    %v6181 = vpop.permute.xlu0 %6180
    %6182 = vrot.lane.b32.xlu0 %v5244, 64
    %v6183 = vpop.permute.xlu0 %6182
    %6184 = vrot.lane.b32.xlu0 %v5246, 64
    %v6185 = vpop.permute.xlu0 %6184
    %6186 = vrot.lane.b32.xlu0 %v5248, 64
    %v6187 = vpop.permute.xlu0 %6186
    %6188 = vrot.lane.b32.xlu0 %v5250, 64
    %v6189 = vpop.permute.xlu0 %6188
    %6190 = vrot.lane.b32.xlu0 %v5256, 64
    %v6191 = vpop.permute.xlu0 %6190
    %6192 = vrot.lane.b32.xlu0 %v5258, 64
    %v6193 = vpop.permute.xlu0 %6192
    %6194 = vrot.lane.b32.xlu0 %v5260, 64
    %v6195 = vpop.permute.xlu0 %6194
    %6196 = vrot.lane.b32.xlu0 %v5262, 64
    %v6197 = vpop.permute.xlu0 %6196
    %6198 = vrot.lane.b32.xlu0 %v5264, 64
    %v6199 = vpop.permute.xlu0 %6198
    %6200 = vrot.lane.b32.xlu0 %v5266, 64
    %v6201 = vpop.permute.xlu0 %6200
    %6202 = vrot.lane.b32.xlu0 %v5268, 64
    %v6203 = vpop.permute.xlu0 %6202
    %6204 = vrot.lane.b32.xlu0 %v5270, 64
    %v6205 = vpop.permute.xlu0 %6204
    %6206 = vrot.lane.b32.xlu0 %v5272, 64
    %v6207 = vpop.permute.xlu0 %6206
    %6208 = vrot.lane.b32.xlu0 %v5274, 64
    %v6209 = vpop.permute.xlu0 %6208
    %6210 = vrot.lane.b32.xlu0 %v5276, 64
    %v6211 = vpop.permute.xlu0 %6210
    %6212 = vrot.lane.b32.xlu0 %v5278, 64
    %v6213 = vpop.permute.xlu0 %6212
    %6214 = vrot.lane.b32.xlu0 %v5280, 64
    %v6215 = vpop.permute.xlu0 %6214
    %6216 = vrot.lane.b32.xlu0 %v5282, 64
    %v6217 = vpop.permute.xlu0 %6216
    %6218 = vrot.lane.b32.xlu0 %v5284, 64
    %v6219 = vpop.permute.xlu0 %6218
    %6220 = vrot.lane.b32.xlu0 %v5286, 64
    %v6221 = vpop.permute.xlu0 %6220
    %6222 = vrot.lane.b32.xlu0 %v5324, 96
    %v6223 = vpop.permute.xlu0 %6222
    %6224 = vrot.lane.b32.xlu0 %v5336, 96
    %v6225 = vpop.permute.xlu0 %6224
    %6226 = vrot.lane.b32.xlu0 %v5348, 96
    %v6227 = vpop.permute.xlu0 %6226
    %6228 = vrot.lane.b32.xlu0 %v5360, 96
    %v6229 = vpop.permute.xlu0 %6228
    %6230 = vrot.lane.b32.xlu0 %v5372, 96
    %v6231 = vpop.permute.xlu0 %6230
    %6232 = vrot.lane.b32.xlu0 %v5384, 96
    %v6233 = vpop.permute.xlu0 %6232
    %6234 = vrot.lane.b32.xlu0 %v5396, 96
    %v6235 = vpop.permute.xlu0 %6234
    %6236 = vrot.lane.b32.xlu0 %v5408, 96
    %v6237 = vpop.permute.xlu0 %6236
    %6238 = vrot.lane.b32.xlu0 %v5420, 96
    %v6239 = vpop.permute.xlu0 %6238
    %6240 = vrot.lane.b32.xlu0 %v5432, 96
    %v6241 = vpop.permute.xlu0 %6240
    %6242 = vrot.lane.b32.xlu0 %v5444, 96
    %v6243 = vpop.permute.xlu0 %6242
    %6244 = vrot.lane.b32.xlu0 %v5456, 96
    %v6245 = vpop.permute.xlu0 %6244
    %6246 = vrot.lane.b32.xlu0 %v5468, 96
    %v6247 = vpop.permute.xlu0 %6246
    %6248 = vrot.lane.b32.xlu0 %v5480, 96
    %v6249 = vpop.permute.xlu0 %6248
    %6250 = vrot.lane.b32.xlu0 %v5845, 96
    %v6251 = vpop.permute.xlu0 %6250
    %6252 = vrot.lane.b32.xlu0 %v5879, 96
    %v6253 = vpop.permute.xlu0 %6252
    %6254 = vrot.lane.b32.xlu0 %v5516, 96
    %v6255 = vpop.permute.xlu0 %6254
    %6256 = vrot.lane.b32.xlu0 %v5528, 96
    %v6257 = vpop.permute.xlu0 %6256
    %6258 = vrot.lane.b32.xlu0 %v5540, 96
    %v6259 = vpop.permute.xlu0 %6258
    %6260 = vrot.lane.b32.xlu0 %v5552, 96
    %v6261 = vpop.permute.xlu0 %6260
    %6262 = vrot.lane.b32.xlu0 %v5564, 96
    %v6263 = vpop.permute.xlu0 %6262
    %6264 = vrot.lane.b32.xlu0 %v5576, 96
    %v6265 = vpop.permute.xlu0 %6264
    %6266 = vrot.lane.b32.xlu0 %v5588, 96
    %v6267 = vpop.permute.xlu0 %6266
    %6268 = vrot.lane.b32.xlu0 %v5600, 96
    %v6269 = vpop.permute.xlu0 %6268
    %6270 = vrot.lane.b32.xlu0 %v5612, 96
    %v6271 = vpop.permute.xlu0 %6270
    %6272 = vrot.lane.b32.xlu0 %v5624, 96
    %v6273 = vpop.permute.xlu0 %6272
    %6274 = vrot.lane.b32.xlu0 %v5636, 96
    %v6275 = vpop.permute.xlu0 %6274
    %6276 = vrot.lane.b32.xlu0 %v5648, 96
    %v6277 = vpop.permute.xlu0 %6276
    %6278 = vrot.lane.b32.xlu0 %v5660, 96
    %v6279 = vpop.permute.xlu0 %6278
    %6280 = vrot.lane.b32.xlu0 %v5672, 96
    %v6281 = vpop.permute.xlu0 %6280
    %6282 = vrot.lane.b32.xlu0 %v5857, 96
    %v6283 = vpop.permute.xlu0 %6282
    %6284 = vrot.lane.b32.xlu0 %v5891, 96
    %v6285 = vpop.permute.xlu0 %6284
    %v6287 = vsel %vm2869, %v5216, %v5903
    %v6289 = vsel %vm2869, %v5218, %v5905
    %v6291 = vsel %vm2869, %v5220, %v5907
    %v6293 = vsel %vm2869, %v5222, %v5909
    %v6295 = vsel %vm2869, %v5224, %v5911
    %v6297 = vsel %vm2869, %v5226, %v5913
    %v6299 = vsel %vm2869, %v5228, %v5915
    %v6301 = vsel %vm2869, %v5230, %v5917
    %v6303 = vsel %vm2869, %v5232, %v5919
    %v6305 = vsel %vm2869, %v5234, %v5921
    %v6307 = vsel %vm2869, %v5236, %v5923
    %v6309 = vsel %vm2869, %v5238, %v5925
    %v6311 = vsel %vm2869, %v5240, %v5927
    %v6313 = vsel %vm2869, %v5242, %v5929
    %v6315 = vsel %vm2869, %v5244, %v5931
    %v6317 = vsel %vm2869, %v5246, %v5933
    %v6319 = vsel %vm2869, %v5252, %v5935
    %v6321 = vsel %vm2869, %v5254, %v5937
    %v6323 = vsel %vm2869, %v5256, %v5939
    %v6325 = vsel %vm2869, %v5258, %v5941
    %v6327 = vsel %vm2869, %v5260, %v5943
    %v6329 = vsel %vm2869, %v5262, %v5945
    %v6331 = vsel %vm2869, %v5264, %v5947
    %v6333 = vsel %vm2869, %v5266, %v5949
    %v6335 = vsel %vm2869, %v5268, %v5951
    %v6337 = vsel %vm2869, %v5270, %v5953
    %v6339 = vsel %vm2869, %v5272, %v5955
    %v6341 = vsel %vm2869, %v5274, %v5957
    %v6343 = vsel %vm2869, %v5276, %v5959
    %v6345 = vsel %vm2869, %v5278, %v5961
    %v6347 = vsel %vm2869, %v5280, %v5963
    %v6349 = vsel %vm2869, %v5282, %v5965
    %v6351 = vsel %vm3161, %v6287, %v5967
    %v6353 = vsel %vm3161, %v6289, %v5969
    %v6355 = vsel %vm3161, %v6291, %v5971
    %v6357 = vsel %vm3161, %v6293, %v5973
    %v6359 = vsel %vm3161, %v6295, %v5975
    %v6361 = vsel %vm3161, %v6297, %v5977
    %v6363 = vsel %vm3161, %v6299, %v5979
    %v6365 = vsel %vm3161, %v6301, %v5981
    %v6367 = vsel %vm3161, %v6303, %v5983
    %v6369 = vsel %vm3161, %v6305, %v5985
    %v6371 = vsel %vm3161, %v6307, %v5987
    %v6373 = vsel %vm3161, %v6309, %v5989
    %v6375 = vsel %vm3161, %v6311, %v5991
    %v6377 = vsel %vm3161, %v6313, %v5993
    %v6379 = vsel %vm3161, %v6315, %v5995
    %v6381 = vsel %vm3161, %v6317, %v5997
    %v6383 = vsel %vm3161, %v6319, %v5999
    %v6385 = vsel %vm3161, %v6321, %v6001
    %v6387 = vsel %vm3161, %v6323, %v6003
    %v6389 = vsel %vm3161, %v6325, %v6005
    %v6391 = vsel %vm3161, %v6327, %v6007
    %v6393 = vsel %vm3161, %v6329, %v6009
    %v6395 = vsel %vm3161, %v6331, %v6011
    %v6397 = vsel %vm3161, %v6333, %v6013
    %v6399 = vsel %vm3161, %v6335, %v6015
    %v6401 = vsel %vm3161, %v6337, %v6017
    %v6403 = vsel %vm3161, %v6339, %v6019
    %v6405 = vsel %vm3161, %v6341, %v6021
    %v6407 = vsel %vm3161, %v6343, %v6023
    %v6409 = vsel %vm3161, %v6345, %v6025
    %v6411 = vsel %vm3161, %v6347, %v6027
    %v6413 = vsel %vm3161, %v6349, %v6029
    %vm6414 = vcmask 785408
    %v6416 = vsel %vm6414, %v6351, %v6031
    %v6419 = vsel %vm6414, %v6353, %v6033
    %v6422 = vsel %vm6414, %v6355, %v6035
    %v6425 = vsel %vm6414, %v6357, %v6037
    %v6428 = vsel %vm6414, %v6359, %v6039
    %v6431 = vsel %vm6414, %v6361, %v6041
    %v6434 = vsel %vm6414, %v6363, %v6043
    %v6437 = vsel %vm6414, %v6365, %v6045
    %v6440 = vsel %vm6414, %v6367, %v6047
    %v6443 = vsel %vm6414, %v6369, %v6049
    %v6446 = vsel %vm6414, %v6371, %v6051
    %v6449 = vsel %vm6414, %v6373, %v6053
    %v6452 = vsel %vm6414, %v6375, %v6055
    %v6455 = vsel %vm6414, %v6377, %v6057
    %v6458 = vsel %vm6414, %v6379, %v6059
    %v6461 = vsel %vm6414, %v6381, %v6061
    %v6464 = vsel %vm6414, %v6383, %v6063
    %v6467 = vsel %vm6414, %v6385, %v6065
    %v6470 = vsel %vm6414, %v6387, %v6067
    %v6473 = vsel %vm6414, %v6389, %v6069
    %v6476 = vsel %vm6414, %v6391, %v6071
    %v6479 = vsel %vm6414, %v6393, %v6073
    %v6482 = vsel %vm6414, %v6395, %v6075
    %v6485 = vsel %vm6414, %v6397, %v6077
    %v6488 = vsel %vm6414, %v6399, %v6079
    %v6491 = vsel %vm6414, %v6401, %v6081
    %v6494 = vsel %vm6414, %v6403, %v6083
    %v6497 = vsel %vm6414, %v6405, %v6085
    %v6500 = vsel %vm6414, %v6407, %v6087
    %v6503 = vsel %vm6414, %v6409, %v6089
    %v6506 = vsel %vm6414, %v6411, %v6091
    %v6509 = vsel %vm6414, %v6413, %v6093
    %v6513 = vsel %vm2869, %v5312, %v6095
    %v6516 = vsel %vm2869, %v5324, %v6097
    %v6519 = vsel %vm2869, %v5336, %v6099
    %v6522 = vsel %vm2869, %v5348, %v6101
    %v6525 = vsel %vm2869, %v5360, %v6103
    %v6528 = vsel %vm2869, %v5372, %v6105
    %v6531 = vsel %vm2869, %v5384, %v6107
    %v6534 = vsel %vm2869, %v5396, %v6109
    %v6537 = vsel %vm2869, %v5408, %v6111
    %v6540 = vsel %vm2869, %v5420, %v6113
    %v6543 = vsel %vm2869, %v5432, %v6115
    %v6546 = vsel %vm2869, %v5444, %v6117
    %v6549 = vsel %vm2869, %v5456, %v6119
    %v6552 = vsel %vm2869, %v5468, %v6121
    %v6555 = vsel %vm2869, %v5480, %v6123
    %v6558 = vsel %vm2869, %v5845, %v6125
    %v6561 = vsel %vm2869, %v5504, %v6127
    %v6564 = vsel %vm2869, %v5516, %v6129
    %v6567 = vsel %vm2869, %v5528, %v6131
    %v6570 = vsel %vm2869, %v5540, %v6133
    %v6573 = vsel %vm2869, %v5552, %v6135
    %v6576 = vsel %vm2869, %v5564, %v6137
    %v6579 = vsel %vm2869, %v5576, %v6139
    %v6582 = vsel %vm2869, %v5588, %v6141
    %v6585 = vsel %vm2869, %v5600, %v6143
    %v6588 = vsel %vm2869, %v5612, %v6145
    %v6591 = vsel %vm2869, %v5624, %v6147
    %v6594 = vsel %vm2869, %v5636, %v6149
    %v6597 = vsel %vm2869, %v5648, %v6151
    %v6600 = vsel %vm2869, %v5660, %v6153
    %v6603 = vsel %vm2869, %v5672, %v6155
    %v6606 = vsel %vm2869, %v5857, %v6157
    %v6608 = vsel %vm3161, %v6513, %v6159
    %v6610 = vsel %vm3161, %v6516, %v6161
    %v6612 = vsel %vm3161, %v6519, %v6163
    %v6614 = vsel %vm3161, %v6522, %v6165
    %v6616 = vsel %vm3161, %v6525, %v6167
    %v6618 = vsel %vm3161, %v6528, %v6169
    %v6620 = vsel %vm3161, %v6531, %v6171
    %v6622 = vsel %vm3161, %v6534, %v6173
    %v6624 = vsel %vm3161, %v6537, %v6175
    %v6626 = vsel %vm3161, %v6540, %v6177
    %v6628 = vsel %vm3161, %v6543, %v6179
    %v6630 = vsel %vm3161, %v6546, %v6181
    %v6632 = vsel %vm3161, %v6549, %v6183
    %v6634 = vsel %vm3161, %v6552, %v6185
    %v6636 = vsel %vm3161, %v6555, %v6187
    %v6638 = vsel %vm3161, %v6558, %v6189
    %v6640 = vsel %vm3161, %v6561, %v6191
    %v6642 = vsel %vm3161, %v6564, %v6193
    %v6644 = vsel %vm3161, %v6567, %v6195
    %v6646 = vsel %vm3161, %v6570, %v6197
    %v6648 = vsel %vm3161, %v6573, %v6199
    %v6650 = vsel %vm3161, %v6576, %v6201
    %v6652 = vsel %vm3161, %v6579, %v6203
    %v6654 = vsel %vm3161, %v6582, %v6205
    %v6656 = vsel %vm3161, %v6585, %v6207
    %v6658 = vsel %vm3161, %v6588, %v6209
    %v6660 = vsel %vm3161, %v6591, %v6211
    %v6662 = vsel %vm3161, %v6594, %v6213
    %v6664 = vsel %vm3161, %v6597, %v6215
    %v6666 = vsel %vm3161, %v6600, %v6217
    %v6668 = vsel %vm3161, %v6603, %v6219
    %v6670 = vsel %vm3161, %v6606, %v6221
    %v6672 = vsel %vm6414, %v6608, %v6223
    %v6675 = vsel %vm6414, %v6610, %v6225
    %v6678 = vsel %vm6414, %v6612, %v6227
    %v6681 = vsel %vm6414, %v6614, %v6229
    %v6684 = vsel %vm6414, %v6616, %v6231
    %v6687 = vsel %vm6414, %v6618, %v6233
    %v6690 = vsel %vm6414, %v6620, %v6235
    %v6693 = vsel %vm6414, %v6622, %v6237
    %v6696 = vsel %vm6414, %v6624, %v6239
    %v6699 = vsel %vm6414, %v6626, %v6241
    %v6702 = vsel %vm6414, %v6628, %v6243
    %v6705 = vsel %vm6414, %v6630, %v6245
    %v6708 = vsel %vm6414, %v6632, %v6247
    %v6711 = vsel %vm6414, %v6634, %v6249
    %v6714 = vsel %vm6414, %v6636, %v6251
    %v6717 = vsel %vm6414, %v6638, %v6253
    %v6720 = vsel %vm6414, %v6640, %v6255
    %v6723 = vsel %vm6414, %v6642, %v6257
    %v6726 = vsel %vm6414, %v6644, %v6259
    %v6729 = vsel %vm6414, %v6646, %v6261
    %v6732 = vsel %vm6414, %v6648, %v6263
    %v6735 = vsel %vm6414, %v6650, %v6265
    %v6738 = vsel %vm6414, %v6652, %v6267
    %v6741 = vsel %vm6414, %v6654, %v6269
    %v6744 = vsel %vm6414, %v6656, %v6271
    %v6747 = vsel %vm6414, %v6658, %v6273
    %v6750 = vsel %vm6414, %v6660, %v6275
    %v6753 = vsel %vm6414, %v6662, %v6277
    %v6756 = vsel %vm6414, %v6664, %v6279
    %v6759 = vsel %vm6414, %v6666, %v6281
    %v6762 = vsel %vm6414, %v6668, %v6283
    %v6765 = vsel %vm6414, %v6670, %v6285
    %v6767 = vld [vmem:[%s2] sm:$0xf]
    %v6768 = vld [vmem:[%s2 + $0x4] sm:$0xf]
    %v6769 = vld [vmem:[%s2 + $0x8] sm:$0xf]
    %v6770 = vld [vmem:[%s2 + $0xc] sm:$0xf]
    %v6771 = vld [vmem:[%s2 + $0x10] sm:$0xf]
    %v6772 = vld [vmem:[%s2 + $0x14] sm:$0xf]
    %v6773 = vld [vmem:[%s2 + $0x18] sm:$0xf]
    %v6774 = vld [vmem:[%s2 + $0x1c] sm:$0xf]
    %v6775 = vld [vmem:[%s2 + $0x20] sm:$0xf]
    %v6776 = vld [vmem:[%s2 + $0x24] sm:$0xf]
    %v6777 = vld [vmem:[%s2 + $0x28] sm:$0xf]
    %v6778 = vld [vmem:[%s2 + $0x2c] sm:$0xf]
    %v6779 = vld [vmem:[%s2 + $0x30] sm:$0xf]
    %v6780 = vld [vmem:[%s2 + $0x34] sm:$0xf]
    %v6781 = vld [vmem:[%s2 + $0x38] sm:$0xf]
    %v6782 = vld [vmem:[%s2 + $0x3c] sm:$0xf]
    %v6783 = vld [vmem:[%s2 + $0x40] sm:$0xf]
    %v6784 = vld [vmem:[%s2 + $0x44] sm:$0xf]
    %v6785 = vld [vmem:[%s2 + $0x48] sm:$0xf]
    %v6786 = vld [vmem:[%s2 + $0x4c] sm:$0xf]
    %v6787 = vld [vmem:[%s2 + $0x50] sm:$0xf]
    %v6788 = vld [vmem:[%s2 + $0x54] sm:$0xf]
    %v6789 = vld [vmem:[%s2 + $0x58] sm:$0xf]
    %v6790 = vld [vmem:[%s2 + $0x5c] sm:$0xf]
    %v6791 = vld [vmem:[%s2 + $0x60] sm:$0xf]
    %v6792 = vld [vmem:[%s2 + $0x64] sm:$0xf]
    %v6793 = vld [vmem:[%s2 + $0x68] sm:$0xf]
    %v6794 = vld [vmem:[%s2 + $0x6c] sm:$0xf]
    %v6795 = vld [vmem:[%s2 + $0x70] sm:$0xf]
    %v6796 = vld [vmem:[%s2 + $0x74] sm:$0xf]
    %v6797 = vld [vmem:[%s2 + $0x78] sm:$0xf]
    %v6798 = vld [vmem:[%s2 + $0x7c] sm:$0xf]
    %v6799 = vld [vmem:[%s2 + $0x80] sm:$0xf]
    %v6800 = vld [vmem:[%s2 + $0x84] sm:$0xf]
    %v6801 = vld [vmem:[%s2 + $0x88] sm:$0xf]
    %v6802 = vld [vmem:[%s2 + $0x8c] sm:$0xf]
    %v6839 = vunpack.c.l.b16 %v6767
    %v6840 = vunpack.c.l.b16 %v6768
    %v6841 = vunpack.c.l.b16 %v6769
    %v6842 = vunpack.c.l.b16 %v6770
    %v6843 = vunpack.c.l.b16 %v6771
    %v6844 = vunpack.c.l.b16 %v6772
    %v6845 = vunpack.c.l.b16 %v6773
    %v6846 = vunpack.c.l.b16 %v6774
    %v6847 = vunpack.c.l.b16 %v6775
    %v6848 = vunpack.c.l.b16 %v6776
    %v6849 = vunpack.c.l.b16 %v6777
    %v6850 = vunpack.c.l.b16 %v6778
    %v6851 = vunpack.c.l.b16 %v6779
    %v6852 = vunpack.c.l.b16 %v6780
    %v6853 = vunpack.c.l.b16 %v6781
    %v6854 = vunpack.c.l.b16 %v6782
    %v6855 = vunpack.c.l.b16 %v6783
    %v6856 = vunpack.c.l.b16 %v6784
    %v6857 = vunpack.c.l.b16 %v6785
    %v6858 = vunpack.c.l.b16 %v6786
    %v6859 = vunpack.c.l.b16 %v6787
    %v6860 = vunpack.c.l.b16 %v6788
    %v6861 = vunpack.c.l.b16 %v6789
    %v6862 = vunpack.c.l.b16 %v6790
    %v6863 = vunpack.c.l.b16 %v6791
    %v6864 = vunpack.c.l.b16 %v6792
    %v6865 = vunpack.c.l.b16 %v6793
    %v6866 = vunpack.c.l.b16 %v6794
    %v6867 = vunpack.c.l.b16 %v6795
    %v6868 = vunpack.c.l.b16 %v6796
    %v6869 = vunpack.c.l.b16 %v6797
    %v6870 = vunpack.c.l.b16 %v6798
    %v6871 = vunpack.c.l.b16 %v6799
    %v6872 = vunpack.c.l.b16 %v6800
    %v6873 = vunpack.c.l.b16 %v6801
    %v6874 = vunpack.c.l.b16 %v6802
    %v6875 = vpack.c.b16 %v6840, %v6839
    %v6876 = vpack.c.b16 %v6842, %v6841
    %v6877 = vpack.c.b16 %v6844, %v6843
    %v6878 = vpack.c.b16 %v6846, %v6845
    %v6879 = vpack.c.b16 %v6848, %v6847
    %v6880 = vpack.c.b16 %v6850, %v6849
    %v6881 = vpack.c.b16 %v6852, %v6851
    %v6882 = vpack.c.b16 %v6854, %v6853
    %v6883 = vpack.c.b16 %v6856, %v6855
    %v6884 = vpack.c.b16 %v6858, %v6857
    %v6885 = vpack.c.b16 %v6860, %v6859
    %v6886 = vpack.c.b16 %v6862, %v6861
    %v6887 = vpack.c.b16 %v6864, %v6863
    %v6888 = vpack.c.b16 %v6866, %v6865
    %v6889 = vpack.c.b16 %v6868, %v6867
    %v6890 = vpack.c.b16 %v6870, %v6869
    %v6891 = vpack.c.b16 %v6872, %v6871
    %v6892 = vpack.c.b16 %v6874, %v6873
    %v6912 = vsel %vm2869, %v5746, 0
    %v6915 = vsel %vm2869, %v5749, 0
    %v6918 = vsel %vm2869, %v5752, 0
    %v6921 = vsel %vm2869, %v5755, 0
    %v6924 = vsel %vm2869, %v5758, 0
    %v6927 = vsel %vm2869, %v5761, 0
    %v6930 = vsel %vm2869, %v5764, 0
    %v6933 = vsel %vm2869, %v5767, 0
    %v6936 = vsel %vm2869, %v5770, 0
    %v6939 = vsel %vm2869, %v5773, 0
    %v6942 = vsel %vm2869, %v5776, 0
    %v6945 = vsel %vm2869, %v5779, 0
    %v6948 = vsel %vm2869, %v5782, 0
    %v6951 = vsel %vm2869, %v5785, 0
    %v6954 = vsel %vm2869, %v5864, 0
    %v6957 = vsel %vm2869, %v5898, 0
    %v6960 = vsel %vm2869, %v5794, 0
    %v6963 = vsel %vm2869, %v5797, 0
    %v6966 = vsel %vm2869, %v5800, 0
    %v6969 = vsel %vm2869, %v5803, 0
    %v6972 = vsel %vm2869, %v5806, 0
    %v6975 = vsel %vm2869, %v5809, 0
    %v6978 = vsel %vm2869, %v5812, 0
    %v6981 = vsel %vm2869, %v5815, 0
    %v6984 = vsel %vm2869, %v5818, 0
    %v6987 = vsel %vm2869, %v5821, 0
    %v6990 = vsel %vm2869, %v5824, 0
    %v6993 = vsel %vm2869, %v5827, 0
    %v6996 = vsel %vm2869, %v5830, 0
    %v6999 = vsel %vm2869, %v5833, 0
    %v7002 = vsel %vm2869, %v5867, 0
    %v7005 = vsel %vm2869, %v5901, 0
    %7007 = vmatprep.subr.bf16.mxu0 0
    %7008 = vmatpush1.bf16.msra.mxu0 %v6875
    %7009 = vmatprep.subr.bf16.mxu0 0
    %7010 = vmatpush1.bf16.msra.mxu0 %v6876
    %7011 = vmatprep.subr.bf16.mxu0 0
    %7012 = vmatpush1.bf16.msra.mxu0 %v6877
    %7013 = vmatprep.subr.bf16.mxu0 0
    %7014 = vmatpush1.bf16.msra.mxu0 %v6878
    %7015 = vmatprep.subr.bf16.mxu0 0
    %7016 = vmatpush1.bf16.msra.mxu0 %v6879
    %7017 = vmatprep.subr.bf16.mxu0 0
    %7018 = vmatpush1.bf16.msra.mxu0 %v6880
    %7019 = vmatprep.subr.bf16.mxu0 0
    %7020 = vmatpush1.bf16.msra.mxu0 %v6881
    %7021 = vmatprep.subr.bf16.mxu0 0
    %7022 = vmatpush1.bf16.msra.mxu0 %v6882
    %7023 = vmatprep.subr.bf16.mxu0 0
    %7024 = vmatpush1.bf16.msra.mxu0 %v6883
    %7025 = vmatprep.subr.bf16.mxu0 0
    %7026 = vmatpush1.bf16.msra.mxu0 %v6884
    %7027 = vmatprep.subr.bf16.mxu0 0
    %7028 = vmatpush1.bf16.msra.mxu0 %v6885
    %7029 = vmatprep.subr.bf16.mxu0 0
    %7030 = vmatpush1.bf16.msra.mxu0 %v6886
    %7031 = vmatprep.subr.bf16.mxu0 0
    %7032 = vmatpush1.bf16.msra.mxu0 %v6887
    %7033 = vmatprep.subr.bf16.mxu0 0
    %7034 = vmatpush1.bf16.msra.mxu0 %v6888
    %7035 = vmatprep.subr.bf16.mxu0 0
    %7036 = vmatpush1.bf16.msra.mxu0 %v6889
    %7037 = vmatprep.subr.bf16.mxu0 0
    %7038 = vmatpush1.bf16.msra.mxu0 %v6890
    %7039 = vmatprep.mubr.bf16.mxu0 %v6672
    %7040 = vmatmul.mubr.bf16.gmra.mrb[0].mxu0 %v6416
    %v7041 = vpop.f32.mrb[0].mxu0
    %v7042 = vadd.f32 0.0, %v7041
    %v7043 = vpop.f32.mrb[0].mxu0
    %v7044 = vpop.f32.mrb[0].mxu0
    %v7045 = vadd.f32 0.0, %v7044
    %v7046 = vpop.f32.mrb[0].mxu0
    %7047 = vmatprep.mubr.bf16.mxu0 %v6675
    %7048 = vmatmul.mubr.bf16.gmra.mrb[0].mxu0 %v6419
    %v7049 = vpop.f32.mrb[0].mxu0
    %v7050 = vadd.f32 0.0, %v7049
    %v7051 = vpop.f32.mrb[0].mxu0
    %v7052 = vpop.f32.mrb[0].mxu0
    %v7053 = vadd.f32 0.0, %v7052
    %v7054 = vpop.f32.mrb[0].mxu0
    %7055 = vmatprep.mubr.bf16.mxu0 %v6678
    %7056 = vmatmul.mubr.bf16.gmra.mrb[0].mxu0 %v6422
    %v7057 = vpop.f32.mrb[0].mxu0
    %v7058 = vadd.f32 0.0, %v7057
    %v7059 = vpop.f32.mrb[0].mxu0
    %v7060 = vpop.f32.mrb[0].mxu0
    %v7061 = vadd.f32 0.0, %v7060
    %v7062 = vpop.f32.mrb[0].mxu0
    %7063 = vmatprep.mubr.bf16.mxu0 %v6681
    %7064 = vmatmul.mubr.bf16.gmra.mrb[0].mxu0 %v6425
    %v7065 = vpop.f32.mrb[0].mxu0
    %v7066 = vadd.f32 0.0, %v7065
    %v7067 = vpop.f32.mrb[0].mxu0
    %v7068 = vpop.f32.mrb[0].mxu0
    %v7069 = vadd.f32 0.0, %v7068
    %v7070 = vpop.f32.mrb[0].mxu0
    %7071 = vmatprep.mubr.bf16.mxu0 %v6684
    %7072 = vmatmul.mubr.bf16.gmra.mrb[0].mxu0 %v6428
    %v7073 = vpop.f32.mrb[0].mxu0
    %v7074 = vadd.f32 0.0, %v7073
    %v7075 = vpop.f32.mrb[0].mxu0
    %v7076 = vpop.f32.mrb[0].mxu0
    %v7077 = vadd.f32 0.0, %v7076
    %v7078 = vpop.f32.mrb[0].mxu0
    %7079 = vmatprep.mubr.bf16.mxu0 %v6687
    %7080 = vmatmul.mubr.bf16.gmra.mrb[0].mxu0 %v6431
    %v7081 = vpop.f32.mrb[0].mxu0
    %v7082 = vadd.f32 0.0, %v7081
    %v7083 = vpop.f32.mrb[0].mxu0
    %v7084 = vpop.f32.mrb[0].mxu0
    %v7085 = vadd.f32 0.0, %v7084
    %v7086 = vpop.f32.mrb[0].mxu0
    %7087 = vmatprep.mubr.bf16.mxu0 %v6690
    %7088 = vmatmul.mubr.bf16.gmra.mrb[0].mxu0 %v6434
    %v7089 = vpop.f32.mrb[0].mxu0
    %v7090 = vadd.f32 0.0, %v7089
    %v7091 = vpop.f32.mrb[0].mxu0
    %v7092 = vpop.f32.mrb[0].mxu0
    %v7093 = vadd.f32 0.0, %v7092
    %v7094 = vpop.f32.mrb[0].mxu0
    %7095 = vmatprep.mubr.bf16.mxu0 %v6693
    %7096 = vmatmul.mubr.bf16.gmra.mrb[0].mxu0 %v6437
    %v7097 = vpop.f32.mrb[0].mxu0
    %v7098 = vadd.f32 0.0, %v7097
    %v7099 = vpop.f32.mrb[0].mxu0
    %v7100 = vpop.f32.mrb[0].mxu0
    %v7101 = vadd.f32 0.0, %v7100
    %v7102 = vpop.f32.mrb[0].mxu0
    %7103 = vmatprep.mubr.bf16.mxu0 %v6696
    %7104 = vmatmul.mubr.bf16.gmra.mrb[0].mxu0 %v6440
    %v7105 = vpop.f32.mrb[0].mxu0
    %v7106 = vadd.f32 0.0, %v7105
    %v7107 = vpop.f32.mrb[0].mxu0
    %v7108 = vpop.f32.mrb[0].mxu0
    %v7109 = vadd.f32 0.0, %v7108
    %v7110 = vpop.f32.mrb[0].mxu0
    %7111 = vmatprep.mubr.bf16.mxu0 %v6699
    %7112 = vmatmul.mubr.bf16.gmra.mrb[0].mxu0 %v6443
    %v7113 = vpop.f32.mrb[0].mxu0
    %v7114 = vadd.f32 0.0, %v7113
    %v7115 = vpop.f32.mrb[0].mxu0
    %v7116 = vpop.f32.mrb[0].mxu0
    %v7117 = vadd.f32 0.0, %v7116
    %v7118 = vpop.f32.mrb[0].mxu0
    %7119 = vmatprep.mubr.bf16.mxu0 %v6702
    %7120 = vmatmul.mubr.bf16.gmra.mrb[0].mxu0 %v6446
    %v7121 = vpop.f32.mrb[0].mxu0
    %v7122 = vadd.f32 0.0, %v7121
    %v7123 = vpop.f32.mrb[0].mxu0
    %v7124 = vpop.f32.mrb[0].mxu0
    %v7125 = vadd.f32 0.0, %v7124
    %v7126 = vpop.f32.mrb[0].mxu0
    %7127 = vmatprep.mubr.bf16.mxu0 %v6705
    %7128 = vmatmul.mubr.bf16.gmra.mrb[0].mxu0 %v6449
    %v7129 = vpop.f32.mrb[0].mxu0
    %v7130 = vadd.f32 0.0, %v7129
    %v7131 = vpop.f32.mrb[0].mxu0
    %v7132 = vpop.f32.mrb[0].mxu0
    %v7133 = vadd.f32 0.0, %v7132
    %v7134 = vpop.f32.mrb[0].mxu0
    %7135 = vmatprep.mubr.bf16.mxu0 %v6708
    %7136 = vmatmul.mubr.bf16.gmra.mrb[0].mxu0 %v6452
    %v7137 = vpop.f32.mrb[0].mxu0
    %v7138 = vadd.f32 0.0, %v7137
    %v7139 = vpop.f32.mrb[0].mxu0
    %v7140 = vpop.f32.mrb[0].mxu0
    %v7141 = vadd.f32 0.0, %v7140
    %v7142 = vpop.f32.mrb[0].mxu0
    %7143 = vmatprep.mubr.bf16.mxu0 %v6711
    %7144 = vmatmul.mubr.bf16.gmra.mrb[0].mxu0 %v6455
    %v7145 = vpop.f32.mrb[0].mxu0
    %v7146 = vadd.f32 0.0, %v7145
    %v7147 = vpop.f32.mrb[0].mxu0
    %v7148 = vpop.f32.mrb[0].mxu0
    %v7149 = vadd.f32 0.0, %v7148
    %v7150 = vpop.f32.mrb[0].mxu0
    %7151 = vmatprep.mubr.bf16.mxu0 %v6714
    %7152 = vmatmul.mubr.bf16.gmra.mrb[0].mxu0 %v6458
    %v7153 = vpop.f32.mrb[0].mxu0
    %v7154 = vadd.f32 0.0, %v7153
    %v7155 = vpop.f32.mrb[0].mxu0
    %v7156 = vpop.f32.mrb[0].mxu0
    %v7157 = vadd.f32 0.0, %v7156
    %v7158 = vpop.f32.mrb[0].mxu0
    %7159 = vmatprep.mubr.bf16.mxu0 %v6717
    %7160 = vmatmul.mubr.bf16.gmra.mrb[0].mxu0 %v6461
    %v7161 = vpop.f32.mrb[0].mxu0
    %v7162 = vadd.f32 0.0, %v7161
    %v7163 = vpop.f32.mrb[0].mxu0
    %v7164 = vpop.f32.mrb[0].mxu0
    %v7165 = vadd.f32 0.0, %v7164
    %v7166 = vpop.f32.mrb[0].mxu0
    %7167 = vmatprep.mubr.bf16.mxu0 %v6720
    %7168 = vmatmul.mubr.bf16.gmra.mrb[0].mxu0 %v6464
    %v7169 = vpop.f32.mrb[0].mxu0
    %v7170 = vadd.f32 0.0, %v7169
    %v7171 = vpop.f32.mrb[0].mxu0
    %v7172 = vpop.f32.mrb[0].mxu0
    %v7173 = vadd.f32 0.0, %v7172
    %v7174 = vpop.f32.mrb[0].mxu0
    %7175 = vmatprep.mubr.bf16.mxu0 %v6723
    %7176 = vmatmul.mubr.bf16.gmra.mrb[0].mxu0 %v6467
    %v7177 = vpop.f32.mrb[0].mxu0
    %v7178 = vadd.f32 0.0, %v7177
    %v7179 = vpop.f32.mrb[0].mxu0
    %v7180 = vpop.f32.mrb[0].mxu0
    %v7181 = vadd.f32 0.0, %v7180
    %v7182 = vpop.f32.mrb[0].mxu0
    %7183 = vmatprep.mubr.bf16.mxu0 %v6726
    %7184 = vmatmul.mubr.bf16.gmra.mrb[0].mxu0 %v6470
    %v7185 = vpop.f32.mrb[0].mxu0
    %v7186 = vadd.f32 0.0, %v7185
    %v7187 = vpop.f32.mrb[0].mxu0
    %v7188 = vpop.f32.mrb[0].mxu0
    %v7189 = vadd.f32 0.0, %v7188
    %v7190 = vpop.f32.mrb[0].mxu0
    %7191 = vmatprep.mubr.bf16.mxu0 %v6729
    %7192 = vmatmul.mubr.bf16.gmra.mrb[0].mxu0 %v6473
    %v7193 = vpop.f32.mrb[0].mxu0
    %v7194 = vadd.f32 0.0, %v7193
    %v7195 = vpop.f32.mrb[0].mxu0
    %v7196 = vpop.f32.mrb[0].mxu0
    %v7197 = vadd.f32 0.0, %v7196
    %v7198 = vpop.f32.mrb[0].mxu0
    %7199 = vmatprep.mubr.bf16.mxu0 %v6732
    %7200 = vmatmul.mubr.bf16.gmra.mrb[0].mxu0 %v6476
    %v7201 = vpop.f32.mrb[0].mxu0
    %v7202 = vadd.f32 0.0, %v7201
    %v7203 = vpop.f32.mrb[0].mxu0
    %v7204 = vpop.f32.mrb[0].mxu0
    %v7205 = vadd.f32 0.0, %v7204
    %v7206 = vpop.f32.mrb[0].mxu0
    %7207 = vmatprep.mubr.bf16.mxu0 %v6735
    %7208 = vmatmul.mubr.bf16.gmra.mrb[0].mxu0 %v6479
    %v7209 = vpop.f32.mrb[0].mxu0
    %v7210 = vadd.f32 0.0, %v7209
    %v7211 = vpop.f32.mrb[0].mxu0
    %v7212 = vpop.f32.mrb[0].mxu0
    %v7213 = vadd.f32 0.0, %v7212
    %v7214 = vpop.f32.mrb[0].mxu0
    %7215 = vmatprep.mubr.bf16.mxu0 %v6738
    %7216 = vmatmul.mubr.bf16.gmra.mrb[0].mxu0 %v6482
    %v7217 = vpop.f32.mrb[0].mxu0
    %v7218 = vadd.f32 0.0, %v7217
    %v7219 = vpop.f32.mrb[0].mxu0
    %v7220 = vpop.f32.mrb[0].mxu0
    %v7221 = vadd.f32 0.0, %v7220
    %v7222 = vpop.f32.mrb[0].mxu0
    %7223 = vmatprep.mubr.bf16.mxu0 %v6741
    %7224 = vmatmul.mubr.bf16.gmra.mrb[0].mxu0 %v6485
    %v7225 = vpop.f32.mrb[0].mxu0
    %v7226 = vadd.f32 0.0, %v7225
    %v7227 = vpop.f32.mrb[0].mxu0
    %v7228 = vpop.f32.mrb[0].mxu0
    %v7229 = vadd.f32 0.0, %v7228
    %v7230 = vpop.f32.mrb[0].mxu0
    %7231 = vmatprep.mubr.bf16.mxu0 %v6744
    %7232 = vmatmul.mubr.bf16.gmra.mrb[0].mxu0 %v6488
    %v7233 = vpop.f32.mrb[0].mxu0
    %v7234 = vadd.f32 0.0, %v7233
    %v7235 = vpop.f32.mrb[0].mxu0
    %v7236 = vpop.f32.mrb[0].mxu0
    %v7237 = vadd.f32 0.0, %v7236
    %v7238 = vpop.f32.mrb[0].mxu0
    %7239 = vmatprep.mubr.bf16.mxu0 %v6747
    %7240 = vmatmul.mubr.bf16.gmra.mrb[0].mxu0 %v6491
    %v7241 = vpop.f32.mrb[0].mxu0
    %v7242 = vadd.f32 0.0, %v7241
    %v7243 = vpop.f32.mrb[0].mxu0
    %v7244 = vpop.f32.mrb[0].mxu0
    %v7245 = vadd.f32 0.0, %v7244
    %v7246 = vpop.f32.mrb[0].mxu0
    %7247 = vmatprep.mubr.bf16.mxu0 %v6750
    %7248 = vmatmul.mubr.bf16.gmra.mrb[0].mxu0 %v6494
    %v7249 = vpop.f32.mrb[0].mxu0
    %v7250 = vadd.f32 0.0, %v7249
    %v7251 = vpop.f32.mrb[0].mxu0
    %v7252 = vpop.f32.mrb[0].mxu0
    %v7253 = vadd.f32 0.0, %v7252
    %v7254 = vpop.f32.mrb[0].mxu0
    %7255 = vmatprep.mubr.bf16.mxu0 %v6753
    %7256 = vmatmul.mubr.bf16.gmra.mrb[0].mxu0 %v6497
    %v7257 = vpop.f32.mrb[0].mxu0
    %v7258 = vadd.f32 0.0, %v7257
    %v7259 = vpop.f32.mrb[0].mxu0
    %v7260 = vpop.f32.mrb[0].mxu0
    %v7261 = vadd.f32 0.0, %v7260
    %v7262 = vpop.f32.mrb[0].mxu0
    %7263 = vmatprep.mubr.bf16.mxu0 %v6756
    %7264 = vmatmul.mubr.bf16.gmra.mrb[0].mxu0 %v6500
    %v7265 = vpop.f32.mrb[0].mxu0
    %v7266 = vadd.f32 0.0, %v7265
    %v7267 = vpop.f32.mrb[0].mxu0
    %v7268 = vpop.f32.mrb[0].mxu0
    %v7269 = vadd.f32 0.0, %v7268
    %v7270 = vpop.f32.mrb[0].mxu0
    %7271 = vmatprep.mubr.bf16.mxu0 %v6759
    %7272 = vmatmul.mubr.bf16.gmra.mrb[0].mxu0 %v6503
    %v7273 = vpop.f32.mrb[0].mxu0
    %v7274 = vadd.f32 0.0, %v7273
    %v7275 = vpop.f32.mrb[0].mxu0
    %v7276 = vpop.f32.mrb[0].mxu0
    %v7277 = vadd.f32 0.0, %v7276
    %v7278 = vpop.f32.mrb[0].mxu0
    %7279 = vmatprep.mubr.bf16.mxu0 %v6762
    %7280 = vmatmul.mubr.bf16.gmra.mrb[0].mxu0 %v6506
    %v7281 = vpop.f32.mrb[0].mxu0
    %v7282 = vadd.f32 0.0, %v7281
    %v7283 = vpop.f32.mrb[0].mxu0
    %v7284 = vpop.f32.mrb[0].mxu0
    %v7285 = vadd.f32 0.0, %v7284
    %v7286 = vpop.f32.mrb[0].mxu0
    %7287 = vmatprep.mubr.bf16.mxu0 %v6765
    %7288 = vmatmul.mubr.bf16.gmra.mrb[0].mxu0 %v6509
    %v7289 = vpop.f32.mrb[0].mxu0
    %v7290 = vadd.f32 0.0, %v7289
    %v7291 = vpop.f32.mrb[0].mxu0
    %v7292 = vpop.f32.mrb[0].mxu0
    %v7293 = vadd.f32 0.0, %v7292
    %v7294 = vpop.f32.mrb[0].mxu0
    %7295 = vdwg.mxu0
    %7296 = vmatprep.subr.bf16.mxu0 0
    %7297 = vmatpush1.bf16.msra.mxu0 %v6891
    %7298 = vmatprep.subr.bf16.mxu0 0
    %7299 = vmatpush1.bf16.msra.mxu0 %v6892
    %7300 = vmatprep.subr.bf16.mxu0 0
    %7301 = vmatpush1.bf16.msra.mxu0 0
    %7302 = vmatprep.subr.bf16.mxu0 0
    %7303 = vmatpush1.bf16.msra.mxu0 0
    %7304 = vmatprep.subr.bf16.mxu0 0
    %7305 = vmatpush1.bf16.msra.mxu0 0
    %7306 = vmatprep.subr.bf16.mxu0 0
    %7307 = vmatpush1.bf16.msra.mxu0 0
    %7308 = vmatprep.subr.bf16.mxu0 0
    %7309 = vmatpush1.bf16.msra.mxu0 0
    %7310 = vmatprep.subr.bf16.mxu0 0
    %7311 = vmatpush1.bf16.msra.mxu0 0
    %7312 = vmatprep.subr.bf16.mxu0 0
    %7313 = vmatpush1.bf16.msra.mxu0 0
    %7314 = vmatprep.subr.bf16.mxu0 0
    %7315 = vmatpush1.bf16.msra.mxu0 0
    %7316 = vmatprep.subr.bf16.mxu0 0
    %7317 = vmatpush1.bf16.msra.mxu0 0
    %7318 = vmatprep.subr.bf16.mxu0 0
    %7319 = vmatpush1.bf16.msra.mxu0 0
    %7320 = vmatprep.subr.bf16.mxu0 0
    %7321 = vmatpush1.bf16.msra.mxu0 0
    %7322 = vmatprep.subr.bf16.mxu0 0
    %7323 = vmatpush1.bf16.msra.mxu0 0
    %7324 = vmatprep.subr.bf16.mxu0 0
    %7325 = vmatpush1.bf16.msra.mxu0 0
    %7326 = vmatprep.subr.bf16.mxu0 0
    %7327 = vmatpush1.bf16.msra.mxu0 0
    %7328 = vmatprep.mubr.bf16.mxu0 0
    %7329 = vmatmul.mubr.bf16.gmra.mrb[0].mxu0 %v6912
    %v7330 = vpop.f32.mrb[0].mxu0
    %v7331 = vadd.f32 %v7042, %v7330
    %v7332 = vpop.f32.mrb[0].mxu0
    %v7333 = vpop.f32.mrb[0].mxu0
    %v7334 = vadd.f32 %v7045, %v7333
    %v7335 = vpop.f32.mrb[0].mxu0
    %7336 = vmatprep.mubr.bf16.mxu0 0
    %7337 = vmatmul.mubr.bf16.gmra.mrb[0].mxu0 %v6915
    %v7338 = vpop.f32.mrb[0].mxu0
    %v7339 = vadd.f32 %v7050, %v7338
    %v7340 = vpop.f32.mrb[0].mxu0
    %v7341 = vpop.f32.mrb[0].mxu0
    %v7342 = vadd.f32 %v7053, %v7341
    %v7343 = vpop.f32.mrb[0].mxu0
    %7344 = vmatprep.mubr.bf16.mxu0 0
    %7345 = vmatmul.mubr.bf16.gmra.mrb[0].mxu0 %v6918
    %v7346 = vpop.f32.mrb[0].mxu0
    %v7347 = vadd.f32 %v7058, %v7346
    %v7348 = vpop.f32.mrb[0].mxu0
    %v7349 = vpop.f32.mrb[0].mxu0
    %v7350 = vadd.f32 %v7061, %v7349
    %v7351 = vpop.f32.mrb[0].mxu0
    %7352 = vmatprep.mubr.bf16.mxu0 0
    %7353 = vmatmul.mubr.bf16.gmra.mrb[0].mxu0 %v6921
    %v7354 = vpop.f32.mrb[0].mxu0
    %v7355 = vadd.f32 %v7066, %v7354
    %v7356 = vpop.f32.mrb[0].mxu0
    %v7357 = vpop.f32.mrb[0].mxu0
    %v7358 = vadd.f32 %v7069, %v7357
    %v7359 = vpop.f32.mrb[0].mxu0
    %7360 = vmatprep.mubr.bf16.mxu0 0
    %7361 = vmatmul.mubr.bf16.gmra.mrb[0].mxu0 %v6924
    %v7362 = vpop.f32.mrb[0].mxu0
    %v7363 = vadd.f32 %v7074, %v7362
    %v7364 = vpop.f32.mrb[0].mxu0
    %v7365 = vpop.f32.mrb[0].mxu0
    %v7366 = vadd.f32 %v7077, %v7365
    %v7367 = vpop.f32.mrb[0].mxu0
    %7368 = vmatprep.mubr.bf16.mxu0 0
    %7369 = vmatmul.mubr.bf16.gmra.mrb[0].mxu0 %v6927
    %v7370 = vpop.f32.mrb[0].mxu0
    %v7371 = vadd.f32 %v7082, %v7370
    %v7372 = vpop.f32.mrb[0].mxu0
    %v7373 = vpop.f32.mrb[0].mxu0
    %v7374 = vadd.f32 %v7085, %v7373
    %v7375 = vpop.f32.mrb[0].mxu0
    %7376 = vmatprep.mubr.bf16.mxu0 0
    %7377 = vmatmul.mubr.bf16.gmra.mrb[0].mxu0 %v6930
    %v7378 = vpop.f32.mrb[0].mxu0
    %v7379 = vadd.f32 %v7090, %v7378
    %v7380 = vpop.f32.mrb[0].mxu0
    %v7381 = vpop.f32.mrb[0].mxu0
    %v7382 = vadd.f32 %v7093, %v7381
    %v7383 = vpop.f32.mrb[0].mxu0
    %7384 = vmatprep.mubr.bf16.mxu0 0
    %7385 = vmatmul.mubr.bf16.gmra.mrb[0].mxu0 %v6933
    %v7386 = vpop.f32.mrb[0].mxu0
    %v7387 = vadd.f32 %v7098, %v7386
    %v7388 = vpop.f32.mrb[0].mxu0
    %v7389 = vpop.f32.mrb[0].mxu0
    %v7390 = vadd.f32 %v7101, %v7389
    %v7391 = vpop.f32.mrb[0].mxu0
    %7392 = vmatprep.mubr.bf16.mxu0 0
    %7393 = vmatmul.mubr.bf16.gmra.mrb[0].mxu0 %v6936
    %v7394 = vpop.f32.mrb[0].mxu0
    %v7395 = vadd.f32 %v7106, %v7394
    %v7396 = vpop.f32.mrb[0].mxu0
    %v7397 = vpop.f32.mrb[0].mxu0
    %v7398 = vadd.f32 %v7109, %v7397
    %v7399 = vpop.f32.mrb[0].mxu0
    %7400 = vmatprep.mubr.bf16.mxu0 0
    %7401 = vmatmul.mubr.bf16.gmra.mrb[0].mxu0 %v6939
    %v7402 = vpop.f32.mrb[0].mxu0
    %v7403 = vadd.f32 %v7114, %v7402
    %v7404 = vpop.f32.mrb[0].mxu0
    %v7405 = vpop.f32.mrb[0].mxu0
    %v7406 = vadd.f32 %v7117, %v7405
    %v7407 = vpop.f32.mrb[0].mxu0
    %7408 = vmatprep.mubr.bf16.mxu0 0
    %7409 = vmatmul.mubr.bf16.gmra.mrb[0].mxu0 %v6942
    %v7410 = vpop.f32.mrb[0].mxu0
    %v7411 = vadd.f32 %v7122, %v7410
    %v7412 = vpop.f32.mrb[0].mxu0
    %v7413 = vpop.f32.mrb[0].mxu0
    %v7414 = vadd.f32 %v7125, %v7413
    %v7415 = vpop.f32.mrb[0].mxu0
    %7416 = vmatprep.mubr.bf16.mxu0 0
    %7417 = vmatmul.mubr.bf16.gmra.mrb[0].mxu0 %v6945
    %v7418 = vpop.f32.mrb[0].mxu0
    %v7419 = vadd.f32 %v7130, %v7418
    %v7420 = vpop.f32.mrb[0].mxu0
    %v7421 = vpop.f32.mrb[0].mxu0
    %v7422 = vadd.f32 %v7133, %v7421
    %v7423 = vpop.f32.mrb[0].mxu0
    %7424 = vmatprep.mubr.bf16.mxu0 0
    %7425 = vmatmul.mubr.bf16.gmra.mrb[0].mxu0 %v6948
    %v7426 = vpop.f32.mrb[0].mxu0
    %v7427 = vadd.f32 %v7138, %v7426
    %v7428 = vpop.f32.mrb[0].mxu0
    %v7429 = vpop.f32.mrb[0].mxu0
    %v7430 = vadd.f32 %v7141, %v7429
    %v7431 = vpop.f32.mrb[0].mxu0
    %7432 = vmatprep.mubr.bf16.mxu0 0
    %7433 = vmatmul.mubr.bf16.gmra.mrb[0].mxu0 %v6951
    %v7434 = vpop.f32.mrb[0].mxu0
    %v7435 = vadd.f32 %v7146, %v7434
    %v7436 = vpop.f32.mrb[0].mxu0
    %v7437 = vpop.f32.mrb[0].mxu0
    %v7438 = vadd.f32 %v7149, %v7437
    %v7439 = vpop.f32.mrb[0].mxu0
    %7440 = vmatprep.mubr.bf16.mxu0 0
    %7441 = vmatmul.mubr.bf16.gmra.mrb[0].mxu0 %v6954
    %v7442 = vpop.f32.mrb[0].mxu0
    %v7443 = vadd.f32 %v7154, %v7442
    %v7444 = vpop.f32.mrb[0].mxu0
    %v7445 = vpop.f32.mrb[0].mxu0
    %v7446 = vadd.f32 %v7157, %v7445
    %v7447 = vpop.f32.mrb[0].mxu0
    %7448 = vmatprep.mubr.bf16.mxu0 0
    %7449 = vmatmul.mubr.bf16.gmra.mrb[0].mxu0 %v6957
    %v7450 = vpop.f32.mrb[0].mxu0
    %v7451 = vadd.f32 %v7162, %v7450
    %v7452 = vpop.f32.mrb[0].mxu0
    %v7453 = vpop.f32.mrb[0].mxu0
    %v7454 = vadd.f32 %v7165, %v7453
    %v7455 = vpop.f32.mrb[0].mxu0
    %7456 = vmatprep.mubr.bf16.mxu0 0
    %7457 = vmatmul.mubr.bf16.gmra.mrb[0].mxu0 %v6960
    %v7458 = vpop.f32.mrb[0].mxu0
    %v7459 = vadd.f32 %v7170, %v7458
    %v7460 = vpop.f32.mrb[0].mxu0
    %v7461 = vpop.f32.mrb[0].mxu0
    %v7462 = vadd.f32 %v7173, %v7461
    %v7463 = vpop.f32.mrb[0].mxu0
    %7464 = vmatprep.mubr.bf16.mxu0 0
    %7465 = vmatmul.mubr.bf16.gmra.mrb[0].mxu0 %v6963
    %v7466 = vpop.f32.mrb[0].mxu0
    %v7467 = vadd.f32 %v7178, %v7466
    %v7468 = vpop.f32.mrb[0].mxu0
    %v7469 = vpop.f32.mrb[0].mxu0
    %v7470 = vadd.f32 %v7181, %v7469
    %v7471 = vpop.f32.mrb[0].mxu0
    %7472 = vmatprep.mubr.bf16.mxu0 0
    %7473 = vmatmul.mubr.bf16.gmra.mrb[0].mxu0 %v6966
    %v7474 = vpop.f32.mrb[0].mxu0
    %v7475 = vadd.f32 %v7186, %v7474
    %v7476 = vpop.f32.mrb[0].mxu0
    %v7477 = vpop.f32.mrb[0].mxu0
    %v7478 = vadd.f32 %v7189, %v7477
    %v7479 = vpop.f32.mrb[0].mxu0
    %7480 = vmatprep.mubr.bf16.mxu0 0
    %7481 = vmatmul.mubr.bf16.gmra.mrb[0].mxu0 %v6969
    %v7482 = vpop.f32.mrb[0].mxu0
    %v7483 = vadd.f32 %v7194, %v7482
    %v7484 = vpop.f32.mrb[0].mxu0
    %v7485 = vpop.f32.mrb[0].mxu0
    %v7486 = vadd.f32 %v7197, %v7485
    %v7487 = vpop.f32.mrb[0].mxu0
    %7488 = vmatprep.mubr.bf16.mxu0 0
    %7489 = vmatmul.mubr.bf16.gmra.mrb[0].mxu0 %v6972
    %v7490 = vpop.f32.mrb[0].mxu0
    %v7491 = vadd.f32 %v7202, %v7490
    %v7492 = vpop.f32.mrb[0].mxu0
    %v7493 = vpop.f32.mrb[0].mxu0
    %v7494 = vadd.f32 %v7205, %v7493
    %v7495 = vpop.f32.mrb[0].mxu0
    %7496 = vmatprep.mubr.bf16.mxu0 0
    %7497 = vmatmul.mubr.bf16.gmra.mrb[0].mxu0 %v6975
    %v7498 = vpop.f32.mrb[0].mxu0
    %v7499 = vadd.f32 %v7210, %v7498
    %v7500 = vpop.f32.mrb[0].mxu0
    %v7501 = vpop.f32.mrb[0].mxu0
    %v7502 = vadd.f32 %v7213, %v7501
    %v7503 = vpop.f32.mrb[0].mxu0
    %7504 = vmatprep.mubr.bf16.mxu0 0
    %7505 = vmatmul.mubr.bf16.gmra.mrb[0].mxu0 %v6978
    %v7506 = vpop.f32.mrb[0].mxu0
    %v7507 = vadd.f32 %v7218, %v7506
    %v7508 = vpop.f32.mrb[0].mxu0
    %v7509 = vpop.f32.mrb[0].mxu0
    %v7510 = vadd.f32 %v7221, %v7509
    %v7511 = vpop.f32.mrb[0].mxu0
    %7512 = vmatprep.mubr.bf16.mxu0 0
    %7513 = vmatmul.mubr.bf16.gmra.mrb[0].mxu0 %v6981
    %v7514 = vpop.f32.mrb[0].mxu0
    %v7515 = vadd.f32 %v7226, %v7514
    %v7516 = vpop.f32.mrb[0].mxu0
    %v7517 = vpop.f32.mrb[0].mxu0
    %v7518 = vadd.f32 %v7229, %v7517
    %v7519 = vpop.f32.mrb[0].mxu0
    %7520 = vmatprep.mubr.bf16.mxu0 0
    %7521 = vmatmul.mubr.bf16.gmra.mrb[0].mxu0 %v6984
    %v7522 = vpop.f32.mrb[0].mxu0
    %v7523 = vadd.f32 %v7234, %v7522
    %v7524 = vpop.f32.mrb[0].mxu0
    %v7525 = vpop.f32.mrb[0].mxu0
    %v7526 = vadd.f32 %v7237, %v7525
    %v7527 = vpop.f32.mrb[0].mxu0
    %7528 = vmatprep.mubr.bf16.mxu0 0
    %7529 = vmatmul.mubr.bf16.gmra.mrb[0].mxu0 %v6987
    %v7530 = vpop.f32.mrb[0].mxu0
    %v7531 = vadd.f32 %v7242, %v7530
    %v7532 = vpop.f32.mrb[0].mxu0
    %v7533 = vpop.f32.mrb[0].mxu0
    %v7534 = vadd.f32 %v7245, %v7533
    %v7535 = vpop.f32.mrb[0].mxu0
    %7536 = vmatprep.mubr.bf16.mxu0 0
    %7537 = vmatmul.mubr.bf16.gmra.mrb[0].mxu0 %v6990
    %v7538 = vpop.f32.mrb[0].mxu0
    %v7539 = vadd.f32 %v7250, %v7538
    %v7540 = vpop.f32.mrb[0].mxu0
    %v7541 = vpop.f32.mrb[0].mxu0
    %v7542 = vadd.f32 %v7253, %v7541
    %v7543 = vpop.f32.mrb[0].mxu0
    %7544 = vmatprep.mubr.bf16.mxu0 0
    %7545 = vmatmul.mubr.bf16.gmra.mrb[0].mxu0 %v6993
    %v7546 = vpop.f32.mrb[0].mxu0
    %v7547 = vadd.f32 %v7258, %v7546
    %v7548 = vpop.f32.mrb[0].mxu0
    %v7549 = vpop.f32.mrb[0].mxu0
    %v7550 = vadd.f32 %v7261, %v7549
    %v7551 = vpop.f32.mrb[0].mxu0
    %7552 = vmatprep.mubr.bf16.mxu0 0
    %7553 = vmatmul.mubr.bf16.gmra.mrb[0].mxu0 %v6996
    %v7554 = vpop.f32.mrb[0].mxu0
    %v7555 = vadd.f32 %v7266, %v7554
    %v7556 = vpop.f32.mrb[0].mxu0
    %v7557 = vpop.f32.mrb[0].mxu0
    %v7558 = vadd.f32 %v7269, %v7557
    %v7559 = vpop.f32.mrb[0].mxu0
    %7560 = vmatprep.mubr.bf16.mxu0 0
    %7561 = vmatmul.mubr.bf16.gmra.mrb[0].mxu0 %v6999
    %v7562 = vpop.f32.mrb[0].mxu0
    %v7563 = vadd.f32 %v7274, %v7562
    %v7564 = vpop.f32.mrb[0].mxu0
    %v7565 = vpop.f32.mrb[0].mxu0
    %v7566 = vadd.f32 %v7277, %v7565
    %v7567 = vpop.f32.mrb[0].mxu0
    %7568 = vmatprep.mubr.bf16.mxu0 0
    %7569 = vmatmul.mubr.bf16.gmra.mrb[0].mxu0 %v7002
    %v7570 = vpop.f32.mrb[0].mxu0
    %v7571 = vadd.f32 %v7282, %v7570
    %v7572 = vpop.f32.mrb[0].mxu0
    %v7573 = vpop.f32.mrb[0].mxu0
    %v7574 = vadd.f32 %v7285, %v7573
    %v7575 = vpop.f32.mrb[0].mxu0
    %7576 = vmatprep.mubr.bf16.mxu0 0
    %7577 = vmatmul.mubr.bf16.gmra.mrb[0].mxu0 %v7005
    %v7578 = vpop.f32.mrb[0].mxu0
    %v7579 = vadd.f32 %v7290, %v7578
    %v7580 = vpop.f32.mrb[0].mxu0
    %v7581 = vpop.f32.mrb[0].mxu0
    %v7582 = vadd.f32 %v7293, %v7581
    %v7583 = vpop.f32.mrb[0].mxu0
    %7584 = vdwg.mxu0
    %7649 = vrot.lane.b32.xlu0 %v7331, 64
    %v7650 = vpop.permute.xlu0 %7649
    %7651 = vrot.lane.b32.xlu0 %v7334, 64
    %v7652 = vpop.permute.xlu0 %7651
    %7653 = vrot.lane.b32.xlu0 %v7339, 64
    %v7654 = vpop.permute.xlu0 %7653
    %7655 = vrot.lane.b32.xlu0 %v7342, 64
    %v7656 = vpop.permute.xlu0 %7655
    %7657 = vrot.lane.b32.xlu0 %v7347, 64
    %v7658 = vpop.permute.xlu0 %7657
    %7659 = vrot.lane.b32.xlu0 %v7350, 64
    %v7660 = vpop.permute.xlu0 %7659
    %7661 = vrot.lane.b32.xlu0 %v7355, 64
    %v7662 = vpop.permute.xlu0 %7661
    %7663 = vrot.lane.b32.xlu0 %v7358, 64
    %v7664 = vpop.permute.xlu0 %7663
    %7665 = vrot.lane.b32.xlu0 %v7363, 64
    %v7666 = vpop.permute.xlu0 %7665
    %7667 = vrot.lane.b32.xlu0 %v7366, 64
    %v7668 = vpop.permute.xlu0 %7667
    %7669 = vrot.lane.b32.xlu0 %v7371, 64
    %v7670 = vpop.permute.xlu0 %7669
    %7671 = vrot.lane.b32.xlu0 %v7374, 64
    %v7672 = vpop.permute.xlu0 %7671
    %7673 = vrot.lane.b32.xlu0 %v7379, 64
    %v7674 = vpop.permute.xlu0 %7673
    %7675 = vrot.lane.b32.xlu0 %v7382, 64
    %v7676 = vpop.permute.xlu0 %7675
    %7677 = vrot.lane.b32.xlu0 %v7387, 64
    %v7678 = vpop.permute.xlu0 %7677
    %7679 = vrot.lane.b32.xlu0 %v7390, 64
    %v7680 = vpop.permute.xlu0 %7679
    %7681 = vrot.lane.b32.xlu0 %v7395, 64
    %v7682 = vpop.permute.xlu0 %7681
    %7683 = vrot.lane.b32.xlu0 %v7398, 64
    %v7684 = vpop.permute.xlu0 %7683
    %7685 = vrot.lane.b32.xlu0 %v7403, 64
    %v7686 = vpop.permute.xlu0 %7685
    %7687 = vrot.lane.b32.xlu0 %v7406, 64
    %v7688 = vpop.permute.xlu0 %7687
    %7689 = vrot.lane.b32.xlu0 %v7411, 64
    %v7690 = vpop.permute.xlu0 %7689
    %7691 = vrot.lane.b32.xlu0 %v7414, 64
    %v7692 = vpop.permute.xlu0 %7691
    %7693 = vrot.lane.b32.xlu0 %v7419, 64
    %v7694 = vpop.permute.xlu0 %7693
    %7695 = vrot.lane.b32.xlu0 %v7422, 64
    %v7696 = vpop.permute.xlu0 %7695
    %7697 = vrot.lane.b32.xlu0 %v7427, 64
    %v7698 = vpop.permute.xlu0 %7697
    %7699 = vrot.lane.b32.xlu0 %v7430, 64
    %v7700 = vpop.permute.xlu0 %7699
    %7701 = vrot.lane.b32.xlu0 %v7435, 64
    %v7702 = vpop.permute.xlu0 %7701
    %7703 = vrot.lane.b32.xlu0 %v7438, 64
    %v7704 = vpop.permute.xlu0 %7703
    %7705 = vrot.lane.b32.xlu0 %v7443, 64
    %v7706 = vpop.permute.xlu0 %7705
    %7707 = vrot.lane.b32.xlu0 %v7446, 64
    %v7708 = vpop.permute.xlu0 %7707
    %7709 = vrot.lane.b32.xlu0 %v7451, 64
    %v7710 = vpop.permute.xlu0 %7709
    %7711 = vrot.lane.b32.xlu0 %v7454, 64
    %v7712 = vpop.permute.xlu0 %7711
    %7713 = vrot.lane.b32.xlu0 %v7459, 64
    %v7714 = vpop.permute.xlu0 %7713
    %7715 = vrot.lane.b32.xlu0 %v7462, 64
    %v7716 = vpop.permute.xlu0 %7715
    %7717 = vrot.lane.b32.xlu0 %v7467, 64
    %v7718 = vpop.permute.xlu0 %7717
    %7719 = vrot.lane.b32.xlu0 %v7470, 64
    %v7720 = vpop.permute.xlu0 %7719
    %7721 = vrot.lane.b32.xlu0 %v7475, 64
    %v7722 = vpop.permute.xlu0 %7721
    %7723 = vrot.lane.b32.xlu0 %v7478, 64
    %v7724 = vpop.permute.xlu0 %7723
    %7725 = vrot.lane.b32.xlu0 %v7483, 64
    %v7726 = vpop.permute.xlu0 %7725
    %7727 = vrot.lane.b32.xlu0 %v7486, 64
    %v7728 = vpop.permute.xlu0 %7727
    %7729 = vrot.lane.b32.xlu0 %v7491, 64
    %v7730 = vpop.permute.xlu0 %7729
    %7731 = vrot.lane.b32.xlu0 %v7494, 64
    %v7732 = vpop.permute.xlu0 %7731
    %7733 = vrot.lane.b32.xlu0 %v7499, 64
    %v7734 = vpop.permute.xlu0 %7733
    %7735 = vrot.lane.b32.xlu0 %v7502, 64
    %v7736 = vpop.permute.xlu0 %7735
    %7737 = vrot.lane.b32.xlu0 %v7507, 64
    %v7738 = vpop.permute.xlu0 %7737
    %7739 = vrot.lane.b32.xlu0 %v7510, 64
    %v7740 = vpop.permute.xlu0 %7739
    %7741 = vrot.lane.b32.xlu0 %v7515, 64
    %v7742 = vpop.permute.xlu0 %7741
    %7743 = vrot.lane.b32.xlu0 %v7518, 64
    %v7744 = vpop.permute.xlu0 %7743
    %7745 = vrot.lane.b32.xlu0 %v7523, 64
    %v7746 = vpop.permute.xlu0 %7745
    %7747 = vrot.lane.b32.xlu0 %v7526, 64
    %v7748 = vpop.permute.xlu0 %7747
    %7749 = vrot.lane.b32.xlu0 %v7531, 64
    %v7750 = vpop.permute.xlu0 %7749
    %7751 = vrot.lane.b32.xlu0 %v7534, 64
    %v7752 = vpop.permute.xlu0 %7751
    %7753 = vrot.lane.b32.xlu0 %v7539, 64
    %v7754 = vpop.permute.xlu0 %7753
    %7755 = vrot.lane.b32.xlu0 %v7542, 64
    %v7756 = vpop.permute.xlu0 %7755
    %7757 = vrot.lane.b32.xlu0 %v7547, 64
    %v7758 = vpop.permute.xlu0 %7757
    %7759 = vrot.lane.b32.xlu0 %v7550, 64
    %v7760 = vpop.permute.xlu0 %7759
    %7761 = vrot.lane.b32.xlu0 %v7555, 64
    %v7762 = vpop.permute.xlu0 %7761
    %7763 = vrot.lane.b32.xlu0 %v7558, 64
    %v7764 = vpop.permute.xlu0 %7763
    %7765 = vrot.lane.b32.xlu0 %v7563, 64
    %v7766 = vpop.permute.xlu0 %7765
    %7767 = vrot.lane.b32.xlu0 %v7566, 64
    %v7768 = vpop.permute.xlu0 %7767
    %7769 = vrot.lane.b32.xlu0 %v7571, 64
    %v7770 = vpop.permute.xlu0 %7769
    %7771 = vrot.lane.b32.xlu0 %v7574, 64
    %v7772 = vpop.permute.xlu0 %7771
    %7773 = vrot.lane.b32.xlu0 %v7579, 64
    %v7774 = vpop.permute.xlu0 %7773
    %7775 = vrot.lane.b32.xlu0 %v7582, 64
    %v7776 = vpop.permute.xlu0 %7775
    %v7841 = vadd.f32 %v3806, %v7650
    %v7842 = vadd.f32 %v3809, %v7652
    %v7843 = vadd.f32 %v3814, %v7654
    %v7844 = vadd.f32 %v3817, %v7656
    %v7845 = vadd.f32 %v3822, %v7658
    %v7846 = vadd.f32 %v3825, %v7660
    %v7847 = vadd.f32 %v3830, %v7662
    %v7848 = vadd.f32 %v3833, %v7664
    %v7849 = vadd.f32 %v3838, %v7666
    %v7850 = vadd.f32 %v3841, %v7668
    %v7851 = vadd.f32 %v3846, %v7670
    %v7852 = vadd.f32 %v3849, %v7672
    %v7853 = vadd.f32 %v3854, %v7674
    %v7854 = vadd.f32 %v3857, %v7676
    %v7855 = vadd.f32 %v3862, %v7678
    %v7856 = vadd.f32 %v3865, %v7680
    %v7857 = vadd.f32 %v3870, %v7682
    %v7858 = vadd.f32 %v3873, %v7684
    %v7859 = vadd.f32 %v3878, %v7686
    %v7860 = vadd.f32 %v3881, %v7688
    %v7861 = vadd.f32 %v3886, %v7690
    %v7862 = vadd.f32 %v3889, %v7692
    %v7863 = vadd.f32 %v3894, %v7694
    %v7864 = vadd.f32 %v3897, %v7696
    %v7865 = vadd.f32 %v3902, %v7698
    %v7866 = vadd.f32 %v3905, %v7700
    %v7867 = vadd.f32 %v3910, %v7702
    %v7868 = vadd.f32 %v3913, %v7704
    %v7869 = vadd.f32 %v3918, %v7706
    %v7870 = vadd.f32 %v3921, %v7708
    %v7871 = vadd.f32 %v3926, %v7710
    %v7872 = vadd.f32 %v3929, %v7712
    %v7873 = vadd.f32 %v3934, %v7714
    %v7874 = vadd.f32 %v3937, %v7716
    %v7875 = vadd.f32 %v3942, %v7718
    %v7876 = vadd.f32 %v3945, %v7720
    %v7877 = vadd.f32 %v3950, %v7722
    %v7878 = vadd.f32 %v3953, %v7724
    %v7879 = vadd.f32 %v3958, %v7726
    %v7880 = vadd.f32 %v3961, %v7728
    %v7881 = vadd.f32 %v3966, %v7730
    %v7882 = vadd.f32 %v3969, %v7732
    %v7883 = vadd.f32 %v3974, %v7734
    %v7884 = vadd.f32 %v3977, %v7736
    %v7885 = vadd.f32 %v3982, %v7738
    %v7886 = vadd.f32 %v3985, %v7740
    %v7887 = vadd.f32 %v3990, %v7742
    %v7888 = vadd.f32 %v3993, %v7744
    %v7889 = vadd.f32 %v3998, %v7746
    %v7890 = vadd.f32 %v4001, %v7748
    %v7891 = vadd.f32 %v4006, %v7750
    %v7892 = vadd.f32 %v4009, %v7752
    %v7893 = vadd.f32 %v4014, %v7754
    %v7894 = vadd.f32 %v4017, %v7756
    %v7895 = vadd.f32 %v4022, %v7758
    %v7896 = vadd.f32 %v4025, %v7760
    %v7897 = vadd.f32 %v4030, %v7762
    %v7898 = vadd.f32 %v4033, %v7764
    %v7899 = vadd.f32 %v4038, %v7766
    %v7900 = vadd.f32 %v4041, %v7768
    %v7901 = vadd.f32 %v4046, %v7770
    %v7902 = vadd.f32 %v4049, %v7772
    %v7903 = vadd.f32 %v4054, %v7774
    %v7904 = vadd.f32 %v4057, %v7776
    %v7905 = vtanh.pop %v7841
    %v7906 = vtanh.pop %v7842
    %v7907 = vtanh.pop %v7843
    %v7908 = vtanh.pop %v7844
    %v7909 = vtanh.pop %v7845
    %v7910 = vtanh.pop %v7846
    %v7911 = vtanh.pop %v7847
    %v7912 = vtanh.pop %v7848
    %v7913 = vtanh.pop %v7849
    %v7914 = vtanh.pop %v7850
    %v7915 = vtanh.pop %v7851
    %v7916 = vtanh.pop %v7852
    %v7917 = vtanh.pop %v7853
    %v7918 = vtanh.pop %v7854
    %v7919 = vtanh.pop %v7855
    %v7920 = vtanh.pop %v7856
    %v7921 = vtanh.pop %v7857
    %v7922 = vtanh.pop %v7858
    %v7923 = vtanh.pop %v7859
    %v7924 = vtanh.pop %v7860
    %v7925 = vtanh.pop %v7861
    %v7926 = vtanh.pop %v7862
    %v7927 = vtanh.pop %v7863
    %v7928 = vtanh.pop %v7864
    %v7929 = vtanh.pop %v7865
    %v7930 = vtanh.pop %v7866
    %v7931 = vtanh.pop %v7867
    %v7932 = vtanh.pop %v7868
    %v7933 = vtanh.pop %v7869
    %v7934 = vtanh.pop %v7870
    %v7935 = vtanh.pop %v7871
    %v7936 = vtanh.pop %v7872
    %v7937 = vtanh.pop %v7873
    %v7938 = vtanh.pop %v7874
    %v7939 = vtanh.pop %v7875
    %v7940 = vtanh.pop %v7876
    %v7941 = vtanh.pop %v7877
    %v7942 = vtanh.pop %v7878
    %v7943 = vtanh.pop %v7879
    %v7944 = vtanh.pop %v7880
    %v7945 = vtanh.pop %v7881
    %v7946 = vtanh.pop %v7882
    %v7947 = vtanh.pop %v7883
    %v7948 = vtanh.pop %v7884
    %v7949 = vtanh.pop %v7885
    %v7950 = vtanh.pop %v7886
    %v7951 = vtanh.pop %v7887
    %v7952 = vtanh.pop %v7888
    %v7953 = vtanh.pop %v7889
    %v7954 = vtanh.pop %v7890
    %v7955 = vtanh.pop %v7891
    %v7956 = vtanh.pop %v7892
    %v7957 = vtanh.pop %v7893
    %v7958 = vtanh.pop %v7894
    %v7959 = vtanh.pop %v7895
    %v7960 = vtanh.pop %v7896
    %v7961 = vtanh.pop %v7897
    %v7962 = vtanh.pop %v7898
    %v7963 = vtanh.pop %v7899
    %v7964 = vtanh.pop %v7900
    %v7965 = vtanh.pop %v7901
    %v7966 = vtanh.pop %v7902
    %v7967 = vtanh.pop %v7903
    %v7968 = vtanh.pop %v7904
    %v7969 = vsub.f32 1.0, %v4317
    %v7970 = vsub.f32 1.0, %v4319
    %v7971 = vsub.f32 1.0, %v4321
    %v7972 = vsub.f32 1.0, %v4323
    %v7973 = vsub.f32 1.0, %v4325
    %v7974 = vsub.f32 1.0, %v4327
    %v7975 = vsub.f32 1.0, %v4329
    %v7976 = vsub.f32 1.0, %v4331
    %v7977 = vsub.f32 1.0, %v4333
    %v7978 = vsub.f32 1.0, %v4335
    %v7979 = vsub.f32 1.0, %v4337
    %v7980 = vsub.f32 1.0, %v4339
    %v7981 = vsub.f32 1.0, %v4341
    %v7982 = vsub.f32 1.0, %v4343
    %v7983 = vsub.f32 1.0, %v4345
    %v7984 = vsub.f32 1.0, %v4347
    %v7985 = vsub.f32 1.0, %v4349
    %v7986 = vsub.f32 1.0, %v4351
    %v7987 = vsub.f32 1.0, %v4353
    %v7988 = vsub.f32 1.0, %v4355
    %v7989 = vsub.f32 1.0, %v4357
    %v7990 = vsub.f32 1.0, %v4359
    %v7991 = vsub.f32 1.0, %v4361
    %v7992 = vsub.f32 1.0, %v4363
    %v7993 = vsub.f32 1.0, %v4365
    %v7994 = vsub.f32 1.0, %v4367
    %v7995 = vsub.f32 1.0, %v4369
    %v7996 = vsub.f32 1.0, %v4371
    %v7997 = vsub.f32 1.0, %v4373
    %v7998 = vsub.f32 1.0, %v4375
    %v7999 = vsub.f32 1.0, %v4377
    %v8000 = vsub.f32 1.0, %v4379
    %v8001 = vsub.f32 1.0, %v4381
    %v8002 = vsub.f32 1.0, %v4383
    %v8003 = vsub.f32 1.0, %v4385
    %v8004 = vsub.f32 1.0, %v4387
    %v8005 = vsub.f32 1.0, %v4389
    %v8006 = vsub.f32 1.0, %v4391
    %v8007 = vsub.f32 1.0, %v4393
    %v8008 = vsub.f32 1.0, %v4395
    %v8009 = vsub.f32 1.0, %v4397
    %v8010 = vsub.f32 1.0, %v4399
    %v8011 = vsub.f32 1.0, %v4401
    %v8012 = vsub.f32 1.0, %v4403
    %v8013 = vsub.f32 1.0, %v4405
    %v8014 = vsub.f32 1.0, %v4407
    %v8015 = vsub.f32 1.0, %v4409
    %v8016 = vsub.f32 1.0, %v4411
    %v8017 = vsub.f32 1.0, %v4413
    %v8018 = vsub.f32 1.0, %v4415
    %v8019 = vsub.f32 1.0, %v4417
    %v8020 = vsub.f32 1.0, %v4419
    %v8021 = vsub.f32 1.0, %v4421
    %v8022 = vsub.f32 1.0, %v4423
    %v8023 = vsub.f32 1.0, %v4425
    %v8024 = vsub.f32 1.0, %v4427
    %v8025 = vsub.f32 1.0, %v4429
    %v8026 = vsub.f32 1.0, %v4431
    %v8027 = vsub.f32 1.0, %v4433
    %v8028 = vsub.f32 1.0, %v4435
    %v8029 = vsub.f32 1.0, %v4437
    %v8030 = vsub.f32 1.0, %v4439
    %v8031 = vsub.f32 1.0, %v4441
    %v8032 = vsub.f32 1.0, %v4443
    %v8033 = vmul.f32 %v7969, %v322
    %v8034 = vmul.f32 %v7970, %v324
    %v8035 = vmul.f32 %v7971, %v327
    %v8036 = vmul.f32 %v7972, %v329
    %v8037 = vmul.f32 %v7973, %v332
    %v8038 = vmul.f32 %v7974, %v334
    %v8039 = vmul.f32 %v7975, %v337
    %v8040 = vmul.f32 %v7976, %v339
    %v8041 = vmul.f32 %v7977, %v342
    %v8042 = vmul.f32 %v7978, %v344
    %v8043 = vmul.f32 %v7979, %v347
    %v8044 = vmul.f32 %v7980, %v349
    %v8045 = vmul.f32 %v7981, %v352
    %v8046 = vmul.f32 %v7982, %v354
    %v8047 = vmul.f32 %v7983, %v357
    %v8048 = vmul.f32 %v7984, %v359
    %v8049 = vmul.f32 %v7985, %v362
    %v8050 = vmul.f32 %v7986, %v364
    %v8051 = vmul.f32 %v7987, %v367
    %v8052 = vmul.f32 %v7988, %v369
    %v8053 = vmul.f32 %v7989, %v372
    %v8054 = vmul.f32 %v7990, %v374
    %v8055 = vmul.f32 %v7991, %v377
    %v8056 = vmul.f32 %v7992, %v379
    %v8057 = vmul.f32 %v7993, %v382
    %v8058 = vmul.f32 %v7994, %v384
    %v8059 = vmul.f32 %v7995, %v387
    %v8060 = vmul.f32 %v7996, %v389
    %v8061 = vmul.f32 %v7997, %v392
    %v8062 = vmul.f32 %v7998, %v394
    %v8063 = vmul.f32 %v7999, %v397
    %v8064 = vmul.f32 %v8000, %v399
    %v8065 = vmul.f32 %v8001, %v402
    %v8066 = vmul.f32 %v8002, %v404
    %v8067 = vmul.f32 %v8003, %v407
    %v8068 = vmul.f32 %v8004, %v409
    %v8069 = vmul.f32 %v8005, %v412
    %v8070 = vmul.f32 %v8006, %v414
    %v8071 = vmul.f32 %v8007, %v417
    %v8072 = vmul.f32 %v8008, %v419
    %v8073 = vmul.f32 %v8009, %v422
    %v8074 = vmul.f32 %v8010, %v424
    %v8075 = vmul.f32 %v8011, %v427
    %v8076 = vmul.f32 %v8012, %v429
    %v8077 = vmul.f32 %v8013, %v432
    %v8078 = vmul.f32 %v8014, %v434
    %v8079 = vmul.f32 %v8015, %v437
    %v8080 = vmul.f32 %v8016, %v439
    %v8081 = vmul.f32 %v8017, %v442
    %v8082 = vmul.f32 %v8018, %v444
    %v8083 = vmul.f32 %v8019, %v447
    %v8084 = vmul.f32 %v8020, %v449
    %v8085 = vmul.f32 %v8021, %v452
    %v8086 = vmul.f32 %v8022, %v454
    %v8087 = vmul.f32 %v8023, %v457
    %v8088 = vmul.f32 %v8024, %v459
    %v8089 = vmul.f32 %v8025, %v462
    %v8090 = vmul.f32 %v8026, %v464
    %v8091 = vmul.f32 %v8027, %v467
    %v8092 = vmul.f32 %v8028, %v469
    %v8093 = vmul.f32 %v8029, %v472
    %v8094 = vmul.f32 %v8030, %v474
    %v8095 = vmul.f32 %v8031, %v477
    %v8096 = vmul.f32 %v8032, %v479
    %8161 = vrot.lane.b32.xlu0 %v7905, 64
    %v8162 = vpop.permute.xlu0 %8161
    %8163 = vrot.lane.b32.xlu0 %v7906, 64
    %v8164 = vpop.permute.xlu0 %8163
    %8165 = vrot.lane.b32.xlu0 %v7907, 64
    %v8166 = vpop.permute.xlu0 %8165
    %8167 = vrot.lane.b32.xlu0 %v7908, 64
    %v8168 = vpop.permute.xlu0 %8167
    %8169 = vrot.lane.b32.xlu0 %v7909, 64
    %v8170 = vpop.permute.xlu0 %8169
    %8171 = vrot.lane.b32.xlu0 %v7910, 64
    %v8172 = vpop.permute.xlu0 %8171
    %8173 = vrot.lane.b32.xlu0 %v7911, 64
    %v8174 = vpop.permute.xlu0 %8173
    %8175 = vrot.lane.b32.xlu0 %v7912, 64
    %v8176 = vpop.permute.xlu0 %8175
    %8177 = vrot.lane.b32.xlu0 %v7913, 64
    %v8178 = vpop.permute.xlu0 %8177
    %8179 = vrot.lane.b32.xlu0 %v7914, 64
    %v8180 = vpop.permute.xlu0 %8179
    %8181 = vrot.lane.b32.xlu0 %v7915, 64
    %v8182 = vpop.permute.xlu0 %8181
    %8183 = vrot.lane.b32.xlu0 %v7916, 64
    %v8184 = vpop.permute.xlu0 %8183
    %8185 = vrot.lane.b32.xlu0 %v7917, 64
    %v8186 = vpop.permute.xlu0 %8185
    %8187 = vrot.lane.b32.xlu0 %v7918, 64
    %v8188 = vpop.permute.xlu0 %8187
    %8189 = vrot.lane.b32.xlu0 %v7919, 64
    %v8190 = vpop.permute.xlu0 %8189
    %8191 = vrot.lane.b32.xlu0 %v7920, 64
    %v8192 = vpop.permute.xlu0 %8191
    %8193 = vrot.lane.b32.xlu0 %v7921, 64
    %v8194 = vpop.permute.xlu0 %8193
    %8195 = vrot.lane.b32.xlu0 %v7922, 64
    %v8196 = vpop.permute.xlu0 %8195
    %8197 = vrot.lane.b32.xlu0 %v7923, 64
    %v8198 = vpop.permute.xlu0 %8197
    %8199 = vrot.lane.b32.xlu0 %v7924, 64
    %v8200 = vpop.permute.xlu0 %8199
    %8201 = vrot.lane.b32.xlu0 %v7925, 64
    %v8202 = vpop.permute.xlu0 %8201
    %8203 = vrot.lane.b32.xlu0 %v7926, 64
    %v8204 = vpop.permute.xlu0 %8203
    %8205 = vrot.lane.b32.xlu0 %v7927, 64
    %v8206 = vpop.permute.xlu0 %8205
    %8207 = vrot.lane.b32.xlu0 %v7928, 64
    %v8208 = vpop.permute.xlu0 %8207
    %8209 = vrot.lane.b32.xlu0 %v7929, 64
    %v8210 = vpop.permute.xlu0 %8209
    %8211 = vrot.lane.b32.xlu0 %v7930, 64
    %v8212 = vpop.permute.xlu0 %8211
    %8213 = vrot.lane.b32.xlu0 %v7931, 64
    %v8214 = vpop.permute.xlu0 %8213
    %8215 = vrot.lane.b32.xlu0 %v7932, 64
    %v8216 = vpop.permute.xlu0 %8215
    %8217 = vrot.lane.b32.xlu0 %v7933, 64
    %v8218 = vpop.permute.xlu0 %8217
    %8219 = vrot.lane.b32.xlu0 %v7934, 64
    %v8220 = vpop.permute.xlu0 %8219
    %8221 = vrot.lane.b32.xlu0 %v7935, 64
    %v8222 = vpop.permute.xlu0 %8221
    %8223 = vrot.lane.b32.xlu0 %v7936, 64
    %v8224 = vpop.permute.xlu0 %8223
    %8225 = vrot.lane.b32.xlu0 %v7937, 64
    %v8226 = vpop.permute.xlu0 %8225
    %8227 = vrot.lane.b32.xlu0 %v7938, 64
    %v8228 = vpop.permute.xlu0 %8227
    %8229 = vrot.lane.b32.xlu0 %v7939, 64
    %v8230 = vpop.permute.xlu0 %8229
    %8231 = vrot.lane.b32.xlu0 %v7940, 64
    %v8232 = vpop.permute.xlu0 %8231
    %8233 = vrot.lane.b32.xlu0 %v7941, 64
    %v8234 = vpop.permute.xlu0 %8233
    %8235 = vrot.lane.b32.xlu0 %v7942, 64
    %v8236 = vpop.permute.xlu0 %8235
    %8237 = vrot.lane.b32.xlu0 %v7943, 64
    %v8238 = vpop.permute.xlu0 %8237
    %8239 = vrot.lane.b32.xlu0 %v7944, 64
    %v8240 = vpop.permute.xlu0 %8239
    %8241 = vrot.lane.b32.xlu0 %v7945, 64
    %v8242 = vpop.permute.xlu0 %8241
    %8243 = vrot.lane.b32.xlu0 %v7946, 64
    %v8244 = vpop.permute.xlu0 %8243
    %8245 = vrot.lane.b32.xlu0 %v7947, 64
    %v8246 = vpop.permute.xlu0 %8245
    %8247 = vrot.lane.b32.xlu0 %v7948, 64
    %v8248 = vpop.permute.xlu0 %8247
    %8249 = vrot.lane.b32.xlu0 %v7949, 64
    %v8250 = vpop.permute.xlu0 %8249
    %8251 = vrot.lane.b32.xlu0 %v7950, 64
    %v8252 = vpop.permute.xlu0 %8251
    %8253 = vrot.lane.b32.xlu0 %v7951, 64
    %v8254 = vpop.permute.xlu0 %8253
    %8255 = vrot.lane.b32.xlu0 %v7952, 64
    %v8256 = vpop.permute.xlu0 %8255
    %8257 = vrot.lane.b32.xlu0 %v7953, 64
    %v8258 = vpop.permute.xlu0 %8257
    %8259 = vrot.lane.b32.xlu0 %v7954, 64
    %v8260 = vpop.permute.xlu0 %8259
    %8261 = vrot.lane.b32.xlu0 %v7955, 64
    %v8262 = vpop.permute.xlu0 %8261
    %8263 = vrot.lane.b32.xlu0 %v7956, 64
    %v8264 = vpop.permute.xlu0 %8263
    %8265 = vrot.lane.b32.xlu0 %v7957, 64
    %v8266 = vpop.permute.xlu0 %8265
    %8267 = vrot.lane.b32.xlu0 %v7958, 64
    %v8268 = vpop.permute.xlu0 %8267
    %8269 = vrot.lane.b32.xlu0 %v7959, 64
    %v8270 = vpop.permute.xlu0 %8269
    %8271 = vrot.lane.b32.xlu0 %v7960, 64
    %v8272 = vpop.permute.xlu0 %8271
    %8273 = vrot.lane.b32.xlu0 %v7961, 64
    %v8274 = vpop.permute.xlu0 %8273
    %8275 = vrot.lane.b32.xlu0 %v7962, 64
    %v8276 = vpop.permute.xlu0 %8275
    %8277 = vrot.lane.b32.xlu0 %v7963, 64
    %v8278 = vpop.permute.xlu0 %8277
    %8279 = vrot.lane.b32.xlu0 %v7964, 64
    %v8280 = vpop.permute.xlu0 %8279
    %8281 = vrot.lane.b32.xlu0 %v7965, 64
    %v8282 = vpop.permute.xlu0 %8281
    %8283 = vrot.lane.b32.xlu0 %v7966, 64
    %v8284 = vpop.permute.xlu0 %8283
    %8285 = vrot.lane.b32.xlu0 %v7967, 64
    %v8286 = vpop.permute.xlu0 %8285
    %8287 = vrot.lane.b32.xlu0 %v7968, 64
    %v8288 = vpop.permute.xlu0 %8287
    %v8353 = vmul.f32 %v4317, %v8162
    %v8354 = vmul.f32 %v4319, %v8164
    %v8355 = vmul.f32 %v4321, %v8166
    %v8356 = vmul.f32 %v4323, %v8168
    %v8357 = vmul.f32 %v4325, %v8170
    %v8358 = vmul.f32 %v4327, %v8172
    %v8359 = vmul.f32 %v4329, %v8174
    %v8360 = vmul.f32 %v4331, %v8176
    %v8361 = vmul.f32 %v4333, %v8178
    %v8362 = vmul.f32 %v4335, %v8180
    %v8363 = vmul.f32 %v4337, %v8182
    %v8364 = vmul.f32 %v4339, %v8184
    %v8365 = vmul.f32 %v4341, %v8186
    %v8366 = vmul.f32 %v4343, %v8188
    %v8367 = vmul.f32 %v4345, %v8190
    %v8368 = vmul.f32 %v4347, %v8192
    %v8369 = vmul.f32 %v4349, %v8194
    %v8370 = vmul.f32 %v4351, %v8196
    %v8371 = vmul.f32 %v4353, %v8198
    %v8372 = vmul.f32 %v4355, %v8200
    %v8373 = vmul.f32 %v4357, %v8202
    %v8374 = vmul.f32 %v4359, %v8204
    %v8375 = vmul.f32 %v4361, %v8206
    %v8376 = vmul.f32 %v4363, %v8208
    %v8377 = vmul.f32 %v4365, %v8210
    %v8378 = vmul.f32 %v4367, %v8212
    %v8379 = vmul.f32 %v4369, %v8214
    %v8380 = vmul.f32 %v4371, %v8216
    %v8381 = vmul.f32 %v4373, %v8218
    %v8382 = vmul.f32 %v4375, %v8220
    %v8383 = vmul.f32 %v4377, %v8222
    %v8384 = vmul.f32 %v4379, %v8224
    %v8385 = vmul.f32 %v4381, %v8226
    %v8386 = vmul.f32 %v4383, %v8228
    %v8387 = vmul.f32 %v4385, %v8230
    %v8388 = vmul.f32 %v4387, %v8232
    %v8389 = vmul.f32 %v4389, %v8234
    %v8390 = vmul.f32 %v4391, %v8236
    %v8391 = vmul.f32 %v4393, %v8238
    %v8392 = vmul.f32 %v4395, %v8240
    %v8393 = vmul.f32 %v4397, %v8242
    %v8394 = vmul.f32 %v4399, %v8244
    %v8395 = vmul.f32 %v4401, %v8246
    %v8396 = vmul.f32 %v4403, %v8248
    %v8397 = vmul.f32 %v4405, %v8250
    %v8398 = vmul.f32 %v4407, %v8252
    %v8399 = vmul.f32 %v4409, %v8254
    %v8400 = vmul.f32 %v4411, %v8256
    %v8401 = vmul.f32 %v4413, %v8258
    %v8402 = vmul.f32 %v4415, %v8260
    %v8403 = vmul.f32 %v4417, %v8262
    %v8404 = vmul.f32 %v4419, %v8264
    %v8405 = vmul.f32 %v4421, %v8266
    %v8406 = vmul.f32 %v4423, %v8268
    %v8407 = vmul.f32 %v4425, %v8270
    %v8408 = vmul.f32 %v4427, %v8272
    %v8409 = vmul.f32 %v4429, %v8274
    %v8410 = vmul.f32 %v4431, %v8276
    %v8411 = vmul.f32 %v4433, %v8278
    %v8412 = vmul.f32 %v4435, %v8280
    %v8413 = vmul.f32 %v4437, %v8282
    %v8414 = vmul.f32 %v4439, %v8284
    %v8415 = vmul.f32 %v4441, %v8286
    %v8416 = vmul.f32 %v4443, %v8288
    %v8417 = vadd.f32 %v8033, %v8353
    %v8418 = vadd.f32 %v8034, %v8354
    %v8419 = vadd.f32 %v8035, %v8355
    %v8420 = vadd.f32 %v8036, %v8356
    %v8421 = vadd.f32 %v8037, %v8357
    %v8422 = vadd.f32 %v8038, %v8358
    %v8423 = vadd.f32 %v8039, %v8359
    %v8424 = vadd.f32 %v8040, %v8360
    %v8425 = vadd.f32 %v8041, %v8361
    %v8426 = vadd.f32 %v8042, %v8362
    %v8427 = vadd.f32 %v8043, %v8363
    %v8428 = vadd.f32 %v8044, %v8364
    %v8429 = vadd.f32 %v8045, %v8365
    %v8430 = vadd.f32 %v8046, %v8366
    %v8431 = vadd.f32 %v8047, %v8367
    %v8432 = vadd.f32 %v8048, %v8368
    %v8433 = vadd.f32 %v8049, %v8369
    %v8434 = vadd.f32 %v8050, %v8370
    %v8435 = vadd.f32 %v8051, %v8371
    %v8436 = vadd.f32 %v8052, %v8372
    %v8437 = vadd.f32 %v8053, %v8373
    %v8438 = vadd.f32 %v8054, %v8374
    %v8439 = vadd.f32 %v8055, %v8375
    %v8440 = vadd.f32 %v8056, %v8376
    %v8441 = vadd.f32 %v8057, %v8377
    %v8442 = vadd.f32 %v8058, %v8378
    %v8443 = vadd.f32 %v8059, %v8379
    %v8444 = vadd.f32 %v8060, %v8380
    %v8445 = vadd.f32 %v8061, %v8381
    %v8446 = vadd.f32 %v8062, %v8382
    %v8447 = vadd.f32 %v8063, %v8383
    %v8448 = vadd.f32 %v8064, %v8384
    %v8449 = vadd.f32 %v8065, %v8385
    %v8450 = vadd.f32 %v8066, %v8386
    %v8451 = vadd.f32 %v8067, %v8387
    %v8452 = vadd.f32 %v8068, %v8388
    %v8453 = vadd.f32 %v8069, %v8389
    %v8454 = vadd.f32 %v8070, %v8390
    %v8455 = vadd.f32 %v8071, %v8391
    %v8456 = vadd.f32 %v8072, %v8392
    %v8457 = vadd.f32 %v8073, %v8393
    %v8458 = vadd.f32 %v8074, %v8394
    %v8459 = vadd.f32 %v8075, %v8395
    %v8460 = vadd.f32 %v8076, %v8396
    %v8461 = vadd.f32 %v8077, %v8397
    %v8462 = vadd.f32 %v8078, %v8398
    %v8463 = vadd.f32 %v8079, %v8399
    %v8464 = vadd.f32 %v8080, %v8400
    %v8465 = vadd.f32 %v8081, %v8401
    %v8466 = vadd.f32 %v8082, %v8402
    %v8467 = vadd.f32 %v8083, %v8403
    %v8468 = vadd.f32 %v8084, %v8404
    %v8469 = vadd.f32 %v8085, %v8405
    %v8470 = vadd.f32 %v8086, %v8406
    %v8471 = vadd.f32 %v8087, %v8407
    %v8472 = vadd.f32 %v8088, %v8408
    %v8473 = vadd.f32 %v8089, %v8409
    %v8474 = vadd.f32 %v8090, %v8410
    %v8475 = vadd.f32 %v8091, %v8411
    %v8476 = vadd.f32 %v8092, %v8412
    %v8477 = vadd.f32 %v8093, %v8413
    %v8478 = vadd.f32 %v8094, %v8414
    %v8479 = vadd.f32 %v8095, %v8415
    %v8480 = vadd.f32 %v8096, %v8416
    %8481 = vst.msk [vmem:[#allocation3] sm:$0xff] %vm2869, %v8417
    %8482 = vst.msk [vmem:[#allocation3 + $0x8] sm:$0xff] %vm2869, %v8418
    %8483 = vst.msk [vmem:[#allocation3 + $0x10] sm:$0xff] %vm2869, %v8419
    %8484 = vst.msk [vmem:[#allocation3 + $0x18] sm:$0xff] %vm2869, %v8420
    %8485 = vst.msk [vmem:[#allocation3 + $0x20] sm:$0xff] %vm2869, %v8421
    %8486 = vst.msk [vmem:[#allocation3 + $0x28] sm:$0xff] %vm2869, %v8422
    %8487 = vst.msk [vmem:[#allocation3 + $0x30] sm:$0xff] %vm2869, %v8423
    %8488 = vst.msk [vmem:[#allocation3 + $0x38] sm:$0xff] %vm2869, %v8424
    %8489 = vst.msk [vmem:[#allocation3 + $0x40] sm:$0xff] %vm2869, %v8425
    %8490 = vst.msk [vmem:[#allocation3 + $0x48] sm:$0xff] %vm2869, %v8426
    %8491 = vst.msk [vmem:[#allocation3 + $0x50] sm:$0xff] %vm2869, %v8427
    %8492 = vst.msk [vmem:[#allocation3 + $0x58] sm:$0xff] %vm2869, %v8428
    %8493 = vst.msk [vmem:[#allocation3 + $0x60] sm:$0xff] %vm2869, %v8429
    %8494 = vst.msk [vmem:[#allocation3 + $0x68] sm:$0xff] %vm2869, %v8430
    %8495 = vst.msk [vmem:[#allocation3 + $0x70] sm:$0xff] %vm2869, %v8431
    %8496 = vst.msk [vmem:[#allocation3 + $0x78] sm:$0xff] %vm2869, %v8432
    %8497 = vst.msk [vmem:[#allocation3 + $0x80] sm:$0xff] %vm2869, %v8433
    %8498 = vst.msk [vmem:[#allocation3 + $0x88] sm:$0xff] %vm2869, %v8434
    %8499 = vst.msk [vmem:[#allocation3 + $0x90] sm:$0xff] %vm2869, %v8435
    %8500 = vst.msk [vmem:[#allocation3 + $0x98] sm:$0xff] %vm2869, %v8436
    %8501 = vst.msk [vmem:[#allocation3 + $0xa0] sm:$0xff] %vm2869, %v8437
    %8502 = vst.msk [vmem:[#allocation3 + $0xa8] sm:$0xff] %vm2869, %v8438
    %8503 = vst.msk [vmem:[#allocation3 + $0xb0] sm:$0xff] %vm2869, %v8439
    %8504 = vst.msk [vmem:[#allocation3 + $0xb8] sm:$0xff] %vm2869, %v8440
    %8505 = vst.msk [vmem:[#allocation3 + $0xc0] sm:$0xff] %vm2869, %v8441
    %8506 = vst.msk [vmem:[#allocation3 + $0xc8] sm:$0xff] %vm2869, %v8442
    %8507 = vst.msk [vmem:[#allocation3 + $0xd0] sm:$0xff] %vm2869, %v8443
    %8508 = vst.msk [vmem:[#allocation3 + $0xd8] sm:$0xff] %vm2869, %v8444
    %8509 = vst.msk [vmem:[#allocation3 + $0xe0] sm:$0xff] %vm2869, %v8445
    %8510 = vst.msk [vmem:[#allocation3 + $0xe8] sm:$0xff] %vm2869, %v8446
    %8511 = vst.msk [vmem:[#allocation3 + $0xf0] sm:$0xff] %vm2869, %v8447
    %8512 = vst.msk [vmem:[#allocation3 + $0xf8] sm:$0xff] %vm2869, %v8448
    %8513 = vst.msk [vmem:[#allocation3 + $0x100] sm:$0xff] %vm2869, %v8449
    %8514 = vst.msk [vmem:[#allocation3 + $0x108] sm:$0xff] %vm2869, %v8450
    %8515 = vst.msk [vmem:[#allocation3 + $0x110] sm:$0xff] %vm2869, %v8451
    %8516 = vst.msk [vmem:[#allocation3 + $0x118] sm:$0xff] %vm2869, %v8452
    %8517 = vst.msk [vmem:[#allocation3 + $0x120] sm:$0xff] %vm2869, %v8453
    %8518 = vst.msk [vmem:[#allocation3 + $0x128] sm:$0xff] %vm2869, %v8454
    %8519 = vst.msk [vmem:[#allocation3 + $0x130] sm:$0xff] %vm2869, %v8455
    %8520 = vst.msk [vmem:[#allocation3 + $0x138] sm:$0xff] %vm2869, %v8456
    %8521 = vst.msk [vmem:[#allocation3 + $0x140] sm:$0xff] %vm2869, %v8457
    %8522 = vst.msk [vmem:[#allocation3 + $0x148] sm:$0xff] %vm2869, %v8458
    %8523 = vst.msk [vmem:[#allocation3 + $0x150] sm:$0xff] %vm2869, %v8459
    %8524 = vst.msk [vmem:[#allocation3 + $0x158] sm:$0xff] %vm2869, %v8460
    %8525 = vst.msk [vmem:[#allocation3 + $0x160] sm:$0xff] %vm2869, %v8461
    %8526 = vst.msk [vmem:[#allocation3 + $0x168] sm:$0xff] %vm2869, %v8462
    %8527 = vst.msk [vmem:[#allocation3 + $0x170] sm:$0xff] %vm2869, %v8463
    %8528 = vst.msk [vmem:[#allocation3 + $0x178] sm:$0xff] %vm2869, %v8464
    %8529 = vst.msk [vmem:[#allocation3 + $0x180] sm:$0xff] %vm2869, %v8465
    %8530 = vst.msk [vmem:[#allocation3 + $0x188] sm:$0xff] %vm2869, %v8466
    %8531 = vst.msk [vmem:[#allocation3 + $0x190] sm:$0xff] %vm2869, %v8467
    %8532 = vst.msk [vmem:[#allocation3 + $0x198] sm:$0xff] %vm2869, %v8468
    %8533 = vst.msk [vmem:[#allocation3 + $0x1a0] sm:$0xff] %vm2869, %v8469
    %8534 = vst.msk [vmem:[#allocation3 + $0x1a8] sm:$0xff] %vm2869, %v8470
    %8535 = vst.msk [vmem:[#allocation3 + $0x1b0] sm:$0xff] %vm2869, %v8471
    %8536 = vst.msk [vmem:[#allocation3 + $0x1b8] sm:$0xff] %vm2869, %v8472
    %8537 = vst.msk [vmem:[#allocation3 + $0x1c0] sm:$0xff] %vm2869, %v8473
    %8538 = vst.msk [vmem:[#allocation3 + $0x1c8] sm:$0xff] %vm2869, %v8474
    %8539 = vst.msk [vmem:[#allocation3 + $0x1d0] sm:$0xff] %vm2869, %v8475
    %8540 = vst.msk [vmem:[#allocation3 + $0x1d8] sm:$0xff] %vm2869, %v8476
    %8541 = vst.msk [vmem:[#allocation3 + $0x1e0] sm:$0xff] %vm2869, %v8477
    %8542 = vst.msk [vmem:[#allocation3 + $0x1e8] sm:$0xff] %vm2869, %v8478
    %8543 = vst.msk [vmem:[#allocation3 + $0x1f0] sm:$0xff] %vm2869, %v8479
    %8544 = vst.msk [vmem:[#allocation3 + $0x1f8] sm:$0xff] %vm2869, %v8480
    // Predicated region
    $region18: #{tpu_custom_call.1} parent=1 // pred_check
      _
    $region19: #{tpu_custom_call.1} parent=1 // pred_check_branch
      %8546 = sbr.rel (0) target = $region21
    $region20: #{tpu_custom_call.1} parent=1 // pred_region
      %s8548 = ssub.s32 8192, 8192
      %8549 = vsyncadd [#allocation4], %s8548
      %s8550 = sshll.u32 [#allocation3], 4
      %s8551 = int_to_ptr.vmem [resolvable:$true] %s8550
      %8556 = dma.vmem_to_hbm [thread:$0]  %s8551, 8192, %s4, [#allocation4], 128, 128, 8
    $region21: #{tpu_custom_call.1} parent=1 // pred_fallthru
      _
    // Predicated region
    $region22: #{tpu_custom_call.1} parent=1 // pred_check
      _
    $region23: #{tpu_custom_call.1} parent=1 // pred_check_branch
      %8558 = sbr.rel (0) target = $region25
    $region24: #{tpu_custom_call.1} parent=1 // pred_region
      %8559 = dma.done [#allocation4], 8192
    $region25: #{tpu_custom_call.1} parent=1 // pred_fallthru
      _
    %8560 = vsyncpa [#allocation4], 1

</llo_original>
